<compile_context>
chip_gen: v7x
topology: tpu7x:2x2x1
jax: 0.10.0
libtpu: 0.0.40
codegen_flags: <defaults>
</compile_context>

<pallas_src>
import functools
import math

import numpy as np
import jax
import jax.numpy as jnp
from jax import lax
from jax.experimental import pallas as pl
from jax.experimental.pallas import tpu as pltpu  # noqa: F401  (TPU backend)


# ----------------------------------------------------------------------------
# Config (shapes implied by the PyTorch module)
# ----------------------------------------------------------------------------
class Config:
    in_channels = 4
    conv_channels = (8, 16)
    enc_kernel_sizes = (3, 3)
    dec_kernel_sizes = (3, 4)
    stride = 2
    compressed_size = (3, 3)
    flattened_size = 16 * 3 * 3       # 144
    latent_dims = 8
    image_size = 16                   # input spatial resolution


# ----------------------------------------------------------------------------
# In-kernel helpers
# ----------------------------------------------------------------------------
_GELU_C = math.sqrt(2.0 / math.pi)


def _new_gelu(x):
    # Exact tanh-approx GELU used by NewGELU in the reference module.
    return 0.5 * x * (1.0 + jnp.tanh(_GELU_C * (x + 0.044715 * x * x * x)))


def _mxu(x, a_ref):
    """bf16-operand matmul on the MXU with f32 accumulation."""
    return jnp.dot(x.astype(jnp.bfloat16), a_ref[...],
                   preferred_element_type=jnp.float32)


def _bn_act(y, st_ref, g_ref, b_ref, act):
    """BatchNorm2d (training batch stats, biased var) + activation.

    y:      (B, C*M) f32 activation in NCHW-flat layout (M = H*W).
    st_ref: (C, C*M) one-hot channel map, st[c, c*M + m] == 1.
    """
    st = st_ref[...]
    bsz = y.shape[0]
    c = st.shape[0]
    inv_n = 1.0 / (bsz * (y.shape[1] // c))

    # Single-pass statistics: sum and sum-of-squares, then per-channel reduce
    # via an NT matmul against the channel map (keeps the XLU cold).
    ysum = jnp.sum(y, axis=0, keepdims=True)         # (1, C*M)
    ysq = jnp.sum(y * y, axis=0, keepdims=True)      # (1, C*M)
    nt = (((1,), (1,)), ((), ()))                    # contract the C*M axis
    mean = lax.dot_general(ysum, st, nt, preferred_element_type=jnp.float32) * inv_n
    msq = lax.dot_general(ysq, st, nt, preferred_element_type=jnp.float32) * inv_n
    var = msq - mean * mean                          # biased var == torch BN norm

    scale_c = g_ref[...] * lax.rsqrt(var + 1e-5)     # (1, C)
    shift_c = b_ref[...] - mean * scale_c            # (1, C)
    # Broadcast per-channel scale/shift back to the flat layout (NN matmul).
    scale = jnp.dot(scale_c, st, preferred_element_type=jnp.float32)  # (1, C*M)
    shift = jnp.dot(shift_c, st, preferred_element_type=jnp.float32)
    yh = y * scale + shift

    if act == "gelu":
        return _new_gelu(yh)
    # sigmoid: exp on the EUP, divide as an approx reciprocal (also EUP).
    return pl.reciprocal(1.0 + jnp.exp(-yh), approx=True)


# ----------------------------------------------------------------------------
# The single fused kernel
# ----------------------------------------------------------------------------
def _vae_fused_kernel(
        x_ref, eps_ref,
        a1_ref, st1_ref, g1_ref, b1_ref,
        a2_ref, st2_ref, g2_ref, b2_ref,
        wmulv_ref, bmulv_ref, wdec_ref, bdec_ref,
        ad1_ref, std1_ref, gd1_ref, bd1_ref,
        ad2_ref, std2_ref, gd2_ref, bd2_ref,
        out_ref, kl_ref):
    bsz = x_ref.shape[0]

    # ---------------- encoder ----------------
    h = _mxu(x_ref[...], a1_ref)                        # conv1 -> (B, 8*7*7)
    h = _bn_act(h, st1_ref, g1_ref, b1_ref, "gelu")
    h = _mxu(h, a2_ref)                                 # conv2 -> (B, 16*3*3)
    feat = _bn_act(h, st2_ref, g2_ref, b2_ref, "gelu")  # == torch flatten(dim=1)

    # -------- latent head: merged mu|logvar, KL, reparameterize --------
    mulv = jnp.dot(feat, wmulv_ref[...],
                   preferred_element_type=jnp.float32) + bmulv_ref[...]
    ld = mulv.shape[1] // 2
    mu = mulv[:, :ld]
    lv = mulv[:, ld:]
    kl = (-0.5 / bsz) * jnp.sum(1.0 + lv - mu * mu - jnp.exp(lv))
    kl_ref[...] = kl.reshape(1, 1)
    z = mu + jnp.exp(0.5 * lv) * eps_ref[...]

    # ---------------- decoder ----------------
    d = jnp.dot(z, wdec_ref[...],
                preferred_element_type=jnp.float32) + bdec_ref[...]   # (B, 16*3*3)
    d = _mxu(d, ad1_ref)                                # deconv1 -> (B, 8*7*7)
    d = _bn_act(d, std1_ref, gd1_ref, bd1_ref, "gelu")
    d = _mxu(d, ad2_ref)                                # deconv2 -> (B, 4*16*16)
    out_ref[...] = _bn_act(d, std2_ref, gd2_ref, bd2_ref, "sigmoid")


# ----------------------------------------------------------------------------
# Init-time weight preprocessing: unrolled conv / deconv operators (numpy)
# ----------------------------------------------------------------------------
def conv_to_matrix(w, size, stride):
    """nn.Conv2d(bias=False) as a matrix on NCHW-flat rows: y_flat = x_flat @ A."""
    cout, cin, kh_, kw_ = w.shape
    out = (size - kh_) // stride + 1
    a = np.zeros((cin, size, size, cout, out, out), np.float32)
    for kh in range(kh_):
        for kw in range(kw_):
            tap = w[:, :, kh, kw].T                      # (Cin, Cout)
            for oh in range(out):
                for ow in range(out):
                    a[:, oh * stride + kh, ow * stride + kw, :, oh, ow] += tap
    return a.reshape(cin * size * size, cout * out * out), out


def deconv_to_matrix(w, size, stride):
    """nn.ConvTranspose2d(bias=False) as a matrix on NCHW-flat rows (torch (Cin,Cout,KH,KW))."""
    cin, cout, kh_, kw_ = w.shape
    out = (size - 1) * stride + kh_
    a = np.zeros((cin, size, size, cout, out, out), np.float32)
    for kh in range(kh_):
        for kw in range(kw_):
            tap = w[:, :, kh, kw]                        # (Cin, Cout)
            for ih in range(size):
                for iw in range(size):
                    a[:, ih, iw, :, ih * stride + kh, iw * stride + kw] += tap
    return a.reshape(cin * size * size, cout * out * out), out


def _bn_block(a_mat, c, m):
    """Per conv/deconv block: bf16 unrolled operator + channel map + BN affine."""
    st = np.kron(np.eye(c, dtype=np.float32), np.ones((1, m), np.float32))  # (C, C*M)
    return dict(a=jnp.asarray(a_mat, jnp.bfloat16),
                st=jnp.asarray(st),
                gamma=jnp.ones((1, c), jnp.float32),
                beta=jnp.zeros((1, c), jnp.float32))


def init_params(cfg, key):
    keys = jax.random.split(key, 8)
    p = {}

    # encoder conv blocks -> unrolled conv operators (NCHW-flat in / out)
    enc_ch = [cfg.in_channels] + list(cfg.conv_channels)
    size = cfg.image_size
    enc = []
    for i in range(len(enc_ch) - 1):
        k = cfg.enc_kernel_sizes[i]
        w = 0.1 * jax.random.normal(keys[i], (enc_ch[i + 1], enc_ch[i], k, k), jnp.float32)
        a_mat, size = conv_to_matrix(np.asarray(w), size, cfg.stride)
        enc.append(_bn_block(a_mat, enc_ch[i + 1], size * size))
    assert (size, size) == tuple(cfg.compressed_size)
    assert enc_ch[-1] * size * size == cfg.flattened_size
    p["enc"] = enc

    # merged mu|logvar head + decoder mlp (consume/produce NCHW-flat directly)
    fdim, ldim = cfg.flattened_size, cfg.latent_dims
    wmu = 0.05 * jax.random.normal(keys[2], (fdim, ldim), jnp.float32)
    wlv = 0.05 * jax.random.normal(keys[3], (fdim, ldim), jnp.float32)
    p["wmulv"] = jnp.concatenate([wmu, wlv], axis=1)                 # (F, 2L)
    p["bmulv"] = jnp.zeros((1, 2 * ldim), jnp.float32)
    p["wdec"] = 0.05 * jax.random.normal(keys[4], (ldim, fdim), jnp.float32)
    p["bdec"] = jnp.zeros((1, fdim), jnp.float32)

    # decoder deconv blocks -> unrolled transposed-conv operators
    dec_ch = list(cfg.conv_channels[::-1]) + [cfg.in_channels]
    size = cfg.compressed_size[0]
    dec = []
    for i in range(len(dec_ch) - 1):
        k = cfg.dec_kernel_sizes[i]
        w = 0.1 * jax.random.normal(keys[5 + i], (dec_ch[i], dec_ch[i + 1], k, k), jnp.float32)
        a_mat, size = deconv_to_matrix(np.asarray(w), size, cfg.stride)
        dec.append(_bn_block(a_mat, dec_ch[i + 1], size * size))
    assert size == cfg.image_size
    p["dec"] = dec
    return p


# ----------------------------------------------------------------------------
# Forward wrapper: one pallas_call, free reshapes only
# ----------------------------------------------------------------------------
def vae_forward(cfg, params, x_nchw, eps):
    b = x_nchw.shape[0]
    out_dim = cfg.in_channels * cfg.image_size * cfg.image_size     # 1024 (lane dense)
    x_flat = x_nchw.reshape(b, out_dim).astype(jnp.float32)         # NCHW-flat, free

    args = [x_flat, eps.astype(jnp.float32)]
    for blk in params["enc"]:
        args += [blk["a"], blk["st"], blk["gamma"], blk["beta"]]
    args += [params["wmulv"], params["bmulv"], params["wdec"], params["bdec"]]
    for blk in params["dec"]:
        args += [blk["a"], blk["st"], blk["gamma"], blk["beta"]]

    out_flat, kl = pl.pallas_call(
        _vae_fused_kernel,
        out_shape=(jax.ShapeDtypeStruct((b, out_dim), jnp.float32),  # lane-dense recon
                   jax.ShapeDtypeStruct((1, 1), jnp.float32)),       # KL scalar
    )(*args)

    recon = out_flat.reshape(b, cfg.in_channels, cfg.image_size, cfg.image_size)
    return recon, kl[0, 0]


if __name__ == "__main__":
    cfg = Config()
    key = jax.random.PRNGKey(0)
    k_param, k_x, k_eps = jax.random.split(key, 3)

    params = init_params(cfg, k_param)
    x = jax.random.normal(k_x, (2, cfg.in_channels, cfg.image_size, cfg.image_size),
                          jnp.float32)                               # NCHW input
    eps = jax.random.normal(k_eps, (2, cfg.latent_dims), jnp.float32)  # reparam noise

    fwd = jax.jit(functools.partial(vae_forward, cfg))
    recon, kl = fwd(params, x, eps)
    jax.block_until_ready(recon)
    jax.block_until_ready(kl)

    assert recon.shape == (2, cfg.in_channels, 16, 16), recon.shape
    assert recon.dtype == jnp.float32
    assert bool(jnp.all(jnp.isfinite(recon)))
    assert bool(jnp.isfinite(kl))
    print("KERNEL_OK")
</pallas_src>

<mosaic_0001>
module attributes {stable_mosaic.version = 11 : i64} {
  func.func @_vae_fused_kernel(%arg0: memref<2x1024xf32, #tpu.memory_space<vmem>>, %arg1: memref<2x8xf32, #tpu.memory_space<vmem>>, %arg2: memref<1024x392xbf16, #tpu.memory_space<vmem>>, %arg3: memref<8x392xf32, #tpu.memory_space<vmem>>, %arg4: memref<1x8xf32, #tpu.memory_space<vmem>>, %arg5: memref<1x8xf32, #tpu.memory_space<vmem>>, %arg6: memref<392x144xbf16, #tpu.memory_space<vmem>>, %arg7: memref<16x144xf32, #tpu.memory_space<vmem>>, %arg8: memref<1x16xf32, #tpu.memory_space<vmem>>, %arg9: memref<1x16xf32, #tpu.memory_space<vmem>>, %arg10: memref<144x16xf32, #tpu.memory_space<vmem>>, %arg11: memref<1x16xf32, #tpu.memory_space<vmem>>, %arg12: memref<8x144xf32, #tpu.memory_space<vmem>>, %arg13: memref<1x144xf32, #tpu.memory_space<vmem>>, %arg14: memref<144x392xbf16, #tpu.memory_space<vmem>>, %arg15: memref<8x392xf32, #tpu.memory_space<vmem>>, %arg16: memref<1x8xf32, #tpu.memory_space<vmem>>, %arg17: memref<1x8xf32, #tpu.memory_space<vmem>>, %arg18: memref<392x1024xbf16, #tpu.memory_space<vmem>>, %arg19: memref<4x1024xf32, #tpu.memory_space<vmem>>, %arg20: memref<1x4xf32, #tpu.memory_space<vmem>>, %arg21: memref<1x4xf32, #tpu.memory_space<vmem>>, %arg22: memref<2x1024xf32, #tpu.memory_space<vmem>>, %arg23: memref<1x1xf32, #tpu.memory_space<vmem>>) attributes {dimension_semantics = [], scalar_prefetch = 0 : i64, scratch_operands = 0 : i64, tpu.core_type = #tpu.core_type<tc>} {
    %c0 = arith.constant 0 : index
    %c0_0 = arith.constant 0 : index
    %0 = vector.load %arg0[%c0, %c0_0] : memref<2x1024xf32, #tpu.memory_space<vmem>>, vector<2x1024xf32>
    %1 = arith.truncf %0 : vector<2x1024xf32> to vector<2x1024xbf16>
    %c0_1 = arith.constant 0 : index
    %c0_2 = arith.constant 0 : index
    %2 = vector.load %arg2[%c0_1, %c0_2] : memref<1024x392xbf16, #tpu.memory_space<vmem>>, vector<1024x392xbf16>
    %cst = arith.constant dense<0.000000e+00> : vector<2x392xf32>
    %3 = tpu.matmul %1, %2, %cst {dimension_numbers = #tpu.dot_dimension_numbers<[1], [0], [0], [1], [0, 0, 1, 1], [], []>} : vector<2x1024xbf16>, vector<1024x392xbf16>, vector<2x392xf32> -> vector<2x392xf32>
    %c0_3 = arith.constant 0 : index
    %c0_4 = arith.constant 0 : index
    %4 = vector.load %arg3[%c0_3, %c0_4] : memref<8x392xf32, #tpu.memory_space<vmem>>, vector<8x392xf32>
    %cst_5 = arith.constant dense<0.000000e+00> : vector<392xf32>
    %5 = vector.multi_reduction <add>, %3, %cst_5 [0] : vector<2x392xf32> to vector<392xf32>
    %6 = vector.shape_cast %5 : vector<392xf32> to vector<1x392xf32>
    %7 = arith.mulf %3, %3 : vector<2x392xf32>
    %cst_6 = arith.constant dense<0.000000e+00> : vector<392xf32>
    %8 = vector.multi_reduction <add>, %7, %cst_6 [0] : vector<2x392xf32> to vector<392xf32>
    %9 = vector.shape_cast %8 : vector<392xf32> to vector<1x392xf32>
    %cst_7 = arith.constant dense<0.000000e+00> : vector<1x8xf32>
    %10 = tpu.matmul %6, %4, %cst_7 {dimension_numbers = #tpu.dot_dimension_numbers<[1], [1], [0], [0], [0, 0, 1, 0], [], []>} : vector<1x392xf32>, vector<8x392xf32>, vector<1x8xf32> -> vector<1x8xf32>
    %cst_8 = arith.constant 0.0102040814 : f32
    %11 = vector.broadcast %cst_8 : f32 to vector<1x8xf32>
    %12 = arith.mulf %10, %11 : vector<1x8xf32>
    %cst_9 = arith.constant dense<0.000000e+00> : vector<1x8xf32>
    %13 = tpu.matmul %9, %4, %cst_9 {dimension_numbers = #tpu.dot_dimension_numbers<[1], [1], [0], [0], [0, 0, 1, 0], [], []>} : vector<1x392xf32>, vector<8x392xf32>, vector<1x8xf32> -> vector<1x8xf32>
    %cst_10 = arith.constant 0.0102040814 : f32
    %14 = vector.broadcast %cst_10 : f32 to vector<1x8xf32>
    %15 = arith.mulf %13, %14 : vector<1x8xf32>
    %16 = arith.mulf %12, %12 : vector<1x8xf32>
    %17 = arith.subf %15, %16 : vector<1x8xf32>
    %c0_11 = arith.constant 0 : index
    %c0_12 = arith.constant 0 : index
    %18 = vector.load %arg4[%c0_11, %c0_12] : memref<1x8xf32, #tpu.memory_space<vmem>>, vector<1x8xf32>
    %cst_13 = arith.constant 9.99999974E-6 : f32
    %19 = vector.broadcast %cst_13 : f32 to vector<1x8xf32>
    %20 = arith.addf %17, %19 : vector<1x8xf32>
    %21 = math.rsqrt %20 : vector<1x8xf32>
    %22 = arith.mulf %18, %21 : vector<1x8xf32>
    %c0_14 = arith.constant 0 : index
    %c0_15 = arith.constant 0 : index
    %23 = vector.load %arg5[%c0_14, %c0_15] : memref<1x8xf32, #tpu.memory_space<vmem>>, vector<1x8xf32>
    %24 = arith.mulf %12, %22 : vector<1x8xf32>
    %25 = arith.subf %23, %24 : vector<1x8xf32>
    %cst_16 = arith.constant dense<0.000000e+00> : vector<1x392xf32>
    %26 = tpu.matmul %22, %4, %cst_16 {dimension_numbers = #tpu.dot_dimension_numbers<[1], [0], [0], [1], [0, 0, 1, 1], [], []>} : vector<1x8xf32>, vector<8x392xf32>, vector<1x392xf32> -> vector<1x392xf32>
    %cst_17 = arith.constant dense<0.000000e+00> : vector<1x392xf32>
    %27 = tpu.matmul %25, %4, %cst_17 {dimension_numbers = #tpu.dot_dimension_numbers<[1], [0], [0], [1], [0, 0, 1, 1], [], []>} : vector<1x8xf32>, vector<8x392xf32>, vector<1x392xf32> -> vector<1x392xf32>
    %28 = vector.broadcast %26 : vector<1x392xf32> to vector<2x392xf32>
    %29 = arith.mulf %3, %28 : vector<2x392xf32>
    %30 = vector.broadcast %27 : vector<1x392xf32> to vector<2x392xf32>
    %31 = arith.addf %29, %30 : vector<2x392xf32>
    %cst_18 = arith.constant 5.000000e-01 : f32
    %32 = vector.broadcast %cst_18 : f32 to vector<2x392xf32>
    %33 = arith.mulf %32, %31 : vector<2x392xf32>
    %cst_19 = arith.constant 4.471500e-02 : f32
    %34 = vector.broadcast %cst_19 : f32 to vector<2x392xf32>
    %35 = arith.mulf %34, %31 : vector<2x392xf32>
    %36 = arith.mulf %35, %31 : vector<2x392xf32>
    %37 = arith.mulf %36, %31 : vector<2x392xf32>
    %38 = arith.addf %31, %37 : vector<2x392xf32>
    %cst_20 = arith.constant 0.797884583 : f32
    %39 = vector.broadcast %cst_20 : f32 to vector<2x392xf32>
    %40 = arith.mulf %39, %38 : vector<2x392xf32>
    %41 = math.tanh %40 : vector<2x392xf32>
    %cst_21 = arith.constant 1.000000e+00 : f32
    %42 = vector.broadcast %cst_21 : f32 to vector<2x392xf32>
    %43 = arith.addf %42, %41 : vector<2x392xf32>
    %44 = arith.mulf %33, %43 : vector<2x392xf32>
    %45 = arith.truncf %44 : vector<2x392xf32> to vector<2x392xbf16>
    %c0_22 = arith.constant 0 : index
    %c0_23 = arith.constant 0 : index
    %46 = vector.load %arg6[%c0_22, %c0_23] : memref<392x144xbf16, #tpu.memory_space<vmem>>, vector<392x144xbf16>
    %cst_24 = arith.constant dense<0.000000e+00> : vector<2x144xf32>
    %47 = tpu.matmul %45, %46, %cst_24 {dimension_numbers = #tpu.dot_dimension_numbers<[1], [0], [0], [1], [0, 0, 1, 1], [], []>} : vector<2x392xbf16>, vector<392x144xbf16>, vector<2x144xf32> -> vector<2x144xf32>
    %c0_25 = arith.constant 0 : index
    %c0_26 = arith.constant 0 : index
    %48 = vector.load %arg7[%c0_25, %c0_26] : memref<16x144xf32, #tpu.memory_space<vmem>>, vector<16x144xf32>
    %cst_27 = arith.constant dense<0.000000e+00> : vector<144xf32>
    %49 = vector.multi_reduction <add>, %47, %cst_27 [0] : vector<2x144xf32> to vector<144xf32>
    %50 = vector.shape_cast %49 : vector<144xf32> to vector<1x144xf32>
    %51 = arith.mulf %47, %47 : vector<2x144xf32>
    %cst_28 = arith.constant dense<0.000000e+00> : vector<144xf32>
    %52 = vector.multi_reduction <add>, %51, %cst_28 [0] : vector<2x144xf32> to vector<144xf32>
    %53 = vector.shape_cast %52 : vector<144xf32> to vector<1x144xf32>
    %cst_29 = arith.constant dense<0.000000e+00> : vector<1x16xf32>
    %54 = tpu.matmul %50, %48, %cst_29 {dimension_numbers = #tpu.dot_dimension_numbers<[1], [1], [0], [0], [0, 0, 1, 0], [], []>} : vector<1x144xf32>, vector<16x144xf32>, vector<1x16xf32> -> vector<1x16xf32>
    %cst_30 = arith.constant 0.055555556 : f32
    %55 = vector.broadcast %cst_30 : f32 to vector<1x16xf32>
    %56 = arith.mulf %54, %55 : vector<1x16xf32>
    %cst_31 = arith.constant dense<0.000000e+00> : vector<1x16xf32>
    %57 = tpu.matmul %53, %48, %cst_31 {dimension_numbers = #tpu.dot_dimension_numbers<[1], [1], [0], [0], [0, 0, 1, 0], [], []>} : vector<1x144xf32>, vector<16x144xf32>, vector<1x16xf32> -> vector<1x16xf32>
    %cst_32 = arith.constant 0.055555556 : f32
    %58 = vector.broadcast %cst_32 : f32 to vector<1x16xf32>
    %59 = arith.mulf %57, %58 : vector<1x16xf32>
    %60 = arith.mulf %56, %56 : vector<1x16xf32>
    %61 = arith.subf %59, %60 : vector<1x16xf32>
    %c0_33 = arith.constant 0 : index
    %c0_34 = arith.constant 0 : index
    %62 = vector.load %arg8[%c0_33, %c0_34] : memref<1x16xf32, #tpu.memory_space<vmem>>, vector<1x16xf32>
    %cst_35 = arith.constant 9.99999974E-6 : f32
    %63 = vector.broadcast %cst_35 : f32 to vector<1x16xf32>
    %64 = arith.addf %61, %63 : vector<1x16xf32>
    %65 = math.rsqrt %64 : vector<1x16xf32>
    %66 = arith.mulf %62, %65 : vector<1x16xf32>
    %c0_36 = arith.constant 0 : index
    %c0_37 = arith.constant 0 : index
    %67 = vector.load %arg9[%c0_36, %c0_37] : memref<1x16xf32, #tpu.memory_space<vmem>>, vector<1x16xf32>
    %68 = arith.mulf %56, %66 : vector<1x16xf32>
    %69 = arith.subf %67, %68 : vector<1x16xf32>
    %cst_38 = arith.constant dense<0.000000e+00> : vector<1x144xf32>
    %70 = tpu.matmul %66, %48, %cst_38 {dimension_numbers = #tpu.dot_dimension_numbers<[1], [0], [0], [1], [0, 0, 1, 1], [], []>} : vector<1x16xf32>, vector<16x144xf32>, vector<1x144xf32> -> vector<1x144xf32>
    %cst_39 = arith.constant dense<0.000000e+00> : vector<1x144xf32>
    %71 = tpu.matmul %69, %48, %cst_39 {dimension_numbers = #tpu.dot_dimension_numbers<[1], [0], [0], [1], [0, 0, 1, 1], [], []>} : vector<1x16xf32>, vector<16x144xf32>, vector<1x144xf32> -> vector<1x144xf32>
    %72 = vector.broadcast %70 : vector<1x144xf32> to vector<2x144xf32>
    %73 = arith.mulf %47, %72 : vector<2x144xf32>
    %74 = vector.broadcast %71 : vector<1x144xf32> to vector<2x144xf32>
    %75 = arith.addf %73, %74 : vector<2x144xf32>
    %cst_40 = arith.constant 5.000000e-01 : f32
    %76 = vector.broadcast %cst_40 : f32 to vector<2x144xf32>
    %77 = arith.mulf %76, %75 : vector<2x144xf32>
    %cst_41 = arith.constant 4.471500e-02 : f32
    %78 = vector.broadcast %cst_41 : f32 to vector<2x144xf32>
    %79 = arith.mulf %78, %75 : vector<2x144xf32>
    %80 = arith.mulf %79, %75 : vector<2x144xf32>
    %81 = arith.mulf %80, %75 : vector<2x144xf32>
    %82 = arith.addf %75, %81 : vector<2x144xf32>
    %cst_42 = arith.constant 0.797884583 : f32
    %83 = vector.broadcast %cst_42 : f32 to vector<2x144xf32>
    %84 = arith.mulf %83, %82 : vector<2x144xf32>
    %85 = math.tanh %84 : vector<2x144xf32>
    %cst_43 = arith.constant 1.000000e+00 : f32
    %86 = vector.broadcast %cst_43 : f32 to vector<2x144xf32>
    %87 = arith.addf %86, %85 : vector<2x144xf32>
    %88 = arith.mulf %77, %87 : vector<2x144xf32>
    %c0_44 = arith.constant 0 : index
    %c0_45 = arith.constant 0 : index
    %89 = vector.load %arg10[%c0_44, %c0_45] : memref<144x16xf32, #tpu.memory_space<vmem>>, vector<144x16xf32>
    %cst_46 = arith.constant dense<0.000000e+00> : vector<2x16xf32>
    %90 = tpu.matmul %88, %89, %cst_46 {dimension_numbers = #tpu.dot_dimension_numbers<[1], [0], [0], [1], [0, 0, 1, 1], [], []>} : vector<2x144xf32>, vector<144x16xf32>, vector<2x16xf32> -> vector<2x16xf32>
    %c0_47 = arith.constant 0 : index
    %c0_48 = arith.constant 0 : index
    %91 = vector.load %arg11[%c0_47, %c0_48] : memref<1x16xf32, #tpu.memory_space<vmem>>, vector<1x16xf32>
    %92 = vector.broadcast %91 : vector<1x16xf32> to vector<2x16xf32>
    %93 = arith.addf %90, %92 : vector<2x16xf32>
    %94 = vector.extract_strided_slice %93 {offsets = [0, 0], sizes = [2, 8], strides = [1, 1]} : vector<2x16xf32> to vector<2x8xf32>
    %95 = vector.extract_strided_slice %93 {offsets = [0, 8], sizes = [2, 8], strides = [1, 1]} : vector<2x16xf32> to vector<2x8xf32>
    %cst_49 = arith.constant 1.000000e+00 : f32
    %96 = vector.broadcast %cst_49 : f32 to vector<2x8xf32>
    %97 = arith.addf %96, %95 : vector<2x8xf32>
    %98 = arith.mulf %94, %94 : vector<2x8xf32>
    %99 = arith.subf %97, %98 : vector<2x8xf32>
    %100 = math.exp %95 : vector<2x8xf32>
    %101 = arith.subf %99, %100 : vector<2x8xf32>
    %102 = vector.shape_cast %101 : vector<2x8xf32> to vector<1x2x8xf32>
    %cst_50 = arith.constant dense<0.000000e+00> : vector<1xf32>
    %103 = vector.multi_reduction <add>, %102, %cst_50 [1, 2] : vector<1x2x8xf32> to vector<1xf32>
    %104 = vector.shape_cast %103 : vector<1xf32> to vector<1x1x1xf32>
    %105 = vector.extract %104[0, 0, 0] : f32 from vector<1x1x1xf32>
    %cst_51 = arith.constant -2.500000e-01 : f32
    %106 = arith.mulf %cst_51, %105 : f32
    %107 = vector.broadcast %106 : f32 to vector<1x1xf32>
    %c0_52 = arith.constant 0 : index
    %c0_53 = arith.constant 0 : index
    %108 = vector.load %arg23[%c0_52, %c0_53] : memref<1x1xf32, #tpu.memory_space<vmem>>, vector<1x1xf32>
    tpu.vector_store %arg23[%c0_52, %c0_53], %107 {strides = array<i32>} : memref<1x1xf32, #tpu.memory_space<vmem>>, vector<1x1xf32>,
    %cst_54 = arith.constant 5.000000e-01 : f32
    %109 = vector.broadcast %cst_54 : f32 to vector<2x8xf32>
    %110 = arith.mulf %109, %95 : vector<2x8xf32>
    %111 = math.exp %110 : vector<2x8xf32>
    %c0_55 = arith.constant 0 : index
    %c0_56 = arith.constant 0 : index
    %112 = vector.load %arg1[%c0_55, %c0_56] : memref<2x8xf32, #tpu.memory_space<vmem>>, vector<2x8xf32>
    %113 = arith.mulf %111, %112 : vector<2x8xf32>
    %114 = arith.addf %94, %113 : vector<2x8xf32>
    %c0_57 = arith.constant 0 : index
    %c0_58 = arith.constant 0 : index
    %115 = vector.load %arg12[%c0_57, %c0_58] : memref<8x144xf32, #tpu.memory_space<vmem>>, vector<8x144xf32>
    %cst_59 = arith.constant dense<0.000000e+00> : vector<2x144xf32>
    %116 = tpu.matmul %114, %115, %cst_59 {dimension_numbers = #tpu.dot_dimension_numbers<[1], [0], [0], [1], [0, 0, 1, 1], [], []>} : vector<2x8xf32>, vector<8x144xf32>, vector<2x144xf32> -> vector<2x144xf32>
    %c0_60 = arith.constant 0 : index
    %c0_61 = arith.constant 0 : index
    %117 = vector.load %arg13[%c0_60, %c0_61] : memref<1x144xf32, #tpu.memory_space<vmem>>, vector<1x144xf32>
    %118 = vector.broadcast %117 : vector<1x144xf32> to vector<2x144xf32>
    %119 = arith.addf %116, %118 : vector<2x144xf32>
    %120 = arith.truncf %119 : vector<2x144xf32> to vector<2x144xbf16>
    %c0_62 = arith.constant 0 : index
    %c0_63 = arith.constant 0 : index
    %121 = vector.load %arg14[%c0_62, %c0_63] : memref<144x392xbf16, #tpu.memory_space<vmem>>, vector<144x392xbf16>
    %cst_64 = arith.constant dense<0.000000e+00> : vector<2x392xf32>
    %122 = tpu.matmul %120, %121, %cst_64 {dimension_numbers = #tpu.dot_dimension_numbers<[1], [0], [0], [1], [0, 0, 1, 1], [], []>} : vector<2x144xbf16>, vector<144x392xbf16>, vector<2x392xf32> -> vector<2x392xf32>
    %c0_65 = arith.constant 0 : index
    %c0_66 = arith.constant 0 : index
    %123 = vector.load %arg15[%c0_65, %c0_66] : memref<8x392xf32, #tpu.memory_space<vmem>>, vector<8x392xf32>
    %cst_67 = arith.constant dense<0.000000e+00> : vector<392xf32>
    %124 = vector.multi_reduction <add>, %122, %cst_67 [0] : vector<2x392xf32> to vector<392xf32>
    %125 = vector.shape_cast %124 : vector<392xf32> to vector<1x392xf32>
    %126 = arith.mulf %122, %122 : vector<2x392xf32>
    %cst_68 = arith.constant dense<0.000000e+00> : vector<392xf32>
    %127 = vector.multi_reduction <add>, %126, %cst_68 [0] : vector<2x392xf32> to vector<392xf32>
    %128 = vector.shape_cast %127 : vector<392xf32> to vector<1x392xf32>
    %cst_69 = arith.constant dense<0.000000e+00> : vector<1x8xf32>
    %129 = tpu.matmul %125, %123, %cst_69 {dimension_numbers = #tpu.dot_dimension_numbers<[1], [1], [0], [0], [0, 0, 1, 0], [], []>} : vector<1x392xf32>, vector<8x392xf32>, vector<1x8xf32> -> vector<1x8xf32>
    %cst_70 = arith.constant 0.0102040814 : f32
    %130 = vector.broadcast %cst_70 : f32 to vector<1x8xf32>
    %131 = arith.mulf %129, %130 : vector<1x8xf32>
    %cst_71 = arith.constant dense<0.000000e+00> : vector<1x8xf32>
    %132 = tpu.matmul %128, %123, %cst_71 {dimension_numbers = #tpu.dot_dimension_numbers<[1], [1], [0], [0], [0, 0, 1, 0], [], []>} : vector<1x392xf32>, vector<8x392xf32>, vector<1x8xf32> -> vector<1x8xf32>
    %cst_72 = arith.constant 0.0102040814 : f32
    %133 = vector.broadcast %cst_72 : f32 to vector<1x8xf32>
    %134 = arith.mulf %132, %133 : vector<1x8xf32>
    %135 = arith.mulf %131, %131 : vector<1x8xf32>
    %136 = arith.subf %134, %135 : vector<1x8xf32>
    %c0_73 = arith.constant 0 : index
    %c0_74 = arith.constant 0 : index
    %137 = vector.load %arg16[%c0_73, %c0_74] : memref<1x8xf32, #tpu.memory_space<vmem>>, vector<1x8xf32>
    %cst_75 = arith.constant 9.99999974E-6 : f32
    %138 = vector.broadcast %cst_75 : f32 to vector<1x8xf32>
    %139 = arith.addf %136, %138 : vector<1x8xf32>
    %140 = math.rsqrt %139 : vector<1x8xf32>
    %141 = arith.mulf %137, %140 : vector<1x8xf32>
    %c0_76 = arith.constant 0 : index
    %c0_77 = arith.constant 0 : index
    %142 = vector.load %arg17[%c0_76, %c0_77] : memref<1x8xf32, #tpu.memory_space<vmem>>, vector<1x8xf32>
    %143 = arith.mulf %131, %141 : vector<1x8xf32>
    %144 = arith.subf %142, %143 : vector<1x8xf32>
    %cst_78 = arith.constant dense<0.000000e+00> : vector<1x392xf32>
    %145 = tpu.matmul %141, %123, %cst_78 {dimension_numbers = #tpu.dot_dimension_numbers<[1], [0], [0], [1], [0, 0, 1, 1], [], []>} : vector<1x8xf32>, vector<8x392xf32>, vector<1x392xf32> -> vector<1x392xf32>
    %cst_79 = arith.constant dense<0.000000e+00> : vector<1x392xf32>
    %146 = tpu.matmul %144, %123, %cst_79 {dimension_numbers = #tpu.dot_dimension_numbers<[1], [0], [0], [1], [0, 0, 1, 1], [], []>} : vector<1x8xf32>, vector<8x392xf32>, vector<1x392xf32> -> vector<1x392xf32>
    %147 = vector.broadcast %145 : vector<1x392xf32> to vector<2x392xf32>
    %148 = arith.mulf %122, %147 : vector<2x392xf32>
    %149 = vector.broadcast %146 : vector<1x392xf32> to vector<2x392xf32>
    %150 = arith.addf %148, %149 : vector<2x392xf32>
    %cst_80 = arith.constant 5.000000e-01 : f32
    %151 = vector.broadcast %cst_80 : f32 to vector<2x392xf32>
    %152 = arith.mulf %151, %150 : vector<2x392xf32>
    %cst_81 = arith.constant 4.471500e-02 : f32
    %153 = vector.broadcast %cst_81 : f32 to vector<2x392xf32>
    %154 = arith.mulf %153, %150 : vector<2x392xf32>
    %155 = arith.mulf %154, %150 : vector<2x392xf32>
    %156 = arith.mulf %155, %150 : vector<2x392xf32>
    %157 = arith.addf %150, %156 : vector<2x392xf32>
    %cst_82 = arith.constant 0.797884583 : f32
    %158 = vector.broadcast %cst_82 : f32 to vector<2x392xf32>
    %159 = arith.mulf %158, %157 : vector<2x392xf32>
    %160 = math.tanh %159 : vector<2x392xf32>
    %cst_83 = arith.constant 1.000000e+00 : f32
    %161 = vector.broadcast %cst_83 : f32 to vector<2x392xf32>
    %162 = arith.addf %161, %160 : vector<2x392xf32>
    %163 = arith.mulf %152, %162 : vector<2x392xf32>
    %164 = arith.truncf %163 : vector<2x392xf32> to vector<2x392xbf16>
    %c0_84 = arith.constant 0 : index
    %c0_85 = arith.constant 0 : index
    %165 = vector.load %arg18[%c0_84, %c0_85] : memref<392x1024xbf16, #tpu.memory_space<vmem>>, vector<392x1024xbf16>
    %cst_86 = arith.constant dense<0.000000e+00> : vector<2x1024xf32>
    %166 = tpu.matmul %164, %165, %cst_86 {dimension_numbers = #tpu.dot_dimension_numbers<[1], [0], [0], [1], [0, 0, 1, 1], [], []>} : vector<2x392xbf16>, vector<392x1024xbf16>, vector<2x1024xf32> -> vector<2x1024xf32>
    %c0_87 = arith.constant 0 : index
    %c0_88 = arith.constant 0 : index
    %167 = vector.load %arg19[%c0_87, %c0_88] : memref<4x1024xf32, #tpu.memory_space<vmem>>, vector<4x1024xf32>
    %cst_89 = arith.constant dense<0.000000e+00> : vector<1024xf32>
    %168 = vector.multi_reduction <add>, %166, %cst_89 [0] : vector<2x1024xf32> to vector<1024xf32>
    %169 = vector.shape_cast %168 : vector<1024xf32> to vector<1x1024xf32>
    %170 = arith.mulf %166, %166 : vector<2x1024xf32>
    %cst_90 = arith.constant dense<0.000000e+00> : vector<1024xf32>
    %171 = vector.multi_reduction <add>, %170, %cst_90 [0] : vector<2x1024xf32> to vector<1024xf32>
    %172 = vector.shape_cast %171 : vector<1024xf32> to vector<1x1024xf32>
    %cst_91 = arith.constant dense<0.000000e+00> : vector<1x4xf32>
    %173 = tpu.matmul %169, %167, %cst_91 {dimension_numbers = #tpu.dot_dimension_numbers<[1], [1], [0], [0], [0, 0, 1, 0], [], []>} : vector<1x1024xf32>, vector<4x1024xf32>, vector<1x4xf32> -> vector<1x4xf32>
    %cst_92 = arith.constant 0.001953125 : f32
    %174 = vector.broadcast %cst_92 : f32 to vector<1x4xf32>
    %175 = arith.mulf %173, %174 : vector<1x4xf32>
    %cst_93 = arith.constant dense<0.000000e+00> : vector<1x4xf32>
    %176 = tpu.matmul %172, %167, %cst_93 {dimension_numbers = #tpu.dot_dimension_numbers<[1], [1], [0], [0], [0, 0, 1, 0], [], []>} : vector<1x1024xf32>, vector<4x1024xf32>, vector<1x4xf32> -> vector<1x4xf32>
    %cst_94 = arith.constant 0.001953125 : f32
    %177 = vector.broadcast %cst_94 : f32 to vector<1x4xf32>
    %178 = arith.mulf %176, %177 : vector<1x4xf32>
    %179 = arith.mulf %175, %175 : vector<1x4xf32>
    %180 = arith.subf %178, %179 : vector<1x4xf32>
    %c0_95 = arith.constant 0 : index
    %c0_96 = arith.constant 0 : index
    %181 = vector.load %arg20[%c0_95, %c0_96] : memref<1x4xf32, #tpu.memory_space<vmem>>, vector<1x4xf32>
    %cst_97 = arith.constant 9.99999974E-6 : f32
    %182 = vector.broadcast %cst_97 : f32 to vector<1x4xf32>
    %183 = arith.addf %180, %182 : vector<1x4xf32>
    %184 = math.rsqrt %183 : vector<1x4xf32>
    %185 = arith.mulf %181, %184 : vector<1x4xf32>
    %c0_98 = arith.constant 0 : index
    %c0_99 = arith.constant 0 : index
    %186 = vector.load %arg21[%c0_98, %c0_99] : memref<1x4xf32, #tpu.memory_space<vmem>>, vector<1x4xf32>
    %187 = arith.mulf %175, %185 : vector<1x4xf32>
    %188 = arith.subf %186, %187 : vector<1x4xf32>
    %cst_100 = arith.constant dense<0.000000e+00> : vector<1x1024xf32>
    %189 = tpu.matmul %185, %167, %cst_100 {dimension_numbers = #tpu.dot_dimension_numbers<[1], [0], [0], [1], [0, 0, 1, 1], [], []>} : vector<1x4xf32>, vector<4x1024xf32>, vector<1x1024xf32> -> vector<1x1024xf32>
    %cst_101 = arith.constant dense<0.000000e+00> : vector<1x1024xf32>
    %190 = tpu.matmul %188, %167, %cst_101 {dimension_numbers = #tpu.dot_dimension_numbers<[1], [0], [0], [1], [0, 0, 1, 1], [], []>} : vector<1x4xf32>, vector<4x1024xf32>, vector<1x1024xf32> -> vector<1x1024xf32>
    %191 = vector.broadcast %189 : vector<1x1024xf32> to vector<2x1024xf32>
    %192 = arith.mulf %166, %191 : vector<2x1024xf32>
    %193 = vector.broadcast %190 : vector<1x1024xf32> to vector<2x1024xf32>
    %194 = arith.addf %192, %193 : vector<2x1024xf32>
    %cst_102 = arith.constant 0.000000e+00 : f32
    %195 = vector.broadcast %cst_102 : f32 to vector<2x1024xf32>
    %196 = arith.subf %195, %194 : vector<2x1024xf32>
    %197 = math.exp %196 : vector<2x1024xf32>
    %cst_103 = arith.constant 1.000000e+00 : f32
    %198 = vector.broadcast %cst_103 : f32 to vector<2x1024xf32>
    %199 = arith.addf %198, %197 : vector<2x1024xf32>
    %200 = tpu.reciprocal %199 {approx = true} : vector<2x1024xf32> -> vector<2x1024xf32>
    %c0_104 = arith.constant 0 : index
    %c0_105 = arith.constant 0 : index
    %201 = vector.load %arg22[%c0_104, %c0_105] : memref<2x1024xf32, #tpu.memory_space<vmem>>, vector<2x1024xf32>
    tpu.vector_store %arg22[%c0_104, %c0_105], %200 {strides = array<i32>} : memref<2x1024xf32, #tpu.memory_space<vmem>>, vector<2x1024xf32>,
    return
  }
}

</mosaic_0001>

<llo_original>
// kernel: vae_forward.1
$region0: #{vae_forward.1}
  #allocation0 [shape = 'u32[]', space=smem, size = 0x4, offset = 0x4, fixed_abs, tag = 'smem constant byte address 0x4 - core index']
  #allocation1 [shape = 'u32[144,128]{1,0:T(1,128)}', space=vmem, size = 0x12000, scoped, tag = 'internal scratch']
  %s0 = inlined_call_operand.vmem [shape: f32[2,1024], index: 0, kind: input, shape index: {}]
  %s1 = inlined_call_operand.vmem [shape: f32[2,8], index: 1, kind: input, shape index: {}]
  %s2 = inlined_call_operand.vmem [shape: bf16[1024,392], index: 2, kind: input, shape index: {}]
  %s3 = inlined_call_operand.vmem [shape: f32[8,392], index: 3, kind: input, shape index: {}]
  %s4 = inlined_call_operand.vmem [shape: f32[1,8], index: 4, kind: input, shape index: {}]
  %s5 = inlined_call_operand.vmem [shape: f32[1,8], index: 5, kind: input, shape index: {}]
  %s6 = inlined_call_operand.vmem [shape: bf16[392,144], index: 6, kind: input, shape index: {}]
  %s7 = inlined_call_operand.vmem [shape: f32[16,144], index: 7, kind: input, shape index: {}]
  %s8 = inlined_call_operand.vmem [shape: f32[1,16], index: 8, kind: input, shape index: {}]
  %s9 = inlined_call_operand.vmem [shape: f32[1,16], index: 9, kind: input, shape index: {}]
  %s10 = inlined_call_operand.vmem [shape: f32[144,16], index: 10, kind: input, shape index: {}]
  %s11 = inlined_call_operand.vmem [shape: f32[1,16], index: 11, kind: input, shape index: {}]
  %s12 = inlined_call_operand.vmem [shape: f32[8,144], index: 12, kind: input, shape index: {}]
  %s13 = inlined_call_operand.vmem [shape: f32[1,144], index: 13, kind: input, shape index: {}]
  %s14 = inlined_call_operand.vmem [shape: bf16[144,392], index: 14, kind: input, shape index: {}]
  %s15 = inlined_call_operand.vmem [shape: f32[8,392], index: 15, kind: input, shape index: {}]
  %s16 = inlined_call_operand.vmem [shape: f32[1,8], index: 16, kind: input, shape index: {}]
  %s17 = inlined_call_operand.vmem [shape: f32[1,8], index: 17, kind: input, shape index: {}]
  %s18 = inlined_call_operand.vmem [shape: bf16[392,1024], index: 18, kind: input, shape index: {}]
  %s19 = inlined_call_operand.vmem [shape: f32[4,1024], index: 19, kind: input, shape index: {}]
  %s20 = inlined_call_operand.vmem [shape: f32[1,4], index: 20, kind: input, shape index: {}]
  %s21 = inlined_call_operand.vmem [shape: f32[1,4], index: 21, kind: input, shape index: {}]
  %s22 = inlined_call_operand.vmem [shape: f32[2,1024], index: 22, kind: output, shape index: {0}]
  %s23 = inlined_call_operand.hbm [shape: f32[1,1], index: 23, kind: output, shape index: {1}]
  %24 = xla_tuple %s22, %s23
  %s25 = sld [smem:[#allocation0]]
  $region106: #{vae_forward.1} parent=0
    _
  %s27 = ssub.s32 1, %s25
  %s28 = scalar_select 0, %s27, %s25
  $region1: #{vae_forward.1} parent=0
    #allocation2 [shape = 'u8[512]{0}', space=vmem, size = 0x400, scoped, tag = 'output window, operand 1, single buffered']
    #allocation3 [shape = 's32[1]{0}', space=sflag, size = 0x4, scoped, tag = 'scoped memory for vae_forward.1']
    %29 = vsyncpa [#allocation3], 0
    // Predicated region
    $region2: #{vae_forward.1} parent=1 // pred_check
      _
    $region3: #{vae_forward.1} parent=1 // pred_check_branch
      %31 = sbr.rel (0) target = $region5
    $region4: #{vae_forward.1} parent=1 // pred_region
      _
    $region5: #{vae_forward.1} parent=1 // pred_fallthru
      _
    // Predicated region
    $region6: #{vae_forward.1} parent=1 // pred_check
      _
    $region7: #{vae_forward.1} parent=1 // pred_check_branch
      %33 = sbr.rel (0) target = $region9
    $region8: #{vae_forward.1} parent=1 // pred_region
      _
    $region9: #{vae_forward.1} parent=1 // pred_fallthru
      _
    // Predicated region
    $region10: #{vae_forward.1} parent=1 // pred_check
      _
    $region11: #{vae_forward.1} parent=1 // pred_check_branch
      %35 = sbr.rel (0) target = $region13
    $region12: #{vae_forward.1} parent=1 // pred_region
      _
    $region13: #{vae_forward.1} parent=1 // pred_fallthru
      _
    // Predicated region
    $region14: #{vae_forward.1} parent=1 // pred_check
      _
    $region15: #{vae_forward.1} parent=1 // pred_check_branch
      %37 = sbr.rel (0) target = $region17
    $region16: #{vae_forward.1} parent=1 // pred_region
      _
    $region17: #{vae_forward.1} parent=1 // pred_fallthru
      _
    // Predicated region
    $region18: #{vae_forward.1} parent=1 // pred_check
      _
    $region19: #{vae_forward.1} parent=1 // pred_check_branch
      %39 = sbr.rel (0) target = $region21
    $region20: #{vae_forward.1} parent=1 // pred_region
      _
    $region21: #{vae_forward.1} parent=1 // pred_fallthru
      _
    // Predicated region
    $region22: #{vae_forward.1} parent=1 // pred_check
      _
    $region23: #{vae_forward.1} parent=1 // pred_check_branch
      %41 = sbr.rel (0) target = $region25
    $region24: #{vae_forward.1} parent=1 // pred_region
      _
    $region25: #{vae_forward.1} parent=1 // pred_fallthru
      _
    // Predicated region
    $region26: #{vae_forward.1} parent=1 // pred_check
      _
    $region27: #{vae_forward.1} parent=1 // pred_check_branch
      %43 = sbr.rel (0) target = $region29
    $region28: #{vae_forward.1} parent=1 // pred_region
      _
    $region29: #{vae_forward.1} parent=1 // pred_fallthru
      _
    // Predicated region
    $region30: #{vae_forward.1} parent=1 // pred_check
      _
    $region31: #{vae_forward.1} parent=1 // pred_check_branch
      %45 = sbr.rel (0) target = $region33
    $region32: #{vae_forward.1} parent=1 // pred_region
      _
    $region33: #{vae_forward.1} parent=1 // pred_fallthru
      _
    // Predicated region
    $region34: #{vae_forward.1} parent=1 // pred_check
      _
    $region35: #{vae_forward.1} parent=1 // pred_check_branch
      %47 = sbr.rel (0) target = $region37
    $region36: #{vae_forward.1} parent=1 // pred_region
      _
    $region37: #{vae_forward.1} parent=1 // pred_fallthru
      _
    // Predicated region
    $region38: #{vae_forward.1} parent=1 // pred_check
      _
    $region39: #{vae_forward.1} parent=1 // pred_check_branch
      %49 = sbr.rel (0) target = $region41
    $region40: #{vae_forward.1} parent=1 // pred_region
      _
    $region41: #{vae_forward.1} parent=1 // pred_fallthru
      _
    // Predicated region
    $region42: #{vae_forward.1} parent=1 // pred_check
      _
    $region43: #{vae_forward.1} parent=1 // pred_check_branch
      %51 = sbr.rel (0) target = $region45
    $region44: #{vae_forward.1} parent=1 // pred_region
      _
    $region45: #{vae_forward.1} parent=1 // pred_fallthru
      _
    // Predicated region
    $region46: #{vae_forward.1} parent=1 // pred_check
      _
    $region47: #{vae_forward.1} parent=1 // pred_check_branch
      %53 = sbr.rel (0) target = $region49
    $region48: #{vae_forward.1} parent=1 // pred_region
      _
    $region49: #{vae_forward.1} parent=1 // pred_fallthru
      _
    // Predicated region
    $region50: #{vae_forward.1} parent=1 // pred_check
      _
    $region51: #{vae_forward.1} parent=1 // pred_check_branch
      %55 = sbr.rel (0) target = $region53
    $region52: #{vae_forward.1} parent=1 // pred_region
      _
    $region53: #{vae_forward.1} parent=1 // pred_fallthru
      _
    // Predicated region
    $region54: #{vae_forward.1} parent=1 // pred_check
      _
    $region55: #{vae_forward.1} parent=1 // pred_check_branch
      %57 = sbr.rel (0) target = $region57
    $region56: #{vae_forward.1} parent=1 // pred_region
      _
    $region57: #{vae_forward.1} parent=1 // pred_fallthru
      _
    // Predicated region
    $region58: #{vae_forward.1} parent=1 // pred_check
      _
    $region59: #{vae_forward.1} parent=1 // pred_check_branch
      %59 = sbr.rel (0) target = $region61
    $region60: #{vae_forward.1} parent=1 // pred_region
      _
    $region61: #{vae_forward.1} parent=1 // pred_fallthru
      _
    // Predicated region
    $region62: #{vae_forward.1} parent=1 // pred_check
      _
    $region63: #{vae_forward.1} parent=1 // pred_check_branch
      %61 = sbr.rel (0) target = $region65
    $region64: #{vae_forward.1} parent=1 // pred_region
      _
    $region65: #{vae_forward.1} parent=1 // pred_fallthru
      _
    // Predicated region
    $region66: #{vae_forward.1} parent=1 // pred_check
      _
    $region67: #{vae_forward.1} parent=1 // pred_check_branch
      %63 = sbr.rel (0) target = $region69
    $region68: #{vae_forward.1} parent=1 // pred_region
      _
    $region69: #{vae_forward.1} parent=1 // pred_fallthru
      _
    // Predicated region
    $region70: #{vae_forward.1} parent=1 // pred_check
      _
    $region71: #{vae_forward.1} parent=1 // pred_check_branch
      %65 = sbr.rel (0) target = $region73
    $region72: #{vae_forward.1} parent=1 // pred_region
      _
    $region73: #{vae_forward.1} parent=1 // pred_fallthru
      _
    // Predicated region
    $region74: #{vae_forward.1} parent=1 // pred_check
      _
    $region75: #{vae_forward.1} parent=1 // pred_check_branch
      %67 = sbr.rel (0) target = $region77
    $region76: #{vae_forward.1} parent=1 // pred_region
      _
    $region77: #{vae_forward.1} parent=1 // pred_fallthru
      _
    // Predicated region
    $region78: #{vae_forward.1} parent=1 // pred_check
      _
    $region79: #{vae_forward.1} parent=1 // pred_check_branch
      %69 = sbr.rel (0) target = $region81
    $region80: #{vae_forward.1} parent=1 // pred_region
      _
    $region81: #{vae_forward.1} parent=1 // pred_fallthru
      _
    // Predicated region
    $region82: #{vae_forward.1} parent=1 // pred_check
      _
    $region83: #{vae_forward.1} parent=1 // pred_check_branch
      %71 = sbr.rel (0) target = $region85
    $region84: #{vae_forward.1} parent=1 // pred_region
      _
    $region85: #{vae_forward.1} parent=1 // pred_fallthru
      _
    // Predicated region
    $region86: #{vae_forward.1} parent=1 // pred_check
      _
    $region87: #{vae_forward.1} parent=1 // pred_check_branch
      %73 = sbr.rel (0) target = $region89
    $region88: #{vae_forward.1} parent=1 // pred_region
      _
    $region89: #{vae_forward.1} parent=1 // pred_fallthru
      _
    %v75 = vld [vmem:[%s0] sm:$0xff]
    %v76 = vld [vmem:[%s0 + $0x8] sm:$0xff]
    %v79 = vcombine.high %v75, %v75
    %v81 = vunpack.c.l.s4 1983009808
    %v82 = vunpack.c.0.s8 %v81
    %v83 = vlaneseq
    %v84 = vshrl.u32 %v83, 7
    %v85 = vsub.s32 %v82, %v84
    %v86 = vrot.slane %v75, %v85
    %v88 = vunpack.c.l.s4 1983009808
    %v89 = vunpack.c.0.s8 %v88
    %v90 = vlaneseq
    %v91 = vshrl.u32 %v90, 7
    %v92 = vsub.s32 %v89, %v91
    %v93 = vrot.slane %v79, %v92
    %v94 = vcombine.high %v86, %v86
    %v95 = vcombine.high %v93, %v93
    %v96 = vcombine.high %v76, %v76
    %v98 = vunpack.c.l.s4 1983009808
    %v99 = vunpack.c.0.s8 %v98
    %v100 = vlaneseq
    %v101 = vshrl.u32 %v100, 7
    %v102 = vsub.s32 %v99, %v101
    %v103 = vrot.slane %v76, %v102
    %v105 = vunpack.c.l.s4 1983009808
    %v106 = vunpack.c.0.s8 %v105
    %v107 = vlaneseq
    %v108 = vshrl.u32 %v107, 7
    %v109 = vsub.s32 %v106, %v108
    %v110 = vrot.slane %v96, %v109
    %v111 = vcombine.high %v103, %v103
    %v112 = vcombine.high %v110, %v110
    %v121 = vpack.c.bf16 %v86, %v86
    %v122 = vpack.c.bf16 %v94, %v94
    %v123 = vpack.c.bf16 %v93, %v93
    %v124 = vpack.c.bf16 %v95, %v95
    %v125 = vpack.c.bf16 %v103, %v103
    %v126 = vpack.c.bf16 %v111, %v111
    %v127 = vpack.c.bf16 %v110, %v110
    %v128 = vpack.c.bf16 %v112, %v112
    %v129 = vld [vmem:[%s2] sm:$0xff]
    %v130 = vld [vmem:[%s2 + $0x8] sm:$0xff]
    %v131 = vld [vmem:[%s2 + $0x10] sm:$0xff]
    %v132 = vld [vmem:[%s2 + $0x18] sm:$0xff]
    %v133 = vld [vmem:[%s2 + $0x20] sm:$0xff]
    %v134 = vld [vmem:[%s2 + $0x28] sm:$0xff]
    %v135 = vld [vmem:[%s2 + $0x30] sm:$0xff]
    %v136 = vld [vmem:[%s2 + $0x38] sm:$0xff]
    %v137 = vld [vmem:[%s2 + $0x40] sm:$0xff]
    %v138 = vld [vmem:[%s2 + $0x48] sm:$0xff]
    %v139 = vld [vmem:[%s2 + $0x50] sm:$0xff]
    %v140 = vld [vmem:[%s2 + $0x58] sm:$0xff]
    %v141 = vld [vmem:[%s2 + $0x60] sm:$0xff]
    %v142 = vld [vmem:[%s2 + $0x68] sm:$0xff]
    %v143 = vld [vmem:[%s2 + $0x70] sm:$0xff]
    %v144 = vld [vmem:[%s2 + $0x78] sm:$0xff]
    %v145 = vld [vmem:[%s2 + $0x80] sm:$0xff]
    %v146 = vld [vmem:[%s2 + $0x88] sm:$0xff]
    %v147 = vld [vmem:[%s2 + $0x90] sm:$0xff]
    %v148 = vld [vmem:[%s2 + $0x98] sm:$0xff]
    %v149 = vld [vmem:[%s2 + $0xa0] sm:$0xff]
    %v150 = vld [vmem:[%s2 + $0xa8] sm:$0xff]
    %v151 = vld [vmem:[%s2 + $0xb0] sm:$0xff]
    %v152 = vld [vmem:[%s2 + $0xb8] sm:$0xff]
    %v153 = vld [vmem:[%s2 + $0xc0] sm:$0xff]
    %v154 = vld [vmem:[%s2 + $0xc8] sm:$0xff]
    %v155 = vld [vmem:[%s2 + $0xd0] sm:$0xff]
    %v156 = vld [vmem:[%s2 + $0xd8] sm:$0xff]
    %v157 = vld [vmem:[%s2 + $0xe0] sm:$0xff]
    %v158 = vld [vmem:[%s2 + $0xe8] sm:$0xff]
    %v159 = vld [vmem:[%s2 + $0xf0] sm:$0xff]
    %v160 = vld [vmem:[%s2 + $0xf8] sm:$0xff]
    %v161 = vld [vmem:[%s2 + $0x100] sm:$0xff]
    %v162 = vld [vmem:[%s2 + $0x108] sm:$0xff]
    %v163 = vld [vmem:[%s2 + $0x110] sm:$0xff]
    %v164 = vld [vmem:[%s2 + $0x118] sm:$0xff]
    %v165 = vld [vmem:[%s2 + $0x120] sm:$0xff]
    %v166 = vld [vmem:[%s2 + $0x128] sm:$0xff]
    %v167 = vld [vmem:[%s2 + $0x130] sm:$0xff]
    %v168 = vld [vmem:[%s2 + $0x138] sm:$0xff]
    %v169 = vld [vmem:[%s2 + $0x140] sm:$0xff]
    %v170 = vld [vmem:[%s2 + $0x148] sm:$0xff]
    %v171 = vld [vmem:[%s2 + $0x150] sm:$0xff]
    %v172 = vld [vmem:[%s2 + $0x158] sm:$0xff]
    %v173 = vld [vmem:[%s2 + $0x160] sm:$0xff]
    %v174 = vld [vmem:[%s2 + $0x168] sm:$0xff]
    %v175 = vld [vmem:[%s2 + $0x170] sm:$0xff]
    %v176 = vld [vmem:[%s2 + $0x178] sm:$0xff]
    %v177 = vld [vmem:[%s2 + $0x180] sm:$0xff]
    %v178 = vld [vmem:[%s2 + $0x188] sm:$0xff]
    %v179 = vld [vmem:[%s2 + $0x190] sm:$0xff]
    %v180 = vld [vmem:[%s2 + $0x198] sm:$0xff]
    %v181 = vld [vmem:[%s2 + $0x1a0] sm:$0xff]
    %v182 = vld [vmem:[%s2 + $0x1a8] sm:$0xff]
    %v183 = vld [vmem:[%s2 + $0x1b0] sm:$0xff]
    %v184 = vld [vmem:[%s2 + $0x1b8] sm:$0xff]
    %v185 = vld [vmem:[%s2 + $0x1c0] sm:$0xff]
    %v186 = vld [vmem:[%s2 + $0x1c8] sm:$0xff]
    %v187 = vld [vmem:[%s2 + $0x1d0] sm:$0xff]
    %v188 = vld [vmem:[%s2 + $0x1d8] sm:$0xff]
    %v189 = vld [vmem:[%s2 + $0x1e0] sm:$0xff]
    %v190 = vld [vmem:[%s2 + $0x1e8] sm:$0xff]
    %v191 = vld [vmem:[%s2 + $0x1f0] sm:$0xff]
    %v192 = vld [vmem:[%s2 + $0x1f8] sm:$0xff]
    %v193 = vld [vmem:[%s2 + $0x200] sm:$0xff]
    %v194 = vld [vmem:[%s2 + $0x208] sm:$0xff]
    %v195 = vld [vmem:[%s2 + $0x210] sm:$0xff]
    %v196 = vld [vmem:[%s2 + $0x218] sm:$0xff]
    %v197 = vld [vmem:[%s2 + $0x220] sm:$0xff]
    %v198 = vld [vmem:[%s2 + $0x228] sm:$0xff]
    %v199 = vld [vmem:[%s2 + $0x230] sm:$0xff]
    %v200 = vld [vmem:[%s2 + $0x238] sm:$0xff]
    %v201 = vld [vmem:[%s2 + $0x240] sm:$0xff]
    %v202 = vld [vmem:[%s2 + $0x248] sm:$0xff]
    %v203 = vld [vmem:[%s2 + $0x250] sm:$0xff]
    %v204 = vld [vmem:[%s2 + $0x258] sm:$0xff]
    %v205 = vld [vmem:[%s2 + $0x260] sm:$0xff]
    %v206 = vld [vmem:[%s2 + $0x268] sm:$0xff]
    %v207 = vld [vmem:[%s2 + $0x270] sm:$0xff]
    %v208 = vld [vmem:[%s2 + $0x278] sm:$0xff]
    %v209 = vld [vmem:[%s2 + $0x280] sm:$0xff]
    %v210 = vld [vmem:[%s2 + $0x288] sm:$0xff]
    %v211 = vld [vmem:[%s2 + $0x290] sm:$0xff]
    %v212 = vld [vmem:[%s2 + $0x298] sm:$0xff]
    %v213 = vld [vmem:[%s2 + $0x2a0] sm:$0xff]
    %v214 = vld [vmem:[%s2 + $0x2a8] sm:$0xff]
    %v215 = vld [vmem:[%s2 + $0x2b0] sm:$0xff]
    %v216 = vld [vmem:[%s2 + $0x2b8] sm:$0xff]
    %v217 = vld [vmem:[%s2 + $0x2c0] sm:$0xff]
    %v218 = vld [vmem:[%s2 + $0x2c8] sm:$0xff]
    %v219 = vld [vmem:[%s2 + $0x2d0] sm:$0xff]
    %v220 = vld [vmem:[%s2 + $0x2d8] sm:$0xff]
    %v221 = vld [vmem:[%s2 + $0x2e0] sm:$0xff]
    %v222 = vld [vmem:[%s2 + $0x2e8] sm:$0xff]
    %v223 = vld [vmem:[%s2 + $0x2f0] sm:$0xff]
    %v224 = vld [vmem:[%s2 + $0x2f8] sm:$0xff]
    %v225 = vld [vmem:[%s2 + $0x300] sm:$0xff]
    %v226 = vld [vmem:[%s2 + $0x308] sm:$0xff]
    %v227 = vld [vmem:[%s2 + $0x310] sm:$0xff]
    %v228 = vld [vmem:[%s2 + $0x318] sm:$0xff]
    %v229 = vld [vmem:[%s2 + $0x320] sm:$0xff]
    %v230 = vld [vmem:[%s2 + $0x328] sm:$0xff]
    %v231 = vld [vmem:[%s2 + $0x330] sm:$0xff]
    %v232 = vld [vmem:[%s2 + $0x338] sm:$0xff]
    %v233 = vld [vmem:[%s2 + $0x340] sm:$0xff]
    %v234 = vld [vmem:[%s2 + $0x348] sm:$0xff]
    %v235 = vld [vmem:[%s2 + $0x350] sm:$0xff]
    %v236 = vld [vmem:[%s2 + $0x358] sm:$0xff]
    %v237 = vld [vmem:[%s2 + $0x360] sm:$0xff]
    %v238 = vld [vmem:[%s2 + $0x368] sm:$0xff]
    %v239 = vld [vmem:[%s2 + $0x370] sm:$0xff]
    %v240 = vld [vmem:[%s2 + $0x378] sm:$0xff]
    %v241 = vld [vmem:[%s2 + $0x380] sm:$0xff]
    %v242 = vld [vmem:[%s2 + $0x388] sm:$0xff]
    %v243 = vld [vmem:[%s2 + $0x390] sm:$0xff]
    %v244 = vld [vmem:[%s2 + $0x398] sm:$0xff]
    %v245 = vld [vmem:[%s2 + $0x3a0] sm:$0xff]
    %v246 = vld [vmem:[%s2 + $0x3a8] sm:$0xff]
    %v247 = vld [vmem:[%s2 + $0x3b0] sm:$0xff]
    %v248 = vld [vmem:[%s2 + $0x3b8] sm:$0xff]
    %v249 = vld [vmem:[%s2 + $0x3c0] sm:$0xff]
    %v250 = vld [vmem:[%s2 + $0x3c8] sm:$0xff]
    %v251 = vld [vmem:[%s2 + $0x3d0] sm:$0xff]
    %v252 = vld [vmem:[%s2 + $0x3d8] sm:$0xff]
    %v253 = vld [vmem:[%s2 + $0x3e0] sm:$0xff]
    %v254 = vld [vmem:[%s2 + $0x3e8] sm:$0xff]
    %v255 = vld [vmem:[%s2 + $0x3f0] sm:$0xff]
    %v256 = vld [vmem:[%s2 + $0x3f8] sm:$0xff]
    %v257 = vld [vmem:[%s2 + $0x400] sm:$0xff]
    %v258 = vld [vmem:[%s2 + $0x408] sm:$0xff]
    %v259 = vld [vmem:[%s2 + $0x410] sm:$0xff]
    %v260 = vld [vmem:[%s2 + $0x418] sm:$0xff]
    %v261 = vld [vmem:[%s2 + $0x420] sm:$0xff]
    %v262 = vld [vmem:[%s2 + $0x428] sm:$0xff]
    %v263 = vld [vmem:[%s2 + $0x430] sm:$0xff]
    %v264 = vld [vmem:[%s2 + $0x438] sm:$0xff]
    %v265 = vld [vmem:[%s2 + $0x440] sm:$0xff]
    %v266 = vld [vmem:[%s2 + $0x448] sm:$0xff]
    %v267 = vld [vmem:[%s2 + $0x450] sm:$0xff]
    %v268 = vld [vmem:[%s2 + $0x458] sm:$0xff]
    %v269 = vld [vmem:[%s2 + $0x460] sm:$0xff]
    %v270 = vld [vmem:[%s2 + $0x468] sm:$0xff]
    %v271 = vld [vmem:[%s2 + $0x470] sm:$0xff]
    %v272 = vld [vmem:[%s2 + $0x478] sm:$0xff]
    %v273 = vld [vmem:[%s2 + $0x480] sm:$0xff]
    %v274 = vld [vmem:[%s2 + $0x488] sm:$0xff]
    %v275 = vld [vmem:[%s2 + $0x490] sm:$0xff]
    %v276 = vld [vmem:[%s2 + $0x498] sm:$0xff]
    %v277 = vld [vmem:[%s2 + $0x4a0] sm:$0xff]
    %v278 = vld [vmem:[%s2 + $0x4a8] sm:$0xff]
    %v279 = vld [vmem:[%s2 + $0x4b0] sm:$0xff]
    %v280 = vld [vmem:[%s2 + $0x4b8] sm:$0xff]
    %v281 = vld [vmem:[%s2 + $0x4c0] sm:$0xff]
    %v282 = vld [vmem:[%s2 + $0x4c8] sm:$0xff]
    %v283 = vld [vmem:[%s2 + $0x4d0] sm:$0xff]
    %v284 = vld [vmem:[%s2 + $0x4d8] sm:$0xff]
    %v285 = vld [vmem:[%s2 + $0x4e0] sm:$0xff]
    %v286 = vld [vmem:[%s2 + $0x4e8] sm:$0xff]
    %v287 = vld [vmem:[%s2 + $0x4f0] sm:$0xff]
    %v288 = vld [vmem:[%s2 + $0x4f8] sm:$0xff]
    %v289 = vld [vmem:[%s2 + $0x500] sm:$0xff]
    %v290 = vld [vmem:[%s2 + $0x508] sm:$0xff]
    %v291 = vld [vmem:[%s2 + $0x510] sm:$0xff]
    %v292 = vld [vmem:[%s2 + $0x518] sm:$0xff]
    %v293 = vld [vmem:[%s2 + $0x520] sm:$0xff]
    %v294 = vld [vmem:[%s2 + $0x528] sm:$0xff]
    %v295 = vld [vmem:[%s2 + $0x530] sm:$0xff]
    %v296 = vld [vmem:[%s2 + $0x538] sm:$0xff]
    %v297 = vld [vmem:[%s2 + $0x540] sm:$0xff]
    %v298 = vld [vmem:[%s2 + $0x548] sm:$0xff]
    %v299 = vld [vmem:[%s2 + $0x550] sm:$0xff]
    %v300 = vld [vmem:[%s2 + $0x558] sm:$0xff]
    %v301 = vld [vmem:[%s2 + $0x560] sm:$0xff]
    %v302 = vld [vmem:[%s2 + $0x568] sm:$0xff]
    %v303 = vld [vmem:[%s2 + $0x570] sm:$0xff]
    %v304 = vld [vmem:[%s2 + $0x578] sm:$0xff]
    %v305 = vld [vmem:[%s2 + $0x580] sm:$0xff]
    %v306 = vld [vmem:[%s2 + $0x588] sm:$0xff]
    %v307 = vld [vmem:[%s2 + $0x590] sm:$0xff]
    %v308 = vld [vmem:[%s2 + $0x598] sm:$0xff]
    %v309 = vld [vmem:[%s2 + $0x5a0] sm:$0xff]
    %v310 = vld [vmem:[%s2 + $0x5a8] sm:$0xff]
    %v311 = vld [vmem:[%s2 + $0x5b0] sm:$0xff]
    %v312 = vld [vmem:[%s2 + $0x5b8] sm:$0xff]
    %v313 = vld [vmem:[%s2 + $0x5c0] sm:$0xff]
    %v314 = vld [vmem:[%s2 + $0x5c8] sm:$0xff]
    %v315 = vld [vmem:[%s2 + $0x5d0] sm:$0xff]
    %v316 = vld [vmem:[%s2 + $0x5d8] sm:$0xff]
    %v317 = vld [vmem:[%s2 + $0x5e0] sm:$0xff]
    %v318 = vld [vmem:[%s2 + $0x5e8] sm:$0xff]
    %v319 = vld [vmem:[%s2 + $0x5f0] sm:$0xff]
    %v320 = vld [vmem:[%s2 + $0x5f8] sm:$0xff]
    %v321 = vld [vmem:[%s2 + $0x600] sm:$0xff]
    %v322 = vld [vmem:[%s2 + $0x608] sm:$0xff]
    %v323 = vld [vmem:[%s2 + $0x610] sm:$0xff]
    %v324 = vld [vmem:[%s2 + $0x618] sm:$0xff]
    %v325 = vld [vmem:[%s2 + $0x620] sm:$0xff]
    %v326 = vld [vmem:[%s2 + $0x628] sm:$0xff]
    %v327 = vld [vmem:[%s2 + $0x630] sm:$0xff]
    %v328 = vld [vmem:[%s2 + $0x638] sm:$0xff]
    %v329 = vld [vmem:[%s2 + $0x640] sm:$0xff]
    %v330 = vld [vmem:[%s2 + $0x648] sm:$0xff]
    %v331 = vld [vmem:[%s2 + $0x650] sm:$0xff]
    %v332 = vld [vmem:[%s2 + $0x658] sm:$0xff]
    %v333 = vld [vmem:[%s2 + $0x660] sm:$0xff]
    %v334 = vld [vmem:[%s2 + $0x668] sm:$0xff]
    %v335 = vld [vmem:[%s2 + $0x670] sm:$0xff]
    %v336 = vld [vmem:[%s2 + $0x678] sm:$0xff]
    %v337 = vld [vmem:[%s2 + $0x680] sm:$0xff]
    %v338 = vld [vmem:[%s2 + $0x688] sm:$0xff]
    %v339 = vld [vmem:[%s2 + $0x690] sm:$0xff]
    %v340 = vld [vmem:[%s2 + $0x698] sm:$0xff]
    %v341 = vld [vmem:[%s2 + $0x6a0] sm:$0xff]
    %v342 = vld [vmem:[%s2 + $0x6a8] sm:$0xff]
    %v343 = vld [vmem:[%s2 + $0x6b0] sm:$0xff]
    %v344 = vld [vmem:[%s2 + $0x6b8] sm:$0xff]
    %v345 = vld [vmem:[%s2 + $0x6c0] sm:$0xff]
    %v346 = vld [vmem:[%s2 + $0x6c8] sm:$0xff]
    %v347 = vld [vmem:[%s2 + $0x6d0] sm:$0xff]
    %v348 = vld [vmem:[%s2 + $0x6d8] sm:$0xff]
    %v349 = vld [vmem:[%s2 + $0x6e0] sm:$0xff]
    %v350 = vld [vmem:[%s2 + $0x6e8] sm:$0xff]
    %v351 = vld [vmem:[%s2 + $0x6f0] sm:$0xff]
    %v352 = vld [vmem:[%s2 + $0x6f8] sm:$0xff]
    %v353 = vld [vmem:[%s2 + $0x700] sm:$0xff]
    %v354 = vld [vmem:[%s2 + $0x708] sm:$0xff]
    %v355 = vld [vmem:[%s2 + $0x710] sm:$0xff]
    %v356 = vld [vmem:[%s2 + $0x718] sm:$0xff]
    %v357 = vld [vmem:[%s2 + $0x720] sm:$0xff]
    %v358 = vld [vmem:[%s2 + $0x728] sm:$0xff]
    %v359 = vld [vmem:[%s2 + $0x730] sm:$0xff]
    %v360 = vld [vmem:[%s2 + $0x738] sm:$0xff]
    %v361 = vld [vmem:[%s2 + $0x740] sm:$0xff]
    %v362 = vld [vmem:[%s2 + $0x748] sm:$0xff]
    %v363 = vld [vmem:[%s2 + $0x750] sm:$0xff]
    %v364 = vld [vmem:[%s2 + $0x758] sm:$0xff]
    %v365 = vld [vmem:[%s2 + $0x760] sm:$0xff]
    %v366 = vld [vmem:[%s2 + $0x768] sm:$0xff]
    %v367 = vld [vmem:[%s2 + $0x770] sm:$0xff]
    %v368 = vld [vmem:[%s2 + $0x778] sm:$0xff]
    %v369 = vld [vmem:[%s2 + $0x780] sm:$0xff]
    %v370 = vld [vmem:[%s2 + $0x788] sm:$0xff]
    %v371 = vld [vmem:[%s2 + $0x790] sm:$0xff]
    %v372 = vld [vmem:[%s2 + $0x798] sm:$0xff]
    %v373 = vld [vmem:[%s2 + $0x7a0] sm:$0xff]
    %v374 = vld [vmem:[%s2 + $0x7a8] sm:$0xff]
    %v375 = vld [vmem:[%s2 + $0x7b0] sm:$0xff]
    %v376 = vld [vmem:[%s2 + $0x7b8] sm:$0xff]
    %v377 = vld [vmem:[%s2 + $0x7c0] sm:$0xff]
    %v378 = vld [vmem:[%s2 + $0x7c8] sm:$0xff]
    %v379 = vld [vmem:[%s2 + $0x7d0] sm:$0xff]
    %v380 = vld [vmem:[%s2 + $0x7d8] sm:$0xff]
    %v381 = vld [vmem:[%s2 + $0x7e0] sm:$0xff]
    %v382 = vld [vmem:[%s2 + $0x7e8] sm:$0xff]
    %v383 = vld [vmem:[%s2 + $0x7f0] sm:$0xff]
    %v384 = vld [vmem:[%s2 + $0x7f8] sm:$0xff]
    %v641 = vunpack.c.l.b16 %v129
    %v642 = vunpack.c.h.b16 %v129
    %v643 = vunpack.c.l.b16 %v130
    %v644 = vunpack.c.h.b16 %v130
    %v645 = vunpack.c.l.b16 %v131
    %v646 = vunpack.c.h.b16 %v131
    %v647 = vunpack.c.l.b16 %v132
    %v648 = vunpack.c.h.b16 %v132
    %v649 = vunpack.c.l.b16 %v133
    %v650 = vunpack.c.h.b16 %v133
    %v651 = vunpack.c.l.b16 %v134
    %v652 = vunpack.c.h.b16 %v134
    %v653 = vunpack.c.l.b16 %v135
    %v654 = vunpack.c.h.b16 %v135
    %v655 = vunpack.c.l.b16 %v136
    %v656 = vunpack.c.h.b16 %v136
    %v657 = vunpack.c.l.b16 %v137
    %v658 = vunpack.c.h.b16 %v137
    %v659 = vunpack.c.l.b16 %v138
    %v660 = vunpack.c.h.b16 %v138
    %v661 = vunpack.c.l.b16 %v139
    %v662 = vunpack.c.h.b16 %v139
    %v663 = vunpack.c.l.b16 %v140
    %v664 = vunpack.c.h.b16 %v140
    %v665 = vunpack.c.l.b16 %v141
    %v666 = vunpack.c.h.b16 %v141
    %v667 = vunpack.c.l.b16 %v142
    %v668 = vunpack.c.h.b16 %v142
    %v669 = vunpack.c.l.b16 %v143
    %v670 = vunpack.c.h.b16 %v143
    %v671 = vunpack.c.l.b16 %v144
    %v672 = vunpack.c.h.b16 %v144
    %v673 = vunpack.c.l.b16 %v145
    %v674 = vunpack.c.h.b16 %v145
    %v675 = vunpack.c.l.b16 %v146
    %v676 = vunpack.c.h.b16 %v146
    %v677 = vunpack.c.l.b16 %v147
    %v678 = vunpack.c.h.b16 %v147
    %v679 = vunpack.c.l.b16 %v148
    %v680 = vunpack.c.h.b16 %v148
    %v681 = vunpack.c.l.b16 %v149
    %v682 = vunpack.c.h.b16 %v149
    %v683 = vunpack.c.l.b16 %v150
    %v684 = vunpack.c.h.b16 %v150
    %v685 = vunpack.c.l.b16 %v151
    %v686 = vunpack.c.h.b16 %v151
    %v687 = vunpack.c.l.b16 %v152
    %v688 = vunpack.c.h.b16 %v152
    %v689 = vunpack.c.l.b16 %v153
    %v690 = vunpack.c.h.b16 %v153
    %v691 = vunpack.c.l.b16 %v154
    %v692 = vunpack.c.h.b16 %v154
    %v693 = vunpack.c.l.b16 %v155
    %v694 = vunpack.c.h.b16 %v155
    %v695 = vunpack.c.l.b16 %v156
    %v696 = vunpack.c.h.b16 %v156
    %v697 = vunpack.c.l.b16 %v157
    %v698 = vunpack.c.h.b16 %v157
    %v699 = vunpack.c.l.b16 %v158
    %v700 = vunpack.c.h.b16 %v158
    %v701 = vunpack.c.l.b16 %v159
    %v702 = vunpack.c.h.b16 %v159
    %v703 = vunpack.c.l.b16 %v160
    %v704 = vunpack.c.h.b16 %v160
    %v705 = vunpack.c.l.b16 %v161
    %v706 = vunpack.c.h.b16 %v161
    %v707 = vunpack.c.l.b16 %v162
    %v708 = vunpack.c.h.b16 %v162
    %v709 = vunpack.c.l.b16 %v163
    %v710 = vunpack.c.h.b16 %v163
    %v711 = vunpack.c.l.b16 %v164
    %v712 = vunpack.c.h.b16 %v164
    %v713 = vunpack.c.l.b16 %v165
    %v714 = vunpack.c.h.b16 %v165
    %v715 = vunpack.c.l.b16 %v166
    %v716 = vunpack.c.h.b16 %v166
    %v717 = vunpack.c.l.b16 %v167
    %v718 = vunpack.c.h.b16 %v167
    %v719 = vunpack.c.l.b16 %v168
    %v720 = vunpack.c.h.b16 %v168
    %v721 = vunpack.c.l.b16 %v169
    %v722 = vunpack.c.h.b16 %v169
    %v723 = vunpack.c.l.b16 %v170
    %v724 = vunpack.c.h.b16 %v170
    %v725 = vunpack.c.l.b16 %v171
    %v726 = vunpack.c.h.b16 %v171
    %v727 = vunpack.c.l.b16 %v172
    %v728 = vunpack.c.h.b16 %v172
    %v729 = vunpack.c.l.b16 %v173
    %v730 = vunpack.c.h.b16 %v173
    %v731 = vunpack.c.l.b16 %v174
    %v732 = vunpack.c.h.b16 %v174
    %v733 = vunpack.c.l.b16 %v175
    %v734 = vunpack.c.h.b16 %v175
    %v735 = vunpack.c.l.b16 %v176
    %v736 = vunpack.c.h.b16 %v176
    %v737 = vunpack.c.l.b16 %v177
    %v738 = vunpack.c.h.b16 %v177
    %v739 = vunpack.c.l.b16 %v178
    %v740 = vunpack.c.h.b16 %v178
    %v741 = vunpack.c.l.b16 %v179
    %v742 = vunpack.c.h.b16 %v179
    %v743 = vunpack.c.l.b16 %v180
    %v744 = vunpack.c.h.b16 %v180
    %v745 = vunpack.c.l.b16 %v181
    %v746 = vunpack.c.h.b16 %v181
    %v747 = vunpack.c.l.b16 %v182
    %v748 = vunpack.c.h.b16 %v182
    %v749 = vunpack.c.l.b16 %v183
    %v750 = vunpack.c.h.b16 %v183
    %v751 = vunpack.c.l.b16 %v184
    %v752 = vunpack.c.h.b16 %v184
    %v753 = vunpack.c.l.b16 %v185
    %v754 = vunpack.c.h.b16 %v185
    %v755 = vunpack.c.l.b16 %v186
    %v756 = vunpack.c.h.b16 %v186
    %v757 = vunpack.c.l.b16 %v187
    %v758 = vunpack.c.h.b16 %v187
    %v759 = vunpack.c.l.b16 %v188
    %v760 = vunpack.c.h.b16 %v188
    %v761 = vunpack.c.l.b16 %v189
    %v762 = vunpack.c.h.b16 %v189
    %v763 = vunpack.c.l.b16 %v190
    %v764 = vunpack.c.h.b16 %v190
    %v765 = vunpack.c.l.b16 %v191
    %v766 = vunpack.c.h.b16 %v191
    %v767 = vunpack.c.l.b16 %v192
    %v768 = vunpack.c.h.b16 %v192
    %v769 = vunpack.c.l.b16 %v193
    %v770 = vunpack.c.h.b16 %v193
    %v771 = vunpack.c.l.b16 %v194
    %v772 = vunpack.c.h.b16 %v194
    %v773 = vunpack.c.l.b16 %v195
    %v774 = vunpack.c.h.b16 %v195
    %v775 = vunpack.c.l.b16 %v196
    %v776 = vunpack.c.h.b16 %v196
    %v777 = vunpack.c.l.b16 %v197
    %v778 = vunpack.c.h.b16 %v197
    %v779 = vunpack.c.l.b16 %v198
    %v780 = vunpack.c.h.b16 %v198
    %v781 = vunpack.c.l.b16 %v199
    %v782 = vunpack.c.h.b16 %v199
    %v783 = vunpack.c.l.b16 %v200
    %v784 = vunpack.c.h.b16 %v200
    %v785 = vunpack.c.l.b16 %v201
    %v786 = vunpack.c.h.b16 %v201
    %v787 = vunpack.c.l.b16 %v202
    %v788 = vunpack.c.h.b16 %v202
    %v789 = vunpack.c.l.b16 %v203
    %v790 = vunpack.c.h.b16 %v203
    %v791 = vunpack.c.l.b16 %v204
    %v792 = vunpack.c.h.b16 %v204
    %v793 = vunpack.c.l.b16 %v205
    %v794 = vunpack.c.h.b16 %v205
    %v795 = vunpack.c.l.b16 %v206
    %v796 = vunpack.c.h.b16 %v206
    %v797 = vunpack.c.l.b16 %v207
    %v798 = vunpack.c.h.b16 %v207
    %v799 = vunpack.c.l.b16 %v208
    %v800 = vunpack.c.h.b16 %v208
    %v801 = vunpack.c.l.b16 %v209
    %v802 = vunpack.c.h.b16 %v209
    %v803 = vunpack.c.l.b16 %v210
    %v804 = vunpack.c.h.b16 %v210
    %v805 = vunpack.c.l.b16 %v211
    %v806 = vunpack.c.h.b16 %v211
    %v807 = vunpack.c.l.b16 %v212
    %v808 = vunpack.c.h.b16 %v212
    %v809 = vunpack.c.l.b16 %v213
    %v810 = vunpack.c.h.b16 %v213
    %v811 = vunpack.c.l.b16 %v214
    %v812 = vunpack.c.h.b16 %v214
    %v813 = vunpack.c.l.b16 %v215
    %v814 = vunpack.c.h.b16 %v215
    %v815 = vunpack.c.l.b16 %v216
    %v816 = vunpack.c.h.b16 %v216
    %v817 = vunpack.c.l.b16 %v217
    %v818 = vunpack.c.h.b16 %v217
    %v819 = vunpack.c.l.b16 %v218
    %v820 = vunpack.c.h.b16 %v218
    %v821 = vunpack.c.l.b16 %v219
    %v822 = vunpack.c.h.b16 %v219
    %v823 = vunpack.c.l.b16 %v220
    %v824 = vunpack.c.h.b16 %v220
    %v825 = vunpack.c.l.b16 %v221
    %v826 = vunpack.c.h.b16 %v221
    %v827 = vunpack.c.l.b16 %v222
    %v828 = vunpack.c.h.b16 %v222
    %v829 = vunpack.c.l.b16 %v223
    %v830 = vunpack.c.h.b16 %v223
    %v831 = vunpack.c.l.b16 %v224
    %v832 = vunpack.c.h.b16 %v224
    %v833 = vunpack.c.l.b16 %v225
    %v834 = vunpack.c.h.b16 %v225
    %v835 = vunpack.c.l.b16 %v226
    %v836 = vunpack.c.h.b16 %v226
    %v837 = vunpack.c.l.b16 %v227
    %v838 = vunpack.c.h.b16 %v227
    %v839 = vunpack.c.l.b16 %v228
    %v840 = vunpack.c.h.b16 %v228
    %v841 = vunpack.c.l.b16 %v229
    %v842 = vunpack.c.h.b16 %v229
    %v843 = vunpack.c.l.b16 %v230
    %v844 = vunpack.c.h.b16 %v230
    %v845 = vunpack.c.l.b16 %v231
    %v846 = vunpack.c.h.b16 %v231
    %v847 = vunpack.c.l.b16 %v232
    %v848 = vunpack.c.h.b16 %v232
    %v849 = vunpack.c.l.b16 %v233
    %v850 = vunpack.c.h.b16 %v233
    %v851 = vunpack.c.l.b16 %v234
    %v852 = vunpack.c.h.b16 %v234
    %v853 = vunpack.c.l.b16 %v235
    %v854 = vunpack.c.h.b16 %v235
    %v855 = vunpack.c.l.b16 %v236
    %v856 = vunpack.c.h.b16 %v236
    %v857 = vunpack.c.l.b16 %v237
    %v858 = vunpack.c.h.b16 %v237
    %v859 = vunpack.c.l.b16 %v238
    %v860 = vunpack.c.h.b16 %v238
    %v861 = vunpack.c.l.b16 %v239
    %v862 = vunpack.c.h.b16 %v239
    %v863 = vunpack.c.l.b16 %v240
    %v864 = vunpack.c.h.b16 %v240
    %v865 = vunpack.c.l.b16 %v241
    %v866 = vunpack.c.h.b16 %v241
    %v867 = vunpack.c.l.b16 %v242
    %v868 = vunpack.c.h.b16 %v242
    %v869 = vunpack.c.l.b16 %v243
    %v870 = vunpack.c.h.b16 %v243
    %v871 = vunpack.c.l.b16 %v244
    %v872 = vunpack.c.h.b16 %v244
    %v873 = vunpack.c.l.b16 %v245
    %v874 = vunpack.c.h.b16 %v245
    %v875 = vunpack.c.l.b16 %v246
    %v876 = vunpack.c.h.b16 %v246
    %v877 = vunpack.c.l.b16 %v247
    %v878 = vunpack.c.h.b16 %v247
    %v879 = vunpack.c.l.b16 %v248
    %v880 = vunpack.c.h.b16 %v248
    %v881 = vunpack.c.l.b16 %v249
    %v882 = vunpack.c.h.b16 %v249
    %v883 = vunpack.c.l.b16 %v250
    %v884 = vunpack.c.h.b16 %v250
    %v885 = vunpack.c.l.b16 %v251
    %v886 = vunpack.c.h.b16 %v251
    %v887 = vunpack.c.l.b16 %v252
    %v888 = vunpack.c.h.b16 %v252
    %v889 = vunpack.c.l.b16 %v253
    %v890 = vunpack.c.h.b16 %v253
    %v891 = vunpack.c.l.b16 %v254
    %v892 = vunpack.c.h.b16 %v254
    %v893 = vunpack.c.l.b16 %v255
    %v894 = vunpack.c.h.b16 %v255
    %v895 = vunpack.c.l.b16 %v256
    %v896 = vunpack.c.h.b16 %v256
    %v897 = vunpack.c.l.b16 %v257
    %v898 = vunpack.c.h.b16 %v257
    %v899 = vunpack.c.l.b16 %v258
    %v900 = vunpack.c.h.b16 %v258
    %v901 = vunpack.c.l.b16 %v259
    %v902 = vunpack.c.h.b16 %v259
    %v903 = vunpack.c.l.b16 %v260
    %v904 = vunpack.c.h.b16 %v260
    %v905 = vunpack.c.l.b16 %v261
    %v906 = vunpack.c.h.b16 %v261
    %v907 = vunpack.c.l.b16 %v262
    %v908 = vunpack.c.h.b16 %v262
    %v909 = vunpack.c.l.b16 %v263
    %v910 = vunpack.c.h.b16 %v263
    %v911 = vunpack.c.l.b16 %v264
    %v912 = vunpack.c.h.b16 %v264
    %v913 = vunpack.c.l.b16 %v265
    %v914 = vunpack.c.h.b16 %v265
    %v915 = vunpack.c.l.b16 %v266
    %v916 = vunpack.c.h.b16 %v266
    %v917 = vunpack.c.l.b16 %v267
    %v918 = vunpack.c.h.b16 %v267
    %v919 = vunpack.c.l.b16 %v268
    %v920 = vunpack.c.h.b16 %v268
    %v921 = vunpack.c.l.b16 %v269
    %v922 = vunpack.c.h.b16 %v269
    %v923 = vunpack.c.l.b16 %v270
    %v924 = vunpack.c.h.b16 %v270
    %v925 = vunpack.c.l.b16 %v271
    %v926 = vunpack.c.h.b16 %v271
    %v927 = vunpack.c.l.b16 %v272
    %v928 = vunpack.c.h.b16 %v272
    %v929 = vunpack.c.l.b16 %v273
    %v930 = vunpack.c.h.b16 %v273
    %v931 = vunpack.c.l.b16 %v274
    %v932 = vunpack.c.h.b16 %v274
    %v933 = vunpack.c.l.b16 %v275
    %v934 = vunpack.c.h.b16 %v275
    %v935 = vunpack.c.l.b16 %v276
    %v936 = vunpack.c.h.b16 %v276
    %v937 = vunpack.c.l.b16 %v277
    %v938 = vunpack.c.h.b16 %v277
    %v939 = vunpack.c.l.b16 %v278
    %v940 = vunpack.c.h.b16 %v278
    %v941 = vunpack.c.l.b16 %v279
    %v942 = vunpack.c.h.b16 %v279
    %v943 = vunpack.c.l.b16 %v280
    %v944 = vunpack.c.h.b16 %v280
    %v945 = vunpack.c.l.b16 %v281
    %v946 = vunpack.c.h.b16 %v281
    %v947 = vunpack.c.l.b16 %v282
    %v948 = vunpack.c.h.b16 %v282
    %v949 = vunpack.c.l.b16 %v283
    %v950 = vunpack.c.h.b16 %v283
    %v951 = vunpack.c.l.b16 %v284
    %v952 = vunpack.c.h.b16 %v284
    %v953 = vunpack.c.l.b16 %v285
    %v954 = vunpack.c.h.b16 %v285
    %v955 = vunpack.c.l.b16 %v286
    %v956 = vunpack.c.h.b16 %v286
    %v957 = vunpack.c.l.b16 %v287
    %v958 = vunpack.c.h.b16 %v287
    %v959 = vunpack.c.l.b16 %v288
    %v960 = vunpack.c.h.b16 %v288
    %v961 = vunpack.c.l.b16 %v289
    %v962 = vunpack.c.h.b16 %v289
    %v963 = vunpack.c.l.b16 %v290
    %v964 = vunpack.c.h.b16 %v290
    %v965 = vunpack.c.l.b16 %v291
    %v966 = vunpack.c.h.b16 %v291
    %v967 = vunpack.c.l.b16 %v292
    %v968 = vunpack.c.h.b16 %v292
    %v969 = vunpack.c.l.b16 %v293
    %v970 = vunpack.c.h.b16 %v293
    %v971 = vunpack.c.l.b16 %v294
    %v972 = vunpack.c.h.b16 %v294
    %v973 = vunpack.c.l.b16 %v295
    %v974 = vunpack.c.h.b16 %v295
    %v975 = vunpack.c.l.b16 %v296
    %v976 = vunpack.c.h.b16 %v296
    %v977 = vunpack.c.l.b16 %v297
    %v978 = vunpack.c.h.b16 %v297
    %v979 = vunpack.c.l.b16 %v298
    %v980 = vunpack.c.h.b16 %v298
    %v981 = vunpack.c.l.b16 %v299
    %v982 = vunpack.c.h.b16 %v299
    %v983 = vunpack.c.l.b16 %v300
    %v984 = vunpack.c.h.b16 %v300
    %v985 = vunpack.c.l.b16 %v301
    %v986 = vunpack.c.h.b16 %v301
    %v987 = vunpack.c.l.b16 %v302
    %v988 = vunpack.c.h.b16 %v302
    %v989 = vunpack.c.l.b16 %v303
    %v990 = vunpack.c.h.b16 %v303
    %v991 = vunpack.c.l.b16 %v304
    %v992 = vunpack.c.h.b16 %v304
    %v993 = vunpack.c.l.b16 %v305
    %v994 = vunpack.c.h.b16 %v305
    %v995 = vunpack.c.l.b16 %v306
    %v996 = vunpack.c.h.b16 %v306
    %v997 = vunpack.c.l.b16 %v307
    %v998 = vunpack.c.h.b16 %v307
    %v999 = vunpack.c.l.b16 %v308
    %v1000 = vunpack.c.h.b16 %v308
    %v1001 = vunpack.c.l.b16 %v309
    %v1002 = vunpack.c.h.b16 %v309
    %v1003 = vunpack.c.l.b16 %v310
    %v1004 = vunpack.c.h.b16 %v310
    %v1005 = vunpack.c.l.b16 %v311
    %v1006 = vunpack.c.h.b16 %v311
    %v1007 = vunpack.c.l.b16 %v312
    %v1008 = vunpack.c.h.b16 %v312
    %v1009 = vunpack.c.l.b16 %v313
    %v1010 = vunpack.c.h.b16 %v313
    %v1011 = vunpack.c.l.b16 %v314
    %v1012 = vunpack.c.h.b16 %v314
    %v1013 = vunpack.c.l.b16 %v315
    %v1014 = vunpack.c.h.b16 %v315
    %v1015 = vunpack.c.l.b16 %v316
    %v1016 = vunpack.c.h.b16 %v316
    %v1017 = vunpack.c.l.b16 %v317
    %v1018 = vunpack.c.h.b16 %v317
    %v1019 = vunpack.c.l.b16 %v318
    %v1020 = vunpack.c.h.b16 %v318
    %v1021 = vunpack.c.l.b16 %v319
    %v1022 = vunpack.c.h.b16 %v319
    %v1023 = vunpack.c.l.b16 %v320
    %v1024 = vunpack.c.h.b16 %v320
    %v1025 = vunpack.c.l.b16 %v321
    %v1026 = vunpack.c.h.b16 %v321
    %v1027 = vunpack.c.l.b16 %v322
    %v1028 = vunpack.c.h.b16 %v322
    %v1029 = vunpack.c.l.b16 %v323
    %v1030 = vunpack.c.h.b16 %v323
    %v1031 = vunpack.c.l.b16 %v324
    %v1032 = vunpack.c.h.b16 %v324
    %v1033 = vunpack.c.l.b16 %v325
    %v1034 = vunpack.c.h.b16 %v325
    %v1035 = vunpack.c.l.b16 %v326
    %v1036 = vunpack.c.h.b16 %v326
    %v1037 = vunpack.c.l.b16 %v327
    %v1038 = vunpack.c.h.b16 %v327
    %v1039 = vunpack.c.l.b16 %v328
    %v1040 = vunpack.c.h.b16 %v328
    %v1041 = vunpack.c.l.b16 %v329
    %v1042 = vunpack.c.h.b16 %v329
    %v1043 = vunpack.c.l.b16 %v330
    %v1044 = vunpack.c.h.b16 %v330
    %v1045 = vunpack.c.l.b16 %v331
    %v1046 = vunpack.c.h.b16 %v331
    %v1047 = vunpack.c.l.b16 %v332
    %v1048 = vunpack.c.h.b16 %v332
    %v1049 = vunpack.c.l.b16 %v333
    %v1050 = vunpack.c.h.b16 %v333
    %v1051 = vunpack.c.l.b16 %v334
    %v1052 = vunpack.c.h.b16 %v334
    %v1053 = vunpack.c.l.b16 %v335
    %v1054 = vunpack.c.h.b16 %v335
    %v1055 = vunpack.c.l.b16 %v336
    %v1056 = vunpack.c.h.b16 %v336
    %v1057 = vunpack.c.l.b16 %v337
    %v1058 = vunpack.c.h.b16 %v337
    %v1059 = vunpack.c.l.b16 %v338
    %v1060 = vunpack.c.h.b16 %v338
    %v1061 = vunpack.c.l.b16 %v339
    %v1062 = vunpack.c.h.b16 %v339
    %v1063 = vunpack.c.l.b16 %v340
    %v1064 = vunpack.c.h.b16 %v340
    %v1065 = vunpack.c.l.b16 %v341
    %v1066 = vunpack.c.h.b16 %v341
    %v1067 = vunpack.c.l.b16 %v342
    %v1068 = vunpack.c.h.b16 %v342
    %v1069 = vunpack.c.l.b16 %v343
    %v1070 = vunpack.c.h.b16 %v343
    %v1071 = vunpack.c.l.b16 %v344
    %v1072 = vunpack.c.h.b16 %v344
    %v1073 = vunpack.c.l.b16 %v345
    %v1074 = vunpack.c.h.b16 %v345
    %v1075 = vunpack.c.l.b16 %v346
    %v1076 = vunpack.c.h.b16 %v346
    %v1077 = vunpack.c.l.b16 %v347
    %v1078 = vunpack.c.h.b16 %v347
    %v1079 = vunpack.c.l.b16 %v348
    %v1080 = vunpack.c.h.b16 %v348
    %v1081 = vunpack.c.l.b16 %v349
    %v1082 = vunpack.c.h.b16 %v349
    %v1083 = vunpack.c.l.b16 %v350
    %v1084 = vunpack.c.h.b16 %v350
    %v1085 = vunpack.c.l.b16 %v351
    %v1086 = vunpack.c.h.b16 %v351
    %v1087 = vunpack.c.l.b16 %v352
    %v1088 = vunpack.c.h.b16 %v352
    %v1089 = vunpack.c.l.b16 %v353
    %v1090 = vunpack.c.h.b16 %v353
    %v1091 = vunpack.c.l.b16 %v354
    %v1092 = vunpack.c.h.b16 %v354
    %v1093 = vunpack.c.l.b16 %v355
    %v1094 = vunpack.c.h.b16 %v355
    %v1095 = vunpack.c.l.b16 %v356
    %v1096 = vunpack.c.h.b16 %v356
    %v1097 = vunpack.c.l.b16 %v357
    %v1098 = vunpack.c.h.b16 %v357
    %v1099 = vunpack.c.l.b16 %v358
    %v1100 = vunpack.c.h.b16 %v358
    %v1101 = vunpack.c.l.b16 %v359
    %v1102 = vunpack.c.h.b16 %v359
    %v1103 = vunpack.c.l.b16 %v360
    %v1104 = vunpack.c.h.b16 %v360
    %v1105 = vunpack.c.l.b16 %v361
    %v1106 = vunpack.c.h.b16 %v361
    %v1107 = vunpack.c.l.b16 %v362
    %v1108 = vunpack.c.h.b16 %v362
    %v1109 = vunpack.c.l.b16 %v363
    %v1110 = vunpack.c.h.b16 %v363
    %v1111 = vunpack.c.l.b16 %v364
    %v1112 = vunpack.c.h.b16 %v364
    %v1113 = vunpack.c.l.b16 %v365
    %v1114 = vunpack.c.h.b16 %v365
    %v1115 = vunpack.c.l.b16 %v366
    %v1116 = vunpack.c.h.b16 %v366
    %v1117 = vunpack.c.l.b16 %v367
    %v1118 = vunpack.c.h.b16 %v367
    %v1119 = vunpack.c.l.b16 %v368
    %v1120 = vunpack.c.h.b16 %v368
    %v1121 = vunpack.c.l.b16 %v369
    %v1122 = vunpack.c.h.b16 %v369
    %v1123 = vunpack.c.l.b16 %v370
    %v1124 = vunpack.c.h.b16 %v370
    %v1125 = vunpack.c.l.b16 %v371
    %v1126 = vunpack.c.h.b16 %v371
    %v1127 = vunpack.c.l.b16 %v372
    %v1128 = vunpack.c.h.b16 %v372
    %v1129 = vunpack.c.l.b16 %v373
    %v1130 = vunpack.c.h.b16 %v373
    %v1131 = vunpack.c.l.b16 %v374
    %v1132 = vunpack.c.h.b16 %v374
    %v1133 = vunpack.c.l.b16 %v375
    %v1134 = vunpack.c.h.b16 %v375
    %v1135 = vunpack.c.l.b16 %v376
    %v1136 = vunpack.c.h.b16 %v376
    %v1137 = vunpack.c.l.b16 %v377
    %v1138 = vunpack.c.h.b16 %v377
    %v1139 = vunpack.c.l.b16 %v378
    %v1140 = vunpack.c.h.b16 %v378
    %v1141 = vunpack.c.l.b16 %v379
    %v1142 = vunpack.c.h.b16 %v379
    %v1143 = vunpack.c.l.b16 %v380
    %v1144 = vunpack.c.h.b16 %v380
    %v1145 = vunpack.c.l.b16 %v381
    %v1146 = vunpack.c.h.b16 %v381
    %v1147 = vunpack.c.l.b16 %v382
    %v1148 = vunpack.c.h.b16 %v382
    %v1149 = vunpack.c.l.b16 %v383
    %v1150 = vunpack.c.h.b16 %v383
    %v1151 = vunpack.c.l.b16 %v384
    %v1152 = vunpack.c.h.b16 %v384
    %v1153 = vpack.c.b16 %v645, %v641
    %v1154 = vpack.c.b16 %v646, %v642
    %v1155 = vpack.c.b16 %v647, %v643
    %v1156 = vpack.c.b16 %v648, %v644
    %v1157 = vpack.c.b16 %v653, %v649
    %v1158 = vpack.c.b16 %v654, %v650
    %v1159 = vpack.c.b16 %v655, %v651
    %v1160 = vpack.c.b16 %v656, %v652
    %v1161 = vpack.c.b16 %v661, %v657
    %v1162 = vpack.c.b16 %v662, %v658
    %v1163 = vpack.c.b16 %v663, %v659
    %v1164 = vpack.c.b16 %v664, %v660
    %v1165 = vpack.c.b16 %v669, %v665
    %v1166 = vpack.c.b16 %v670, %v666
    %v1167 = vpack.c.b16 %v671, %v667
    %v1168 = vpack.c.b16 %v672, %v668
    %v1169 = vpack.c.b16 %v677, %v673
    %v1170 = vpack.c.b16 %v678, %v674
    %v1171 = vpack.c.b16 %v679, %v675
    %v1172 = vpack.c.b16 %v680, %v676
    %v1173 = vpack.c.b16 %v685, %v681
    %v1174 = vpack.c.b16 %v686, %v682
    %v1175 = vpack.c.b16 %v687, %v683
    %v1176 = vpack.c.b16 %v688, %v684
    %v1177 = vpack.c.b16 %v693, %v689
    %v1178 = vpack.c.b16 %v694, %v690
    %v1179 = vpack.c.b16 %v695, %v691
    %v1180 = vpack.c.b16 %v696, %v692
    %v1181 = vpack.c.b16 %v701, %v697
    %v1182 = vpack.c.b16 %v702, %v698
    %v1183 = vpack.c.b16 %v703, %v699
    %v1184 = vpack.c.b16 %v704, %v700
    %v1185 = vpack.c.b16 %v709, %v705
    %v1186 = vpack.c.b16 %v710, %v706
    %v1187 = vpack.c.b16 %v711, %v707
    %v1188 = vpack.c.b16 %v712, %v708
    %v1189 = vpack.c.b16 %v717, %v713
    %v1190 = vpack.c.b16 %v718, %v714
    %v1191 = vpack.c.b16 %v719, %v715
    %v1192 = vpack.c.b16 %v720, %v716
    %v1193 = vpack.c.b16 %v725, %v721
    %v1194 = vpack.c.b16 %v726, %v722
    %v1195 = vpack.c.b16 %v727, %v723
    %v1196 = vpack.c.b16 %v728, %v724
    %v1197 = vpack.c.b16 %v733, %v729
    %v1198 = vpack.c.b16 %v734, %v730
    %v1199 = vpack.c.b16 %v735, %v731
    %v1200 = vpack.c.b16 %v736, %v732
    %v1201 = vpack.c.b16 %v741, %v737
    %v1202 = vpack.c.b16 %v742, %v738
    %v1203 = vpack.c.b16 %v743, %v739
    %v1204 = vpack.c.b16 %v744, %v740
    %v1205 = vpack.c.b16 %v749, %v745
    %v1206 = vpack.c.b16 %v750, %v746
    %v1207 = vpack.c.b16 %v751, %v747
    %v1208 = vpack.c.b16 %v752, %v748
    %v1209 = vpack.c.b16 %v757, %v753
    %v1210 = vpack.c.b16 %v758, %v754
    %v1211 = vpack.c.b16 %v759, %v755
    %v1212 = vpack.c.b16 %v760, %v756
    %v1213 = vpack.c.b16 %v765, %v761
    %v1214 = vpack.c.b16 %v766, %v762
    %v1215 = vpack.c.b16 %v767, %v763
    %v1216 = vpack.c.b16 %v768, %v764
    %v1217 = vpack.c.b16 %v773, %v769
    %v1218 = vpack.c.b16 %v774, %v770
    %v1219 = vpack.c.b16 %v775, %v771
    %v1220 = vpack.c.b16 %v776, %v772
    %v1221 = vpack.c.b16 %v781, %v777
    %v1222 = vpack.c.b16 %v782, %v778
    %v1223 = vpack.c.b16 %v783, %v779
    %v1224 = vpack.c.b16 %v784, %v780
    %v1225 = vpack.c.b16 %v789, %v785
    %v1226 = vpack.c.b16 %v790, %v786
    %v1227 = vpack.c.b16 %v791, %v787
    %v1228 = vpack.c.b16 %v792, %v788
    %v1229 = vpack.c.b16 %v797, %v793
    %v1230 = vpack.c.b16 %v798, %v794
    %v1231 = vpack.c.b16 %v799, %v795
    %v1232 = vpack.c.b16 %v800, %v796
    %v1233 = vpack.c.b16 %v805, %v801
    %v1234 = vpack.c.b16 %v806, %v802
    %v1235 = vpack.c.b16 %v807, %v803
    %v1236 = vpack.c.b16 %v808, %v804
    %v1237 = vpack.c.b16 %v813, %v809
    %v1238 = vpack.c.b16 %v814, %v810
    %v1239 = vpack.c.b16 %v815, %v811
    %v1240 = vpack.c.b16 %v816, %v812
    %v1241 = vpack.c.b16 %v821, %v817
    %v1242 = vpack.c.b16 %v822, %v818
    %v1243 = vpack.c.b16 %v823, %v819
    %v1244 = vpack.c.b16 %v824, %v820
    %v1245 = vpack.c.b16 %v829, %v825
    %v1246 = vpack.c.b16 %v830, %v826
    %v1247 = vpack.c.b16 %v831, %v827
    %v1248 = vpack.c.b16 %v832, %v828
    %v1249 = vpack.c.b16 %v837, %v833
    %v1250 = vpack.c.b16 %v838, %v834
    %v1251 = vpack.c.b16 %v839, %v835
    %v1252 = vpack.c.b16 %v840, %v836
    %v1253 = vpack.c.b16 %v845, %v841
    %v1254 = vpack.c.b16 %v846, %v842
    %v1255 = vpack.c.b16 %v847, %v843
    %v1256 = vpack.c.b16 %v848, %v844
    %v1257 = vpack.c.b16 %v853, %v849
    %v1258 = vpack.c.b16 %v854, %v850
    %v1259 = vpack.c.b16 %v855, %v851
    %v1260 = vpack.c.b16 %v856, %v852
    %v1261 = vpack.c.b16 %v861, %v857
    %v1262 = vpack.c.b16 %v862, %v858
    %v1263 = vpack.c.b16 %v863, %v859
    %v1264 = vpack.c.b16 %v864, %v860
    %v1265 = vpack.c.b16 %v869, %v865
    %v1266 = vpack.c.b16 %v870, %v866
    %v1267 = vpack.c.b16 %v871, %v867
    %v1268 = vpack.c.b16 %v872, %v868
    %v1269 = vpack.c.b16 %v877, %v873
    %v1270 = vpack.c.b16 %v878, %v874
    %v1271 = vpack.c.b16 %v879, %v875
    %v1272 = vpack.c.b16 %v880, %v876
    %v1273 = vpack.c.b16 %v885, %v881
    %v1274 = vpack.c.b16 %v886, %v882
    %v1275 = vpack.c.b16 %v887, %v883
    %v1276 = vpack.c.b16 %v888, %v884
    %v1277 = vpack.c.b16 %v893, %v889
    %v1278 = vpack.c.b16 %v894, %v890
    %v1279 = vpack.c.b16 %v895, %v891
    %v1280 = vpack.c.b16 %v896, %v892
    %v1281 = vpack.c.b16 %v901, %v897
    %v1282 = vpack.c.b16 %v902, %v898
    %v1283 = vpack.c.b16 %v903, %v899
    %v1284 = vpack.c.b16 %v904, %v900
    %v1285 = vpack.c.b16 %v909, %v905
    %v1286 = vpack.c.b16 %v910, %v906
    %v1287 = vpack.c.b16 %v911, %v907
    %v1288 = vpack.c.b16 %v912, %v908
    %v1289 = vpack.c.b16 %v917, %v913
    %v1290 = vpack.c.b16 %v918, %v914
    %v1291 = vpack.c.b16 %v919, %v915
    %v1292 = vpack.c.b16 %v920, %v916
    %v1293 = vpack.c.b16 %v925, %v921
    %v1294 = vpack.c.b16 %v926, %v922
    %v1295 = vpack.c.b16 %v927, %v923
    %v1296 = vpack.c.b16 %v928, %v924
    %v1297 = vpack.c.b16 %v933, %v929
    %v1298 = vpack.c.b16 %v934, %v930
    %v1299 = vpack.c.b16 %v935, %v931
    %v1300 = vpack.c.b16 %v936, %v932
    %v1301 = vpack.c.b16 %v941, %v937
    %v1302 = vpack.c.b16 %v942, %v938
    %v1303 = vpack.c.b16 %v943, %v939
    %v1304 = vpack.c.b16 %v944, %v940
    %v1305 = vpack.c.b16 %v949, %v945
    %v1306 = vpack.c.b16 %v950, %v946
    %v1307 = vpack.c.b16 %v951, %v947
    %v1308 = vpack.c.b16 %v952, %v948
    %v1309 = vpack.c.b16 %v957, %v953
    %v1310 = vpack.c.b16 %v958, %v954
    %v1311 = vpack.c.b16 %v959, %v955
    %v1312 = vpack.c.b16 %v960, %v956
    %v1313 = vpack.c.b16 %v965, %v961
    %v1314 = vpack.c.b16 %v966, %v962
    %v1315 = vpack.c.b16 %v967, %v963
    %v1316 = vpack.c.b16 %v968, %v964
    %v1317 = vpack.c.b16 %v973, %v969
    %v1318 = vpack.c.b16 %v974, %v970
    %v1319 = vpack.c.b16 %v975, %v971
    %v1320 = vpack.c.b16 %v976, %v972
    %v1321 = vpack.c.b16 %v981, %v977
    %v1322 = vpack.c.b16 %v982, %v978
    %v1323 = vpack.c.b16 %v983, %v979
    %v1324 = vpack.c.b16 %v984, %v980
    %v1325 = vpack.c.b16 %v989, %v985
    %v1326 = vpack.c.b16 %v990, %v986
    %v1327 = vpack.c.b16 %v991, %v987
    %v1328 = vpack.c.b16 %v992, %v988
    %v1329 = vpack.c.b16 %v997, %v993
    %v1330 = vpack.c.b16 %v998, %v994
    %v1331 = vpack.c.b16 %v999, %v995
    %v1332 = vpack.c.b16 %v1000, %v996
    %v1333 = vpack.c.b16 %v1005, %v1001
    %v1334 = vpack.c.b16 %v1006, %v1002
    %v1335 = vpack.c.b16 %v1007, %v1003
    %v1336 = vpack.c.b16 %v1008, %v1004
    %v1337 = vpack.c.b16 %v1013, %v1009
    %v1338 = vpack.c.b16 %v1014, %v1010
    %v1339 = vpack.c.b16 %v1015, %v1011
    %v1340 = vpack.c.b16 %v1016, %v1012
    %v1341 = vpack.c.b16 %v1021, %v1017
    %v1342 = vpack.c.b16 %v1022, %v1018
    %v1343 = vpack.c.b16 %v1023, %v1019
    %v1344 = vpack.c.b16 %v1024, %v1020
    %v1345 = vpack.c.b16 %v1029, %v1025
    %v1346 = vpack.c.b16 %v1030, %v1026
    %v1347 = vpack.c.b16 %v1031, %v1027
    %v1348 = vpack.c.b16 %v1032, %v1028
    %v1349 = vpack.c.b16 %v1037, %v1033
    %v1350 = vpack.c.b16 %v1038, %v1034
    %v1351 = vpack.c.b16 %v1039, %v1035
    %v1352 = vpack.c.b16 %v1040, %v1036
    %v1353 = vpack.c.b16 %v1045, %v1041
    %v1354 = vpack.c.b16 %v1046, %v1042
    %v1355 = vpack.c.b16 %v1047, %v1043
    %v1356 = vpack.c.b16 %v1048, %v1044
    %v1357 = vpack.c.b16 %v1053, %v1049
    %v1358 = vpack.c.b16 %v1054, %v1050
    %v1359 = vpack.c.b16 %v1055, %v1051
    %v1360 = vpack.c.b16 %v1056, %v1052
    %v1361 = vpack.c.b16 %v1061, %v1057
    %v1362 = vpack.c.b16 %v1062, %v1058
    %v1363 = vpack.c.b16 %v1063, %v1059
    %v1364 = vpack.c.b16 %v1064, %v1060
    %v1365 = vpack.c.b16 %v1069, %v1065
    %v1366 = vpack.c.b16 %v1070, %v1066
    %v1367 = vpack.c.b16 %v1071, %v1067
    %v1368 = vpack.c.b16 %v1072, %v1068
    %v1369 = vpack.c.b16 %v1077, %v1073
    %v1370 = vpack.c.b16 %v1078, %v1074
    %v1371 = vpack.c.b16 %v1079, %v1075
    %v1372 = vpack.c.b16 %v1080, %v1076
    %v1373 = vpack.c.b16 %v1085, %v1081
    %v1374 = vpack.c.b16 %v1086, %v1082
    %v1375 = vpack.c.b16 %v1087, %v1083
    %v1376 = vpack.c.b16 %v1088, %v1084
    %v1377 = vpack.c.b16 %v1093, %v1089
    %v1378 = vpack.c.b16 %v1094, %v1090
    %v1379 = vpack.c.b16 %v1095, %v1091
    %v1380 = vpack.c.b16 %v1096, %v1092
    %v1381 = vpack.c.b16 %v1101, %v1097
    %v1382 = vpack.c.b16 %v1102, %v1098
    %v1383 = vpack.c.b16 %v1103, %v1099
    %v1384 = vpack.c.b16 %v1104, %v1100
    %v1385 = vpack.c.b16 %v1109, %v1105
    %v1386 = vpack.c.b16 %v1110, %v1106
    %v1387 = vpack.c.b16 %v1111, %v1107
    %v1388 = vpack.c.b16 %v1112, %v1108
    %v1389 = vpack.c.b16 %v1117, %v1113
    %v1390 = vpack.c.b16 %v1118, %v1114
    %v1391 = vpack.c.b16 %v1119, %v1115
    %v1392 = vpack.c.b16 %v1120, %v1116
    %v1393 = vpack.c.b16 %v1125, %v1121
    %v1394 = vpack.c.b16 %v1126, %v1122
    %v1395 = vpack.c.b16 %v1127, %v1123
    %v1396 = vpack.c.b16 %v1128, %v1124
    %v1397 = vpack.c.b16 %v1133, %v1129
    %v1398 = vpack.c.b16 %v1134, %v1130
    %v1399 = vpack.c.b16 %v1135, %v1131
    %v1400 = vpack.c.b16 %v1136, %v1132
    %v1401 = vpack.c.b16 %v1141, %v1137
    %v1402 = vpack.c.b16 %v1142, %v1138
    %v1403 = vpack.c.b16 %v1143, %v1139
    %v1404 = vpack.c.b16 %v1144, %v1140
    %v1405 = vpack.c.b16 %v1149, %v1145
    %v1406 = vpack.c.b16 %v1150, %v1146
    %v1407 = vpack.c.b16 %v1151, %v1147
    %v1408 = vpack.c.b16 %v1152, %v1148
    %1665 = vmatprep.subr.bf16.mxu0 %v1154
    %1666 = vmatpush1.bf16.msra.mxu0 %v1153
    %1667 = vmatprep.subr.bf16.mxu0 %v1158
    %1668 = vmatpush1.bf16.msra.mxu0 %v1157
    %1669 = vmatprep.subr.bf16.mxu0 %v1162
    %1670 = vmatpush1.bf16.msra.mxu0 %v1161
    %1671 = vmatprep.subr.bf16.mxu0 %v1166
    %1672 = vmatpush1.bf16.msra.mxu0 %v1165
    %1673 = vmatprep.subr.bf16.mxu0 %v1170
    %1674 = vmatpush1.bf16.msra.mxu0 %v1169
    %1675 = vmatprep.subr.bf16.mxu0 %v1174
    %1676 = vmatpush1.bf16.msra.mxu0 %v1173
    %1677 = vmatprep.subr.bf16.mxu0 %v1178
    %1678 = vmatpush1.bf16.msra.mxu0 %v1177
    %1679 = vmatprep.subr.bf16.mxu0 %v1182
    %1680 = vmatpush1.bf16.msra.mxu0 %v1181
    %1681 = vmatprep.subr.bf16.mxu0 %v1186
    %1682 = vmatpush1.bf16.msra.mxu0 %v1185
    %1683 = vmatprep.subr.bf16.mxu0 %v1190
    %1684 = vmatpush1.bf16.msra.mxu0 %v1189
    %1685 = vmatprep.subr.bf16.mxu0 %v1194
    %1686 = vmatpush1.bf16.msra.mxu0 %v1193
    %1687 = vmatprep.subr.bf16.mxu0 %v1198
    %1688 = vmatpush1.bf16.msra.mxu0 %v1197
    %1689 = vmatprep.subr.bf16.mxu0 %v1202
    %1690 = vmatpush1.bf16.msra.mxu0 %v1201
    %1691 = vmatprep.subr.bf16.mxu0 %v1206
    %1692 = vmatpush1.bf16.msra.mxu0 %v1205
    %1693 = vmatprep.subr.bf16.mxu0 %v1210
    %1694 = vmatpush1.bf16.msra.mxu0 %v1209
    %1695 = vmatprep.subr.bf16.mxu0 %v1214
    %1696 = vmatpush1.bf16.msra.mxu0 %v1213
    %1697 = vmatprep.mubr.bf16.mxu0 %v122
    %1698 = vmatmul.mubr.bf16.gmra.mrb[0].mxu0 %v121
    %v1699 = vpop.f32.mrb[0].mxu0
    %v1700 = vadd.f32 0.0, %v1699
    %v1701 = vpop.f32.mrb[0].mxu0
    %v1702 = vadd.f32 0.0, %v1701
    %v1703 = vpop.f32.mrb[0].mxu0
    %v1704 = vpop.f32.mrb[0].mxu0
    %1705 = vdwg.mxu0
    %1706 = vmatprep.subr.bf16.mxu0 %v1218
    %1707 = vmatpush1.bf16.msra.mxu0 %v1217
    %1708 = vmatprep.subr.bf16.mxu0 %v1222
    %1709 = vmatpush1.bf16.msra.mxu0 %v1221
    %1710 = vmatprep.subr.bf16.mxu0 %v1226
    %1711 = vmatpush1.bf16.msra.mxu0 %v1225
    %1712 = vmatprep.subr.bf16.mxu0 %v1230
    %1713 = vmatpush1.bf16.msra.mxu0 %v1229
    %1714 = vmatprep.subr.bf16.mxu0 %v1234
    %1715 = vmatpush1.bf16.msra.mxu0 %v1233
    %1716 = vmatprep.subr.bf16.mxu0 %v1238
    %1717 = vmatpush1.bf16.msra.mxu0 %v1237
    %1718 = vmatprep.subr.bf16.mxu0 %v1242
    %1719 = vmatpush1.bf16.msra.mxu0 %v1241
    %1720 = vmatprep.subr.bf16.mxu0 %v1246
    %1721 = vmatpush1.bf16.msra.mxu0 %v1245
    %1722 = vmatprep.subr.bf16.mxu0 %v1250
    %1723 = vmatpush1.bf16.msra.mxu0 %v1249
    %1724 = vmatprep.subr.bf16.mxu0 %v1254
    %1725 = vmatpush1.bf16.msra.mxu0 %v1253
    %1726 = vmatprep.subr.bf16.mxu0 %v1258
    %1727 = vmatpush1.bf16.msra.mxu0 %v1257
    %1728 = vmatprep.subr.bf16.mxu0 %v1262
    %1729 = vmatpush1.bf16.msra.mxu0 %v1261
    %1730 = vmatprep.subr.bf16.mxu0 %v1266
    %1731 = vmatpush1.bf16.msra.mxu0 %v1265
    %1732 = vmatprep.subr.bf16.mxu0 %v1270
    %1733 = vmatpush1.bf16.msra.mxu0 %v1269
    %1734 = vmatprep.subr.bf16.mxu0 %v1274
    %1735 = vmatpush1.bf16.msra.mxu0 %v1273
    %1736 = vmatprep.subr.bf16.mxu0 %v1278
    %1737 = vmatpush1.bf16.msra.mxu0 %v1277
    %1738 = vmatprep.mubr.bf16.mxu0 %v124
    %1739 = vmatmul.mubr.bf16.gmra.mrb[0].mxu0 %v123
    %v1740 = vpop.f32.mrb[0].mxu0
    %v1741 = vadd.f32 %v1700, %v1740
    %v1742 = vpop.f32.mrb[0].mxu0
    %v1743 = vadd.f32 %v1702, %v1742
    %v1744 = vpop.f32.mrb[0].mxu0
    %v1745 = vpop.f32.mrb[0].mxu0
    %1746 = vdwg.mxu0
    %1747 = vmatprep.subr.bf16.mxu0 %v1282
    %1748 = vmatpush1.bf16.msra.mxu0 %v1281
    %1749 = vmatprep.subr.bf16.mxu0 %v1286
    %1750 = vmatpush1.bf16.msra.mxu0 %v1285
    %1751 = vmatprep.subr.bf16.mxu0 %v1290
    %1752 = vmatpush1.bf16.msra.mxu0 %v1289
    %1753 = vmatprep.subr.bf16.mxu0 %v1294
    %1754 = vmatpush1.bf16.msra.mxu0 %v1293
    %1755 = vmatprep.subr.bf16.mxu0 %v1298
    %1756 = vmatpush1.bf16.msra.mxu0 %v1297
    %1757 = vmatprep.subr.bf16.mxu0 %v1302
    %1758 = vmatpush1.bf16.msra.mxu0 %v1301
    %1759 = vmatprep.subr.bf16.mxu0 %v1306
    %1760 = vmatpush1.bf16.msra.mxu0 %v1305
    %1761 = vmatprep.subr.bf16.mxu0 %v1310
    %1762 = vmatpush1.bf16.msra.mxu0 %v1309
    %1763 = vmatprep.subr.bf16.mxu0 %v1314
    %1764 = vmatpush1.bf16.msra.mxu0 %v1313
    %1765 = vmatprep.subr.bf16.mxu0 %v1318
    %1766 = vmatpush1.bf16.msra.mxu0 %v1317
    %1767 = vmatprep.subr.bf16.mxu0 %v1322
    %1768 = vmatpush1.bf16.msra.mxu0 %v1321
    %1769 = vmatprep.subr.bf16.mxu0 %v1326
    %1770 = vmatpush1.bf16.msra.mxu0 %v1325
    %1771 = vmatprep.subr.bf16.mxu0 %v1330
    %1772 = vmatpush1.bf16.msra.mxu0 %v1329
    %1773 = vmatprep.subr.bf16.mxu0 %v1334
    %1774 = vmatpush1.bf16.msra.mxu0 %v1333
    %1775 = vmatprep.subr.bf16.mxu0 %v1338
    %1776 = vmatpush1.bf16.msra.mxu0 %v1337
    %1777 = vmatprep.subr.bf16.mxu0 %v1342
    %1778 = vmatpush1.bf16.msra.mxu0 %v1341
    %1779 = vmatprep.mubr.bf16.mxu0 %v126
    %1780 = vmatmul.mubr.bf16.gmra.mrb[0].mxu0 %v125
    %v1781 = vpop.f32.mrb[0].mxu0
    %v1782 = vadd.f32 %v1741, %v1781
    %v1783 = vpop.f32.mrb[0].mxu0
    %v1784 = vadd.f32 %v1743, %v1783
    %v1785 = vpop.f32.mrb[0].mxu0
    %v1786 = vpop.f32.mrb[0].mxu0
    %1787 = vdwg.mxu0
    %1788 = vmatprep.subr.bf16.mxu0 %v1346
    %1789 = vmatpush1.bf16.msra.mxu0 %v1345
    %1790 = vmatprep.subr.bf16.mxu0 %v1350
    %1791 = vmatpush1.bf16.msra.mxu0 %v1349
    %1792 = vmatprep.subr.bf16.mxu0 %v1354
    %1793 = vmatpush1.bf16.msra.mxu0 %v1353
    %1794 = vmatprep.subr.bf16.mxu0 %v1358
    %1795 = vmatpush1.bf16.msra.mxu0 %v1357
    %1796 = vmatprep.subr.bf16.mxu0 %v1362
    %1797 = vmatpush1.bf16.msra.mxu0 %v1361
    %1798 = vmatprep.subr.bf16.mxu0 %v1366
    %1799 = vmatpush1.bf16.msra.mxu0 %v1365
    %1800 = vmatprep.subr.bf16.mxu0 %v1370
    %1801 = vmatpush1.bf16.msra.mxu0 %v1369
    %1802 = vmatprep.subr.bf16.mxu0 %v1374
    %1803 = vmatpush1.bf16.msra.mxu0 %v1373
    %1804 = vmatprep.subr.bf16.mxu0 %v1378
    %1805 = vmatpush1.bf16.msra.mxu0 %v1377
    %1806 = vmatprep.subr.bf16.mxu0 %v1382
    %1807 = vmatpush1.bf16.msra.mxu0 %v1381
    %1808 = vmatprep.subr.bf16.mxu0 %v1386
    %1809 = vmatpush1.bf16.msra.mxu0 %v1385
    %1810 = vmatprep.subr.bf16.mxu0 %v1390
    %1811 = vmatpush1.bf16.msra.mxu0 %v1389
    %1812 = vmatprep.subr.bf16.mxu0 %v1394
    %1813 = vmatpush1.bf16.msra.mxu0 %v1393
    %1814 = vmatprep.subr.bf16.mxu0 %v1398
    %1815 = vmatpush1.bf16.msra.mxu0 %v1397
    %1816 = vmatprep.subr.bf16.mxu0 %v1402
    %1817 = vmatpush1.bf16.msra.mxu0 %v1401
    %1818 = vmatprep.subr.bf16.mxu0 %v1406
    %1819 = vmatpush1.bf16.msra.mxu0 %v1405
    %1820 = vmatprep.mubr.bf16.mxu0 %v128
    %1821 = vmatmul.mubr.bf16.gmra.mrb[0].mxu0 %v127
    %v1822 = vpop.f32.mrb[0].mxu0
    %v1823 = vadd.f32 %v1782, %v1822
    %v1824 = vpop.f32.mrb[0].mxu0
    %v1825 = vadd.f32 %v1784, %v1824
    %v1826 = vpop.f32.mrb[0].mxu0
    %v1827 = vpop.f32.mrb[0].mxu0
    %1828 = vdwg.mxu0
    %1829 = vmatprep.subr.bf16.mxu0 %v1156
    %1830 = vmatpush1.bf16.msra.mxu0 %v1155
    %1831 = vmatprep.subr.bf16.mxu0 %v1160
    %1832 = vmatpush1.bf16.msra.mxu0 %v1159
    %1833 = vmatprep.subr.bf16.mxu0 %v1164
    %1834 = vmatpush1.bf16.msra.mxu0 %v1163
    %1835 = vmatprep.subr.bf16.mxu0 %v1168
    %1836 = vmatpush1.bf16.msra.mxu0 %v1167
    %1837 = vmatprep.subr.bf16.mxu0 %v1172
    %1838 = vmatpush1.bf16.msra.mxu0 %v1171
    %1839 = vmatprep.subr.bf16.mxu0 %v1176
    %1840 = vmatpush1.bf16.msra.mxu0 %v1175
    %1841 = vmatprep.subr.bf16.mxu0 %v1180
    %1842 = vmatpush1.bf16.msra.mxu0 %v1179
    %1843 = vmatprep.subr.bf16.mxu0 %v1184
    %1844 = vmatpush1.bf16.msra.mxu0 %v1183
    %1845 = vmatprep.subr.bf16.mxu0 %v1188
    %1846 = vmatpush1.bf16.msra.mxu0 %v1187
    %1847 = vmatprep.subr.bf16.mxu0 %v1192
    %1848 = vmatpush1.bf16.msra.mxu0 %v1191
    %1849 = vmatprep.subr.bf16.mxu0 %v1196
    %1850 = vmatpush1.bf16.msra.mxu0 %v1195
    %1851 = vmatprep.subr.bf16.mxu0 %v1200
    %1852 = vmatpush1.bf16.msra.mxu0 %v1199
    %1853 = vmatprep.subr.bf16.mxu0 %v1204
    %1854 = vmatpush1.bf16.msra.mxu0 %v1203
    %1855 = vmatprep.subr.bf16.mxu0 %v1208
    %1856 = vmatpush1.bf16.msra.mxu0 %v1207
    %1857 = vmatprep.subr.bf16.mxu0 %v1212
    %1858 = vmatpush1.bf16.msra.mxu0 %v1211
    %1859 = vmatprep.subr.bf16.mxu0 %v1216
    %1860 = vmatpush1.bf16.msra.mxu0 %v1215
    %1861 = vmatprep.mubr.bf16.mxu0 %v122
    %1862 = vmatmul.mubr.bf16.gmra.mrb[0].mxu0 %v121
    %v1863 = vpop.f32.mrb[0].mxu0
    %v1864 = vadd.f32 0.0, %v1863
    %v1865 = vpop.f32.mrb[0].mxu0
    %v1866 = vadd.f32 0.0, %v1865
    %v1867 = vpop.f32.mrb[0].mxu0
    %v1868 = vpop.f32.mrb[0].mxu0
    %1869 = vdwg.mxu0
    %1870 = vmatprep.subr.bf16.mxu0 %v1220
    %1871 = vmatpush1.bf16.msra.mxu0 %v1219
    %1872 = vmatprep.subr.bf16.mxu0 %v1224
    %1873 = vmatpush1.bf16.msra.mxu0 %v1223
    %1874 = vmatprep.subr.bf16.mxu0 %v1228
    %1875 = vmatpush1.bf16.msra.mxu0 %v1227
    %1876 = vmatprep.subr.bf16.mxu0 %v1232
    %1877 = vmatpush1.bf16.msra.mxu0 %v1231
    %1878 = vmatprep.subr.bf16.mxu0 %v1236
    %1879 = vmatpush1.bf16.msra.mxu0 %v1235
    %1880 = vmatprep.subr.bf16.mxu0 %v1240
    %1881 = vmatpush1.bf16.msra.mxu0 %v1239
    %1882 = vmatprep.subr.bf16.mxu0 %v1244
    %1883 = vmatpush1.bf16.msra.mxu0 %v1243
    %1884 = vmatprep.subr.bf16.mxu0 %v1248
    %1885 = vmatpush1.bf16.msra.mxu0 %v1247
    %1886 = vmatprep.subr.bf16.mxu0 %v1252
    %1887 = vmatpush1.bf16.msra.mxu0 %v1251
    %1888 = vmatprep.subr.bf16.mxu0 %v1256
    %1889 = vmatpush1.bf16.msra.mxu0 %v1255
    %1890 = vmatprep.subr.bf16.mxu0 %v1260
    %1891 = vmatpush1.bf16.msra.mxu0 %v1259
    %1892 = vmatprep.subr.bf16.mxu0 %v1264
    %1893 = vmatpush1.bf16.msra.mxu0 %v1263
    %1894 = vmatprep.subr.bf16.mxu0 %v1268
    %1895 = vmatpush1.bf16.msra.mxu0 %v1267
    %1896 = vmatprep.subr.bf16.mxu0 %v1272
    %1897 = vmatpush1.bf16.msra.mxu0 %v1271
    %1898 = vmatprep.subr.bf16.mxu0 %v1276
    %1899 = vmatpush1.bf16.msra.mxu0 %v1275
    %1900 = vmatprep.subr.bf16.mxu0 %v1280
    %1901 = vmatpush1.bf16.msra.mxu0 %v1279
    %1902 = vmatprep.mubr.bf16.mxu0 %v124
    %1903 = vmatmul.mubr.bf16.gmra.mrb[0].mxu0 %v123
    %v1904 = vpop.f32.mrb[0].mxu0
    %v1905 = vadd.f32 %v1864, %v1904
    %v1906 = vpop.f32.mrb[0].mxu0
    %v1907 = vadd.f32 %v1866, %v1906
    %v1908 = vpop.f32.mrb[0].mxu0
    %v1909 = vpop.f32.mrb[0].mxu0
    %1910 = vdwg.mxu0
    %1911 = vmatprep.subr.bf16.mxu0 %v1284
    %1912 = vmatpush1.bf16.msra.mxu0 %v1283
    %1913 = vmatprep.subr.bf16.mxu0 %v1288
    %1914 = vmatpush1.bf16.msra.mxu0 %v1287
    %1915 = vmatprep.subr.bf16.mxu0 %v1292
    %1916 = vmatpush1.bf16.msra.mxu0 %v1291
    %1917 = vmatprep.subr.bf16.mxu0 %v1296
    %1918 = vmatpush1.bf16.msra.mxu0 %v1295
    %1919 = vmatprep.subr.bf16.mxu0 %v1300
    %1920 = vmatpush1.bf16.msra.mxu0 %v1299
    %1921 = vmatprep.subr.bf16.mxu0 %v1304
    %1922 = vmatpush1.bf16.msra.mxu0 %v1303
    %1923 = vmatprep.subr.bf16.mxu0 %v1308
    %1924 = vmatpush1.bf16.msra.mxu0 %v1307
    %1925 = vmatprep.subr.bf16.mxu0 %v1312
    %1926 = vmatpush1.bf16.msra.mxu0 %v1311
    %1927 = vmatprep.subr.bf16.mxu0 %v1316
    %1928 = vmatpush1.bf16.msra.mxu0 %v1315
    %1929 = vmatprep.subr.bf16.mxu0 %v1320
    %1930 = vmatpush1.bf16.msra.mxu0 %v1319
    %1931 = vmatprep.subr.bf16.mxu0 %v1324
    %1932 = vmatpush1.bf16.msra.mxu0 %v1323
    %1933 = vmatprep.subr.bf16.mxu0 %v1328
    %1934 = vmatpush1.bf16.msra.mxu0 %v1327
    %1935 = vmatprep.subr.bf16.mxu0 %v1332
    %1936 = vmatpush1.bf16.msra.mxu0 %v1331
    %1937 = vmatprep.subr.bf16.mxu0 %v1336
    %1938 = vmatpush1.bf16.msra.mxu0 %v1335
    %1939 = vmatprep.subr.bf16.mxu0 %v1340
    %1940 = vmatpush1.bf16.msra.mxu0 %v1339
    %1941 = vmatprep.subr.bf16.mxu0 %v1344
    %1942 = vmatpush1.bf16.msra.mxu0 %v1343
    %1943 = vmatprep.mubr.bf16.mxu0 %v126
    %1944 = vmatmul.mubr.bf16.gmra.mrb[0].mxu0 %v125
    %v1945 = vpop.f32.mrb[0].mxu0
    %v1946 = vadd.f32 %v1905, %v1945
    %v1947 = vpop.f32.mrb[0].mxu0
    %v1948 = vadd.f32 %v1907, %v1947
    %v1949 = vpop.f32.mrb[0].mxu0
    %v1950 = vpop.f32.mrb[0].mxu0
    %1951 = vdwg.mxu0
    %1952 = vmatprep.subr.bf16.mxu0 %v1348
    %1953 = vmatpush1.bf16.msra.mxu0 %v1347
    %1954 = vmatprep.subr.bf16.mxu0 %v1352
    %1955 = vmatpush1.bf16.msra.mxu0 %v1351
    %1956 = vmatprep.subr.bf16.mxu0 %v1356
    %1957 = vmatpush1.bf16.msra.mxu0 %v1355
    %1958 = vmatprep.subr.bf16.mxu0 %v1360
    %1959 = vmatpush1.bf16.msra.mxu0 %v1359
    %1960 = vmatprep.subr.bf16.mxu0 %v1364
    %1961 = vmatpush1.bf16.msra.mxu0 %v1363
    %1962 = vmatprep.subr.bf16.mxu0 %v1368
    %1963 = vmatpush1.bf16.msra.mxu0 %v1367
    %1964 = vmatprep.subr.bf16.mxu0 %v1372
    %1965 = vmatpush1.bf16.msra.mxu0 %v1371
    %1966 = vmatprep.subr.bf16.mxu0 %v1376
    %1967 = vmatpush1.bf16.msra.mxu0 %v1375
    %1968 = vmatprep.subr.bf16.mxu0 %v1380
    %1969 = vmatpush1.bf16.msra.mxu0 %v1379
    %1970 = vmatprep.subr.bf16.mxu0 %v1384
    %1971 = vmatpush1.bf16.msra.mxu0 %v1383
    %1972 = vmatprep.subr.bf16.mxu0 %v1388
    %1973 = vmatpush1.bf16.msra.mxu0 %v1387
    %1974 = vmatprep.subr.bf16.mxu0 %v1392
    %1975 = vmatpush1.bf16.msra.mxu0 %v1391
    %1976 = vmatprep.subr.bf16.mxu0 %v1396
    %1977 = vmatpush1.bf16.msra.mxu0 %v1395
    %1978 = vmatprep.subr.bf16.mxu0 %v1400
    %1979 = vmatpush1.bf16.msra.mxu0 %v1399
    %1980 = vmatprep.subr.bf16.mxu0 %v1404
    %1981 = vmatpush1.bf16.msra.mxu0 %v1403
    %1982 = vmatprep.subr.bf16.mxu0 %v1408
    %1983 = vmatpush1.bf16.msra.mxu0 %v1407
    %1984 = vmatprep.mubr.bf16.mxu0 %v128
    %1985 = vmatmul.mubr.bf16.gmra.mrb[0].mxu0 %v127
    %v1986 = vpop.f32.mrb[0].mxu0
    %v1987 = vadd.f32 %v1946, %v1986
    %v1988 = vpop.f32.mrb[0].mxu0
    %v1989 = vadd.f32 %v1948, %v1988
    %v1990 = vpop.f32.mrb[0].mxu0
    %v1991 = vpop.f32.mrb[0].mxu0
    %1992 = vdwg.mxu0
    %v1993 = vld [vmem:[%s3] sm:$0xff]
    %v1994 = vld [vmem:[%s3 + $0x8] sm:$0xff]
    %v1995 = vld [vmem:[%s3 + $0x10] sm:$0xff]
    %v1996 = vld [vmem:[%s3 + $0x18] sm:$0xff]
    %vm1997 = vcmask 1041408
    %v1998 = vsel %vm1997, %v1823, 0.0
    %v1999 = vrot.slane %v1998, 4
    %v2000 = vadd.f32 %v1998, %v1999
    %v2001 = vrot.slane %v2000, 2
    %v2002 = vadd.f32 %v2000, %v2001
    %v2003 = vrot.slane %v2002, 1
    %v2004 = vadd.f32 %v2002, %v2003
    %v2005 = vsel %vm1997, %v1825, 0.0
    %v2006 = vrot.slane %v2005, 4
    %v2007 = vadd.f32 %v2005, %v2006
    %v2008 = vrot.slane %v2007, 2
    %v2009 = vadd.f32 %v2007, %v2008
    %v2010 = vrot.slane %v2009, 1
    %v2011 = vadd.f32 %v2009, %v2010
    %v2012 = vsel %vm1997, %v1987, 0.0
    %v2013 = vrot.slane %v2012, 4
    %v2014 = vadd.f32 %v2012, %v2013
    %v2015 = vrot.slane %v2014, 2
    %v2016 = vadd.f32 %v2014, %v2015
    %v2017 = vrot.slane %v2016, 1
    %v2018 = vadd.f32 %v2016, %v2017
    %vm2019 = vcmask 58368
    %v2020 = vsel %vm2019, %v1989, 0.0
    %v2021 = vrot.slane %v2020, 4
    %v2022 = vadd.f32 %v2020, %v2021
    %v2023 = vrot.slane %v2022, 2
    %v2024 = vadd.f32 %v2022, %v2023
    %v2025 = vrot.slane %v2024, 1
    %v2026 = vadd.f32 %v2024, %v2025
    %v2027 = vmul.f32 %v1823, %v1823
    %v2028 = vmul.f32 %v1825, %v1825
    %v2029 = vmul.f32 %v1987, %v1987
    %v2030 = vmul.f32 %v1989, %v1989
    %v2031 = vsel %vm1997, %v2027, 0.0
    %v2032 = vrot.slane %v2031, 4
    %v2033 = vadd.f32 %v2031, %v2032
    %v2034 = vrot.slane %v2033, 2
    %v2035 = vadd.f32 %v2033, %v2034
    %v2036 = vrot.slane %v2035, 1
    %v2037 = vadd.f32 %v2035, %v2036
    %v2038 = vsel %vm1997, %v2028, 0.0
    %v2039 = vrot.slane %v2038, 4
    %v2040 = vadd.f32 %v2038, %v2039
    %v2041 = vrot.slane %v2040, 2
    %v2042 = vadd.f32 %v2040, %v2041
    %v2043 = vrot.slane %v2042, 1
    %v2044 = vadd.f32 %v2042, %v2043
    %v2045 = vsel %vm1997, %v2029, 0.0
    %v2046 = vrot.slane %v2045, 4
    %v2047 = vadd.f32 %v2045, %v2046
    %v2048 = vrot.slane %v2047, 2
    %v2049 = vadd.f32 %v2047, %v2048
    %v2050 = vrot.slane %v2049, 1
    %v2051 = vadd.f32 %v2049, %v2050
    %v2052 = vsel %vm2019, %v2030, 0.0
    %v2053 = vrot.slane %v2052, 4
    %v2054 = vadd.f32 %v2052, %v2053
    %v2055 = vrot.slane %v2054, 2
    %v2056 = vadd.f32 %v2054, %v2055
    %v2057 = vrot.slane %v2056, 1
    %v2058 = vadd.f32 %v2056, %v2057
    %vm2059 = vcmask 64512
    %v2061 = vsel %vm2059, %v2026, 0
    %v2064 = vsel %vm2059, %v1996, 0
    %2066 = vmatprep.subr.mxu0 %v1994
    %2067 = vmatpush1.xpose.msra.mxu0 %v1993
    %2068 = vmatprep.subr.mxu0 0.0
    %2069 = vmatpush1.xpose.msra.mxu0 0.0
    %2070 = vmatprep.subr.mxu0 0.0
    %2071 = vmatpush1.xpose.msra.mxu0 0.0
    %2072 = vmatprep.subr.mxu0 0.0
    %2073 = vmatpush1.xpose.msra.mxu0 0.0
    %2074 = vmatprep.subr.mxu0 0.0
    %2075 = vmatpush1.xpose.msra.mxu0 0.0
    %2076 = vmatprep.subr.mxu0 0.0
    %2077 = vmatpush1.xpose.msra.mxu0 0.0
    %2078 = vmatprep.subr.mxu0 0.0
    %2079 = vmatpush1.xpose.msra.mxu0 0.0
    %2080 = vmatprep.subr.mxu0 0.0
    %2081 = vmatpush1.xpose.msra.mxu0 0.0
    %2082 = vmatprep.subr.mxu0 0.0
    %2083 = vmatpush1.xpose.msra.mxu0 0.0
    %2084 = vmatprep.subr.mxu0 0.0
    %2085 = vmatpush1.xpose.msra.mxu0 0.0
    %2086 = vmatprep.subr.mxu0 0.0
    %2087 = vmatpush1.xpose.msra.mxu0 0.0
    %2088 = vmatprep.subr.mxu0 0.0
    %2089 = vmatpush1.xpose.msra.mxu0 0.0
    %2090 = vmatprep.subr.mxu0 0.0
    %2091 = vmatpush1.xpose.msra.mxu0 0.0
    %2092 = vmatprep.subr.mxu0 0.0
    %2093 = vmatpush1.xpose.msra.mxu0 0.0
    %2094 = vmatprep.subr.mxu0 0.0
    %2095 = vmatpush1.xpose.msra.mxu0 0.0
    %2096 = vmatprep.subr.mxu0 0.0
    %2097 = vmatpush1.xpose.msra.mxu0 0.0
    %2098 = vmatprep.subr.mxu0 0.0
    %2099 = vmatpush1.xpose.msra.mxu0 0.0
    %2100 = vmatprep.subr.mxu0 0.0
    %2101 = vmatpush1.xpose.msra.mxu0 0.0
    %2102 = vmatprep.subr.mxu0 0.0
    %2103 = vmatpush1.xpose.msra.mxu0 0.0
    %2104 = vmatprep.subr.mxu0 0.0
    %2105 = vmatpush1.xpose.msra.mxu0 0.0
    %2106 = vmatprep.subr.mxu0 0.0
    %2107 = vmatpush1.xpose.msra.mxu0 0.0
    %2108 = vmatprep.subr.mxu0 0.0
    %2109 = vmatpush1.xpose.msra.mxu0 0.0
    %2110 = vmatprep.subr.mxu0 0.0
    %2111 = vmatpush1.xpose.msra.mxu0 0.0
    %2112 = vmatprep.subr.mxu0 0.0
    %2113 = vmatpush1.xpose.msra.mxu0 0.0
    %2114 = vmatprep.subr.mxu0 0.0
    %2115 = vmatpush1.xpose.msra.mxu0 0.0
    %2116 = vmatprep.subr.mxu0 0.0
    %2117 = vmatpush1.xpose.msra.mxu0 0.0
    %2118 = vmatprep.subr.mxu0 0.0
    %2119 = vmatpush1.xpose.msra.mxu0 0.0
    %2120 = vmatprep.subr.mxu0 0.0
    %2121 = vmatpush1.xpose.msra.mxu0 0.0
    %2122 = vmatprep.subr.mxu0 0.0
    %2123 = vmatpush1.xpose.msra.mxu0 0.0
    %2124 = vmatprep.subr.mxu0 0.0
    %2125 = vmatpush1.xpose.msra.mxu0 0.0
    %2126 = vmatprep.subr.mxu0 0.0
    %2127 = vmatpush1.xpose.msra.mxu0 0.0
    %2128 = vmatprep.subr.mxu0 0.0
    %2129 = vmatpush1.xpose.msra.mxu0 0.0
    %2130 = vmatprep.mubr.f32.mxu0 %v2011
    %2131 = vmatmul.mubr.f32.gmra.mrb[0].mxu0 %v2004
    %v2132 = vpop.f32.mrb[0].mxu0
    %v2133 = vadd.f32 0.0, %v2132
    %v2134 = vpop.f32.mrb[0].mxu0
    %2135 = vdwg.mxu0
    %2136 = vmatprep.subr.mxu0 %v2064
    %2137 = vmatpush1.xpose.msra.mxu0 %v1995
    %2138 = vmatprep.subr.mxu0 0.0
    %2139 = vmatpush1.xpose.msra.mxu0 0.0
    %2140 = vmatprep.subr.mxu0 0.0
    %2141 = vmatpush1.xpose.msra.mxu0 0.0
    %2142 = vmatprep.subr.mxu0 0.0
    %2143 = vmatpush1.xpose.msra.mxu0 0.0
    %2144 = vmatprep.subr.mxu0 0.0
    %2145 = vmatpush1.xpose.msra.mxu0 0.0
    %2146 = vmatprep.subr.mxu0 0.0
    %2147 = vmatpush1.xpose.msra.mxu0 0.0
    %2148 = vmatprep.subr.mxu0 0.0
    %2149 = vmatpush1.xpose.msra.mxu0 0.0
    %2150 = vmatprep.subr.mxu0 0.0
    %2151 = vmatpush1.xpose.msra.mxu0 0.0
    %2152 = vmatprep.subr.mxu0 0.0
    %2153 = vmatpush1.xpose.msra.mxu0 0.0
    %2154 = vmatprep.subr.mxu0 0.0
    %2155 = vmatpush1.xpose.msra.mxu0 0.0
    %2156 = vmatprep.subr.mxu0 0.0
    %2157 = vmatpush1.xpose.msra.mxu0 0.0
    %2158 = vmatprep.subr.mxu0 0.0
    %2159 = vmatpush1.xpose.msra.mxu0 0.0
    %2160 = vmatprep.subr.mxu0 0.0
    %2161 = vmatpush1.xpose.msra.mxu0 0.0
    %2162 = vmatprep.subr.mxu0 0.0
    %2163 = vmatpush1.xpose.msra.mxu0 0.0
    %2164 = vmatprep.subr.mxu0 0.0
    %2165 = vmatpush1.xpose.msra.mxu0 0.0
    %2166 = vmatprep.subr.mxu0 0.0
    %2167 = vmatpush1.xpose.msra.mxu0 0.0
    %2168 = vmatprep.subr.mxu0 0.0
    %2169 = vmatpush1.xpose.msra.mxu0 0.0
    %2170 = vmatprep.subr.mxu0 0.0
    %2171 = vmatpush1.xpose.msra.mxu0 0.0
    %2172 = vmatprep.subr.mxu0 0.0
    %2173 = vmatpush1.xpose.msra.mxu0 0.0
    %2174 = vmatprep.subr.mxu0 0.0
    %2175 = vmatpush1.xpose.msra.mxu0 0.0
    %2176 = vmatprep.subr.mxu0 0.0
    %2177 = vmatpush1.xpose.msra.mxu0 0.0
    %2178 = vmatprep.subr.mxu0 0.0
    %2179 = vmatpush1.xpose.msra.mxu0 0.0
    %2180 = vmatprep.subr.mxu0 0.0
    %2181 = vmatpush1.xpose.msra.mxu0 0.0
    %2182 = vmatprep.subr.mxu0 0.0
    %2183 = vmatpush1.xpose.msra.mxu0 0.0
    %2184 = vmatprep.subr.mxu0 0.0
    %2185 = vmatpush1.xpose.msra.mxu0 0.0
    %2186 = vmatprep.subr.mxu0 0.0
    %2187 = vmatpush1.xpose.msra.mxu0 0.0
    %2188 = vmatprep.subr.mxu0 0.0
    %2189 = vmatpush1.xpose.msra.mxu0 0.0
    %2190 = vmatprep.subr.mxu0 0.0
    %2191 = vmatpush1.xpose.msra.mxu0 0.0
    %2192 = vmatprep.subr.mxu0 0.0
    %2193 = vmatpush1.xpose.msra.mxu0 0.0
    %2194 = vmatprep.subr.mxu0 0.0
    %2195 = vmatpush1.xpose.msra.mxu0 0.0
    %2196 = vmatprep.subr.mxu0 0.0
    %2197 = vmatpush1.xpose.msra.mxu0 0.0
    %2198 = vmatprep.subr.mxu0 0.0
    %2199 = vmatpush1.xpose.msra.mxu0 0.0
    %2200 = vmatprep.mubr.f32.mxu0 %v2061
    %2201 = vmatmul.mubr.f32.gmra.mrb[0].mxu0 %v2018
    %v2202 = vpop.f32.mrb[0].mxu0
    %v2203 = vadd.f32 %v2133, %v2202
    %v2204 = vpop.f32.mrb[0].mxu0
    %2205 = vdwg.mxu0
    %v2206 = vmul.f32 %v2203, 0.010204081
    %v2208 = vsel %vm2059, %v2058, 0
    %2210 = vmatprep.subr.mxu0 %v1994
    %2211 = vmatpush1.xpose.msra.mxu0 %v1993
    %2212 = vmatprep.subr.mxu0 0.0
    %2213 = vmatpush1.xpose.msra.mxu0 0.0
    %2214 = vmatprep.subr.mxu0 0.0
    %2215 = vmatpush1.xpose.msra.mxu0 0.0
    %2216 = vmatprep.subr.mxu0 0.0
    %2217 = vmatpush1.xpose.msra.mxu0 0.0
    %2218 = vmatprep.subr.mxu0 0.0
    %2219 = vmatpush1.xpose.msra.mxu0 0.0
    %2220 = vmatprep.subr.mxu0 0.0
    %2221 = vmatpush1.xpose.msra.mxu0 0.0
    %2222 = vmatprep.subr.mxu0 0.0
    %2223 = vmatpush1.xpose.msra.mxu0 0.0
    %2224 = vmatprep.subr.mxu0 0.0
    %2225 = vmatpush1.xpose.msra.mxu0 0.0
    %2226 = vmatprep.subr.mxu0 0.0
    %2227 = vmatpush1.xpose.msra.mxu0 0.0
    %2228 = vmatprep.subr.mxu0 0.0
    %2229 = vmatpush1.xpose.msra.mxu0 0.0
    %2230 = vmatprep.subr.mxu0 0.0
    %2231 = vmatpush1.xpose.msra.mxu0 0.0
    %2232 = vmatprep.subr.mxu0 0.0
    %2233 = vmatpush1.xpose.msra.mxu0 0.0
    %2234 = vmatprep.subr.mxu0 0.0
    %2235 = vmatpush1.xpose.msra.mxu0 0.0
    %2236 = vmatprep.subr.mxu0 0.0
    %2237 = vmatpush1.xpose.msra.mxu0 0.0
    %2238 = vmatprep.subr.mxu0 0.0
    %2239 = vmatpush1.xpose.msra.mxu0 0.0
    %2240 = vmatprep.subr.mxu0 0.0
    %2241 = vmatpush1.xpose.msra.mxu0 0.0
    %2242 = vmatprep.subr.mxu0 0.0
    %2243 = vmatpush1.xpose.msra.mxu0 0.0
    %2244 = vmatprep.subr.mxu0 0.0
    %2245 = vmatpush1.xpose.msra.mxu0 0.0
    %2246 = vmatprep.subr.mxu0 0.0
    %2247 = vmatpush1.xpose.msra.mxu0 0.0
    %2248 = vmatprep.subr.mxu0 0.0
    %2249 = vmatpush1.xpose.msra.mxu0 0.0
    %2250 = vmatprep.subr.mxu0 0.0
    %2251 = vmatpush1.xpose.msra.mxu0 0.0
    %2252 = vmatprep.subr.mxu0 0.0
    %2253 = vmatpush1.xpose.msra.mxu0 0.0
    %2254 = vmatprep.subr.mxu0 0.0
    %2255 = vmatpush1.xpose.msra.mxu0 0.0
    %2256 = vmatprep.subr.mxu0 0.0
    %2257 = vmatpush1.xpose.msra.mxu0 0.0
    %2258 = vmatprep.subr.mxu0 0.0
    %2259 = vmatpush1.xpose.msra.mxu0 0.0
    %2260 = vmatprep.subr.mxu0 0.0
    %2261 = vmatpush1.xpose.msra.mxu0 0.0
    %2262 = vmatprep.subr.mxu0 0.0
    %2263 = vmatpush1.xpose.msra.mxu0 0.0
    %2264 = vmatprep.subr.mxu0 0.0
    %2265 = vmatpush1.xpose.msra.mxu0 0.0
    %2266 = vmatprep.subr.mxu0 0.0
    %2267 = vmatpush1.xpose.msra.mxu0 0.0
    %2268 = vmatprep.subr.mxu0 0.0
    %2269 = vmatpush1.xpose.msra.mxu0 0.0
    %2270 = vmatprep.subr.mxu0 0.0
    %2271 = vmatpush1.xpose.msra.mxu0 0.0
    %2272 = vmatprep.subr.mxu0 0.0
    %2273 = vmatpush1.xpose.msra.mxu0 0.0
    %2274 = vmatprep.mubr.f32.mxu0 %v2044
    %2275 = vmatmul.mubr.f32.gmra.mrb[0].mxu0 %v2037
    %v2276 = vpop.f32.mrb[0].mxu0
    %v2277 = vadd.f32 0.0, %v2276
    %v2278 = vpop.f32.mrb[0].mxu0
    %2279 = vdwg.mxu0
    %2280 = vmatprep.subr.mxu0 %v2064
    %2281 = vmatpush1.xpose.msra.mxu0 %v1995
    %2282 = vmatprep.subr.mxu0 0.0
    %2283 = vmatpush1.xpose.msra.mxu0 0.0
    %2284 = vmatprep.subr.mxu0 0.0
    %2285 = vmatpush1.xpose.msra.mxu0 0.0
    %2286 = vmatprep.subr.mxu0 0.0
    %2287 = vmatpush1.xpose.msra.mxu0 0.0
    %2288 = vmatprep.subr.mxu0 0.0
    %2289 = vmatpush1.xpose.msra.mxu0 0.0
    %2290 = vmatprep.subr.mxu0 0.0
    %2291 = vmatpush1.xpose.msra.mxu0 0.0
    %2292 = vmatprep.subr.mxu0 0.0
    %2293 = vmatpush1.xpose.msra.mxu0 0.0
    %2294 = vmatprep.subr.mxu0 0.0
    %2295 = vmatpush1.xpose.msra.mxu0 0.0
    %2296 = vmatprep.subr.mxu0 0.0
    %2297 = vmatpush1.xpose.msra.mxu0 0.0
    %2298 = vmatprep.subr.mxu0 0.0
    %2299 = vmatpush1.xpose.msra.mxu0 0.0
    %2300 = vmatprep.subr.mxu0 0.0
    %2301 = vmatpush1.xpose.msra.mxu0 0.0
    %2302 = vmatprep.subr.mxu0 0.0
    %2303 = vmatpush1.xpose.msra.mxu0 0.0
    %2304 = vmatprep.subr.mxu0 0.0
    %2305 = vmatpush1.xpose.msra.mxu0 0.0
    %2306 = vmatprep.subr.mxu0 0.0
    %2307 = vmatpush1.xpose.msra.mxu0 0.0
    %2308 = vmatprep.subr.mxu0 0.0
    %2309 = vmatpush1.xpose.msra.mxu0 0.0
    %2310 = vmatprep.subr.mxu0 0.0
    %2311 = vmatpush1.xpose.msra.mxu0 0.0
    %2312 = vmatprep.subr.mxu0 0.0
    %2313 = vmatpush1.xpose.msra.mxu0 0.0
    %2314 = vmatprep.subr.mxu0 0.0
    %2315 = vmatpush1.xpose.msra.mxu0 0.0
    %2316 = vmatprep.subr.mxu0 0.0
    %2317 = vmatpush1.xpose.msra.mxu0 0.0
    %2318 = vmatprep.subr.mxu0 0.0
    %2319 = vmatpush1.xpose.msra.mxu0 0.0
    %2320 = vmatprep.subr.mxu0 0.0
    %2321 = vmatpush1.xpose.msra.mxu0 0.0
    %2322 = vmatprep.subr.mxu0 0.0
    %2323 = vmatpush1.xpose.msra.mxu0 0.0
    %2324 = vmatprep.subr.mxu0 0.0
    %2325 = vmatpush1.xpose.msra.mxu0 0.0
    %2326 = vmatprep.subr.mxu0 0.0
    %2327 = vmatpush1.xpose.msra.mxu0 0.0
    %2328 = vmatprep.subr.mxu0 0.0
    %2329 = vmatpush1.xpose.msra.mxu0 0.0
    %2330 = vmatprep.subr.mxu0 0.0
    %2331 = vmatpush1.xpose.msra.mxu0 0.0
    %2332 = vmatprep.subr.mxu0 0.0
    %2333 = vmatpush1.xpose.msra.mxu0 0.0
    %2334 = vmatprep.subr.mxu0 0.0
    %2335 = vmatpush1.xpose.msra.mxu0 0.0
    %2336 = vmatprep.subr.mxu0 0.0
    %2337 = vmatpush1.xpose.msra.mxu0 0.0
    %2338 = vmatprep.subr.mxu0 0.0
    %2339 = vmatpush1.xpose.msra.mxu0 0.0
    %2340 = vmatprep.subr.mxu0 0.0
    %2341 = vmatpush1.xpose.msra.mxu0 0.0
    %2342 = vmatprep.subr.mxu0 0.0
    %2343 = vmatpush1.xpose.msra.mxu0 0.0
    %2344 = vmatprep.mubr.f32.mxu0 %v2208
    %2345 = vmatmul.mubr.f32.gmra.mrb[0].mxu0 %v2051
    %v2346 = vpop.f32.mrb[0].mxu0
    %v2347 = vadd.f32 %v2277, %v2346
    %v2348 = vpop.f32.mrb[0].mxu0
    %2349 = vdwg.mxu0
    %v2350 = vmul.f32 %v2347, 0.010204081
    %v2351 = vmul.f32 %v2206, %v2206
    %v2352 = vsub.f32 %v2350, %v2351
    %v2353 = vld [vmem:[%s4] sm:$0x1]
    %v2354 = vadd.f32 %v2352, 1e-05
    %v2355 = vrsqrt.pop %v2354
    %v2356 = vmul.f32 %v2353, %v2355
    %v2357 = vld [vmem:[%s5] sm:$0x1]
    %v2358 = vmul.f32 %v2206, %v2356
    %v2359 = vsub.f32 %v2357, %v2358
    %v2361 = vsel %vm2059, %v2356, 0
    %2363 = vmatprep.subr.mxu0 %v1994
    %2364 = vmatpush1.msra.mxu0 %v1993
    %2365 = vmatprep.subr.mxu0 0.0
    %2366 = vmatpush1.msra.mxu0 0.0
    %2367 = vmatprep.subr.mxu0 0.0
    %2368 = vmatpush1.msra.mxu0 0.0
    %2369 = vmatprep.subr.mxu0 0.0
    %2370 = vmatpush1.msra.mxu0 0.0
    %2371 = vmatprep.subr.mxu0 0.0
    %2372 = vmatpush1.msra.mxu0 0.0
    %2373 = vmatprep.subr.mxu0 0.0
    %2374 = vmatpush1.msra.mxu0 0.0
    %2375 = vmatprep.subr.mxu0 0.0
    %2376 = vmatpush1.msra.mxu0 0.0
    %2377 = vmatprep.subr.mxu0 0.0
    %2378 = vmatpush1.msra.mxu0 0.0
    %2379 = vmatprep.subr.mxu0 0.0
    %2380 = vmatpush1.msra.mxu0 0.0
    %2381 = vmatprep.subr.mxu0 0.0
    %2382 = vmatpush1.msra.mxu0 0.0
    %2383 = vmatprep.subr.mxu0 0.0
    %2384 = vmatpush1.msra.mxu0 0.0
    %2385 = vmatprep.subr.mxu0 0.0
    %2386 = vmatpush1.msra.mxu0 0.0
    %2387 = vmatprep.subr.mxu0 0.0
    %2388 = vmatpush1.msra.mxu0 0.0
    %2389 = vmatprep.subr.mxu0 0.0
    %2390 = vmatpush1.msra.mxu0 0.0
    %2391 = vmatprep.subr.mxu0 0.0
    %2392 = vmatpush1.msra.mxu0 0.0
    %2393 = vmatprep.subr.mxu0 0.0
    %2394 = vmatpush1.msra.mxu0 0.0
    %2395 = vmatprep.subr.mxu0 0.0
    %2396 = vmatpush1.msra.mxu0 0.0
    %2397 = vmatprep.subr.mxu0 0.0
    %2398 = vmatpush1.msra.mxu0 0.0
    %2399 = vmatprep.subr.mxu0 0.0
    %2400 = vmatpush1.msra.mxu0 0.0
    %2401 = vmatprep.subr.mxu0 0.0
    %2402 = vmatpush1.msra.mxu0 0.0
    %2403 = vmatprep.subr.mxu0 0.0
    %2404 = vmatpush1.msra.mxu0 0.0
    %2405 = vmatprep.subr.mxu0 0.0
    %2406 = vmatpush1.msra.mxu0 0.0
    %2407 = vmatprep.subr.mxu0 0.0
    %2408 = vmatpush1.msra.mxu0 0.0
    %2409 = vmatprep.subr.mxu0 0.0
    %2410 = vmatpush1.msra.mxu0 0.0
    %2411 = vmatprep.subr.mxu0 0.0
    %2412 = vmatpush1.msra.mxu0 0.0
    %2413 = vmatprep.subr.mxu0 0.0
    %2414 = vmatpush1.msra.mxu0 0.0
    %2415 = vmatprep.subr.mxu0 0.0
    %2416 = vmatpush1.msra.mxu0 0.0
    %2417 = vmatprep.subr.mxu0 0.0
    %2418 = vmatpush1.msra.mxu0 0.0
    %2419 = vmatprep.subr.mxu0 0.0
    %2420 = vmatpush1.msra.mxu0 0.0
    %2421 = vmatprep.subr.mxu0 0.0
    %2422 = vmatpush1.msra.mxu0 0.0
    %2423 = vmatprep.subr.mxu0 0.0
    %2424 = vmatpush1.msra.mxu0 0.0
    %2425 = vmatprep.subr.mxu0 0.0
    %2426 = vmatpush1.msra.mxu0 0.0
    %2427 = vmatprep.mubr.f32.mxu0 0.0
    %2428 = vmatmul.mubr.f32.gmra.mrb[0].mxu0 %v2361
    %v2429 = vpop.f32.mrb[0].mxu0
    %v2430 = vadd.f32 0.0, %v2429
    %v2431 = vpop.f32.mrb[0].mxu0
    %v2432 = vadd.f32 0.0, %v2431
    %2433 = vdwg.mxu0
    %2434 = vmatprep.subr.mxu0 %v1996
    %2435 = vmatpush1.msra.mxu0 %v1995
    %2436 = vmatprep.subr.mxu0 0.0
    %2437 = vmatpush1.msra.mxu0 0.0
    %2438 = vmatprep.subr.mxu0 0.0
    %2439 = vmatpush1.msra.mxu0 0.0
    %2440 = vmatprep.subr.mxu0 0.0
    %2441 = vmatpush1.msra.mxu0 0.0
    %2442 = vmatprep.subr.mxu0 0.0
    %2443 = vmatpush1.msra.mxu0 0.0
    %2444 = vmatprep.subr.mxu0 0.0
    %2445 = vmatpush1.msra.mxu0 0.0
    %2446 = vmatprep.subr.mxu0 0.0
    %2447 = vmatpush1.msra.mxu0 0.0
    %2448 = vmatprep.subr.mxu0 0.0
    %2449 = vmatpush1.msra.mxu0 0.0
    %2450 = vmatprep.subr.mxu0 0.0
    %2451 = vmatpush1.msra.mxu0 0.0
    %2452 = vmatprep.subr.mxu0 0.0
    %2453 = vmatpush1.msra.mxu0 0.0
    %2454 = vmatprep.subr.mxu0 0.0
    %2455 = vmatpush1.msra.mxu0 0.0
    %2456 = vmatprep.subr.mxu0 0.0
    %2457 = vmatpush1.msra.mxu0 0.0
    %2458 = vmatprep.subr.mxu0 0.0
    %2459 = vmatpush1.msra.mxu0 0.0
    %2460 = vmatprep.subr.mxu0 0.0
    %2461 = vmatpush1.msra.mxu0 0.0
    %2462 = vmatprep.subr.mxu0 0.0
    %2463 = vmatpush1.msra.mxu0 0.0
    %2464 = vmatprep.subr.mxu0 0.0
    %2465 = vmatpush1.msra.mxu0 0.0
    %2466 = vmatprep.subr.mxu0 0.0
    %2467 = vmatpush1.msra.mxu0 0.0
    %2468 = vmatprep.subr.mxu0 0.0
    %2469 = vmatpush1.msra.mxu0 0.0
    %2470 = vmatprep.subr.mxu0 0.0
    %2471 = vmatpush1.msra.mxu0 0.0
    %2472 = vmatprep.subr.mxu0 0.0
    %2473 = vmatpush1.msra.mxu0 0.0
    %2474 = vmatprep.subr.mxu0 0.0
    %2475 = vmatpush1.msra.mxu0 0.0
    %2476 = vmatprep.subr.mxu0 0.0
    %2477 = vmatpush1.msra.mxu0 0.0
    %2478 = vmatprep.subr.mxu0 0.0
    %2479 = vmatpush1.msra.mxu0 0.0
    %2480 = vmatprep.subr.mxu0 0.0
    %2481 = vmatpush1.msra.mxu0 0.0
    %2482 = vmatprep.subr.mxu0 0.0
    %2483 = vmatpush1.msra.mxu0 0.0
    %2484 = vmatprep.subr.mxu0 0.0
    %2485 = vmatpush1.msra.mxu0 0.0
    %2486 = vmatprep.subr.mxu0 0.0
    %2487 = vmatpush1.msra.mxu0 0.0
    %2488 = vmatprep.subr.mxu0 0.0
    %2489 = vmatpush1.msra.mxu0 0.0
    %2490 = vmatprep.subr.mxu0 0.0
    %2491 = vmatpush1.msra.mxu0 0.0
    %2492 = vmatprep.subr.mxu0 0.0
    %2493 = vmatpush1.msra.mxu0 0.0
    %2494 = vmatprep.subr.mxu0 0.0
    %2495 = vmatpush1.msra.mxu0 0.0
    %2496 = vmatprep.subr.mxu0 0.0
    %2497 = vmatpush1.msra.mxu0 0.0
    %2498 = vmatprep.mubr.f32.mxu0 0.0
    %2499 = vmatmul.mubr.f32.gmra.mrb[0].mxu0 %v2361
    %v2500 = vpop.f32.mrb[0].mxu0
    %v2501 = vadd.f32 0.0, %v2500
    %v2502 = vpop.f32.mrb[0].mxu0
    %v2503 = vadd.f32 0.0, %v2502
    %2504 = vdwg.mxu0
    %v2506 = vsel %vm2059, %v2359, 0
    %2508 = vmatprep.subr.mxu0 %v1994
    %2509 = vmatpush1.msra.mxu0 %v1993
    %2510 = vmatprep.subr.mxu0 0.0
    %2511 = vmatpush1.msra.mxu0 0.0
    %2512 = vmatprep.subr.mxu0 0.0
    %2513 = vmatpush1.msra.mxu0 0.0
    %2514 = vmatprep.subr.mxu0 0.0
    %2515 = vmatpush1.msra.mxu0 0.0
    %2516 = vmatprep.subr.mxu0 0.0
    %2517 = vmatpush1.msra.mxu0 0.0
    %2518 = vmatprep.subr.mxu0 0.0
    %2519 = vmatpush1.msra.mxu0 0.0
    %2520 = vmatprep.subr.mxu0 0.0
    %2521 = vmatpush1.msra.mxu0 0.0
    %2522 = vmatprep.subr.mxu0 0.0
    %2523 = vmatpush1.msra.mxu0 0.0
    %2524 = vmatprep.subr.mxu0 0.0
    %2525 = vmatpush1.msra.mxu0 0.0
    %2526 = vmatprep.subr.mxu0 0.0
    %2527 = vmatpush1.msra.mxu0 0.0
    %2528 = vmatprep.subr.mxu0 0.0
    %2529 = vmatpush1.msra.mxu0 0.0
    %2530 = vmatprep.subr.mxu0 0.0
    %2531 = vmatpush1.msra.mxu0 0.0
    %2532 = vmatprep.subr.mxu0 0.0
    %2533 = vmatpush1.msra.mxu0 0.0
    %2534 = vmatprep.subr.mxu0 0.0
    %2535 = vmatpush1.msra.mxu0 0.0
    %2536 = vmatprep.subr.mxu0 0.0
    %2537 = vmatpush1.msra.mxu0 0.0
    %2538 = vmatprep.subr.mxu0 0.0
    %2539 = vmatpush1.msra.mxu0 0.0
    %2540 = vmatprep.subr.mxu0 0.0
    %2541 = vmatpush1.msra.mxu0 0.0
    %2542 = vmatprep.subr.mxu0 0.0
    %2543 = vmatpush1.msra.mxu0 0.0
    %2544 = vmatprep.subr.mxu0 0.0
    %2545 = vmatpush1.msra.mxu0 0.0
    %2546 = vmatprep.subr.mxu0 0.0
    %2547 = vmatpush1.msra.mxu0 0.0
    %2548 = vmatprep.subr.mxu0 0.0
    %2549 = vmatpush1.msra.mxu0 0.0
    %2550 = vmatprep.subr.mxu0 0.0
    %2551 = vmatpush1.msra.mxu0 0.0
    %2552 = vmatprep.subr.mxu0 0.0
    %2553 = vmatpush1.msra.mxu0 0.0
    %2554 = vmatprep.subr.mxu0 0.0
    %2555 = vmatpush1.msra.mxu0 0.0
    %2556 = vmatprep.subr.mxu0 0.0
    %2557 = vmatpush1.msra.mxu0 0.0
    %2558 = vmatprep.subr.mxu0 0.0
    %2559 = vmatpush1.msra.mxu0 0.0
    %2560 = vmatprep.subr.mxu0 0.0
    %2561 = vmatpush1.msra.mxu0 0.0
    %2562 = vmatprep.subr.mxu0 0.0
    %2563 = vmatpush1.msra.mxu0 0.0
    %2564 = vmatprep.subr.mxu0 0.0
    %2565 = vmatpush1.msra.mxu0 0.0
    %2566 = vmatprep.subr.mxu0 0.0
    %2567 = vmatpush1.msra.mxu0 0.0
    %2568 = vmatprep.subr.mxu0 0.0
    %2569 = vmatpush1.msra.mxu0 0.0
    %2570 = vmatprep.subr.mxu0 0.0
    %2571 = vmatpush1.msra.mxu0 0.0
    %2572 = vmatprep.mubr.f32.mxu0 0.0
    %2573 = vmatmul.mubr.f32.gmra.mrb[0].mxu0 %v2506
    %v2574 = vpop.f32.mrb[0].mxu0
    %v2575 = vadd.f32 0.0, %v2574
    %v2576 = vpop.f32.mrb[0].mxu0
    %v2577 = vadd.f32 0.0, %v2576
    %2578 = vdwg.mxu0
    %2579 = vmatprep.subr.mxu0 %v1996
    %2580 = vmatpush1.msra.mxu0 %v1995
    %2581 = vmatprep.subr.mxu0 0.0
    %2582 = vmatpush1.msra.mxu0 0.0
    %2583 = vmatprep.subr.mxu0 0.0
    %2584 = vmatpush1.msra.mxu0 0.0
    %2585 = vmatprep.subr.mxu0 0.0
    %2586 = vmatpush1.msra.mxu0 0.0
    %2587 = vmatprep.subr.mxu0 0.0
    %2588 = vmatpush1.msra.mxu0 0.0
    %2589 = vmatprep.subr.mxu0 0.0
    %2590 = vmatpush1.msra.mxu0 0.0
    %2591 = vmatprep.subr.mxu0 0.0
    %2592 = vmatpush1.msra.mxu0 0.0
    %2593 = vmatprep.subr.mxu0 0.0
    %2594 = vmatpush1.msra.mxu0 0.0
    %2595 = vmatprep.subr.mxu0 0.0
    %2596 = vmatpush1.msra.mxu0 0.0
    %2597 = vmatprep.subr.mxu0 0.0
    %2598 = vmatpush1.msra.mxu0 0.0
    %2599 = vmatprep.subr.mxu0 0.0
    %2600 = vmatpush1.msra.mxu0 0.0
    %2601 = vmatprep.subr.mxu0 0.0
    %2602 = vmatpush1.msra.mxu0 0.0
    %2603 = vmatprep.subr.mxu0 0.0
    %2604 = vmatpush1.msra.mxu0 0.0
    %2605 = vmatprep.subr.mxu0 0.0
    %2606 = vmatpush1.msra.mxu0 0.0
    %2607 = vmatprep.subr.mxu0 0.0
    %2608 = vmatpush1.msra.mxu0 0.0
    %2609 = vmatprep.subr.mxu0 0.0
    %2610 = vmatpush1.msra.mxu0 0.0
    %2611 = vmatprep.subr.mxu0 0.0
    %2612 = vmatpush1.msra.mxu0 0.0
    %2613 = vmatprep.subr.mxu0 0.0
    %2614 = vmatpush1.msra.mxu0 0.0
    %2615 = vmatprep.subr.mxu0 0.0
    %2616 = vmatpush1.msra.mxu0 0.0
    %2617 = vmatprep.subr.mxu0 0.0
    %2618 = vmatpush1.msra.mxu0 0.0
    %2619 = vmatprep.subr.mxu0 0.0
    %2620 = vmatpush1.msra.mxu0 0.0
    %2621 = vmatprep.subr.mxu0 0.0
    %2622 = vmatpush1.msra.mxu0 0.0
    %2623 = vmatprep.subr.mxu0 0.0
    %2624 = vmatpush1.msra.mxu0 0.0
    %2625 = vmatprep.subr.mxu0 0.0
    %2626 = vmatpush1.msra.mxu0 0.0
    %2627 = vmatprep.subr.mxu0 0.0
    %2628 = vmatpush1.msra.mxu0 0.0
    %2629 = vmatprep.subr.mxu0 0.0
    %2630 = vmatpush1.msra.mxu0 0.0
    %2631 = vmatprep.subr.mxu0 0.0
    %2632 = vmatpush1.msra.mxu0 0.0
    %2633 = vmatprep.subr.mxu0 0.0
    %2634 = vmatpush1.msra.mxu0 0.0
    %2635 = vmatprep.subr.mxu0 0.0
    %2636 = vmatpush1.msra.mxu0 0.0
    %2637 = vmatprep.subr.mxu0 0.0
    %2638 = vmatpush1.msra.mxu0 0.0
    %2639 = vmatprep.subr.mxu0 0.0
    %2640 = vmatpush1.msra.mxu0 0.0
    %2641 = vmatprep.subr.mxu0 0.0
    %2642 = vmatpush1.msra.mxu0 0.0
    %2643 = vmatprep.mubr.f32.mxu0 0.0
    %2644 = vmatmul.mubr.f32.gmra.mrb[0].mxu0 %v2506
    %v2645 = vpop.f32.mrb[0].mxu0
    %v2646 = vadd.f32 0.0, %v2645
    %v2647 = vpop.f32.mrb[0].mxu0
    %v2648 = vadd.f32 0.0, %v2647
    %2649 = vdwg.mxu0
    %v2650 = vlaneseq
    %v2651 = vshrl.u32 %v2650, 7
    %v2652 = vsub.s32 0, %v2651
    %v2653 = vrot.slane %v2430, %v2652
    %v2654 = vlaneseq
    %v2655 = vshrl.u32 %v2654, 7
    %v2656 = vsub.s32 0, %v2655
    %v2657 = vrot.slane %v2432, %v2656
    %v2658 = vlaneseq
    %v2659 = vshrl.u32 %v2658, 7
    %v2660 = vsub.s32 0, %v2659
    %v2661 = vrot.slane %v2501, %v2660
    %v2662 = vlaneseq
    %v2663 = vshrl.u32 %v2662, 7
    %v2664 = vsub.s32 0, %v2663
    %v2665 = vrot.slane %v2503, %v2664
    %v2666 = vmul.f32 %v1823, %v2653
    %v2667 = vmul.f32 %v1825, %v2657
    %v2668 = vmul.f32 %v1987, %v2661
    %v2669 = vmul.f32 %v1989, %v2665
    %v2670 = vlaneseq
    %v2671 = vshrl.u32 %v2670, 7
    %v2672 = vsub.s32 0, %v2671
    %v2673 = vrot.slane %v2575, %v2672
    %v2674 = vlaneseq
    %v2675 = vshrl.u32 %v2674, 7
    %v2676 = vsub.s32 0, %v2675
    %v2677 = vrot.slane %v2577, %v2676
    %v2678 = vlaneseq
    %v2679 = vshrl.u32 %v2678, 7
    %v2680 = vsub.s32 0, %v2679
    %v2681 = vrot.slane %v2646, %v2680
    %v2682 = vlaneseq
    %v2683 = vshrl.u32 %v2682, 7
    %v2684 = vsub.s32 0, %v2683
    %v2685 = vrot.slane %v2648, %v2684
    %v2686 = vadd.f32 %v2666, %v2673
    %v2687 = vadd.f32 %v2667, %v2677
    %v2688 = vadd.f32 %v2668, %v2681
    %v2689 = vadd.f32 %v2669, %v2685
    %v2690 = vmul.f32 %v2686, 0.5
    %v2691 = vmul.f32 %v2687, 0.5
    %v2692 = vmul.f32 %v2688, 0.5
    %v2693 = vmul.f32 %v2689, 0.5
    %v2694 = vmul.f32 %v2686, 0.044715
    %v2695 = vmul.f32 %v2687, 0.044715
    %v2696 = vmul.f32 %v2688, 0.044715
    %v2697 = vmul.f32 %v2689, 0.044715
    %v2698 = vmul.f32 %v2694, %v2686
    %v2699 = vmul.f32 %v2695, %v2687
    %v2700 = vmul.f32 %v2696, %v2688
    %v2701 = vmul.f32 %v2697, %v2689
    %v2702 = vmul.f32 %v2698, %v2686
    %v2703 = vmul.f32 %v2699, %v2687
    %v2704 = vmul.f32 %v2700, %v2688
    %v2705 = vmul.f32 %v2701, %v2689
    %v2706 = vadd.f32 %v2686, %v2702
    %v2707 = vadd.f32 %v2687, %v2703
    %v2708 = vadd.f32 %v2688, %v2704
    %v2709 = vadd.f32 %v2689, %v2705
    %v2710 = vmul.f32 %v2706, 0.7978846
    %v2711 = vmul.f32 %v2707, 0.7978846
    %v2712 = vmul.f32 %v2708, 0.7978846
    %v2713 = vmul.f32 %v2709, 0.7978846
    %v2714 = vtanh.pop %v2710
    %v2715 = vtanh.pop %v2711
    %v2716 = vtanh.pop %v2712
    %v2717 = vtanh.pop %v2713
    %v2718 = vadd.f32 %v2714, 1.0
    %v2719 = vadd.f32 %v2715, 1.0
    %v2720 = vadd.f32 %v2716, 1.0
    %v2721 = vadd.f32 %v2717, 1.0
    %v2722 = vmul.f32 %v2690, %v2718
    %v2723 = vmul.f32 %v2691, %v2719
    %v2724 = vmul.f32 %v2692, %v2720
    %v2725 = vmul.f32 %v2693, %v2721
    %v2726 = vpack.c.bf16 %v2722, %v2722
    %v2727 = vpack.c.bf16 %v2723, %v2723
    %v2728 = vpack.c.bf16 %v2724, %v2724
    %v2729 = vpack.c.bf16 %v2725, %v2725
    %v2730 = vld [vmem:[%s6] sm:$0xff]
    %v2731 = vld [vmem:[%s6 + $0x8] sm:$0xff]
    %v2732 = vld [vmem:[%s6 + $0x10] sm:$0xff]
    %v2733 = vld [vmem:[%s6 + $0x18] sm:$0xff]
    %v2734 = vld [vmem:[%s6 + $0x20] sm:$0xff]
    %v2735 = vld [vmem:[%s6 + $0x28] sm:$0xff]
    %v2736 = vld [vmem:[%s6 + $0x30] sm:$0xff]
    %v2737 = vld [vmem:[%s6 + $0x38] sm:$0xff]
    %v2738 = vld [vmem:[%s6 + $0x40] sm:$0xff]
    %v2739 = vld [vmem:[%s6 + $0x48] sm:$0xff]
    %v2740 = vld [vmem:[%s6 + $0x50] sm:$0xff]
    %v2741 = vld [vmem:[%s6 + $0x58] sm:$0xff]
    %v2742 = vld [vmem:[%s6 + $0x60] sm:$0xff]
    %v2743 = vld [vmem:[%s6 + $0x68] sm:$0xff]
    %v2744 = vld [vmem:[%s6 + $0x70] sm:$0xff]
    %v2745 = vld [vmem:[%s6 + $0x78] sm:$0xff]
    %v2746 = vld [vmem:[%s6 + $0x80] sm:$0xff]
    %v2747 = vld [vmem:[%s6 + $0x88] sm:$0xff]
    %v2748 = vld [vmem:[%s6 + $0x90] sm:$0xff]
    %v2749 = vld [vmem:[%s6 + $0x98] sm:$0xff]
    %v2750 = vld [vmem:[%s6 + $0xa0] sm:$0xff]
    %v2751 = vld [vmem:[%s6 + $0xa8] sm:$0xff]
    %v2752 = vld [vmem:[%s6 + $0xb0] sm:$0xff]
    %v2753 = vld [vmem:[%s6 + $0xb8] sm:$0xff]
    %v2754 = vld [vmem:[%s6 + $0xc0] sm:$0xff]
    %v2755 = vld [vmem:[%s6 + $0xc8] sm:$0xff]
    %v2756 = vld [vmem:[%s6 + $0xd0] sm:$0xff]
    %v2757 = vld [vmem:[%s6 + $0xd8] sm:$0xff]
    %v2758 = vld [vmem:[%s6 + $0xe0] sm:$0xff]
    %v2759 = vld [vmem:[%s6 + $0xe8] sm:$0xff]
    %v2760 = vld [vmem:[%s6 + $0xf0] sm:$0xff]
    %v2761 = vld [vmem:[%s6 + $0xf8] sm:$0xff]
    %v2762 = vld [vmem:[%s6 + $0x100] sm:$0xff]
    %v2763 = vld [vmem:[%s6 + $0x108] sm:$0xff]
    %v2764 = vld [vmem:[%s6 + $0x110] sm:$0xff]
    %v2765 = vld [vmem:[%s6 + $0x118] sm:$0xff]
    %v2766 = vld [vmem:[%s6 + $0x120] sm:$0xff]
    %v2767 = vld [vmem:[%s6 + $0x128] sm:$0xff]
    %v2768 = vld [vmem:[%s6 + $0x130] sm:$0xff]
    %v2769 = vld [vmem:[%s6 + $0x138] sm:$0xff]
    %v2770 = vld [vmem:[%s6 + $0x140] sm:$0xff]
    %v2771 = vld [vmem:[%s6 + $0x148] sm:$0xff]
    %v2772 = vld [vmem:[%s6 + $0x150] sm:$0xff]
    %v2773 = vld [vmem:[%s6 + $0x158] sm:$0xff]
    %v2774 = vld [vmem:[%s6 + $0x160] sm:$0xff]
    %v2775 = vld [vmem:[%s6 + $0x168] sm:$0xff]
    %v2776 = vld [vmem:[%s6 + $0x170] sm:$0xff]
    %v2777 = vld [vmem:[%s6 + $0x178] sm:$0xff]
    %v2778 = vld [vmem:[%s6 + $0x180] sm:$0xff]
    %v2828 = vunpack.c.l.b16 %v2730
    %v2829 = vunpack.c.h.b16 %v2730
    %v2830 = vunpack.c.l.b16 %v2731
    %v2831 = vunpack.c.h.b16 %v2731
    %v2832 = vunpack.c.l.b16 %v2732
    %v2833 = vunpack.c.h.b16 %v2732
    %v2834 = vunpack.c.l.b16 %v2733
    %v2835 = vunpack.c.h.b16 %v2733
    %v2836 = vunpack.c.l.b16 %v2734
    %v2837 = vunpack.c.h.b16 %v2734
    %v2838 = vunpack.c.l.b16 %v2735
    %v2839 = vunpack.c.h.b16 %v2735
    %v2840 = vunpack.c.l.b16 %v2736
    %v2841 = vunpack.c.h.b16 %v2736
    %v2842 = vunpack.c.l.b16 %v2737
    %v2843 = vunpack.c.h.b16 %v2737
    %v2844 = vunpack.c.l.b16 %v2738
    %v2845 = vunpack.c.h.b16 %v2738
    %v2846 = vunpack.c.l.b16 %v2739
    %v2847 = vunpack.c.h.b16 %v2739
    %v2848 = vunpack.c.l.b16 %v2740
    %v2849 = vunpack.c.h.b16 %v2740
    %v2850 = vunpack.c.l.b16 %v2741
    %v2851 = vunpack.c.h.b16 %v2741
    %v2852 = vunpack.c.l.b16 %v2742
    %v2853 = vunpack.c.h.b16 %v2742
    %v2854 = vunpack.c.l.b16 %v2743
    %v2855 = vunpack.c.h.b16 %v2743
    %v2856 = vunpack.c.l.b16 %v2744
    %v2857 = vunpack.c.h.b16 %v2744
    %v2858 = vunpack.c.l.b16 %v2745
    %v2859 = vunpack.c.h.b16 %v2745
    %v2860 = vunpack.c.l.b16 %v2746
    %v2861 = vunpack.c.h.b16 %v2746
    %v2862 = vunpack.c.l.b16 %v2747
    %v2863 = vunpack.c.h.b16 %v2747
    %v2864 = vunpack.c.l.b16 %v2748
    %v2865 = vunpack.c.h.b16 %v2748
    %v2866 = vunpack.c.l.b16 %v2749
    %v2867 = vunpack.c.h.b16 %v2749
    %v2868 = vunpack.c.l.b16 %v2750
    %v2869 = vunpack.c.h.b16 %v2750
    %v2870 = vunpack.c.l.b16 %v2751
    %v2871 = vunpack.c.h.b16 %v2751
    %v2872 = vunpack.c.l.b16 %v2752
    %v2873 = vunpack.c.h.b16 %v2752
    %v2874 = vunpack.c.l.b16 %v2753
    %v2875 = vunpack.c.h.b16 %v2753
    %v2876 = vunpack.c.l.b16 %v2754
    %v2877 = vunpack.c.h.b16 %v2754
    %v2878 = vunpack.c.l.b16 %v2755
    %v2879 = vunpack.c.h.b16 %v2755
    %v2880 = vunpack.c.l.b16 %v2756
    %v2881 = vunpack.c.h.b16 %v2756
    %v2882 = vunpack.c.l.b16 %v2757
    %v2883 = vunpack.c.h.b16 %v2757
    %v2884 = vunpack.c.l.b16 %v2758
    %v2885 = vunpack.c.h.b16 %v2758
    %v2886 = vunpack.c.l.b16 %v2759
    %v2887 = vunpack.c.h.b16 %v2759
    %v2888 = vunpack.c.l.b16 %v2760
    %v2889 = vunpack.c.h.b16 %v2760
    %v2890 = vunpack.c.l.b16 %v2761
    %v2891 = vunpack.c.h.b16 %v2761
    %v2892 = vunpack.c.l.b16 %v2762
    %v2893 = vunpack.c.h.b16 %v2762
    %v2894 = vunpack.c.l.b16 %v2763
    %v2895 = vunpack.c.h.b16 %v2763
    %v2896 = vunpack.c.l.b16 %v2764
    %v2897 = vunpack.c.h.b16 %v2764
    %v2898 = vunpack.c.l.b16 %v2765
    %v2899 = vunpack.c.h.b16 %v2765
    %v2900 = vunpack.c.l.b16 %v2766
    %v2901 = vunpack.c.h.b16 %v2766
    %v2902 = vunpack.c.l.b16 %v2767
    %v2903 = vunpack.c.h.b16 %v2767
    %v2904 = vunpack.c.l.b16 %v2768
    %v2905 = vunpack.c.h.b16 %v2768
    %v2906 = vunpack.c.l.b16 %v2769
    %v2907 = vunpack.c.h.b16 %v2769
    %v2908 = vunpack.c.l.b16 %v2770
    %v2909 = vunpack.c.h.b16 %v2770
    %v2910 = vunpack.c.l.b16 %v2771
    %v2911 = vunpack.c.h.b16 %v2771
    %v2912 = vunpack.c.l.b16 %v2772
    %v2913 = vunpack.c.h.b16 %v2772
    %v2914 = vunpack.c.l.b16 %v2773
    %v2915 = vunpack.c.h.b16 %v2773
    %v2916 = vunpack.c.l.b16 %v2774
    %v2917 = vunpack.c.h.b16 %v2774
    %v2918 = vunpack.c.l.b16 %v2775
    %v2919 = vunpack.c.h.b16 %v2775
    %v2920 = vunpack.c.l.b16 %v2776
    %v2921 = vunpack.c.h.b16 %v2776
    %v2922 = vunpack.c.l.b16 %v2777
    %v2923 = vunpack.c.h.b16 %v2777
    %v2924 = vunpack.c.l.b16 %v2778
    %v2925 = vunpack.c.h.b16 %v2778
    %v2926 = vpack.c.b16 %v2830, %v2828
    %v2927 = vpack.c.b16 %v2831, %v2829
    %v2928 = vpack.c.b16 %v2834, %v2832
    %v2929 = vpack.c.b16 %v2835, %v2833
    %v2930 = vpack.c.b16 %v2838, %v2836
    %v2931 = vpack.c.b16 %v2839, %v2837
    %v2932 = vpack.c.b16 %v2842, %v2840
    %v2933 = vpack.c.b16 %v2843, %v2841
    %v2934 = vpack.c.b16 %v2846, %v2844
    %v2935 = vpack.c.b16 %v2847, %v2845
    %v2936 = vpack.c.b16 %v2850, %v2848
    %v2937 = vpack.c.b16 %v2851, %v2849
    %v2938 = vpack.c.b16 %v2854, %v2852
    %v2939 = vpack.c.b16 %v2855, %v2853
    %v2940 = vpack.c.b16 %v2858, %v2856
    %v2941 = vpack.c.b16 %v2859, %v2857
    %v2942 = vpack.c.b16 %v2862, %v2860
    %v2943 = vpack.c.b16 %v2863, %v2861
    %v2944 = vpack.c.b16 %v2866, %v2864
    %v2945 = vpack.c.b16 %v2867, %v2865
    %v2946 = vpack.c.b16 %v2870, %v2868
    %v2947 = vpack.c.b16 %v2871, %v2869
    %v2948 = vpack.c.b16 %v2874, %v2872
    %v2949 = vpack.c.b16 %v2875, %v2873
    %v2950 = vpack.c.b16 %v2878, %v2876
    %v2951 = vpack.c.b16 %v2879, %v2877
    %v2952 = vpack.c.b16 %v2882, %v2880
    %v2953 = vpack.c.b16 %v2883, %v2881
    %v2954 = vpack.c.b16 %v2886, %v2884
    %v2955 = vpack.c.b16 %v2887, %v2885
    %v2956 = vpack.c.b16 %v2890, %v2888
    %v2957 = vpack.c.b16 %v2891, %v2889
    %v2958 = vpack.c.b16 %v2894, %v2892
    %v2959 = vpack.c.b16 %v2895, %v2893
    %v2960 = vpack.c.b16 %v2898, %v2896
    %v2961 = vpack.c.b16 %v2899, %v2897
    %v2962 = vpack.c.b16 %v2902, %v2900
    %v2963 = vpack.c.b16 %v2903, %v2901
    %v2964 = vpack.c.b16 %v2906, %v2904
    %v2965 = vpack.c.b16 %v2907, %v2905
    %v2966 = vpack.c.b16 %v2910, %v2908
    %v2967 = vpack.c.b16 %v2911, %v2909
    %v2968 = vpack.c.b16 %v2914, %v2912
    %v2969 = vpack.c.b16 %v2915, %v2913
    %v2970 = vpack.c.b16 %v2918, %v2916
    %v2971 = vpack.c.b16 %v2919, %v2917
    %v2972 = vpack.c.b16 %v2922, %v2920
    %v2973 = vpack.c.b16 %v2923, %v2921
    %v2974 = vpack.c.b16 %v2924, %v2924
    %v2975 = vpack.c.b16 %v2925, %v2925
    %v3025 = vsel %vm2059, %v2729, 0
    %vm3027 = vcmask 1043456
    %v3029 = vsel %vm3027, %v2974, 0
    %v3032 = vsel %vm3027, %v2975, 0
    %3034 = vmatprep.subr.bf16.mxu0 %v2927
    %3035 = vmatpush1.bf16.msra.mxu0 %v2926
    %3036 = vmatprep.subr.bf16.mxu0 %v2929
    %3037 = vmatpush1.bf16.msra.mxu0 %v2928
    %3038 = vmatprep.subr.bf16.mxu0 %v2931
    %3039 = vmatpush1.bf16.msra.mxu0 %v2930
    %3040 = vmatprep.subr.bf16.mxu0 %v2933
    %3041 = vmatpush1.bf16.msra.mxu0 %v2932
    %3042 = vmatprep.subr.bf16.mxu0 %v2935
    %3043 = vmatpush1.bf16.msra.mxu0 %v2934
    %3044 = vmatprep.subr.bf16.mxu0 %v2937
    %3045 = vmatpush1.bf16.msra.mxu0 %v2936
    %3046 = vmatprep.subr.bf16.mxu0 %v2939
    %3047 = vmatpush1.bf16.msra.mxu0 %v2938
    %3048 = vmatprep.subr.bf16.mxu0 %v2941
    %3049 = vmatpush1.bf16.msra.mxu0 %v2940
    %3050 = vmatprep.subr.bf16.mxu0 %v2943
    %3051 = vmatpush1.bf16.msra.mxu0 %v2942
    %3052 = vmatprep.subr.bf16.mxu0 %v2945
    %3053 = vmatpush1.bf16.msra.mxu0 %v2944
    %3054 = vmatprep.subr.bf16.mxu0 %v2947
    %3055 = vmatpush1.bf16.msra.mxu0 %v2946
    %3056 = vmatprep.subr.bf16.mxu0 %v2949
    %3057 = vmatpush1.bf16.msra.mxu0 %v2948
    %3058 = vmatprep.subr.bf16.mxu0 %v2951
    %3059 = vmatpush1.bf16.msra.mxu0 %v2950
    %3060 = vmatprep.subr.bf16.mxu0 %v2953
    %3061 = vmatpush1.bf16.msra.mxu0 %v2952
    %3062 = vmatprep.subr.bf16.mxu0 %v2955
    %3063 = vmatpush1.bf16.msra.mxu0 %v2954
    %3064 = vmatprep.subr.bf16.mxu0 %v2957
    %3065 = vmatpush1.bf16.msra.mxu0 %v2956
    %3066 = vmatprep.mubr.bf16.mxu0 %v2727
    %3067 = vmatmul.mubr.bf16.gmra.mrb[0].mxu0 %v2726
    %v3068 = vpop.f32.mrb[0].mxu0
    %v3069 = vadd.f32 0.0, %v3068
    %v3070 = vpop.f32.mrb[0].mxu0
    %v3071 = vadd.f32 0.0, %v3070
    %v3072 = vpop.f32.mrb[0].mxu0
    %v3073 = vpop.f32.mrb[0].mxu0
    %3074 = vdwg.mxu0
    %3075 = vmatprep.subr.bf16.mxu0 %v2959
    %3076 = vmatpush1.bf16.msra.mxu0 %v2958
    %3077 = vmatprep.subr.bf16.mxu0 %v2961
    %3078 = vmatpush1.bf16.msra.mxu0 %v2960
    %3079 = vmatprep.subr.bf16.mxu0 %v2963
    %3080 = vmatpush1.bf16.msra.mxu0 %v2962
    %3081 = vmatprep.subr.bf16.mxu0 %v2965
    %3082 = vmatpush1.bf16.msra.mxu0 %v2964
    %3083 = vmatprep.subr.bf16.mxu0 %v2967
    %3084 = vmatpush1.bf16.msra.mxu0 %v2966
    %3085 = vmatprep.subr.bf16.mxu0 %v2969
    %3086 = vmatpush1.bf16.msra.mxu0 %v2968
    %3087 = vmatprep.subr.bf16.mxu0 %v2971
    %3088 = vmatpush1.bf16.msra.mxu0 %v2970
    %3089 = vmatprep.subr.bf16.mxu0 %v2973
    %3090 = vmatpush1.bf16.msra.mxu0 %v2972
    %3091 = vmatprep.subr.bf16.mxu0 %v3032
    %3092 = vmatpush1.bf16.msra.mxu0 %v3029
    %3093 = vmatprep.subr.bf16.mxu0 0
    %3094 = vmatpush1.bf16.msra.mxu0 0
    %3095 = vmatprep.subr.bf16.mxu0 0
    %3096 = vmatpush1.bf16.msra.mxu0 0
    %3097 = vmatprep.subr.bf16.mxu0 0
    %3098 = vmatpush1.bf16.msra.mxu0 0
    %3099 = vmatprep.subr.bf16.mxu0 0
    %3100 = vmatpush1.bf16.msra.mxu0 0
    %3101 = vmatprep.subr.bf16.mxu0 0
    %3102 = vmatpush1.bf16.msra.mxu0 0
    %3103 = vmatprep.subr.bf16.mxu0 0
    %3104 = vmatpush1.bf16.msra.mxu0 0
    %3105 = vmatprep.subr.bf16.mxu0 0
    %3106 = vmatpush1.bf16.msra.mxu0 0
    %3107 = vmatprep.mubr.bf16.mxu0 %v3025
    %3108 = vmatmul.mubr.bf16.gmra.mrb[0].mxu0 %v2728
    %v3109 = vpop.f32.mrb[0].mxu0
    %v3110 = vadd.f32 %v3069, %v3109
    %v3111 = vpop.f32.mrb[0].mxu0
    %v3112 = vadd.f32 %v3071, %v3111
    %v3113 = vpop.f32.mrb[0].mxu0
    %v3114 = vpop.f32.mrb[0].mxu0
    %3115 = vdwg.mxu0
    %v3116 = vld [vmem:[%s7] sm:$0xff]
    %v3117 = vld [vmem:[%s7 + $0x8] sm:$0xff]
    %v3118 = vld [vmem:[%s7 + $0x10] sm:$0xff]
    %v3119 = vld [vmem:[%s7 + $0x18] sm:$0xff]
    %v3120 = vsel %vm1997, %v3110, 0.0
    %v3121 = vrot.slane %v3120, 4
    %v3122 = vadd.f32 %v3120, %v3121
    %v3123 = vrot.slane %v3122, 2
    %v3124 = vadd.f32 %v3122, %v3123
    %v3125 = vrot.slane %v3124, 1
    %v3126 = vadd.f32 %v3124, %v3125
    %vm3127 = vcmask 123904
    %v3128 = vsel %vm3127, %v3112, 0.0
    %v3129 = vrot.slane %v3128, 4
    %v3130 = vadd.f32 %v3128, %v3129
    %v3131 = vrot.slane %v3130, 2
    %v3132 = vadd.f32 %v3130, %v3131
    %v3133 = vrot.slane %v3132, 1
    %v3134 = vadd.f32 %v3132, %v3133
    %v3135 = vmul.f32 %v3110, %v3110
    %v3136 = vmul.f32 %v3112, %v3112
    %v3137 = vsel %vm1997, %v3135, 0.0
    %v3138 = vrot.slane %v3137, 4
    %v3139 = vadd.f32 %v3137, %v3138
    %v3140 = vrot.slane %v3139, 2
    %v3141 = vadd.f32 %v3139, %v3140
    %v3142 = vrot.slane %v3141, 1
    %v3143 = vadd.f32 %v3141, %v3142
    %v3144 = vsel %vm3127, %v3136, 0.0
    %v3145 = vrot.slane %v3144, 4
    %v3146 = vadd.f32 %v3144, %v3145
    %v3147 = vrot.slane %v3146, 2
    %v3148 = vadd.f32 %v3146, %v3147
    %v3149 = vrot.slane %v3148, 1
    %v3150 = vadd.f32 %v3148, %v3149
    %vm3151 = vcmask 130048
    %v3153 = vsel %vm3151, %v3134, 0
    %v3156 = vsel %vm3151, %v3117, 0
    %v3159 = vsel %vm3151, %v3119, 0
    %3161 = vmatprep.subr.mxu0 %v3156
    %3162 = vmatpush1.xpose.msra.mxu0 %v3116
    %3163 = vmatprep.subr.mxu0 %v3159
    %3164 = vmatpush1.xpose.msra.mxu0 %v3118
    %3165 = vmatprep.subr.mxu0 0.0
    %3166 = vmatpush1.xpose.msra.mxu0 0.0
    %3167 = vmatprep.subr.mxu0 0.0
    %3168 = vmatpush1.xpose.msra.mxu0 0.0
    %3169 = vmatprep.subr.mxu0 0.0
    %3170 = vmatpush1.xpose.msra.mxu0 0.0
    %3171 = vmatprep.subr.mxu0 0.0
    %3172 = vmatpush1.xpose.msra.mxu0 0.0
    %3173 = vmatprep.subr.mxu0 0.0
    %3174 = vmatpush1.xpose.msra.mxu0 0.0
    %3175 = vmatprep.subr.mxu0 0.0
    %3176 = vmatpush1.xpose.msra.mxu0 0.0
    %3177 = vmatprep.subr.mxu0 0.0
    %3178 = vmatpush1.xpose.msra.mxu0 0.0
    %3179 = vmatprep.subr.mxu0 0.0
    %3180 = vmatpush1.xpose.msra.mxu0 0.0
    %3181 = vmatprep.subr.mxu0 0.0
    %3182 = vmatpush1.xpose.msra.mxu0 0.0
    %3183 = vmatprep.subr.mxu0 0.0
    %3184 = vmatpush1.xpose.msra.mxu0 0.0
    %3185 = vmatprep.subr.mxu0 0.0
    %3186 = vmatpush1.xpose.msra.mxu0 0.0
    %3187 = vmatprep.subr.mxu0 0.0
    %3188 = vmatpush1.xpose.msra.mxu0 0.0
    %3189 = vmatprep.subr.mxu0 0.0
    %3190 = vmatpush1.xpose.msra.mxu0 0.0
    %3191 = vmatprep.subr.mxu0 0.0
    %3192 = vmatpush1.xpose.msra.mxu0 0.0
    %3193 = vmatprep.subr.mxu0 0.0
    %3194 = vmatpush1.xpose.msra.mxu0 0.0
    %3195 = vmatprep.subr.mxu0 0.0
    %3196 = vmatpush1.xpose.msra.mxu0 0.0
    %3197 = vmatprep.subr.mxu0 0.0
    %3198 = vmatpush1.xpose.msra.mxu0 0.0
    %3199 = vmatprep.subr.mxu0 0.0
    %3200 = vmatpush1.xpose.msra.mxu0 0.0
    %3201 = vmatprep.subr.mxu0 0.0
    %3202 = vmatpush1.xpose.msra.mxu0 0.0
    %3203 = vmatprep.subr.mxu0 0.0
    %3204 = vmatpush1.xpose.msra.mxu0 0.0
    %3205 = vmatprep.subr.mxu0 0.0
    %3206 = vmatpush1.xpose.msra.mxu0 0.0
    %3207 = vmatprep.subr.mxu0 0.0
    %3208 = vmatpush1.xpose.msra.mxu0 0.0
    %3209 = vmatprep.subr.mxu0 0.0
    %3210 = vmatpush1.xpose.msra.mxu0 0.0
    %3211 = vmatprep.subr.mxu0 0.0
    %3212 = vmatpush1.xpose.msra.mxu0 0.0
    %3213 = vmatprep.subr.mxu0 0.0
    %3214 = vmatpush1.xpose.msra.mxu0 0.0
    %3215 = vmatprep.subr.mxu0 0.0
    %3216 = vmatpush1.xpose.msra.mxu0 0.0
    %3217 = vmatprep.subr.mxu0 0.0
    %3218 = vmatpush1.xpose.msra.mxu0 0.0
    %3219 = vmatprep.subr.mxu0 0.0
    %3220 = vmatpush1.xpose.msra.mxu0 0.0
    %3221 = vmatprep.subr.mxu0 0.0
    %3222 = vmatpush1.xpose.msra.mxu0 0.0
    %3223 = vmatprep.subr.mxu0 0.0
    %3224 = vmatpush1.xpose.msra.mxu0 0.0
    %3225 = vmatprep.mubr.f32.mxu0 %v3153
    %3226 = vmatmul.mubr.f32.gmra.mrb[0].mxu0 %v3126
    %v3227 = vpop.f32.mrb[0].mxu0
    %v3228 = vadd.f32 0.0, %v3227
    %v3229 = vpop.f32.mrb[0].mxu0
    %3230 = vdwg.mxu0
    %v3231 = vmul.f32 %v3228, 0.055555556
    %v3233 = vsel %vm3151, %v3150, 0
    %3235 = vmatprep.subr.mxu0 %v3156
    %3236 = vmatpush1.xpose.msra.mxu0 %v3116
    %3237 = vmatprep.subr.mxu0 %v3159
    %3238 = vmatpush1.xpose.msra.mxu0 %v3118
    %3239 = vmatprep.subr.mxu0 0.0
    %3240 = vmatpush1.xpose.msra.mxu0 0.0
    %3241 = vmatprep.subr.mxu0 0.0
    %3242 = vmatpush1.xpose.msra.mxu0 0.0
    %3243 = vmatprep.subr.mxu0 0.0
    %3244 = vmatpush1.xpose.msra.mxu0 0.0
    %3245 = vmatprep.subr.mxu0 0.0
    %3246 = vmatpush1.xpose.msra.mxu0 0.0
    %3247 = vmatprep.subr.mxu0 0.0
    %3248 = vmatpush1.xpose.msra.mxu0 0.0
    %3249 = vmatprep.subr.mxu0 0.0
    %3250 = vmatpush1.xpose.msra.mxu0 0.0
    %3251 = vmatprep.subr.mxu0 0.0
    %3252 = vmatpush1.xpose.msra.mxu0 0.0
    %3253 = vmatprep.subr.mxu0 0.0
    %3254 = vmatpush1.xpose.msra.mxu0 0.0
    %3255 = vmatprep.subr.mxu0 0.0
    %3256 = vmatpush1.xpose.msra.mxu0 0.0
    %3257 = vmatprep.subr.mxu0 0.0
    %3258 = vmatpush1.xpose.msra.mxu0 0.0
    %3259 = vmatprep.subr.mxu0 0.0
    %3260 = vmatpush1.xpose.msra.mxu0 0.0
    %3261 = vmatprep.subr.mxu0 0.0
    %3262 = vmatpush1.xpose.msra.mxu0 0.0
    %3263 = vmatprep.subr.mxu0 0.0
    %3264 = vmatpush1.xpose.msra.mxu0 0.0
    %3265 = vmatprep.subr.mxu0 0.0
    %3266 = vmatpush1.xpose.msra.mxu0 0.0
    %3267 = vmatprep.subr.mxu0 0.0
    %3268 = vmatpush1.xpose.msra.mxu0 0.0
    %3269 = vmatprep.subr.mxu0 0.0
    %3270 = vmatpush1.xpose.msra.mxu0 0.0
    %3271 = vmatprep.subr.mxu0 0.0
    %3272 = vmatpush1.xpose.msra.mxu0 0.0
    %3273 = vmatprep.subr.mxu0 0.0
    %3274 = vmatpush1.xpose.msra.mxu0 0.0
    %3275 = vmatprep.subr.mxu0 0.0
    %3276 = vmatpush1.xpose.msra.mxu0 0.0
    %3277 = vmatprep.subr.mxu0 0.0
    %3278 = vmatpush1.xpose.msra.mxu0 0.0
    %3279 = vmatprep.subr.mxu0 0.0
    %3280 = vmatpush1.xpose.msra.mxu0 0.0
    %3281 = vmatprep.subr.mxu0 0.0
    %3282 = vmatpush1.xpose.msra.mxu0 0.0
    %3283 = vmatprep.subr.mxu0 0.0
    %3284 = vmatpush1.xpose.msra.mxu0 0.0
    %3285 = vmatprep.subr.mxu0 0.0
    %3286 = vmatpush1.xpose.msra.mxu0 0.0
    %3287 = vmatprep.subr.mxu0 0.0
    %3288 = vmatpush1.xpose.msra.mxu0 0.0
    %3289 = vmatprep.subr.mxu0 0.0
    %3290 = vmatpush1.xpose.msra.mxu0 0.0
    %3291 = vmatprep.subr.mxu0 0.0
    %3292 = vmatpush1.xpose.msra.mxu0 0.0
    %3293 = vmatprep.subr.mxu0 0.0
    %3294 = vmatpush1.xpose.msra.mxu0 0.0
    %3295 = vmatprep.subr.mxu0 0.0
    %3296 = vmatpush1.xpose.msra.mxu0 0.0
    %3297 = vmatprep.subr.mxu0 0.0
    %3298 = vmatpush1.xpose.msra.mxu0 0.0
    %3299 = vmatprep.mubr.f32.mxu0 %v3233
    %3300 = vmatmul.mubr.f32.gmra.mrb[0].mxu0 %v3143
    %v3301 = vpop.f32.mrb[0].mxu0
    %v3302 = vadd.f32 0.0, %v3301
    %v3303 = vpop.f32.mrb[0].mxu0
    %3304 = vdwg.mxu0
    %v3305 = vmul.f32 %v3302, 0.055555556
    %v3306 = vmul.f32 %v3231, %v3231
    %v3307 = vsub.f32 %v3305, %v3306
    %v3308 = vld [vmem:[%s8] sm:$0x1]
    %v3309 = vadd.f32 %v3307, 1e-05
    %v3310 = vrsqrt.pop %v3309
    %v3311 = vmul.f32 %v3308, %v3310
    %v3312 = vld [vmem:[%s9] sm:$0x1]
    %v3313 = vmul.f32 %v3231, %v3311
    %v3314 = vsub.f32 %v3312, %v3313
    %v3316 = vsel %vm3151, %v3311, 0
    %3318 = vmatprep.subr.mxu0 %v3117
    %3319 = vmatpush1.msra.mxu0 %v3116
    %3320 = vmatprep.subr.mxu0 %v3119
    %3321 = vmatpush1.msra.mxu0 %v3118
    %3322 = vmatprep.subr.mxu0 0.0
    %3323 = vmatpush1.msra.mxu0 0.0
    %3324 = vmatprep.subr.mxu0 0.0
    %3325 = vmatpush1.msra.mxu0 0.0
    %3326 = vmatprep.subr.mxu0 0.0
    %3327 = vmatpush1.msra.mxu0 0.0
    %3328 = vmatprep.subr.mxu0 0.0
    %3329 = vmatpush1.msra.mxu0 0.0
    %3330 = vmatprep.subr.mxu0 0.0
    %3331 = vmatpush1.msra.mxu0 0.0
    %3332 = vmatprep.subr.mxu0 0.0
    %3333 = vmatpush1.msra.mxu0 0.0
    %3334 = vmatprep.subr.mxu0 0.0
    %3335 = vmatpush1.msra.mxu0 0.0
    %3336 = vmatprep.subr.mxu0 0.0
    %3337 = vmatpush1.msra.mxu0 0.0
    %3338 = vmatprep.subr.mxu0 0.0
    %3339 = vmatpush1.msra.mxu0 0.0
    %3340 = vmatprep.subr.mxu0 0.0
    %3341 = vmatpush1.msra.mxu0 0.0
    %3342 = vmatprep.subr.mxu0 0.0
    %3343 = vmatpush1.msra.mxu0 0.0
    %3344 = vmatprep.subr.mxu0 0.0
    %3345 = vmatpush1.msra.mxu0 0.0
    %3346 = vmatprep.subr.mxu0 0.0
    %3347 = vmatpush1.msra.mxu0 0.0
    %3348 = vmatprep.subr.mxu0 0.0
    %3349 = vmatpush1.msra.mxu0 0.0
    %3350 = vmatprep.subr.mxu0 0.0
    %3351 = vmatpush1.msra.mxu0 0.0
    %3352 = vmatprep.subr.mxu0 0.0
    %3353 = vmatpush1.msra.mxu0 0.0
    %3354 = vmatprep.subr.mxu0 0.0
    %3355 = vmatpush1.msra.mxu0 0.0
    %3356 = vmatprep.subr.mxu0 0.0
    %3357 = vmatpush1.msra.mxu0 0.0
    %3358 = vmatprep.subr.mxu0 0.0
    %3359 = vmatpush1.msra.mxu0 0.0
    %3360 = vmatprep.subr.mxu0 0.0
    %3361 = vmatpush1.msra.mxu0 0.0
    %3362 = vmatprep.subr.mxu0 0.0
    %3363 = vmatpush1.msra.mxu0 0.0
    %3364 = vmatprep.subr.mxu0 0.0
    %3365 = vmatpush1.msra.mxu0 0.0
    %3366 = vmatprep.subr.mxu0 0.0
    %3367 = vmatpush1.msra.mxu0 0.0
    %3368 = vmatprep.subr.mxu0 0.0
    %3369 = vmatpush1.msra.mxu0 0.0
    %3370 = vmatprep.subr.mxu0 0.0
    %3371 = vmatpush1.msra.mxu0 0.0
    %3372 = vmatprep.subr.mxu0 0.0
    %3373 = vmatpush1.msra.mxu0 0.0
    %3374 = vmatprep.subr.mxu0 0.0
    %3375 = vmatpush1.msra.mxu0 0.0
    %3376 = vmatprep.subr.mxu0 0.0
    %3377 = vmatpush1.msra.mxu0 0.0
    %3378 = vmatprep.subr.mxu0 0.0
    %3379 = vmatpush1.msra.mxu0 0.0
    %3380 = vmatprep.subr.mxu0 0.0
    %3381 = vmatpush1.msra.mxu0 0.0
    %3382 = vmatprep.mubr.f32.mxu0 0.0
    %3383 = vmatmul.mubr.f32.gmra.mrb[0].mxu0 %v3316
    %v3384 = vpop.f32.mrb[0].mxu0
    %v3385 = vadd.f32 0.0, %v3384
    %v3386 = vpop.f32.mrb[0].mxu0
    %v3387 = vadd.f32 0.0, %v3386
    %3388 = vdwg.mxu0
    %v3390 = vsel %vm3151, %v3314, 0
    %3392 = vmatprep.subr.mxu0 %v3117
    %3393 = vmatpush1.msra.mxu0 %v3116
    %3394 = vmatprep.subr.mxu0 %v3119
    %3395 = vmatpush1.msra.mxu0 %v3118
    %3396 = vmatprep.subr.mxu0 0.0
    %3397 = vmatpush1.msra.mxu0 0.0
    %3398 = vmatprep.subr.mxu0 0.0
    %3399 = vmatpush1.msra.mxu0 0.0
    %3400 = vmatprep.subr.mxu0 0.0
    %3401 = vmatpush1.msra.mxu0 0.0
    %3402 = vmatprep.subr.mxu0 0.0
    %3403 = vmatpush1.msra.mxu0 0.0
    %3404 = vmatprep.subr.mxu0 0.0
    %3405 = vmatpush1.msra.mxu0 0.0
    %3406 = vmatprep.subr.mxu0 0.0
    %3407 = vmatpush1.msra.mxu0 0.0
    %3408 = vmatprep.subr.mxu0 0.0
    %3409 = vmatpush1.msra.mxu0 0.0
    %3410 = vmatprep.subr.mxu0 0.0
    %3411 = vmatpush1.msra.mxu0 0.0
    %3412 = vmatprep.subr.mxu0 0.0
    %3413 = vmatpush1.msra.mxu0 0.0
    %3414 = vmatprep.subr.mxu0 0.0
    %3415 = vmatpush1.msra.mxu0 0.0
    %3416 = vmatprep.subr.mxu0 0.0
    %3417 = vmatpush1.msra.mxu0 0.0
    %3418 = vmatprep.subr.mxu0 0.0
    %3419 = vmatpush1.msra.mxu0 0.0
    %3420 = vmatprep.subr.mxu0 0.0
    %3421 = vmatpush1.msra.mxu0 0.0
    %3422 = vmatprep.subr.mxu0 0.0
    %3423 = vmatpush1.msra.mxu0 0.0
    %3424 = vmatprep.subr.mxu0 0.0
    %3425 = vmatpush1.msra.mxu0 0.0
    %3426 = vmatprep.subr.mxu0 0.0
    %3427 = vmatpush1.msra.mxu0 0.0
    %3428 = vmatprep.subr.mxu0 0.0
    %3429 = vmatpush1.msra.mxu0 0.0
    %3430 = vmatprep.subr.mxu0 0.0
    %3431 = vmatpush1.msra.mxu0 0.0
    %3432 = vmatprep.subr.mxu0 0.0
    %3433 = vmatpush1.msra.mxu0 0.0
    %3434 = vmatprep.subr.mxu0 0.0
    %3435 = vmatpush1.msra.mxu0 0.0
    %3436 = vmatprep.subr.mxu0 0.0
    %3437 = vmatpush1.msra.mxu0 0.0
    %3438 = vmatprep.subr.mxu0 0.0
    %3439 = vmatpush1.msra.mxu0 0.0
    %3440 = vmatprep.subr.mxu0 0.0
    %3441 = vmatpush1.msra.mxu0 0.0
    %3442 = vmatprep.subr.mxu0 0.0
    %3443 = vmatpush1.msra.mxu0 0.0
    %3444 = vmatprep.subr.mxu0 0.0
    %3445 = vmatpush1.msra.mxu0 0.0
    %3446 = vmatprep.subr.mxu0 0.0
    %3447 = vmatpush1.msra.mxu0 0.0
    %3448 = vmatprep.subr.mxu0 0.0
    %3449 = vmatpush1.msra.mxu0 0.0
    %3450 = vmatprep.subr.mxu0 0.0
    %3451 = vmatpush1.msra.mxu0 0.0
    %3452 = vmatprep.subr.mxu0 0.0
    %3453 = vmatpush1.msra.mxu0 0.0
    %3454 = vmatprep.subr.mxu0 0.0
    %3455 = vmatpush1.msra.mxu0 0.0
    %3456 = vmatprep.mubr.f32.mxu0 0.0
    %3457 = vmatmul.mubr.f32.gmra.mrb[0].mxu0 %v3390
    %v3458 = vpop.f32.mrb[0].mxu0
    %v3459 = vadd.f32 0.0, %v3458
    %v3460 = vpop.f32.mrb[0].mxu0
    %v3461 = vadd.f32 0.0, %v3460
    %3462 = vdwg.mxu0
    %v3463 = vlaneseq
    %v3464 = vshrl.u32 %v3463, 7
    %v3465 = vsub.s32 0, %v3464
    %v3466 = vrot.slane %v3385, %v3465
    %v3467 = vlaneseq
    %v3468 = vshrl.u32 %v3467, 7
    %v3469 = vsub.s32 0, %v3468
    %v3470 = vrot.slane %v3387, %v3469
    %v3471 = vmul.f32 %v3110, %v3466
    %v3472 = vmul.f32 %v3112, %v3470
    %v3473 = vlaneseq
    %v3474 = vshrl.u32 %v3473, 7
    %v3475 = vsub.s32 0, %v3474
    %v3476 = vrot.slane %v3459, %v3475
    %v3477 = vlaneseq
    %v3478 = vshrl.u32 %v3477, 7
    %v3479 = vsub.s32 0, %v3478
    %v3480 = vrot.slane %v3461, %v3479
    %v3481 = vadd.f32 %v3471, %v3476
    %v3482 = vadd.f32 %v3472, %v3480
    %v3483 = vmul.f32 %v3481, 0.5
    %v3484 = vmul.f32 %v3482, 0.5
    %v3485 = vmul.f32 %v3481, 0.044715
    %v3486 = vmul.f32 %v3482, 0.044715
    %v3487 = vmul.f32 %v3485, %v3481
    %v3488 = vmul.f32 %v3486, %v3482
    %v3489 = vmul.f32 %v3487, %v3481
    %v3490 = vmul.f32 %v3488, %v3482
    %v3491 = vadd.f32 %v3481, %v3489
    %v3492 = vadd.f32 %v3482, %v3490
    %v3493 = vmul.f32 %v3491, 0.7978846
    %v3494 = vmul.f32 %v3492, 0.7978846
    %v3495 = vtanh.pop %v3493
    %v3496 = vtanh.pop %v3494
    %v3497 = vadd.f32 %v3495, 1.0
    %v3498 = vadd.f32 %v3496, 1.0
    %v3499 = vmul.f32 %v3483, %v3497
    %v3500 = vmul.f32 %v3484, %v3498
    %v3501 = vld [vmem:[%s10] sm:$0xff]
    %v3502 = vld [vmem:[%s10 + $0x8] sm:$0xff]
    %v3503 = vld [vmem:[%s10 + $0x10] sm:$0xff]
    %v3504 = vld [vmem:[%s10 + $0x18] sm:$0xff]
    %v3505 = vld [vmem:[%s10 + $0x20] sm:$0xff]
    %v3506 = vld [vmem:[%s10 + $0x28] sm:$0xff]
    %v3507 = vld [vmem:[%s10 + $0x30] sm:$0xff]
    %v3508 = vld [vmem:[%s10 + $0x38] sm:$0xff]
    %v3509 = vld [vmem:[%s10 + $0x40] sm:$0xff]
    %v3510 = vld [vmem:[%s10 + $0x48] sm:$0xff]
    %v3511 = vld [vmem:[%s10 + $0x50] sm:$0xff]
    %v3512 = vld [vmem:[%s10 + $0x58] sm:$0xff]
    %v3513 = vld [vmem:[%s10 + $0x60] sm:$0xff]
    %v3514 = vld [vmem:[%s10 + $0x68] sm:$0xff]
    %v3515 = vld [vmem:[%s10 + $0x70] sm:$0xff]
    %v3516 = vld [vmem:[%s10 + $0x78] sm:$0xff]
    %v3517 = vld [vmem:[%s10 + $0x80] sm:$0xff]
    %v3518 = vld [vmem:[%s10 + $0x88] sm:$0xff]
    %v3519 = vld [vmem:[%s11] sm:$0x1]
    %v3521 = vlaneseq
    %v3522 = vshrl.u32 %v3521, 7
    %v3523 = vsub.s32 0, %v3522
    %v3524 = vrot.slane %v3519, %v3523
    %v3527 = vsel %vm3151, %v3500, 0
    %3529 = vmatprep.subr.mxu0 0.0
    %3530 = vmatpush1.msra.mxu0 %v3501
    %3531 = vmatprep.subr.mxu0 0.0
    %3532 = vmatpush1.msra.mxu0 %v3502
    %3533 = vmatprep.subr.mxu0 0.0
    %3534 = vmatpush1.msra.mxu0 %v3503
    %3535 = vmatprep.subr.mxu0 0.0
    %3536 = vmatpush1.msra.mxu0 %v3504
    %3537 = vmatprep.subr.mxu0 0.0
    %3538 = vmatpush1.msra.mxu0 %v3505
    %3539 = vmatprep.subr.mxu0 0.0
    %3540 = vmatpush1.msra.mxu0 %v3506
    %3541 = vmatprep.subr.mxu0 0.0
    %3542 = vmatpush1.msra.mxu0 %v3507
    %3543 = vmatprep.subr.mxu0 0.0
    %3544 = vmatpush1.msra.mxu0 %v3508
    %3545 = vmatprep.subr.mxu0 0.0
    %3546 = vmatpush1.msra.mxu0 %v3509
    %3547 = vmatprep.subr.mxu0 0.0
    %3548 = vmatpush1.msra.mxu0 %v3510
    %3549 = vmatprep.subr.mxu0 0.0
    %3550 = vmatpush1.msra.mxu0 %v3511
    %3551 = vmatprep.subr.mxu0 0.0
    %3552 = vmatpush1.msra.mxu0 %v3512
    %3553 = vmatprep.subr.mxu0 0.0
    %3554 = vmatpush1.msra.mxu0 %v3513
    %3555 = vmatprep.subr.mxu0 0.0
    %3556 = vmatpush1.msra.mxu0 %v3514
    %3557 = vmatprep.subr.mxu0 0.0
    %3558 = vmatpush1.msra.mxu0 %v3515
    %3559 = vmatprep.subr.mxu0 0.0
    %3560 = vmatpush1.msra.mxu0 %v3516
    %3561 = vmatprep.subr.mxu0 0.0
    %3562 = vmatpush1.msra.mxu0 %v3517
    %3563 = vmatprep.subr.mxu0 0.0
    %3564 = vmatpush1.msra.mxu0 %v3518
    %3565 = vmatprep.subr.mxu0 0.0
    %3566 = vmatpush1.msra.mxu0 0.0
    %3567 = vmatprep.subr.mxu0 0.0
    %3568 = vmatpush1.msra.mxu0 0.0
    %3569 = vmatprep.subr.mxu0 0.0
    %3570 = vmatpush1.msra.mxu0 0.0
    %3571 = vmatprep.subr.mxu0 0.0
    %3572 = vmatpush1.msra.mxu0 0.0
    %3573 = vmatprep.subr.mxu0 0.0
    %3574 = vmatpush1.msra.mxu0 0.0
    %3575 = vmatprep.subr.mxu0 0.0
    %3576 = vmatpush1.msra.mxu0 0.0
    %3577 = vmatprep.subr.mxu0 0.0
    %3578 = vmatpush1.msra.mxu0 0.0
    %3579 = vmatprep.subr.mxu0 0.0
    %3580 = vmatpush1.msra.mxu0 0.0
    %3581 = vmatprep.subr.mxu0 0.0
    %3582 = vmatpush1.msra.mxu0 0.0
    %3583 = vmatprep.subr.mxu0 0.0
    %3584 = vmatpush1.msra.mxu0 0.0
    %3585 = vmatprep.subr.mxu0 0.0
    %3586 = vmatpush1.msra.mxu0 0.0
    %3587 = vmatprep.subr.mxu0 0.0
    %3588 = vmatpush1.msra.mxu0 0.0
    %3589 = vmatprep.subr.mxu0 0.0
    %3590 = vmatpush1.msra.mxu0 0.0
    %3591 = vmatprep.subr.mxu0 0.0
    %3592 = vmatpush1.msra.mxu0 0.0
    %3593 = vmatprep.mubr.f32.mxu0 %v3527
    %3594 = vmatmul.mubr.f32.gmra.mrb[0].mxu0 %v3499
    %v3595 = vpop.f32.mrb[0].mxu0
    %v3596 = vadd.f32 %v3524, %v3595
    %v3597 = vpop.f32.mrb[0].mxu0
    %3598 = vdwg.mxu0
    %v3599 = vadd.f32 %v3596, 1.0
    %v3600 = vmul.f32 %v3596, %v3596
    %3602 = vrot.lane.b32.xlu0 %v3600, 8
    %v3603 = vpop.permute.xlu0 %3602
    %v3605 = vsub.f32 %v3599, %v3603
    %v3606 = vmul.f32 %v3596, 1.442695
    %v3607 = vpow.pop %v3606
    %v3608 = vsub.f32 %v3605, %v3607
    %3610 = vrot.lane.b32.xlu0 %v3608, 120
    %v3611 = vpop.permute.xlu0 %3610
    %v3613 = vsel %vm2019, %v3611, 0.0
    %3614 = vadd.xlane.f32.xlu0 %v3613
    %v3615 = vpop.xlane.xlu0 %3614
    %v3616 = vrot.slane %v3615, 4
    %v3617 = vadd.f32 %v3615, %v3616
    %v3618 = vrot.slane %v3617, 2
    %v3619 = vadd.f32 %v3617, %v3618
    %v3620 = vrot.slane %v3619, 1
    %v3621 = vadd.f32 %v3619, %v3620
    %s3622 = vtos %v3621
    %s3623 = smul.f32 %s3622, -0.25
    %v3624 = vstv %s3623
    %vm3625 = vcmask 0
    %3626 = vst.msk [vmem:[#allocation2] sm:$0x1] %vm3625, %v3624
    %v3627 = vmul.f32 %v3596, 0.5
    %v3628 = vmul.f32 %v3627, 1.442695
    %v3629 = vpow.pop %v3628
    %v3630 = vld [vmem:[%s1] sm:$0x3]
    %3632 = vrot.lane.b32.xlu0 %v3630, 8
    %v3633 = vpop.permute.xlu0 %3632
    %v3635 = vmul.f32 %v3629, %v3633
    %3637 = vrot.lane.b32.xlu0 %v3635, 120
    %v3638 = vpop.permute.xlu0 %3637
    %v3640 = vadd.f32 %v3596, %v3638
    %v3641 = vld [vmem:[%s12] sm:$0xff]
    %v3642 = vld [vmem:[%s12 + $0x8] sm:$0xff]
    %v3643 = vld [vmem:[%s13] sm:$0x3]
    %v3645 = vlaneseq
    %v3646 = vshrl.u32 %v3645, 7
    %v3647 = vsub.s32 0, %v3646
    %v3648 = vrot.slane %v3643, %v3647
    %v3649 = vlaneseq
    %v3650 = vshrl.u32 %v3649, 7
    %v3651 = vsub.s32 1, %v3650
    %v3652 = vrot.slane %v3643, %v3651
    %v3656 = vsel %vm2059, %v3640, 0
    %3658 = vmatprep.subr.mxu0 %v3642
    %3659 = vmatpush1.msra.mxu0 %v3641
    %3660 = vmatprep.subr.mxu0 0.0
    %3661 = vmatpush1.msra.mxu0 0.0
    %3662 = vmatprep.subr.mxu0 0.0
    %3663 = vmatpush1.msra.mxu0 0.0
    %3664 = vmatprep.subr.mxu0 0.0
    %3665 = vmatpush1.msra.mxu0 0.0
    %3666 = vmatprep.subr.mxu0 0.0
    %3667 = vmatpush1.msra.mxu0 0.0
    %3668 = vmatprep.subr.mxu0 0.0
    %3669 = vmatpush1.msra.mxu0 0.0
    %3670 = vmatprep.subr.mxu0 0.0
    %3671 = vmatpush1.msra.mxu0 0.0
    %3672 = vmatprep.subr.mxu0 0.0
    %3673 = vmatpush1.msra.mxu0 0.0
    %3674 = vmatprep.subr.mxu0 0.0
    %3675 = vmatpush1.msra.mxu0 0.0
    %3676 = vmatprep.subr.mxu0 0.0
    %3677 = vmatpush1.msra.mxu0 0.0
    %3678 = vmatprep.subr.mxu0 0.0
    %3679 = vmatpush1.msra.mxu0 0.0
    %3680 = vmatprep.subr.mxu0 0.0
    %3681 = vmatpush1.msra.mxu0 0.0
    %3682 = vmatprep.subr.mxu0 0.0
    %3683 = vmatpush1.msra.mxu0 0.0
    %3684 = vmatprep.subr.mxu0 0.0
    %3685 = vmatpush1.msra.mxu0 0.0
    %3686 = vmatprep.subr.mxu0 0.0
    %3687 = vmatpush1.msra.mxu0 0.0
    %3688 = vmatprep.subr.mxu0 0.0
    %3689 = vmatpush1.msra.mxu0 0.0
    %3690 = vmatprep.subr.mxu0 0.0
    %3691 = vmatpush1.msra.mxu0 0.0
    %3692 = vmatprep.subr.mxu0 0.0
    %3693 = vmatpush1.msra.mxu0 0.0
    %3694 = vmatprep.subr.mxu0 0.0
    %3695 = vmatpush1.msra.mxu0 0.0
    %3696 = vmatprep.subr.mxu0 0.0
    %3697 = vmatpush1.msra.mxu0 0.0
    %3698 = vmatprep.subr.mxu0 0.0
    %3699 = vmatpush1.msra.mxu0 0.0
    %3700 = vmatprep.subr.mxu0 0.0
    %3701 = vmatpush1.msra.mxu0 0.0
    %3702 = vmatprep.subr.mxu0 0.0
    %3703 = vmatpush1.msra.mxu0 0.0
    %3704 = vmatprep.subr.mxu0 0.0
    %3705 = vmatpush1.msra.mxu0 0.0
    %3706 = vmatprep.subr.mxu0 0.0
    %3707 = vmatpush1.msra.mxu0 0.0
    %3708 = vmatprep.subr.mxu0 0.0
    %3709 = vmatpush1.msra.mxu0 0.0
    %3710 = vmatprep.subr.mxu0 0.0
    %3711 = vmatpush1.msra.mxu0 0.0
    %3712 = vmatprep.subr.mxu0 0.0
    %3713 = vmatpush1.msra.mxu0 0.0
    %3714 = vmatprep.subr.mxu0 0.0
    %3715 = vmatpush1.msra.mxu0 0.0
    %3716 = vmatprep.subr.mxu0 0.0
    %3717 = vmatpush1.msra.mxu0 0.0
    %3718 = vmatprep.subr.mxu0 0.0
    %3719 = vmatpush1.msra.mxu0 0.0
    %3720 = vmatprep.subr.mxu0 0.0
    %3721 = vmatpush1.msra.mxu0 0.0
    %3722 = vmatprep.mubr.f32.mxu0 0.0
    %3723 = vmatmul.mubr.f32.gmra.mrb[0].mxu0 %v3656
    %v3724 = vpop.f32.mrb[0].mxu0
    %v3725 = vadd.f32 %v3648, %v3724
    %v3726 = vpop.f32.mrb[0].mxu0
    %v3727 = vadd.f32 %v3652, %v3726
    %3728 = vdwg.mxu0
    %v3729 = vpack.c.bf16 %v3725, %v3725
    %v3730 = vpack.c.bf16 %v3727, %v3727
    %v3731 = vld [vmem:[%s14] sm:$0xff]
    %v3732 = vld [vmem:[%s14 + $0x8] sm:$0xff]
    %v3733 = vld [vmem:[%s14 + $0x10] sm:$0xff]
    %v3734 = vld [vmem:[%s14 + $0x18] sm:$0xff]
    %v3735 = vld [vmem:[%s14 + $0x20] sm:$0xff]
    %v3736 = vld [vmem:[%s14 + $0x28] sm:$0xff]
    %v3737 = vld [vmem:[%s14 + $0x30] sm:$0xff]
    %v3738 = vld [vmem:[%s14 + $0x38] sm:$0xff]
    %v3739 = vld [vmem:[%s14 + $0x40] sm:$0xff]
    %v3740 = vld [vmem:[%s14 + $0x48] sm:$0xff]
    %v3741 = vld [vmem:[%s14 + $0x50] sm:$0xff]
    %v3742 = vld [vmem:[%s14 + $0x58] sm:$0xff]
    %v3743 = vld [vmem:[%s14 + $0x60] sm:$0xff]
    %v3744 = vld [vmem:[%s14 + $0x68] sm:$0xff]
    %v3745 = vld [vmem:[%s14 + $0x70] sm:$0xff]
    %v3746 = vld [vmem:[%s14 + $0x78] sm:$0xff]
    %v3747 = vld [vmem:[%s14 + $0x80] sm:$0xff]
    %v3748 = vld [vmem:[%s14 + $0x88] sm:$0xff]
    %v3749 = vld [vmem:[%s14 + $0x90] sm:$0xff]
    %v3750 = vld [vmem:[%s14 + $0x98] sm:$0xff]
    %v3751 = vld [vmem:[%s14 + $0xa0] sm:$0xff]
    %v3752 = vld [vmem:[%s14 + $0xa8] sm:$0xff]
    %v3753 = vld [vmem:[%s14 + $0xb0] sm:$0xff]
    %v3754 = vld [vmem:[%s14 + $0xb8] sm:$0xff]
    %v3755 = vld [vmem:[%s14 + $0xc0] sm:$0xff]
    %v3756 = vld [vmem:[%s14 + $0xc8] sm:$0xff]
    %v3757 = vld [vmem:[%s14 + $0xd0] sm:$0xff]
    %v3758 = vld [vmem:[%s14 + $0xd8] sm:$0xff]
    %v3759 = vld [vmem:[%s14 + $0xe0] sm:$0xff]
    %v3760 = vld [vmem:[%s14 + $0xe8] sm:$0xff]
    %v3761 = vld [vmem:[%s14 + $0xf0] sm:$0xff]
    %v3762 = vld [vmem:[%s14 + $0xf8] sm:$0xff]
    %v3763 = vld [vmem:[%s14 + $0x100] sm:$0xff]
    %v3764 = vld [vmem:[%s14 + $0x108] sm:$0xff]
    %v3765 = vld [vmem:[%s14 + $0x110] sm:$0xff]
    %v3766 = vld [vmem:[%s14 + $0x118] sm:$0xff]
    %v3803 = vunpack.c.l.b16 %v3731
    %v3804 = vunpack.c.h.b16 %v3731
    %v3805 = vunpack.c.l.b16 %v3732
    %v3806 = vunpack.c.h.b16 %v3732
    %v3807 = vunpack.c.l.b16 %v3733
    %v3808 = vunpack.c.h.b16 %v3733
    %v3809 = vunpack.c.l.b16 %v3734
    %v3810 = vunpack.c.h.b16 %v3734
    %v3811 = vunpack.c.l.b16 %v3735
    %v3812 = vunpack.c.h.b16 %v3735
    %v3813 = vunpack.c.l.b16 %v3736
    %v3814 = vunpack.c.h.b16 %v3736
    %v3815 = vunpack.c.l.b16 %v3737
    %v3816 = vunpack.c.h.b16 %v3737
    %v3817 = vunpack.c.l.b16 %v3738
    %v3818 = vunpack.c.h.b16 %v3738
    %v3819 = vunpack.c.l.b16 %v3739
    %v3820 = vunpack.c.h.b16 %v3739
    %v3821 = vunpack.c.l.b16 %v3740
    %v3822 = vunpack.c.h.b16 %v3740
    %v3823 = vunpack.c.l.b16 %v3741
    %v3824 = vunpack.c.h.b16 %v3741
    %v3825 = vunpack.c.l.b16 %v3742
    %v3826 = vunpack.c.h.b16 %v3742
    %v3827 = vunpack.c.l.b16 %v3743
    %v3828 = vunpack.c.h.b16 %v3743
    %v3829 = vunpack.c.l.b16 %v3744
    %v3830 = vunpack.c.h.b16 %v3744
    %v3831 = vunpack.c.l.b16 %v3745
    %v3832 = vunpack.c.h.b16 %v3745
    %v3833 = vunpack.c.l.b16 %v3746
    %v3834 = vunpack.c.h.b16 %v3746
    %v3835 = vunpack.c.l.b16 %v3747
    %v3836 = vunpack.c.h.b16 %v3747
    %v3837 = vunpack.c.l.b16 %v3748
    %v3838 = vunpack.c.h.b16 %v3748
    %v3839 = vunpack.c.l.b16 %v3749
    %v3840 = vunpack.c.h.b16 %v3749
    %v3841 = vunpack.c.l.b16 %v3750
    %v3842 = vunpack.c.h.b16 %v3750
    %v3843 = vunpack.c.l.b16 %v3751
    %v3844 = vunpack.c.h.b16 %v3751
    %v3845 = vunpack.c.l.b16 %v3752
    %v3846 = vunpack.c.h.b16 %v3752
    %v3847 = vunpack.c.l.b16 %v3753
    %v3848 = vunpack.c.h.b16 %v3753
    %v3849 = vunpack.c.l.b16 %v3754
    %v3850 = vunpack.c.h.b16 %v3754
    %v3851 = vunpack.c.l.b16 %v3755
    %v3852 = vunpack.c.h.b16 %v3755
    %v3853 = vunpack.c.l.b16 %v3756
    %v3854 = vunpack.c.h.b16 %v3756
    %v3855 = vunpack.c.l.b16 %v3757
    %v3856 = vunpack.c.h.b16 %v3757
    %v3857 = vunpack.c.l.b16 %v3758
    %v3858 = vunpack.c.h.b16 %v3758
    %v3859 = vunpack.c.l.b16 %v3759
    %v3860 = vunpack.c.h.b16 %v3759
    %v3861 = vunpack.c.l.b16 %v3760
    %v3862 = vunpack.c.h.b16 %v3760
    %v3863 = vunpack.c.l.b16 %v3761
    %v3864 = vunpack.c.h.b16 %v3761
    %v3865 = vunpack.c.l.b16 %v3762
    %v3866 = vunpack.c.h.b16 %v3762
    %v3867 = vunpack.c.l.b16 %v3763
    %v3868 = vunpack.c.h.b16 %v3763
    %v3869 = vunpack.c.l.b16 %v3764
    %v3870 = vunpack.c.h.b16 %v3764
    %v3871 = vunpack.c.l.b16 %v3765
    %v3872 = vunpack.c.h.b16 %v3765
    %v3873 = vunpack.c.l.b16 %v3766
    %v3874 = vunpack.c.h.b16 %v3766
    %v3875 = vpack.c.b16 %v3807, %v3803
    %v3876 = vpack.c.b16 %v3808, %v3804
    %v3877 = vpack.c.b16 %v3809, %v3805
    %v3878 = vpack.c.b16 %v3810, %v3806
    %v3879 = vpack.c.b16 %v3815, %v3811
    %v3880 = vpack.c.b16 %v3816, %v3812
    %v3881 = vpack.c.b16 %v3817, %v3813
    %v3882 = vpack.c.b16 %v3818, %v3814
    %v3883 = vpack.c.b16 %v3823, %v3819
    %v3884 = vpack.c.b16 %v3824, %v3820
    %v3885 = vpack.c.b16 %v3825, %v3821
    %v3886 = vpack.c.b16 %v3826, %v3822
    %v3887 = vpack.c.b16 %v3831, %v3827
    %v3888 = vpack.c.b16 %v3832, %v3828
    %v3889 = vpack.c.b16 %v3833, %v3829
    %v3890 = vpack.c.b16 %v3834, %v3830
    %v3891 = vpack.c.b16 %v3839, %v3835
    %v3892 = vpack.c.b16 %v3840, %v3836
    %v3893 = vpack.c.b16 %v3841, %v3837
    %v3894 = vpack.c.b16 %v3842, %v3838
    %v3895 = vpack.c.b16 %v3847, %v3843
    %v3896 = vpack.c.b16 %v3848, %v3844
    %v3897 = vpack.c.b16 %v3849, %v3845
    %v3898 = vpack.c.b16 %v3850, %v3846
    %v3899 = vpack.c.b16 %v3855, %v3851
    %v3900 = vpack.c.b16 %v3856, %v3852
    %v3901 = vpack.c.b16 %v3857, %v3853
    %v3902 = vpack.c.b16 %v3858, %v3854
    %v3903 = vpack.c.b16 %v3863, %v3859
    %v3904 = vpack.c.b16 %v3864, %v3860
    %v3905 = vpack.c.b16 %v3865, %v3861
    %v3906 = vpack.c.b16 %v3866, %v3862
    %v3907 = vpack.c.b16 %v3871, %v3867
    %v3908 = vpack.c.b16 %v3872, %v3868
    %v3909 = vpack.c.b16 %v3873, %v3869
    %v3910 = vpack.c.b16 %v3874, %v3870
    %v3948 = vsel %vm3151, %v3730, 0
    %3950 = vmatprep.subr.bf16.mxu0 %v3876
    %3951 = vmatpush1.bf16.msra.mxu0 %v3875
    %3952 = vmatprep.subr.bf16.mxu0 %v3880
    %3953 = vmatpush1.bf16.msra.mxu0 %v3879
    %3954 = vmatprep.subr.bf16.mxu0 %v3884
    %3955 = vmatpush1.bf16.msra.mxu0 %v3883
    %3956 = vmatprep.subr.bf16.mxu0 %v3888
    %3957 = vmatpush1.bf16.msra.mxu0 %v3887
    %3958 = vmatprep.subr.bf16.mxu0 %v3892
    %3959 = vmatpush1.bf16.msra.mxu0 %v3891
    %3960 = vmatprep.subr.bf16.mxu0 %v3896
    %3961 = vmatpush1.bf16.msra.mxu0 %v3895
    %3962 = vmatprep.subr.bf16.mxu0 %v3900
    %3963 = vmatpush1.bf16.msra.mxu0 %v3899
    %3964 = vmatprep.subr.bf16.mxu0 %v3904
    %3965 = vmatpush1.bf16.msra.mxu0 %v3903
    %3966 = vmatprep.subr.bf16.mxu0 %v3908
    %3967 = vmatpush1.bf16.msra.mxu0 %v3907
    %3968 = vmatprep.subr.bf16.mxu0 0
    %3969 = vmatpush1.bf16.msra.mxu0 0
    %3970 = vmatprep.subr.bf16.mxu0 0
    %3971 = vmatpush1.bf16.msra.mxu0 0
    %3972 = vmatprep.subr.bf16.mxu0 0
    %3973 = vmatpush1.bf16.msra.mxu0 0
    %3974 = vmatprep.subr.bf16.mxu0 0
    %3975 = vmatpush1.bf16.msra.mxu0 0
    %3976 = vmatprep.subr.bf16.mxu0 0
    %3977 = vmatpush1.bf16.msra.mxu0 0
    %3978 = vmatprep.subr.bf16.mxu0 0
    %3979 = vmatpush1.bf16.msra.mxu0 0
    %3980 = vmatprep.subr.bf16.mxu0 0
    %3981 = vmatpush1.bf16.msra.mxu0 0
    %3982 = vmatprep.mubr.bf16.mxu0 %v3948
    %3983 = vmatmul.mubr.bf16.gmra.mrb[0].mxu0 %v3729
    %v3984 = vpop.f32.mrb[0].mxu0
    %v3985 = vadd.f32 0.0, %v3984
    %v3986 = vpop.f32.mrb[0].mxu0
    %v3987 = vadd.f32 0.0, %v3986
    %v3988 = vpop.f32.mrb[0].mxu0
    %v3989 = vpop.f32.mrb[0].mxu0
    %3990 = vdwg.mxu0
    %3991 = vmatprep.subr.bf16.mxu0 %v3878
    %3992 = vmatpush1.bf16.msra.mxu0 %v3877
    %3993 = vmatprep.subr.bf16.mxu0 %v3882
    %3994 = vmatpush1.bf16.msra.mxu0 %v3881
    %3995 = vmatprep.subr.bf16.mxu0 %v3886
    %3996 = vmatpush1.bf16.msra.mxu0 %v3885
    %3997 = vmatprep.subr.bf16.mxu0 %v3890
    %3998 = vmatpush1.bf16.msra.mxu0 %v3889
    %3999 = vmatprep.subr.bf16.mxu0 %v3894
    %4000 = vmatpush1.bf16.msra.mxu0 %v3893
    %4001 = vmatprep.subr.bf16.mxu0 %v3898
    %4002 = vmatpush1.bf16.msra.mxu0 %v3897
    %4003 = vmatprep.subr.bf16.mxu0 %v3902
    %4004 = vmatpush1.bf16.msra.mxu0 %v3901
    %4005 = vmatprep.subr.bf16.mxu0 %v3906
    %4006 = vmatpush1.bf16.msra.mxu0 %v3905
    %4007 = vmatprep.subr.bf16.mxu0 %v3910
    %4008 = vmatpush1.bf16.msra.mxu0 %v3909
    %4009 = vmatprep.subr.bf16.mxu0 0
    %4010 = vmatpush1.bf16.msra.mxu0 0
    %4011 = vmatprep.subr.bf16.mxu0 0
    %4012 = vmatpush1.bf16.msra.mxu0 0
    %4013 = vmatprep.subr.bf16.mxu0 0
    %4014 = vmatpush1.bf16.msra.mxu0 0
    %4015 = vmatprep.subr.bf16.mxu0 0
    %4016 = vmatpush1.bf16.msra.mxu0 0
    %4017 = vmatprep.subr.bf16.mxu0 0
    %4018 = vmatpush1.bf16.msra.mxu0 0
    %4019 = vmatprep.subr.bf16.mxu0 0
    %4020 = vmatpush1.bf16.msra.mxu0 0
    %4021 = vmatprep.subr.bf16.mxu0 0
    %4022 = vmatpush1.bf16.msra.mxu0 0
    %4023 = vmatprep.mubr.bf16.mxu0 %v3948
    %4024 = vmatmul.mubr.bf16.gmra.mrb[0].mxu0 %v3729
    %v4025 = vpop.f32.mrb[0].mxu0
    %v4026 = vadd.f32 0.0, %v4025
    %v4027 = vpop.f32.mrb[0].mxu0
    %v4028 = vadd.f32 0.0, %v4027
    %v4029 = vpop.f32.mrb[0].mxu0
    %v4030 = vpop.f32.mrb[0].mxu0
    %4031 = vdwg.mxu0
    %v4032 = vld [vmem:[%s15] sm:$0xff]
    %v4033 = vld [vmem:[%s15 + $0x8] sm:$0xff]
    %v4034 = vld [vmem:[%s15 + $0x10] sm:$0xff]
    %v4035 = vld [vmem:[%s15 + $0x18] sm:$0xff]
    %v4036 = vsel %vm1997, %v3985, 0.0
    %v4037 = vrot.slane %v4036, 4
    %v4038 = vadd.f32 %v4036, %v4037
    %v4039 = vrot.slane %v4038, 2
    %v4040 = vadd.f32 %v4038, %v4039
    %v4041 = vrot.slane %v4040, 1
    %v4042 = vadd.f32 %v4040, %v4041
    %v4043 = vsel %vm1997, %v3987, 0.0
    %v4044 = vrot.slane %v4043, 4
    %v4045 = vadd.f32 %v4043, %v4044
    %v4046 = vrot.slane %v4045, 2
    %v4047 = vadd.f32 %v4045, %v4046
    %v4048 = vrot.slane %v4047, 1
    %v4049 = vadd.f32 %v4047, %v4048
    %v4050 = vsel %vm1997, %v4026, 0.0
    %v4051 = vrot.slane %v4050, 4
    %v4052 = vadd.f32 %v4050, %v4051
    %v4053 = vrot.slane %v4052, 2
    %v4054 = vadd.f32 %v4052, %v4053
    %v4055 = vrot.slane %v4054, 1
    %v4056 = vadd.f32 %v4054, %v4055
    %v4057 = vsel %vm2019, %v4028, 0.0
    %v4058 = vrot.slane %v4057, 4
    %v4059 = vadd.f32 %v4057, %v4058
    %v4060 = vrot.slane %v4059, 2
    %v4061 = vadd.f32 %v4059, %v4060
    %v4062 = vrot.slane %v4061, 1
    %v4063 = vadd.f32 %v4061, %v4062
    %v4064 = vmul.f32 %v3985, %v3985
    %v4065 = vmul.f32 %v3987, %v3987
    %v4066 = vmul.f32 %v4026, %v4026
    %v4067 = vmul.f32 %v4028, %v4028
    %v4068 = vsel %vm1997, %v4064, 0.0
    %v4069 = vrot.slane %v4068, 4
    %v4070 = vadd.f32 %v4068, %v4069
    %v4071 = vrot.slane %v4070, 2
    %v4072 = vadd.f32 %v4070, %v4071
    %v4073 = vrot.slane %v4072, 1
    %v4074 = vadd.f32 %v4072, %v4073
    %v4075 = vsel %vm1997, %v4065, 0.0
    %v4076 = vrot.slane %v4075, 4
    %v4077 = vadd.f32 %v4075, %v4076
    %v4078 = vrot.slane %v4077, 2
    %v4079 = vadd.f32 %v4077, %v4078
    %v4080 = vrot.slane %v4079, 1
    %v4081 = vadd.f32 %v4079, %v4080
    %v4082 = vsel %vm1997, %v4066, 0.0
    %v4083 = vrot.slane %v4082, 4
    %v4084 = vadd.f32 %v4082, %v4083
    %v4085 = vrot.slane %v4084, 2
    %v4086 = vadd.f32 %v4084, %v4085
    %v4087 = vrot.slane %v4086, 1
    %v4088 = vadd.f32 %v4086, %v4087
    %v4089 = vsel %vm2019, %v4067, 0.0
    %v4090 = vrot.slane %v4089, 4
    %v4091 = vadd.f32 %v4089, %v4090
    %v4092 = vrot.slane %v4091, 2
    %v4093 = vadd.f32 %v4091, %v4092
    %v4094 = vrot.slane %v4093, 1
    %v4095 = vadd.f32 %v4093, %v4094
    %v4097 = vsel %vm2059, %v4063, 0
    %v4100 = vsel %vm2059, %v4035, 0
    %4102 = vmatprep.subr.mxu0 %v4033
    %4103 = vmatpush1.xpose.msra.mxu0 %v4032
    %4104 = vmatprep.subr.mxu0 0.0
    %4105 = vmatpush1.xpose.msra.mxu0 0.0
    %4106 = vmatprep.subr.mxu0 0.0
    %4107 = vmatpush1.xpose.msra.mxu0 0.0
    %4108 = vmatprep.subr.mxu0 0.0
    %4109 = vmatpush1.xpose.msra.mxu0 0.0
    %4110 = vmatprep.subr.mxu0 0.0
    %4111 = vmatpush1.xpose.msra.mxu0 0.0
    %4112 = vmatprep.subr.mxu0 0.0
    %4113 = vmatpush1.xpose.msra.mxu0 0.0
    %4114 = vmatprep.subr.mxu0 0.0
    %4115 = vmatpush1.xpose.msra.mxu0 0.0
    %4116 = vmatprep.subr.mxu0 0.0
    %4117 = vmatpush1.xpose.msra.mxu0 0.0
    %4118 = vmatprep.subr.mxu0 0.0
    %4119 = vmatpush1.xpose.msra.mxu0 0.0
    %4120 = vmatprep.subr.mxu0 0.0
    %4121 = vmatpush1.xpose.msra.mxu0 0.0
    %4122 = vmatprep.subr.mxu0 0.0
    %4123 = vmatpush1.xpose.msra.mxu0 0.0
    %4124 = vmatprep.subr.mxu0 0.0
    %4125 = vmatpush1.xpose.msra.mxu0 0.0
    %4126 = vmatprep.subr.mxu0 0.0
    %4127 = vmatpush1.xpose.msra.mxu0 0.0
    %4128 = vmatprep.subr.mxu0 0.0
    %4129 = vmatpush1.xpose.msra.mxu0 0.0
    %4130 = vmatprep.subr.mxu0 0.0
    %4131 = vmatpush1.xpose.msra.mxu0 0.0
    %4132 = vmatprep.subr.mxu0 0.0
    %4133 = vmatpush1.xpose.msra.mxu0 0.0
    %4134 = vmatprep.subr.mxu0 0.0
    %4135 = vmatpush1.xpose.msra.mxu0 0.0
    %4136 = vmatprep.subr.mxu0 0.0
    %4137 = vmatpush1.xpose.msra.mxu0 0.0
    %4138 = vmatprep.subr.mxu0 0.0
    %4139 = vmatpush1.xpose.msra.mxu0 0.0
    %4140 = vmatprep.subr.mxu0 0.0
    %4141 = vmatpush1.xpose.msra.mxu0 0.0
    %4142 = vmatprep.subr.mxu0 0.0
    %4143 = vmatpush1.xpose.msra.mxu0 0.0
    %4144 = vmatprep.subr.mxu0 0.0
    %4145 = vmatpush1.xpose.msra.mxu0 0.0
    %4146 = vmatprep.subr.mxu0 0.0
    %4147 = vmatpush1.xpose.msra.mxu0 0.0
    %4148 = vmatprep.subr.mxu0 0.0
    %4149 = vmatpush1.xpose.msra.mxu0 0.0
    %4150 = vmatprep.subr.mxu0 0.0
    %4151 = vmatpush1.xpose.msra.mxu0 0.0
    %4152 = vmatprep.subr.mxu0 0.0
    %4153 = vmatpush1.xpose.msra.mxu0 0.0
    %4154 = vmatprep.subr.mxu0 0.0
    %4155 = vmatpush1.xpose.msra.mxu0 0.0
    %4156 = vmatprep.subr.mxu0 0.0
    %4157 = vmatpush1.xpose.msra.mxu0 0.0
    %4158 = vmatprep.subr.mxu0 0.0
    %4159 = vmatpush1.xpose.msra.mxu0 0.0
    %4160 = vmatprep.subr.mxu0 0.0
    %4161 = vmatpush1.xpose.msra.mxu0 0.0
    %4162 = vmatprep.subr.mxu0 0.0
    %4163 = vmatpush1.xpose.msra.mxu0 0.0
    %4164 = vmatprep.subr.mxu0 0.0
    %4165 = vmatpush1.xpose.msra.mxu0 0.0
    %4166 = vmatprep.mubr.f32.mxu0 %v4049
    %4167 = vmatmul.mubr.f32.gmra.mrb[0].mxu0 %v4042
    %v4168 = vpop.f32.mrb[0].mxu0
    %v4169 = vadd.f32 0.0, %v4168
    %v4170 = vpop.f32.mrb[0].mxu0
    %4171 = vdwg.mxu0
    %4172 = vmatprep.subr.mxu0 %v4100
    %4173 = vmatpush1.xpose.msra.mxu0 %v4034
    %4174 = vmatprep.subr.mxu0 0.0
    %4175 = vmatpush1.xpose.msra.mxu0 0.0
    %4176 = vmatprep.subr.mxu0 0.0
    %4177 = vmatpush1.xpose.msra.mxu0 0.0
    %4178 = vmatprep.subr.mxu0 0.0
    %4179 = vmatpush1.xpose.msra.mxu0 0.0
    %4180 = vmatprep.subr.mxu0 0.0
    %4181 = vmatpush1.xpose.msra.mxu0 0.0
    %4182 = vmatprep.subr.mxu0 0.0
    %4183 = vmatpush1.xpose.msra.mxu0 0.0
    %4184 = vmatprep.subr.mxu0 0.0
    %4185 = vmatpush1.xpose.msra.mxu0 0.0
    %4186 = vmatprep.subr.mxu0 0.0
    %4187 = vmatpush1.xpose.msra.mxu0 0.0
    %4188 = vmatprep.subr.mxu0 0.0
    %4189 = vmatpush1.xpose.msra.mxu0 0.0
    %4190 = vmatprep.subr.mxu0 0.0
    %4191 = vmatpush1.xpose.msra.mxu0 0.0
    %4192 = vmatprep.subr.mxu0 0.0
    %4193 = vmatpush1.xpose.msra.mxu0 0.0
    %4194 = vmatprep.subr.mxu0 0.0
    %4195 = vmatpush1.xpose.msra.mxu0 0.0
    %4196 = vmatprep.subr.mxu0 0.0
    %4197 = vmatpush1.xpose.msra.mxu0 0.0
    %4198 = vmatprep.subr.mxu0 0.0
    %4199 = vmatpush1.xpose.msra.mxu0 0.0
    %4200 = vmatprep.subr.mxu0 0.0
    %4201 = vmatpush1.xpose.msra.mxu0 0.0
    %4202 = vmatprep.subr.mxu0 0.0
    %4203 = vmatpush1.xpose.msra.mxu0 0.0
    %4204 = vmatprep.subr.mxu0 0.0
    %4205 = vmatpush1.xpose.msra.mxu0 0.0
    %4206 = vmatprep.subr.mxu0 0.0
    %4207 = vmatpush1.xpose.msra.mxu0 0.0
    %4208 = vmatprep.subr.mxu0 0.0
    %4209 = vmatpush1.xpose.msra.mxu0 0.0
    %4210 = vmatprep.subr.mxu0 0.0
    %4211 = vmatpush1.xpose.msra.mxu0 0.0
    %4212 = vmatprep.subr.mxu0 0.0
    %4213 = vmatpush1.xpose.msra.mxu0 0.0
    %4214 = vmatprep.subr.mxu0 0.0
    %4215 = vmatpush1.xpose.msra.mxu0 0.0
    %4216 = vmatprep.subr.mxu0 0.0
    %4217 = vmatpush1.xpose.msra.mxu0 0.0
    %4218 = vmatprep.subr.mxu0 0.0
    %4219 = vmatpush1.xpose.msra.mxu0 0.0
    %4220 = vmatprep.subr.mxu0 0.0
    %4221 = vmatpush1.xpose.msra.mxu0 0.0
    %4222 = vmatprep.subr.mxu0 0.0
    %4223 = vmatpush1.xpose.msra.mxu0 0.0
    %4224 = vmatprep.subr.mxu0 0.0
    %4225 = vmatpush1.xpose.msra.mxu0 0.0
    %4226 = vmatprep.subr.mxu0 0.0
    %4227 = vmatpush1.xpose.msra.mxu0 0.0
    %4228 = vmatprep.subr.mxu0 0.0
    %4229 = vmatpush1.xpose.msra.mxu0 0.0
    %4230 = vmatprep.subr.mxu0 0.0
    %4231 = vmatpush1.xpose.msra.mxu0 0.0
    %4232 = vmatprep.subr.mxu0 0.0
    %4233 = vmatpush1.xpose.msra.mxu0 0.0
    %4234 = vmatprep.subr.mxu0 0.0
    %4235 = vmatpush1.xpose.msra.mxu0 0.0
    %4236 = vmatprep.mubr.f32.mxu0 %v4097
    %4237 = vmatmul.mubr.f32.gmra.mrb[0].mxu0 %v4056
    %v4238 = vpop.f32.mrb[0].mxu0
    %v4239 = vadd.f32 %v4169, %v4238
    %v4240 = vpop.f32.mrb[0].mxu0
    %4241 = vdwg.mxu0
    %v4242 = vmul.f32 %v4239, 0.010204081
    %v4244 = vsel %vm2059, %v4095, 0
    %4246 = vmatprep.subr.mxu0 %v4033
    %4247 = vmatpush1.xpose.msra.mxu0 %v4032
    %4248 = vmatprep.subr.mxu0 0.0
    %4249 = vmatpush1.xpose.msra.mxu0 0.0
    %4250 = vmatprep.subr.mxu0 0.0
    %4251 = vmatpush1.xpose.msra.mxu0 0.0
    %4252 = vmatprep.subr.mxu0 0.0
    %4253 = vmatpush1.xpose.msra.mxu0 0.0
    %4254 = vmatprep.subr.mxu0 0.0
    %4255 = vmatpush1.xpose.msra.mxu0 0.0
    %4256 = vmatprep.subr.mxu0 0.0
    %4257 = vmatpush1.xpose.msra.mxu0 0.0
    %4258 = vmatprep.subr.mxu0 0.0
    %4259 = vmatpush1.xpose.msra.mxu0 0.0
    %4260 = vmatprep.subr.mxu0 0.0
    %4261 = vmatpush1.xpose.msra.mxu0 0.0
    %4262 = vmatprep.subr.mxu0 0.0
    %4263 = vmatpush1.xpose.msra.mxu0 0.0
    %4264 = vmatprep.subr.mxu0 0.0
    %4265 = vmatpush1.xpose.msra.mxu0 0.0
    %4266 = vmatprep.subr.mxu0 0.0
    %4267 = vmatpush1.xpose.msra.mxu0 0.0
    %4268 = vmatprep.subr.mxu0 0.0
    %4269 = vmatpush1.xpose.msra.mxu0 0.0
    %4270 = vmatprep.subr.mxu0 0.0
    %4271 = vmatpush1.xpose.msra.mxu0 0.0
    %4272 = vmatprep.subr.mxu0 0.0
    %4273 = vmatpush1.xpose.msra.mxu0 0.0
    %4274 = vmatprep.subr.mxu0 0.0
    %4275 = vmatpush1.xpose.msra.mxu0 0.0
    %4276 = vmatprep.subr.mxu0 0.0
    %4277 = vmatpush1.xpose.msra.mxu0 0.0
    %4278 = vmatprep.subr.mxu0 0.0
    %4279 = vmatpush1.xpose.msra.mxu0 0.0
    %4280 = vmatprep.subr.mxu0 0.0
    %4281 = vmatpush1.xpose.msra.mxu0 0.0
    %4282 = vmatprep.subr.mxu0 0.0
    %4283 = vmatpush1.xpose.msra.mxu0 0.0
    %4284 = vmatprep.subr.mxu0 0.0
    %4285 = vmatpush1.xpose.msra.mxu0 0.0
    %4286 = vmatprep.subr.mxu0 0.0
    %4287 = vmatpush1.xpose.msra.mxu0 0.0
    %4288 = vmatprep.subr.mxu0 0.0
    %4289 = vmatpush1.xpose.msra.mxu0 0.0
    %4290 = vmatprep.subr.mxu0 0.0
    %4291 = vmatpush1.xpose.msra.mxu0 0.0
    %4292 = vmatprep.subr.mxu0 0.0
    %4293 = vmatpush1.xpose.msra.mxu0 0.0
    %4294 = vmatprep.subr.mxu0 0.0
    %4295 = vmatpush1.xpose.msra.mxu0 0.0
    %4296 = vmatprep.subr.mxu0 0.0
    %4297 = vmatpush1.xpose.msra.mxu0 0.0
    %4298 = vmatprep.subr.mxu0 0.0
    %4299 = vmatpush1.xpose.msra.mxu0 0.0
    %4300 = vmatprep.subr.mxu0 0.0
    %4301 = vmatpush1.xpose.msra.mxu0 0.0
    %4302 = vmatprep.subr.mxu0 0.0
    %4303 = vmatpush1.xpose.msra.mxu0 0.0
    %4304 = vmatprep.subr.mxu0 0.0
    %4305 = vmatpush1.xpose.msra.mxu0 0.0
    %4306 = vmatprep.subr.mxu0 0.0
    %4307 = vmatpush1.xpose.msra.mxu0 0.0
    %4308 = vmatprep.subr.mxu0 0.0
    %4309 = vmatpush1.xpose.msra.mxu0 0.0
    %4310 = vmatprep.mubr.f32.mxu0 %v4081
    %4311 = vmatmul.mubr.f32.gmra.mrb[0].mxu0 %v4074
    %v4312 = vpop.f32.mrb[0].mxu0
    %v4313 = vadd.f32 0.0, %v4312
    %v4314 = vpop.f32.mrb[0].mxu0
    %4315 = vdwg.mxu0
    %4316 = vmatprep.subr.mxu0 %v4100
    %4317 = vmatpush1.xpose.msra.mxu0 %v4034
    %4318 = vmatprep.subr.mxu0 0.0
    %4319 = vmatpush1.xpose.msra.mxu0 0.0
    %4320 = vmatprep.subr.mxu0 0.0
    %4321 = vmatpush1.xpose.msra.mxu0 0.0
    %4322 = vmatprep.subr.mxu0 0.0
    %4323 = vmatpush1.xpose.msra.mxu0 0.0
    %4324 = vmatprep.subr.mxu0 0.0
    %4325 = vmatpush1.xpose.msra.mxu0 0.0
    %4326 = vmatprep.subr.mxu0 0.0
    %4327 = vmatpush1.xpose.msra.mxu0 0.0
    %4328 = vmatprep.subr.mxu0 0.0
    %4329 = vmatpush1.xpose.msra.mxu0 0.0
    %4330 = vmatprep.subr.mxu0 0.0
    %4331 = vmatpush1.xpose.msra.mxu0 0.0
    %4332 = vmatprep.subr.mxu0 0.0
    %4333 = vmatpush1.xpose.msra.mxu0 0.0
    %4334 = vmatprep.subr.mxu0 0.0
    %4335 = vmatpush1.xpose.msra.mxu0 0.0
    %4336 = vmatprep.subr.mxu0 0.0
    %4337 = vmatpush1.xpose.msra.mxu0 0.0
    %4338 = vmatprep.subr.mxu0 0.0
    %4339 = vmatpush1.xpose.msra.mxu0 0.0
    %4340 = vmatprep.subr.mxu0 0.0
    %4341 = vmatpush1.xpose.msra.mxu0 0.0
    %4342 = vmatprep.subr.mxu0 0.0
    %4343 = vmatpush1.xpose.msra.mxu0 0.0
    %4344 = vmatprep.subr.mxu0 0.0
    %4345 = vmatpush1.xpose.msra.mxu0 0.0
    %4346 = vmatprep.subr.mxu0 0.0
    %4347 = vmatpush1.xpose.msra.mxu0 0.0
    %4348 = vmatprep.subr.mxu0 0.0
    %4349 = vmatpush1.xpose.msra.mxu0 0.0
    %4350 = vmatprep.subr.mxu0 0.0
    %4351 = vmatpush1.xpose.msra.mxu0 0.0
    %4352 = vmatprep.subr.mxu0 0.0
    %4353 = vmatpush1.xpose.msra.mxu0 0.0
    %4354 = vmatprep.subr.mxu0 0.0
    %4355 = vmatpush1.xpose.msra.mxu0 0.0
    %4356 = vmatprep.subr.mxu0 0.0
    %4357 = vmatpush1.xpose.msra.mxu0 0.0
    %4358 = vmatprep.subr.mxu0 0.0
    %4359 = vmatpush1.xpose.msra.mxu0 0.0
    %4360 = vmatprep.subr.mxu0 0.0
    %4361 = vmatpush1.xpose.msra.mxu0 0.0
    %4362 = vmatprep.subr.mxu0 0.0
    %4363 = vmatpush1.xpose.msra.mxu0 0.0
    %4364 = vmatprep.subr.mxu0 0.0
    %4365 = vmatpush1.xpose.msra.mxu0 0.0
    %4366 = vmatprep.subr.mxu0 0.0
    %4367 = vmatpush1.xpose.msra.mxu0 0.0
    %4368 = vmatprep.subr.mxu0 0.0
    %4369 = vmatpush1.xpose.msra.mxu0 0.0
    %4370 = vmatprep.subr.mxu0 0.0
    %4371 = vmatpush1.xpose.msra.mxu0 0.0
    %4372 = vmatprep.subr.mxu0 0.0
    %4373 = vmatpush1.xpose.msra.mxu0 0.0
    %4374 = vmatprep.subr.mxu0 0.0
    %4375 = vmatpush1.xpose.msra.mxu0 0.0
    %4376 = vmatprep.subr.mxu0 0.0
    %4377 = vmatpush1.xpose.msra.mxu0 0.0
    %4378 = vmatprep.subr.mxu0 0.0
    %4379 = vmatpush1.xpose.msra.mxu0 0.0
    %4380 = vmatprep.mubr.f32.mxu0 %v4244
    %4381 = vmatmul.mubr.f32.gmra.mrb[0].mxu0 %v4088
    %v4382 = vpop.f32.mrb[0].mxu0
    %v4383 = vadd.f32 %v4313, %v4382
    %v4384 = vpop.f32.mrb[0].mxu0
    %4385 = vdwg.mxu0
    %v4386 = vmul.f32 %v4383, 0.010204081
    %v4387 = vmul.f32 %v4242, %v4242
    %v4388 = vsub.f32 %v4386, %v4387
    %v4389 = vld [vmem:[%s16] sm:$0x1]
    %v4390 = vadd.f32 %v4388, 1e-05
    %v4391 = vrsqrt.pop %v4390
    %v4392 = vmul.f32 %v4389, %v4391
    %v4393 = vld [vmem:[%s17] sm:$0x1]
    %v4394 = vmul.f32 %v4242, %v4392
    %v4395 = vsub.f32 %v4393, %v4394
    %v4397 = vsel %vm2059, %v4392, 0
    %4399 = vmatprep.subr.mxu0 %v4033
    %4400 = vmatpush1.msra.mxu0 %v4032
    %4401 = vmatprep.subr.mxu0 0.0
    %4402 = vmatpush1.msra.mxu0 0.0
    %4403 = vmatprep.subr.mxu0 0.0
    %4404 = vmatpush1.msra.mxu0 0.0
    %4405 = vmatprep.subr.mxu0 0.0
    %4406 = vmatpush1.msra.mxu0 0.0
    %4407 = vmatprep.subr.mxu0 0.0
    %4408 = vmatpush1.msra.mxu0 0.0
    %4409 = vmatprep.subr.mxu0 0.0
    %4410 = vmatpush1.msra.mxu0 0.0
    %4411 = vmatprep.subr.mxu0 0.0
    %4412 = vmatpush1.msra.mxu0 0.0
    %4413 = vmatprep.subr.mxu0 0.0
    %4414 = vmatpush1.msra.mxu0 0.0
    %4415 = vmatprep.subr.mxu0 0.0
    %4416 = vmatpush1.msra.mxu0 0.0
    %4417 = vmatprep.subr.mxu0 0.0
    %4418 = vmatpush1.msra.mxu0 0.0
    %4419 = vmatprep.subr.mxu0 0.0
    %4420 = vmatpush1.msra.mxu0 0.0
    %4421 = vmatprep.subr.mxu0 0.0
    %4422 = vmatpush1.msra.mxu0 0.0
    %4423 = vmatprep.subr.mxu0 0.0
    %4424 = vmatpush1.msra.mxu0 0.0
    %4425 = vmatprep.subr.mxu0 0.0
    %4426 = vmatpush1.msra.mxu0 0.0
    %4427 = vmatprep.subr.mxu0 0.0
    %4428 = vmatpush1.msra.mxu0 0.0
    %4429 = vmatprep.subr.mxu0 0.0
    %4430 = vmatpush1.msra.mxu0 0.0
    %4431 = vmatprep.subr.mxu0 0.0
    %4432 = vmatpush1.msra.mxu0 0.0
    %4433 = vmatprep.subr.mxu0 0.0
    %4434 = vmatpush1.msra.mxu0 0.0
    %4435 = vmatprep.subr.mxu0 0.0
    %4436 = vmatpush1.msra.mxu0 0.0
    %4437 = vmatprep.subr.mxu0 0.0
    %4438 = vmatpush1.msra.mxu0 0.0
    %4439 = vmatprep.subr.mxu0 0.0
    %4440 = vmatpush1.msra.mxu0 0.0
    %4441 = vmatprep.subr.mxu0 0.0
    %4442 = vmatpush1.msra.mxu0 0.0
    %4443 = vmatprep.subr.mxu0 0.0
    %4444 = vmatpush1.msra.mxu0 0.0
    %4445 = vmatprep.subr.mxu0 0.0
    %4446 = vmatpush1.msra.mxu0 0.0
    %4447 = vmatprep.subr.mxu0 0.0
    %4448 = vmatpush1.msra.mxu0 0.0
    %4449 = vmatprep.subr.mxu0 0.0
    %4450 = vmatpush1.msra.mxu0 0.0
    %4451 = vmatprep.subr.mxu0 0.0
    %4452 = vmatpush1.msra.mxu0 0.0
    %4453 = vmatprep.subr.mxu0 0.0
    %4454 = vmatpush1.msra.mxu0 0.0
    %4455 = vmatprep.subr.mxu0 0.0
    %4456 = vmatpush1.msra.mxu0 0.0
    %4457 = vmatprep.subr.mxu0 0.0
    %4458 = vmatpush1.msra.mxu0 0.0
    %4459 = vmatprep.subr.mxu0 0.0
    %4460 = vmatpush1.msra.mxu0 0.0
    %4461 = vmatprep.subr.mxu0 0.0
    %4462 = vmatpush1.msra.mxu0 0.0
    %4463 = vmatprep.mubr.f32.mxu0 0.0
    %4464 = vmatmul.mubr.f32.gmra.mrb[0].mxu0 %v4397
    %v4465 = vpop.f32.mrb[0].mxu0
    %v4466 = vadd.f32 0.0, %v4465
    %v4467 = vpop.f32.mrb[0].mxu0
    %v4468 = vadd.f32 0.0, %v4467
    %4469 = vdwg.mxu0
    %4470 = vmatprep.subr.mxu0 %v4035
    %4471 = vmatpush1.msra.mxu0 %v4034
    %4472 = vmatprep.subr.mxu0 0.0
    %4473 = vmatpush1.msra.mxu0 0.0
    %4474 = vmatprep.subr.mxu0 0.0
    %4475 = vmatpush1.msra.mxu0 0.0
    %4476 = vmatprep.subr.mxu0 0.0
    %4477 = vmatpush1.msra.mxu0 0.0
    %4478 = vmatprep.subr.mxu0 0.0
    %4479 = vmatpush1.msra.mxu0 0.0
    %4480 = vmatprep.subr.mxu0 0.0
    %4481 = vmatpush1.msra.mxu0 0.0
    %4482 = vmatprep.subr.mxu0 0.0
    %4483 = vmatpush1.msra.mxu0 0.0
    %4484 = vmatprep.subr.mxu0 0.0
    %4485 = vmatpush1.msra.mxu0 0.0
    %4486 = vmatprep.subr.mxu0 0.0
    %4487 = vmatpush1.msra.mxu0 0.0
    %4488 = vmatprep.subr.mxu0 0.0
    %4489 = vmatpush1.msra.mxu0 0.0
    %4490 = vmatprep.subr.mxu0 0.0
    %4491 = vmatpush1.msra.mxu0 0.0
    %4492 = vmatprep.subr.mxu0 0.0
    %4493 = vmatpush1.msra.mxu0 0.0
    %4494 = vmatprep.subr.mxu0 0.0
    %4495 = vmatpush1.msra.mxu0 0.0
    %4496 = vmatprep.subr.mxu0 0.0
    %4497 = vmatpush1.msra.mxu0 0.0
    %4498 = vmatprep.subr.mxu0 0.0
    %4499 = vmatpush1.msra.mxu0 0.0
    %4500 = vmatprep.subr.mxu0 0.0
    %4501 = vmatpush1.msra.mxu0 0.0
    %4502 = vmatprep.subr.mxu0 0.0
    %4503 = vmatpush1.msra.mxu0 0.0
    %4504 = vmatprep.subr.mxu0 0.0
    %4505 = vmatpush1.msra.mxu0 0.0
    %4506 = vmatprep.subr.mxu0 0.0
    %4507 = vmatpush1.msra.mxu0 0.0
    %4508 = vmatprep.subr.mxu0 0.0
    %4509 = vmatpush1.msra.mxu0 0.0
    %4510 = vmatprep.subr.mxu0 0.0
    %4511 = vmatpush1.msra.mxu0 0.0
    %4512 = vmatprep.subr.mxu0 0.0
    %4513 = vmatpush1.msra.mxu0 0.0
    %4514 = vmatprep.subr.mxu0 0.0
    %4515 = vmatpush1.msra.mxu0 0.0
    %4516 = vmatprep.subr.mxu0 0.0
    %4517 = vmatpush1.msra.mxu0 0.0
    %4518 = vmatprep.subr.mxu0 0.0
    %4519 = vmatpush1.msra.mxu0 0.0
    %4520 = vmatprep.subr.mxu0 0.0
    %4521 = vmatpush1.msra.mxu0 0.0
    %4522 = vmatprep.subr.mxu0 0.0
    %4523 = vmatpush1.msra.mxu0 0.0
    %4524 = vmatprep.subr.mxu0 0.0
    %4525 = vmatpush1.msra.mxu0 0.0
    %4526 = vmatprep.subr.mxu0 0.0
    %4527 = vmatpush1.msra.mxu0 0.0
    %4528 = vmatprep.subr.mxu0 0.0
    %4529 = vmatpush1.msra.mxu0 0.0
    %4530 = vmatprep.subr.mxu0 0.0
    %4531 = vmatpush1.msra.mxu0 0.0
    %4532 = vmatprep.subr.mxu0 0.0
    %4533 = vmatpush1.msra.mxu0 0.0
    %4534 = vmatprep.mubr.f32.mxu0 0.0
    %4535 = vmatmul.mubr.f32.gmra.mrb[0].mxu0 %v4397
    %v4536 = vpop.f32.mrb[0].mxu0
    %v4537 = vadd.f32 0.0, %v4536
    %v4538 = vpop.f32.mrb[0].mxu0
    %v4539 = vadd.f32 0.0, %v4538
    %4540 = vdwg.mxu0
    %v4542 = vsel %vm2059, %v4395, 0
    %4544 = vmatprep.subr.mxu0 %v4033
    %4545 = vmatpush1.msra.mxu0 %v4032
    %4546 = vmatprep.subr.mxu0 0.0
    %4547 = vmatpush1.msra.mxu0 0.0
    %4548 = vmatprep.subr.mxu0 0.0
    %4549 = vmatpush1.msra.mxu0 0.0
    %4550 = vmatprep.subr.mxu0 0.0
    %4551 = vmatpush1.msra.mxu0 0.0
    %4552 = vmatprep.subr.mxu0 0.0
    %4553 = vmatpush1.msra.mxu0 0.0
    %4554 = vmatprep.subr.mxu0 0.0
    %4555 = vmatpush1.msra.mxu0 0.0
    %4556 = vmatprep.subr.mxu0 0.0
    %4557 = vmatpush1.msra.mxu0 0.0
    %4558 = vmatprep.subr.mxu0 0.0
    %4559 = vmatpush1.msra.mxu0 0.0
    %4560 = vmatprep.subr.mxu0 0.0
    %4561 = vmatpush1.msra.mxu0 0.0
    %4562 = vmatprep.subr.mxu0 0.0
    %4563 = vmatpush1.msra.mxu0 0.0
    %4564 = vmatprep.subr.mxu0 0.0
    %4565 = vmatpush1.msra.mxu0 0.0
    %4566 = vmatprep.subr.mxu0 0.0
    %4567 = vmatpush1.msra.mxu0 0.0
    %4568 = vmatprep.subr.mxu0 0.0
    %4569 = vmatpush1.msra.mxu0 0.0
    %4570 = vmatprep.subr.mxu0 0.0
    %4571 = vmatpush1.msra.mxu0 0.0
    %4572 = vmatprep.subr.mxu0 0.0
    %4573 = vmatpush1.msra.mxu0 0.0
    %4574 = vmatprep.subr.mxu0 0.0
    %4575 = vmatpush1.msra.mxu0 0.0
    %4576 = vmatprep.subr.mxu0 0.0
    %4577 = vmatpush1.msra.mxu0 0.0
    %4578 = vmatprep.subr.mxu0 0.0
    %4579 = vmatpush1.msra.mxu0 0.0
    %4580 = vmatprep.subr.mxu0 0.0
    %4581 = vmatpush1.msra.mxu0 0.0
    %4582 = vmatprep.subr.mxu0 0.0
    %4583 = vmatpush1.msra.mxu0 0.0
    %4584 = vmatprep.subr.mxu0 0.0
    %4585 = vmatpush1.msra.mxu0 0.0
    %4586 = vmatprep.subr.mxu0 0.0
    %4587 = vmatpush1.msra.mxu0 0.0
    %4588 = vmatprep.subr.mxu0 0.0
    %4589 = vmatpush1.msra.mxu0 0.0
    %4590 = vmatprep.subr.mxu0 0.0
    %4591 = vmatpush1.msra.mxu0 0.0
    %4592 = vmatprep.subr.mxu0 0.0
    %4593 = vmatpush1.msra.mxu0 0.0
    %4594 = vmatprep.subr.mxu0 0.0
    %4595 = vmatpush1.msra.mxu0 0.0
    %4596 = vmatprep.subr.mxu0 0.0
    %4597 = vmatpush1.msra.mxu0 0.0
    %4598 = vmatprep.subr.mxu0 0.0
    %4599 = vmatpush1.msra.mxu0 0.0
    %4600 = vmatprep.subr.mxu0 0.0
    %4601 = vmatpush1.msra.mxu0 0.0
    %4602 = vmatprep.subr.mxu0 0.0
    %4603 = vmatpush1.msra.mxu0 0.0
    %4604 = vmatprep.subr.mxu0 0.0
    %4605 = vmatpush1.msra.mxu0 0.0
    %4606 = vmatprep.subr.mxu0 0.0
    %4607 = vmatpush1.msra.mxu0 0.0
    %4608 = vmatprep.mubr.f32.mxu0 0.0
    %4609 = vmatmul.mubr.f32.gmra.mrb[0].mxu0 %v4542
    %v4610 = vpop.f32.mrb[0].mxu0
    %v4611 = vadd.f32 0.0, %v4610
    %v4612 = vpop.f32.mrb[0].mxu0
    %v4613 = vadd.f32 0.0, %v4612
    %4614 = vdwg.mxu0
    %4615 = vmatprep.subr.mxu0 %v4035
    %4616 = vmatpush1.msra.mxu0 %v4034
    %4617 = vmatprep.subr.mxu0 0.0
    %4618 = vmatpush1.msra.mxu0 0.0
    %4619 = vmatprep.subr.mxu0 0.0
    %4620 = vmatpush1.msra.mxu0 0.0
    %4621 = vmatprep.subr.mxu0 0.0
    %4622 = vmatpush1.msra.mxu0 0.0
    %4623 = vmatprep.subr.mxu0 0.0
    %4624 = vmatpush1.msra.mxu0 0.0
    %4625 = vmatprep.subr.mxu0 0.0
    %4626 = vmatpush1.msra.mxu0 0.0
    %4627 = vmatprep.subr.mxu0 0.0
    %4628 = vmatpush1.msra.mxu0 0.0
    %4629 = vmatprep.subr.mxu0 0.0
    %4630 = vmatpush1.msra.mxu0 0.0
    %4631 = vmatprep.subr.mxu0 0.0
    %4632 = vmatpush1.msra.mxu0 0.0
    %4633 = vmatprep.subr.mxu0 0.0
    %4634 = vmatpush1.msra.mxu0 0.0
    %4635 = vmatprep.subr.mxu0 0.0
    %4636 = vmatpush1.msra.mxu0 0.0
    %4637 = vmatprep.subr.mxu0 0.0
    %4638 = vmatpush1.msra.mxu0 0.0
    %4639 = vmatprep.subr.mxu0 0.0
    %4640 = vmatpush1.msra.mxu0 0.0
    %4641 = vmatprep.subr.mxu0 0.0
    %4642 = vmatpush1.msra.mxu0 0.0
    %4643 = vmatprep.subr.mxu0 0.0
    %4644 = vmatpush1.msra.mxu0 0.0
    %4645 = vmatprep.subr.mxu0 0.0
    %4646 = vmatpush1.msra.mxu0 0.0
    %4647 = vmatprep.subr.mxu0 0.0
    %4648 = vmatpush1.msra.mxu0 0.0
    %4649 = vmatprep.subr.mxu0 0.0
    %4650 = vmatpush1.msra.mxu0 0.0
    %4651 = vmatprep.subr.mxu0 0.0
    %4652 = vmatpush1.msra.mxu0 0.0
    %4653 = vmatprep.subr.mxu0 0.0
    %4654 = vmatpush1.msra.mxu0 0.0
    %4655 = vmatprep.subr.mxu0 0.0
    %4656 = vmatpush1.msra.mxu0 0.0
    %4657 = vmatprep.subr.mxu0 0.0
    %4658 = vmatpush1.msra.mxu0 0.0
    %4659 = vmatprep.subr.mxu0 0.0
    %4660 = vmatpush1.msra.mxu0 0.0
    %4661 = vmatprep.subr.mxu0 0.0
    %4662 = vmatpush1.msra.mxu0 0.0
    %4663 = vmatprep.subr.mxu0 0.0
    %4664 = vmatpush1.msra.mxu0 0.0
    %4665 = vmatprep.subr.mxu0 0.0
    %4666 = vmatpush1.msra.mxu0 0.0
    %4667 = vmatprep.subr.mxu0 0.0
    %4668 = vmatpush1.msra.mxu0 0.0
    %4669 = vmatprep.subr.mxu0 0.0
    %4670 = vmatpush1.msra.mxu0 0.0
    %4671 = vmatprep.subr.mxu0 0.0
    %4672 = vmatpush1.msra.mxu0 0.0
    %4673 = vmatprep.subr.mxu0 0.0
    %4674 = vmatpush1.msra.mxu0 0.0
    %4675 = vmatprep.subr.mxu0 0.0
    %4676 = vmatpush1.msra.mxu0 0.0
    %4677 = vmatprep.subr.mxu0 0.0
    %4678 = vmatpush1.msra.mxu0 0.0
    %4679 = vmatprep.mubr.f32.mxu0 0.0
    %4680 = vmatmul.mubr.f32.gmra.mrb[0].mxu0 %v4542
    %v4681 = vpop.f32.mrb[0].mxu0
    %v4682 = vadd.f32 0.0, %v4681
    %v4683 = vpop.f32.mrb[0].mxu0
    %v4684 = vadd.f32 0.0, %v4683
    %4685 = vdwg.mxu0
    %v4686 = vlaneseq
    %v4687 = vshrl.u32 %v4686, 7
    %v4688 = vsub.s32 0, %v4687
    %v4689 = vrot.slane %v4466, %v4688
    %v4690 = vlaneseq
    %v4691 = vshrl.u32 %v4690, 7
    %v4692 = vsub.s32 0, %v4691
    %v4693 = vrot.slane %v4468, %v4692
    %v4694 = vlaneseq
    %v4695 = vshrl.u32 %v4694, 7
    %v4696 = vsub.s32 0, %v4695
    %v4697 = vrot.slane %v4537, %v4696
    %v4698 = vlaneseq
    %v4699 = vshrl.u32 %v4698, 7
    %v4700 = vsub.s32 0, %v4699
    %v4701 = vrot.slane %v4539, %v4700
    %v4702 = vmul.f32 %v3985, %v4689
    %v4703 = vmul.f32 %v3987, %v4693
    %v4704 = vmul.f32 %v4026, %v4697
    %v4705 = vmul.f32 %v4028, %v4701
    %v4706 = vlaneseq
    %v4707 = vshrl.u32 %v4706, 7
    %v4708 = vsub.s32 0, %v4707
    %v4709 = vrot.slane %v4611, %v4708
    %v4710 = vlaneseq
    %v4711 = vshrl.u32 %v4710, 7
    %v4712 = vsub.s32 0, %v4711
    %v4713 = vrot.slane %v4613, %v4712
    %v4714 = vlaneseq
    %v4715 = vshrl.u32 %v4714, 7
    %v4716 = vsub.s32 0, %v4715
    %v4717 = vrot.slane %v4682, %v4716
    %v4718 = vlaneseq
    %v4719 = vshrl.u32 %v4718, 7
    %v4720 = vsub.s32 0, %v4719
    %v4721 = vrot.slane %v4684, %v4720
    %v4722 = vadd.f32 %v4702, %v4709
    %v4723 = vadd.f32 %v4703, %v4713
    %v4724 = vadd.f32 %v4704, %v4717
    %v4725 = vadd.f32 %v4705, %v4721
    %v4726 = vmul.f32 %v4722, 0.5
    %v4727 = vmul.f32 %v4723, 0.5
    %v4728 = vmul.f32 %v4724, 0.5
    %v4729 = vmul.f32 %v4725, 0.5
    %v4730 = vmul.f32 %v4722, 0.044715
    %v4731 = vmul.f32 %v4723, 0.044715
    %v4732 = vmul.f32 %v4724, 0.044715
    %v4733 = vmul.f32 %v4725, 0.044715
    %v4734 = vmul.f32 %v4730, %v4722
    %v4735 = vmul.f32 %v4731, %v4723
    %v4736 = vmul.f32 %v4732, %v4724
    %v4737 = vmul.f32 %v4733, %v4725
    %v4738 = vmul.f32 %v4734, %v4722
    %v4739 = vmul.f32 %v4735, %v4723
    %v4740 = vmul.f32 %v4736, %v4724
    %v4741 = vmul.f32 %v4737, %v4725
    %v4742 = vadd.f32 %v4722, %v4738
    %v4743 = vadd.f32 %v4723, %v4739
    %v4744 = vadd.f32 %v4724, %v4740
    %v4745 = vadd.f32 %v4725, %v4741
    %v4746 = vmul.f32 %v4742, 0.7978846
    %v4747 = vmul.f32 %v4743, 0.7978846
    %v4748 = vmul.f32 %v4744, 0.7978846
    %v4749 = vmul.f32 %v4745, 0.7978846
    %v4750 = vtanh.pop %v4746
    %v4751 = vtanh.pop %v4747
    %v4752 = vtanh.pop %v4748
    %v4753 = vtanh.pop %v4749
    %v4754 = vadd.f32 %v4750, 1.0
    %v4755 = vadd.f32 %v4751, 1.0
    %v4756 = vadd.f32 %v4752, 1.0
    %v4757 = vadd.f32 %v4753, 1.0
    %v4758 = vmul.f32 %v4726, %v4754
    %v4759 = vmul.f32 %v4727, %v4755
    %v4760 = vmul.f32 %v4728, %v4756
    %v4761 = vmul.f32 %v4729, %v4757
    %v4762 = vpack.c.bf16 %v4758, %v4758
    %v4763 = vpack.c.bf16 %v4759, %v4759
    %v4764 = vpack.c.bf16 %v4760, %v4760
    %v4765 = vpack.c.bf16 %v4761, %v4761
    %v4766 = vld [vmem:[%s18] sm:$0xff]
    %v4767 = vld [vmem:[%s18 + $0x8] sm:$0xff]
    %v4768 = vld [vmem:[%s18 + $0x10] sm:$0xff]
    %v4769 = vld [vmem:[%s18 + $0x18] sm:$0xff]
    %v4770 = vld [vmem:[%s18 + $0x20] sm:$0xff]
    %v4771 = vld [vmem:[%s18 + $0x28] sm:$0xff]
    %v4772 = vld [vmem:[%s18 + $0x30] sm:$0xff]
    %v4773 = vld [vmem:[%s18 + $0x38] sm:$0xff]
    %v4774 = vld [vmem:[%s18 + $0x40] sm:$0xff]
    %v4775 = vld [vmem:[%s18 + $0x48] sm:$0xff]
    %v4776 = vld [vmem:[%s18 + $0x50] sm:$0xff]
    %v4777 = vld [vmem:[%s18 + $0x58] sm:$0xff]
    %v4778 = vld [vmem:[%s18 + $0x60] sm:$0xff]
    %v4779 = vld [vmem:[%s18 + $0x68] sm:$0xff]
    %v4780 = vld [vmem:[%s18 + $0x70] sm:$0xff]
    %v4781 = vld [vmem:[%s18 + $0x78] sm:$0xff]
    %v4782 = vld [vmem:[%s18 + $0x80] sm:$0xff]
    %v4783 = vld [vmem:[%s18 + $0x88] sm:$0xff]
    %v4784 = vld [vmem:[%s18 + $0x90] sm:$0xff]
    %v4785 = vld [vmem:[%s18 + $0x98] sm:$0xff]
    %v4786 = vld [vmem:[%s18 + $0xa0] sm:$0xff]
    %v4787 = vld [vmem:[%s18 + $0xa8] sm:$0xff]
    %v4788 = vld [vmem:[%s18 + $0xb0] sm:$0xff]
    %v4789 = vld [vmem:[%s18 + $0xb8] sm:$0xff]
    %v4790 = vld [vmem:[%s18 + $0xc0] sm:$0xff]
    %v4791 = vld [vmem:[%s18 + $0xc8] sm:$0xff]
    %v4792 = vld [vmem:[%s18 + $0xd0] sm:$0xff]
    %v4793 = vld [vmem:[%s18 + $0xd8] sm:$0xff]
    %v4794 = vld [vmem:[%s18 + $0xe0] sm:$0xff]
    %v4795 = vld [vmem:[%s18 + $0xe8] sm:$0xff]
    %v4796 = vld [vmem:[%s18 + $0xf0] sm:$0xff]
    %v4797 = vld [vmem:[%s18 + $0xf8] sm:$0xff]
    %v4798 = vld [vmem:[%s18 + $0x100] sm:$0xff]
    %v4799 = vld [vmem:[%s18 + $0x108] sm:$0xff]
    %v4800 = vld [vmem:[%s18 + $0x110] sm:$0xff]
    %v4801 = vld [vmem:[%s18 + $0x118] sm:$0xff]
    %v4802 = vld [vmem:[%s18 + $0x120] sm:$0xff]
    %v4803 = vld [vmem:[%s18 + $0x128] sm:$0xff]
    %v4804 = vld [vmem:[%s18 + $0x130] sm:$0xff]
    %v4805 = vld [vmem:[%s18 + $0x138] sm:$0xff]
    %v4806 = vld [vmem:[%s18 + $0x140] sm:$0xff]
    %v4807 = vld [vmem:[%s18 + $0x148] sm:$0xff]
    %v4808 = vld [vmem:[%s18 + $0x150] sm:$0xff]
    %v4809 = vld [vmem:[%s18 + $0x158] sm:$0xff]
    %v4810 = vld [vmem:[%s18 + $0x160] sm:$0xff]
    %v4811 = vld [vmem:[%s18 + $0x168] sm:$0xff]
    %v4812 = vld [vmem:[%s18 + $0x170] sm:$0xff]
    %v4813 = vld [vmem:[%s18 + $0x178] sm:$0xff]
    %v4814 = vld [vmem:[%s18 + $0x180] sm:$0xff]
    %v4815 = vld [vmem:[%s18 + $0x188] sm:$0xff]
    %v4816 = vld [vmem:[%s18 + $0x190] sm:$0xff]
    %v4817 = vld [vmem:[%s18 + $0x198] sm:$0xff]
    %v4818 = vld [vmem:[%s18 + $0x1a0] sm:$0xff]
    %v4819 = vld [vmem:[%s18 + $0x1a8] sm:$0xff]
    %v4820 = vld [vmem:[%s18 + $0x1b0] sm:$0xff]
    %v4821 = vld [vmem:[%s18 + $0x1b8] sm:$0xff]
    %v4822 = vld [vmem:[%s18 + $0x1c0] sm:$0xff]
    %v4823 = vld [vmem:[%s18 + $0x1c8] sm:$0xff]
    %v4824 = vld [vmem:[%s18 + $0x1d0] sm:$0xff]
    %v4825 = vld [vmem:[%s18 + $0x1d8] sm:$0xff]
    %v4826 = vld [vmem:[%s18 + $0x1e0] sm:$0xff]
    %v4827 = vld [vmem:[%s18 + $0x1e8] sm:$0xff]
    %v4828 = vld [vmem:[%s18 + $0x1f0] sm:$0xff]
    %v4829 = vld [vmem:[%s18 + $0x1f8] sm:$0xff]
    %v4830 = vld [vmem:[%s18 + $0x200] sm:$0xff]
    %v4831 = vld [vmem:[%s18 + $0x208] sm:$0xff]
    %v4832 = vld [vmem:[%s18 + $0x210] sm:$0xff]
    %v4833 = vld [vmem:[%s18 + $0x218] sm:$0xff]
    %v4834 = vld [vmem:[%s18 + $0x220] sm:$0xff]
    %v4835 = vld [vmem:[%s18 + $0x228] sm:$0xff]
    %v4836 = vld [vmem:[%s18 + $0x230] sm:$0xff]
    %v4837 = vld [vmem:[%s18 + $0x238] sm:$0xff]
    %v4838 = vld [vmem:[%s18 + $0x240] sm:$0xff]
    %v4839 = vld [vmem:[%s18 + $0x248] sm:$0xff]
    %v4840 = vld [vmem:[%s18 + $0x250] sm:$0xff]
    %v4841 = vld [vmem:[%s18 + $0x258] sm:$0xff]
    %v4842 = vld [vmem:[%s18 + $0x260] sm:$0xff]
    %v4843 = vld [vmem:[%s18 + $0x268] sm:$0xff]
    %v4844 = vld [vmem:[%s18 + $0x270] sm:$0xff]
    %v4845 = vld [vmem:[%s18 + $0x278] sm:$0xff]
    %v4846 = vld [vmem:[%s18 + $0x280] sm:$0xff]
    %v4847 = vld [vmem:[%s18 + $0x288] sm:$0xff]
    %v4848 = vld [vmem:[%s18 + $0x290] sm:$0xff]
    %v4849 = vld [vmem:[%s18 + $0x298] sm:$0xff]
    %v4850 = vld [vmem:[%s18 + $0x2a0] sm:$0xff]
    %v4851 = vld [vmem:[%s18 + $0x2a8] sm:$0xff]
    %v4852 = vld [vmem:[%s18 + $0x2b0] sm:$0xff]
    %v4853 = vld [vmem:[%s18 + $0x2b8] sm:$0xff]
    %v4854 = vld [vmem:[%s18 + $0x2c0] sm:$0xff]
    %v4855 = vld [vmem:[%s18 + $0x2c8] sm:$0xff]
    %v4856 = vld [vmem:[%s18 + $0x2d0] sm:$0xff]
    %v4857 = vld [vmem:[%s18 + $0x2d8] sm:$0xff]
    %v4858 = vld [vmem:[%s18 + $0x2e0] sm:$0xff]
    %v4859 = vld [vmem:[%s18 + $0x2e8] sm:$0xff]
    %v4860 = vld [vmem:[%s18 + $0x2f0] sm:$0xff]
    %v4861 = vld [vmem:[%s18 + $0x2f8] sm:$0xff]
    %v4862 = vld [vmem:[%s18 + $0x300] sm:$0xff]
    %v4863 = vld [vmem:[%s18 + $0x308] sm:$0xff]
    %v4864 = vld [vmem:[%s18 + $0x310] sm:$0xff]
    %v4865 = vld [vmem:[%s18 + $0x318] sm:$0xff]
    %v4866 = vld [vmem:[%s18 + $0x320] sm:$0xff]
    %v4867 = vld [vmem:[%s18 + $0x328] sm:$0xff]
    %v4868 = vld [vmem:[%s18 + $0x330] sm:$0xff]
    %v4869 = vld [vmem:[%s18 + $0x338] sm:$0xff]
    %v4870 = vld [vmem:[%s18 + $0x340] sm:$0xff]
    %v4871 = vld [vmem:[%s18 + $0x348] sm:$0xff]
    %v4872 = vld [vmem:[%s18 + $0x350] sm:$0xff]
    %v4873 = vld [vmem:[%s18 + $0x358] sm:$0xff]
    %v4874 = vld [vmem:[%s18 + $0x360] sm:$0xff]
    %v4875 = vld [vmem:[%s18 + $0x368] sm:$0xff]
    %v4876 = vld [vmem:[%s18 + $0x370] sm:$0xff]
    %v4877 = vld [vmem:[%s18 + $0x378] sm:$0xff]
    %v4878 = vld [vmem:[%s18 + $0x380] sm:$0xff]
    %v4879 = vld [vmem:[%s18 + $0x388] sm:$0xff]
    %v4880 = vld [vmem:[%s18 + $0x390] sm:$0xff]
    %v4881 = vld [vmem:[%s18 + $0x398] sm:$0xff]
    %v4882 = vld [vmem:[%s18 + $0x3a0] sm:$0xff]
    %v4883 = vld [vmem:[%s18 + $0x3a8] sm:$0xff]
    %v4884 = vld [vmem:[%s18 + $0x3b0] sm:$0xff]
    %v4885 = vld [vmem:[%s18 + $0x3b8] sm:$0xff]
    %v4886 = vld [vmem:[%s18 + $0x3c0] sm:$0xff]
    %v4887 = vld [vmem:[%s18 + $0x3c8] sm:$0xff]
    %v4888 = vld [vmem:[%s18 + $0x3d0] sm:$0xff]
    %v4889 = vld [vmem:[%s18 + $0x3d8] sm:$0xff]
    %v4890 = vld [vmem:[%s18 + $0x3e0] sm:$0xff]
    %v4891 = vld [vmem:[%s18 + $0x3e8] sm:$0xff]
    %v4892 = vld [vmem:[%s18 + $0x3f0] sm:$0xff]
    %v4893 = vld [vmem:[%s18 + $0x3f8] sm:$0xff]
    %v4894 = vld [vmem:[%s18 + $0x400] sm:$0xff]
    %v4895 = vld [vmem:[%s18 + $0x408] sm:$0xff]
    %v4896 = vld [vmem:[%s18 + $0x410] sm:$0xff]
    %v4897 = vld [vmem:[%s18 + $0x418] sm:$0xff]
    %v4898 = vld [vmem:[%s18 + $0x420] sm:$0xff]
    %v4899 = vld [vmem:[%s18 + $0x428] sm:$0xff]
    %v4900 = vld [vmem:[%s18 + $0x430] sm:$0xff]
    %v4901 = vld [vmem:[%s18 + $0x438] sm:$0xff]
    %v4902 = vld [vmem:[%s18 + $0x440] sm:$0xff]
    %v4903 = vld [vmem:[%s18 + $0x448] sm:$0xff]
    %v4904 = vld [vmem:[%s18 + $0x450] sm:$0xff]
    %v4905 = vld [vmem:[%s18 + $0x458] sm:$0xff]
    %v4906 = vld [vmem:[%s18 + $0x460] sm:$0xff]
    %v4907 = vld [vmem:[%s18 + $0x468] sm:$0xff]
    %v4908 = vld [vmem:[%s18 + $0x470] sm:$0xff]
    %v4909 = vld [vmem:[%s18 + $0x478] sm:$0xff]
    %v4910 = vld [vmem:[%s18 + $0x480] sm:$0xff]
    %v4911 = vld [vmem:[%s18 + $0x488] sm:$0xff]
    %v4912 = vld [vmem:[%s18 + $0x490] sm:$0xff]
    %v4913 = vld [vmem:[%s18 + $0x498] sm:$0xff]
    %v4914 = vld [vmem:[%s18 + $0x4a0] sm:$0xff]
    %v4915 = vld [vmem:[%s18 + $0x4a8] sm:$0xff]
    %v4916 = vld [vmem:[%s18 + $0x4b0] sm:$0xff]
    %v4917 = vld [vmem:[%s18 + $0x4b8] sm:$0xff]
    %v4918 = vld [vmem:[%s18 + $0x4c0] sm:$0xff]
    %v4919 = vld [vmem:[%s18 + $0x4c8] sm:$0xff]
    %v4920 = vld [vmem:[%s18 + $0x4d0] sm:$0xff]
    %v4921 = vld [vmem:[%s18 + $0x4d8] sm:$0xff]
    %v4922 = vld [vmem:[%s18 + $0x4e0] sm:$0xff]
    %v4923 = vld [vmem:[%s18 + $0x4e8] sm:$0xff]
    %v4924 = vld [vmem:[%s18 + $0x4f0] sm:$0xff]
    %v4925 = vld [vmem:[%s18 + $0x4f8] sm:$0xff]
    %v4926 = vld [vmem:[%s18 + $0x500] sm:$0xff]
    %v4927 = vld [vmem:[%s18 + $0x508] sm:$0xff]
    %v4928 = vld [vmem:[%s18 + $0x510] sm:$0xff]
    %v4929 = vld [vmem:[%s18 + $0x518] sm:$0xff]
    %v4930 = vld [vmem:[%s18 + $0x520] sm:$0xff]
    %v4931 = vld [vmem:[%s18 + $0x528] sm:$0xff]
    %v4932 = vld [vmem:[%s18 + $0x530] sm:$0xff]
    %v4933 = vld [vmem:[%s18 + $0x538] sm:$0xff]
    %v4934 = vld [vmem:[%s18 + $0x540] sm:$0xff]
    %v4935 = vld [vmem:[%s18 + $0x548] sm:$0xff]
    %v4936 = vld [vmem:[%s18 + $0x550] sm:$0xff]
    %v4937 = vld [vmem:[%s18 + $0x558] sm:$0xff]
    %v4938 = vld [vmem:[%s18 + $0x560] sm:$0xff]
    %v4939 = vld [vmem:[%s18 + $0x568] sm:$0xff]
    %v4940 = vld [vmem:[%s18 + $0x570] sm:$0xff]
    %v4941 = vld [vmem:[%s18 + $0x578] sm:$0xff]
    %v4942 = vld [vmem:[%s18 + $0x580] sm:$0xff]
    %v4943 = vld [vmem:[%s18 + $0x588] sm:$0xff]
    %v4944 = vld [vmem:[%s18 + $0x590] sm:$0xff]
    %v4945 = vld [vmem:[%s18 + $0x598] sm:$0xff]
    %v4946 = vld [vmem:[%s18 + $0x5a0] sm:$0xff]
    %v4947 = vld [vmem:[%s18 + $0x5a8] sm:$0xff]
    %v4948 = vld [vmem:[%s18 + $0x5b0] sm:$0xff]
    %v4949 = vld [vmem:[%s18 + $0x5b8] sm:$0xff]
    %v4950 = vld [vmem:[%s18 + $0x5c0] sm:$0xff]
    %v4951 = vld [vmem:[%s18 + $0x5c8] sm:$0xff]
    %v4952 = vld [vmem:[%s18 + $0x5d0] sm:$0xff]
    %v4953 = vld [vmem:[%s18 + $0x5d8] sm:$0xff]
    %v4954 = vld [vmem:[%s18 + $0x5e0] sm:$0xff]
    %v4955 = vld [vmem:[%s18 + $0x5e8] sm:$0xff]
    %v4956 = vld [vmem:[%s18 + $0x5f0] sm:$0xff]
    %v4957 = vld [vmem:[%s18 + $0x5f8] sm:$0xff]
    %v4958 = vld [vmem:[%s18 + $0x600] sm:$0xff]
    %v4959 = vld [vmem:[%s18 + $0x608] sm:$0xff]
    %v4960 = vld [vmem:[%s18 + $0x610] sm:$0xff]
    %v4961 = vld [vmem:[%s18 + $0x618] sm:$0xff]
    %v5158 = vunpack.c.l.b16 %v4766
    %v5159 = vunpack.c.h.b16 %v4766
    %v5160 = vunpack.c.l.b16 %v4767
    %v5161 = vunpack.c.h.b16 %v4767
    %v5162 = vunpack.c.l.b16 %v4768
    %v5163 = vunpack.c.h.b16 %v4768
    %v5164 = vunpack.c.l.b16 %v4769
    %v5165 = vunpack.c.h.b16 %v4769
    %v5166 = vunpack.c.l.b16 %v4770
    %v5167 = vunpack.c.h.b16 %v4770
    %v5168 = vunpack.c.l.b16 %v4771
    %v5169 = vunpack.c.h.b16 %v4771
    %v5170 = vunpack.c.l.b16 %v4772
    %v5171 = vunpack.c.h.b16 %v4772
    %v5172 = vunpack.c.l.b16 %v4773
    %v5173 = vunpack.c.h.b16 %v4773
    %v5174 = vunpack.c.l.b16 %v4774
    %v5175 = vunpack.c.h.b16 %v4774
    %v5176 = vunpack.c.l.b16 %v4775
    %v5177 = vunpack.c.h.b16 %v4775
    %v5178 = vunpack.c.l.b16 %v4776
    %v5179 = vunpack.c.h.b16 %v4776
    %v5180 = vunpack.c.l.b16 %v4777
    %v5181 = vunpack.c.h.b16 %v4777
    %v5182 = vunpack.c.l.b16 %v4778
    %v5183 = vunpack.c.h.b16 %v4778
    %v5184 = vunpack.c.l.b16 %v4779
    %v5185 = vunpack.c.h.b16 %v4779
    %v5186 = vunpack.c.l.b16 %v4780
    %v5187 = vunpack.c.h.b16 %v4780
    %v5188 = vunpack.c.l.b16 %v4781
    %v5189 = vunpack.c.h.b16 %v4781
    %v5190 = vunpack.c.l.b16 %v4782
    %v5191 = vunpack.c.h.b16 %v4782
    %v5192 = vunpack.c.l.b16 %v4783
    %v5193 = vunpack.c.h.b16 %v4783
    %v5194 = vunpack.c.l.b16 %v4784
    %v5195 = vunpack.c.h.b16 %v4784
    %v5196 = vunpack.c.l.b16 %v4785
    %v5197 = vunpack.c.h.b16 %v4785
    %v5198 = vunpack.c.l.b16 %v4786
    %v5199 = vunpack.c.h.b16 %v4786
    %v5200 = vunpack.c.l.b16 %v4787
    %v5201 = vunpack.c.h.b16 %v4787
    %v5202 = vunpack.c.l.b16 %v4788
    %v5203 = vunpack.c.h.b16 %v4788
    %v5204 = vunpack.c.l.b16 %v4789
    %v5205 = vunpack.c.h.b16 %v4789
    %v5206 = vunpack.c.l.b16 %v4790
    %v5207 = vunpack.c.h.b16 %v4790
    %v5208 = vunpack.c.l.b16 %v4791
    %v5209 = vunpack.c.h.b16 %v4791
    %v5210 = vunpack.c.l.b16 %v4792
    %v5211 = vunpack.c.h.b16 %v4792
    %v5212 = vunpack.c.l.b16 %v4793
    %v5213 = vunpack.c.h.b16 %v4793
    %v5214 = vunpack.c.l.b16 %v4794
    %v5215 = vunpack.c.h.b16 %v4794
    %v5216 = vunpack.c.l.b16 %v4795
    %v5217 = vunpack.c.h.b16 %v4795
    %v5218 = vunpack.c.l.b16 %v4796
    %v5219 = vunpack.c.h.b16 %v4796
    %v5220 = vunpack.c.l.b16 %v4797
    %v5221 = vunpack.c.h.b16 %v4797
    %v5222 = vunpack.c.l.b16 %v4798
    %v5223 = vunpack.c.h.b16 %v4798
    %v5224 = vunpack.c.l.b16 %v4799
    %v5225 = vunpack.c.h.b16 %v4799
    %v5226 = vunpack.c.l.b16 %v4800
    %v5227 = vunpack.c.h.b16 %v4800
    %v5228 = vunpack.c.l.b16 %v4801
    %v5229 = vunpack.c.h.b16 %v4801
    %v5230 = vunpack.c.l.b16 %v4802
    %v5231 = vunpack.c.h.b16 %v4802
    %v5232 = vunpack.c.l.b16 %v4803
    %v5233 = vunpack.c.h.b16 %v4803
    %v5234 = vunpack.c.l.b16 %v4804
    %v5235 = vunpack.c.h.b16 %v4804
    %v5236 = vunpack.c.l.b16 %v4805
    %v5237 = vunpack.c.h.b16 %v4805
    %v5238 = vunpack.c.l.b16 %v4806
    %v5239 = vunpack.c.h.b16 %v4806
    %v5240 = vunpack.c.l.b16 %v4807
    %v5241 = vunpack.c.h.b16 %v4807
    %v5242 = vunpack.c.l.b16 %v4808
    %v5243 = vunpack.c.h.b16 %v4808
    %v5244 = vunpack.c.l.b16 %v4809
    %v5245 = vunpack.c.h.b16 %v4809
    %v5246 = vunpack.c.l.b16 %v4810
    %v5247 = vunpack.c.h.b16 %v4810
    %v5248 = vunpack.c.l.b16 %v4811
    %v5249 = vunpack.c.h.b16 %v4811
    %v5250 = vunpack.c.l.b16 %v4812
    %v5251 = vunpack.c.h.b16 %v4812
    %v5252 = vunpack.c.l.b16 %v4813
    %v5253 = vunpack.c.h.b16 %v4813
    %v5254 = vunpack.c.l.b16 %v4814
    %v5255 = vunpack.c.h.b16 %v4814
    %v5256 = vunpack.c.l.b16 %v4815
    %v5257 = vunpack.c.h.b16 %v4815
    %v5258 = vunpack.c.l.b16 %v4816
    %v5259 = vunpack.c.h.b16 %v4816
    %v5260 = vunpack.c.l.b16 %v4817
    %v5261 = vunpack.c.h.b16 %v4817
    %v5262 = vunpack.c.l.b16 %v4818
    %v5263 = vunpack.c.h.b16 %v4818
    %v5264 = vunpack.c.l.b16 %v4819
    %v5265 = vunpack.c.h.b16 %v4819
    %v5266 = vunpack.c.l.b16 %v4820
    %v5267 = vunpack.c.h.b16 %v4820
    %v5268 = vunpack.c.l.b16 %v4821
    %v5269 = vunpack.c.h.b16 %v4821
    %v5270 = vunpack.c.l.b16 %v4822
    %v5271 = vunpack.c.h.b16 %v4822
    %v5272 = vunpack.c.l.b16 %v4823
    %v5273 = vunpack.c.h.b16 %v4823
    %v5274 = vunpack.c.l.b16 %v4824
    %v5275 = vunpack.c.h.b16 %v4824
    %v5276 = vunpack.c.l.b16 %v4825
    %v5277 = vunpack.c.h.b16 %v4825
    %v5278 = vunpack.c.l.b16 %v4826
    %v5279 = vunpack.c.h.b16 %v4826
    %v5280 = vunpack.c.l.b16 %v4827
    %v5281 = vunpack.c.h.b16 %v4827
    %v5282 = vunpack.c.l.b16 %v4828
    %v5283 = vunpack.c.h.b16 %v4828
    %v5284 = vunpack.c.l.b16 %v4829
    %v5285 = vunpack.c.h.b16 %v4829
    %v5286 = vunpack.c.l.b16 %v4830
    %v5287 = vunpack.c.h.b16 %v4830
    %v5288 = vunpack.c.l.b16 %v4831
    %v5289 = vunpack.c.h.b16 %v4831
    %v5290 = vunpack.c.l.b16 %v4832
    %v5291 = vunpack.c.h.b16 %v4832
    %v5292 = vunpack.c.l.b16 %v4833
    %v5293 = vunpack.c.h.b16 %v4833
    %v5294 = vunpack.c.l.b16 %v4834
    %v5295 = vunpack.c.h.b16 %v4834
    %v5296 = vunpack.c.l.b16 %v4835
    %v5297 = vunpack.c.h.b16 %v4835
    %v5298 = vunpack.c.l.b16 %v4836
    %v5299 = vunpack.c.h.b16 %v4836
    %v5300 = vunpack.c.l.b16 %v4837
    %v5301 = vunpack.c.h.b16 %v4837
    %v5302 = vunpack.c.l.b16 %v4838
    %v5303 = vunpack.c.h.b16 %v4838
    %v5304 = vunpack.c.l.b16 %v4839
    %v5305 = vunpack.c.h.b16 %v4839
    %v5306 = vunpack.c.l.b16 %v4840
    %v5307 = vunpack.c.h.b16 %v4840
    %v5308 = vunpack.c.l.b16 %v4841
    %v5309 = vunpack.c.h.b16 %v4841
    %v5310 = vunpack.c.l.b16 %v4842
    %v5311 = vunpack.c.h.b16 %v4842
    %v5312 = vunpack.c.l.b16 %v4843
    %v5313 = vunpack.c.h.b16 %v4843
    %v5314 = vunpack.c.l.b16 %v4844
    %v5315 = vunpack.c.h.b16 %v4844
    %v5316 = vunpack.c.l.b16 %v4845
    %v5317 = vunpack.c.h.b16 %v4845
    %v5318 = vunpack.c.l.b16 %v4846
    %v5319 = vunpack.c.h.b16 %v4846
    %v5320 = vunpack.c.l.b16 %v4847
    %v5321 = vunpack.c.h.b16 %v4847
    %v5322 = vunpack.c.l.b16 %v4848
    %v5323 = vunpack.c.h.b16 %v4848
    %v5324 = vunpack.c.l.b16 %v4849
    %v5325 = vunpack.c.h.b16 %v4849
    %v5326 = vunpack.c.l.b16 %v4850
    %v5327 = vunpack.c.h.b16 %v4850
    %v5328 = vunpack.c.l.b16 %v4851
    %v5329 = vunpack.c.h.b16 %v4851
    %v5330 = vunpack.c.l.b16 %v4852
    %v5331 = vunpack.c.h.b16 %v4852
    %v5332 = vunpack.c.l.b16 %v4853
    %v5333 = vunpack.c.h.b16 %v4853
    %v5334 = vunpack.c.l.b16 %v4854
    %v5335 = vunpack.c.h.b16 %v4854
    %v5336 = vunpack.c.l.b16 %v4855
    %v5337 = vunpack.c.h.b16 %v4855
    %v5338 = vunpack.c.l.b16 %v4856
    %v5339 = vunpack.c.h.b16 %v4856
    %v5340 = vunpack.c.l.b16 %v4857
    %v5341 = vunpack.c.h.b16 %v4857
    %v5342 = vunpack.c.l.b16 %v4858
    %v5343 = vunpack.c.h.b16 %v4858
    %v5344 = vunpack.c.l.b16 %v4859
    %v5345 = vunpack.c.h.b16 %v4859
    %v5346 = vunpack.c.l.b16 %v4860
    %v5347 = vunpack.c.h.b16 %v4860
    %v5348 = vunpack.c.l.b16 %v4861
    %v5349 = vunpack.c.h.b16 %v4861
    %v5350 = vunpack.c.l.b16 %v4862
    %v5351 = vunpack.c.h.b16 %v4862
    %v5352 = vunpack.c.l.b16 %v4863
    %v5353 = vunpack.c.h.b16 %v4863
    %v5354 = vunpack.c.l.b16 %v4864
    %v5355 = vunpack.c.h.b16 %v4864
    %v5356 = vunpack.c.l.b16 %v4865
    %v5357 = vunpack.c.h.b16 %v4865
    %v5358 = vunpack.c.l.b16 %v4866
    %v5359 = vunpack.c.h.b16 %v4866
    %v5360 = vunpack.c.l.b16 %v4867
    %v5361 = vunpack.c.h.b16 %v4867
    %v5362 = vunpack.c.l.b16 %v4868
    %v5363 = vunpack.c.h.b16 %v4868
    %v5364 = vunpack.c.l.b16 %v4869
    %v5365 = vunpack.c.h.b16 %v4869
    %v5366 = vunpack.c.l.b16 %v4870
    %v5367 = vunpack.c.h.b16 %v4870
    %v5368 = vunpack.c.l.b16 %v4871
    %v5369 = vunpack.c.h.b16 %v4871
    %v5370 = vunpack.c.l.b16 %v4872
    %v5371 = vunpack.c.h.b16 %v4872
    %v5372 = vunpack.c.l.b16 %v4873
    %v5373 = vunpack.c.h.b16 %v4873
    %v5374 = vunpack.c.l.b16 %v4874
    %v5375 = vunpack.c.h.b16 %v4874
    %v5376 = vunpack.c.l.b16 %v4875
    %v5377 = vunpack.c.h.b16 %v4875
    %v5378 = vunpack.c.l.b16 %v4876
    %v5379 = vunpack.c.h.b16 %v4876
    %v5380 = vunpack.c.l.b16 %v4877
    %v5381 = vunpack.c.h.b16 %v4877
    %v5382 = vunpack.c.l.b16 %v4878
    %v5383 = vunpack.c.h.b16 %v4878
    %v5384 = vunpack.c.l.b16 %v4879
    %v5385 = vunpack.c.h.b16 %v4879
    %v5386 = vunpack.c.l.b16 %v4880
    %v5387 = vunpack.c.h.b16 %v4880
    %v5388 = vunpack.c.l.b16 %v4881
    %v5389 = vunpack.c.h.b16 %v4881
    %v5390 = vunpack.c.l.b16 %v4882
    %v5391 = vunpack.c.h.b16 %v4882
    %v5392 = vunpack.c.l.b16 %v4883
    %v5393 = vunpack.c.h.b16 %v4883
    %v5394 = vunpack.c.l.b16 %v4884
    %v5395 = vunpack.c.h.b16 %v4884
    %v5396 = vunpack.c.l.b16 %v4885
    %v5397 = vunpack.c.h.b16 %v4885
    %v5398 = vunpack.c.l.b16 %v4886
    %v5399 = vunpack.c.h.b16 %v4886
    %v5400 = vunpack.c.l.b16 %v4887
    %v5401 = vunpack.c.h.b16 %v4887
    %v5402 = vunpack.c.l.b16 %v4888
    %v5403 = vunpack.c.h.b16 %v4888
    %v5404 = vunpack.c.l.b16 %v4889
    %v5405 = vunpack.c.h.b16 %v4889
    %v5406 = vunpack.c.l.b16 %v4890
    %v5407 = vunpack.c.h.b16 %v4890
    %v5408 = vunpack.c.l.b16 %v4891
    %v5409 = vunpack.c.h.b16 %v4891
    %v5410 = vunpack.c.l.b16 %v4892
    %v5411 = vunpack.c.h.b16 %v4892
    %v5412 = vunpack.c.l.b16 %v4893
    %v5413 = vunpack.c.h.b16 %v4893
    %v5414 = vunpack.c.l.b16 %v4894
    %v5415 = vunpack.c.h.b16 %v4894
    %v5416 = vunpack.c.l.b16 %v4895
    %v5417 = vunpack.c.h.b16 %v4895
    %v5418 = vunpack.c.l.b16 %v4896
    %v5419 = vunpack.c.h.b16 %v4896
    %v5420 = vunpack.c.l.b16 %v4897
    %v5421 = vunpack.c.h.b16 %v4897
    %v5422 = vunpack.c.l.b16 %v4898
    %v5423 = vunpack.c.h.b16 %v4898
    %v5424 = vunpack.c.l.b16 %v4899
    %v5425 = vunpack.c.h.b16 %v4899
    %v5426 = vunpack.c.l.b16 %v4900
    %v5427 = vunpack.c.h.b16 %v4900
    %v5428 = vunpack.c.l.b16 %v4901
    %v5429 = vunpack.c.h.b16 %v4901
    %v5430 = vunpack.c.l.b16 %v4902
    %v5431 = vunpack.c.h.b16 %v4902
    %v5432 = vunpack.c.l.b16 %v4903
    %v5433 = vunpack.c.h.b16 %v4903
    %v5434 = vunpack.c.l.b16 %v4904
    %v5435 = vunpack.c.h.b16 %v4904
    %v5436 = vunpack.c.l.b16 %v4905
    %v5437 = vunpack.c.h.b16 %v4905
    %v5438 = vunpack.c.l.b16 %v4906
    %v5439 = vunpack.c.h.b16 %v4906
    %v5440 = vunpack.c.l.b16 %v4907
    %v5441 = vunpack.c.h.b16 %v4907
    %v5442 = vunpack.c.l.b16 %v4908
    %v5443 = vunpack.c.h.b16 %v4908
    %v5444 = vunpack.c.l.b16 %v4909
    %v5445 = vunpack.c.h.b16 %v4909
    %v5446 = vunpack.c.l.b16 %v4910
    %v5447 = vunpack.c.h.b16 %v4910
    %v5448 = vunpack.c.l.b16 %v4911
    %v5449 = vunpack.c.h.b16 %v4911
    %v5450 = vunpack.c.l.b16 %v4912
    %v5451 = vunpack.c.h.b16 %v4912
    %v5452 = vunpack.c.l.b16 %v4913
    %v5453 = vunpack.c.h.b16 %v4913
    %v5454 = vunpack.c.l.b16 %v4914
    %v5455 = vunpack.c.h.b16 %v4914
    %v5456 = vunpack.c.l.b16 %v4915
    %v5457 = vunpack.c.h.b16 %v4915
    %v5458 = vunpack.c.l.b16 %v4916
    %v5459 = vunpack.c.h.b16 %v4916
    %v5460 = vunpack.c.l.b16 %v4917
    %v5461 = vunpack.c.h.b16 %v4917
    %v5462 = vunpack.c.l.b16 %v4918
    %v5463 = vunpack.c.h.b16 %v4918
    %v5464 = vunpack.c.l.b16 %v4919
    %v5465 = vunpack.c.h.b16 %v4919
    %v5466 = vunpack.c.l.b16 %v4920
    %v5467 = vunpack.c.h.b16 %v4920
    %v5468 = vunpack.c.l.b16 %v4921
    %v5469 = vunpack.c.h.b16 %v4921
    %v5470 = vunpack.c.l.b16 %v4922
    %v5471 = vunpack.c.h.b16 %v4922
    %v5472 = vunpack.c.l.b16 %v4923
    %v5473 = vunpack.c.h.b16 %v4923
    %v5474 = vunpack.c.l.b16 %v4924
    %v5475 = vunpack.c.h.b16 %v4924
    %v5476 = vunpack.c.l.b16 %v4925
    %v5477 = vunpack.c.h.b16 %v4925
    %v5478 = vunpack.c.l.b16 %v4926
    %v5479 = vunpack.c.h.b16 %v4926
    %v5480 = vunpack.c.l.b16 %v4927
    %v5481 = vunpack.c.h.b16 %v4927
    %v5482 = vunpack.c.l.b16 %v4928
    %v5483 = vunpack.c.h.b16 %v4928
    %v5484 = vunpack.c.l.b16 %v4929
    %v5485 = vunpack.c.h.b16 %v4929
    %v5486 = vunpack.c.l.b16 %v4930
    %v5487 = vunpack.c.h.b16 %v4930
    %v5488 = vunpack.c.l.b16 %v4931
    %v5489 = vunpack.c.h.b16 %v4931
    %v5490 = vunpack.c.l.b16 %v4932
    %v5491 = vunpack.c.h.b16 %v4932
    %v5492 = vunpack.c.l.b16 %v4933
    %v5493 = vunpack.c.h.b16 %v4933
    %v5494 = vunpack.c.l.b16 %v4934
    %v5495 = vunpack.c.h.b16 %v4934
    %v5496 = vunpack.c.l.b16 %v4935
    %v5497 = vunpack.c.h.b16 %v4935
    %v5498 = vunpack.c.l.b16 %v4936
    %v5499 = vunpack.c.h.b16 %v4936
    %v5500 = vunpack.c.l.b16 %v4937
    %v5501 = vunpack.c.h.b16 %v4937
    %v5502 = vunpack.c.l.b16 %v4938
    %v5503 = vunpack.c.h.b16 %v4938
    %v5504 = vunpack.c.l.b16 %v4939
    %v5505 = vunpack.c.h.b16 %v4939
    %v5506 = vunpack.c.l.b16 %v4940
    %v5507 = vunpack.c.h.b16 %v4940
    %v5508 = vunpack.c.l.b16 %v4941
    %v5509 = vunpack.c.h.b16 %v4941
    %v5510 = vunpack.c.l.b16 %v4942
    %v5511 = vunpack.c.h.b16 %v4942
    %v5512 = vunpack.c.l.b16 %v4943
    %v5513 = vunpack.c.h.b16 %v4943
    %v5514 = vunpack.c.l.b16 %v4944
    %v5515 = vunpack.c.h.b16 %v4944
    %v5516 = vunpack.c.l.b16 %v4945
    %v5517 = vunpack.c.h.b16 %v4945
    %v5518 = vunpack.c.l.b16 %v4946
    %v5519 = vunpack.c.h.b16 %v4946
    %v5520 = vunpack.c.l.b16 %v4947
    %v5521 = vunpack.c.h.b16 %v4947
    %v5522 = vunpack.c.l.b16 %v4948
    %v5523 = vunpack.c.h.b16 %v4948
    %v5524 = vunpack.c.l.b16 %v4949
    %v5525 = vunpack.c.h.b16 %v4949
    %v5526 = vunpack.c.l.b16 %v4950
    %v5527 = vunpack.c.h.b16 %v4950
    %v5528 = vunpack.c.l.b16 %v4951
    %v5529 = vunpack.c.h.b16 %v4951
    %v5530 = vunpack.c.l.b16 %v4952
    %v5531 = vunpack.c.h.b16 %v4952
    %v5532 = vunpack.c.l.b16 %v4953
    %v5533 = vunpack.c.h.b16 %v4953
    %v5534 = vunpack.c.l.b16 %v4954
    %v5535 = vunpack.c.h.b16 %v4954
    %v5536 = vunpack.c.l.b16 %v4955
    %v5537 = vunpack.c.h.b16 %v4955
    %v5538 = vunpack.c.l.b16 %v4956
    %v5539 = vunpack.c.h.b16 %v4956
    %v5540 = vunpack.c.l.b16 %v4957
    %v5541 = vunpack.c.h.b16 %v4957
    %v5542 = vunpack.c.l.b16 %v4958
    %v5543 = vunpack.c.h.b16 %v4958
    %v5544 = vunpack.c.l.b16 %v4959
    %v5545 = vunpack.c.h.b16 %v4959
    %v5546 = vunpack.c.l.b16 %v4960
    %v5547 = vunpack.c.h.b16 %v4960
    %v5548 = vunpack.c.l.b16 %v4961
    %v5549 = vunpack.c.h.b16 %v4961
    %v5550 = vpack.c.b16 %v5166, %v5158
    %v5551 = vpack.c.b16 %v5167, %v5159
    %v5552 = vpack.c.b16 %v5168, %v5160
    %v5553 = vpack.c.b16 %v5169, %v5161
    %v5554 = vpack.c.b16 %v5170, %v5162
    %v5555 = vpack.c.b16 %v5171, %v5163
    %v5556 = vpack.c.b16 %v5172, %v5164
    %v5557 = vpack.c.b16 %v5173, %v5165
    %v5558 = vpack.c.b16 %v5182, %v5174
    %v5559 = vpack.c.b16 %v5183, %v5175
    %v5560 = vpack.c.b16 %v5184, %v5176
    %v5561 = vpack.c.b16 %v5185, %v5177
    %v5562 = vpack.c.b16 %v5186, %v5178
    %v5563 = vpack.c.b16 %v5187, %v5179
    %v5564 = vpack.c.b16 %v5188, %v5180
    %v5565 = vpack.c.b16 %v5189, %v5181
    %v5566 = vpack.c.b16 %v5198, %v5190
    %v5567 = vpack.c.b16 %v5199, %v5191
    %v5568 = vpack.c.b16 %v5200, %v5192
    %v5569 = vpack.c.b16 %v5201, %v5193
    %v5570 = vpack.c.b16 %v5202, %v5194
    %v5571 = vpack.c.b16 %v5203, %v5195
    %v5572 = vpack.c.b16 %v5204, %v5196
    %v5573 = vpack.c.b16 %v5205, %v5197
    %v5574 = vpack.c.b16 %v5214, %v5206
    %v5575 = vpack.c.b16 %v5215, %v5207
    %v5576 = vpack.c.b16 %v5216, %v5208
    %v5577 = vpack.c.b16 %v5217, %v5209
    %v5578 = vpack.c.b16 %v5218, %v5210
    %v5579 = vpack.c.b16 %v5219, %v5211
    %v5580 = vpack.c.b16 %v5220, %v5212
    %v5581 = vpack.c.b16 %v5221, %v5213
    %v5582 = vpack.c.b16 %v5230, %v5222
    %v5583 = vpack.c.b16 %v5231, %v5223
    %v5584 = vpack.c.b16 %v5232, %v5224
    %v5585 = vpack.c.b16 %v5233, %v5225
    %v5586 = vpack.c.b16 %v5234, %v5226
    %v5587 = vpack.c.b16 %v5235, %v5227
    %v5588 = vpack.c.b16 %v5236, %v5228
    %v5589 = vpack.c.b16 %v5237, %v5229
    %v5590 = vpack.c.b16 %v5246, %v5238
    %v5591 = vpack.c.b16 %v5247, %v5239
    %v5592 = vpack.c.b16 %v5248, %v5240
    %v5593 = vpack.c.b16 %v5249, %v5241
    %v5594 = vpack.c.b16 %v5250, %v5242
    %v5595 = vpack.c.b16 %v5251, %v5243
    %v5596 = vpack.c.b16 %v5252, %v5244
    %v5597 = vpack.c.b16 %v5253, %v5245
    %v5598 = vpack.c.b16 %v5262, %v5254
    %v5599 = vpack.c.b16 %v5263, %v5255
    %v5600 = vpack.c.b16 %v5264, %v5256
    %v5601 = vpack.c.b16 %v5265, %v5257
    %v5602 = vpack.c.b16 %v5266, %v5258
    %v5603 = vpack.c.b16 %v5267, %v5259
    %v5604 = vpack.c.b16 %v5268, %v5260
    %v5605 = vpack.c.b16 %v5269, %v5261
    %v5606 = vpack.c.b16 %v5278, %v5270
    %v5607 = vpack.c.b16 %v5279, %v5271
    %v5608 = vpack.c.b16 %v5280, %v5272
    %v5609 = vpack.c.b16 %v5281, %v5273
    %v5610 = vpack.c.b16 %v5282, %v5274
    %v5611 = vpack.c.b16 %v5283, %v5275
    %v5612 = vpack.c.b16 %v5284, %v5276
    %v5613 = vpack.c.b16 %v5285, %v5277
    %v5614 = vpack.c.b16 %v5294, %v5286
    %v5615 = vpack.c.b16 %v5295, %v5287
    %v5616 = vpack.c.b16 %v5296, %v5288
    %v5617 = vpack.c.b16 %v5297, %v5289
    %v5618 = vpack.c.b16 %v5298, %v5290
    %v5619 = vpack.c.b16 %v5299, %v5291
    %v5620 = vpack.c.b16 %v5300, %v5292
    %v5621 = vpack.c.b16 %v5301, %v5293
    %v5622 = vpack.c.b16 %v5310, %v5302
    %v5623 = vpack.c.b16 %v5311, %v5303
    %v5624 = vpack.c.b16 %v5312, %v5304
    %v5625 = vpack.c.b16 %v5313, %v5305
    %v5626 = vpack.c.b16 %v5314, %v5306
    %v5627 = vpack.c.b16 %v5315, %v5307
    %v5628 = vpack.c.b16 %v5316, %v5308
    %v5629 = vpack.c.b16 %v5317, %v5309
    %v5630 = vpack.c.b16 %v5326, %v5318
    %v5631 = vpack.c.b16 %v5327, %v5319
    %v5632 = vpack.c.b16 %v5328, %v5320
    %v5633 = vpack.c.b16 %v5329, %v5321
    %v5634 = vpack.c.b16 %v5330, %v5322
    %v5635 = vpack.c.b16 %v5331, %v5323
    %v5636 = vpack.c.b16 %v5332, %v5324
    %v5637 = vpack.c.b16 %v5333, %v5325
    %v5638 = vpack.c.b16 %v5342, %v5334
    %v5639 = vpack.c.b16 %v5343, %v5335
    %v5640 = vpack.c.b16 %v5344, %v5336
    %v5641 = vpack.c.b16 %v5345, %v5337
    %v5642 = vpack.c.b16 %v5346, %v5338
    %v5643 = vpack.c.b16 %v5347, %v5339
    %v5644 = vpack.c.b16 %v5348, %v5340
    %v5645 = vpack.c.b16 %v5349, %v5341
    %v5646 = vpack.c.b16 %v5358, %v5350
    %v5647 = vpack.c.b16 %v5359, %v5351
    %v5648 = vpack.c.b16 %v5360, %v5352
    %v5649 = vpack.c.b16 %v5361, %v5353
    %v5650 = vpack.c.b16 %v5362, %v5354
    %v5651 = vpack.c.b16 %v5363, %v5355
    %v5652 = vpack.c.b16 %v5364, %v5356
    %v5653 = vpack.c.b16 %v5365, %v5357
    %v5654 = vpack.c.b16 %v5374, %v5366
    %v5655 = vpack.c.b16 %v5375, %v5367
    %v5656 = vpack.c.b16 %v5376, %v5368
    %v5657 = vpack.c.b16 %v5377, %v5369
    %v5658 = vpack.c.b16 %v5378, %v5370
    %v5659 = vpack.c.b16 %v5379, %v5371
    %v5660 = vpack.c.b16 %v5380, %v5372
    %v5661 = vpack.c.b16 %v5381, %v5373
    %v5662 = vpack.c.b16 %v5390, %v5382
    %v5663 = vpack.c.b16 %v5391, %v5383
    %v5664 = vpack.c.b16 %v5392, %v5384
    %v5665 = vpack.c.b16 %v5393, %v5385
    %v5666 = vpack.c.b16 %v5394, %v5386
    %v5667 = vpack.c.b16 %v5395, %v5387
    %v5668 = vpack.c.b16 %v5396, %v5388
    %v5669 = vpack.c.b16 %v5397, %v5389
    %v5670 = vpack.c.b16 %v5406, %v5398
    %v5671 = vpack.c.b16 %v5407, %v5399
    %v5672 = vpack.c.b16 %v5408, %v5400
    %v5673 = vpack.c.b16 %v5409, %v5401
    %v5674 = vpack.c.b16 %v5410, %v5402
    %v5675 = vpack.c.b16 %v5411, %v5403
    %v5676 = vpack.c.b16 %v5412, %v5404
    %v5677 = vpack.c.b16 %v5413, %v5405
    %v5678 = vpack.c.b16 %v5422, %v5414
    %v5679 = vpack.c.b16 %v5423, %v5415
    %v5680 = vpack.c.b16 %v5424, %v5416
    %v5681 = vpack.c.b16 %v5425, %v5417
    %v5682 = vpack.c.b16 %v5426, %v5418
    %v5683 = vpack.c.b16 %v5427, %v5419
    %v5684 = vpack.c.b16 %v5428, %v5420
    %v5685 = vpack.c.b16 %v5429, %v5421
    %v5686 = vpack.c.b16 %v5438, %v5430
    %v5687 = vpack.c.b16 %v5439, %v5431
    %v5688 = vpack.c.b16 %v5440, %v5432
    %v5689 = vpack.c.b16 %v5441, %v5433
    %v5690 = vpack.c.b16 %v5442, %v5434
    %v5691 = vpack.c.b16 %v5443, %v5435
    %v5692 = vpack.c.b16 %v5444, %v5436
    %v5693 = vpack.c.b16 %v5445, %v5437
    %v5694 = vpack.c.b16 %v5454, %v5446
    %v5695 = vpack.c.b16 %v5455, %v5447
    %v5696 = vpack.c.b16 %v5456, %v5448
    %v5697 = vpack.c.b16 %v5457, %v5449
    %v5698 = vpack.c.b16 %v5458, %v5450
    %v5699 = vpack.c.b16 %v5459, %v5451
    %v5700 = vpack.c.b16 %v5460, %v5452
    %v5701 = vpack.c.b16 %v5461, %v5453
    %v5702 = vpack.c.b16 %v5470, %v5462
    %v5703 = vpack.c.b16 %v5471, %v5463
    %v5704 = vpack.c.b16 %v5472, %v5464
    %v5705 = vpack.c.b16 %v5473, %v5465
    %v5706 = vpack.c.b16 %v5474, %v5466
    %v5707 = vpack.c.b16 %v5475, %v5467
    %v5708 = vpack.c.b16 %v5476, %v5468
    %v5709 = vpack.c.b16 %v5477, %v5469
    %v5710 = vpack.c.b16 %v5486, %v5478
    %v5711 = vpack.c.b16 %v5487, %v5479
    %v5712 = vpack.c.b16 %v5488, %v5480
    %v5713 = vpack.c.b16 %v5489, %v5481
    %v5714 = vpack.c.b16 %v5490, %v5482
    %v5715 = vpack.c.b16 %v5491, %v5483
    %v5716 = vpack.c.b16 %v5492, %v5484
    %v5717 = vpack.c.b16 %v5493, %v5485
    %v5718 = vpack.c.b16 %v5502, %v5494
    %v5719 = vpack.c.b16 %v5503, %v5495
    %v5720 = vpack.c.b16 %v5504, %v5496
    %v5721 = vpack.c.b16 %v5505, %v5497
    %v5722 = vpack.c.b16 %v5506, %v5498
    %v5723 = vpack.c.b16 %v5507, %v5499
    %v5724 = vpack.c.b16 %v5508, %v5500
    %v5725 = vpack.c.b16 %v5509, %v5501
    %v5726 = vpack.c.b16 %v5518, %v5510
    %v5727 = vpack.c.b16 %v5519, %v5511
    %v5728 = vpack.c.b16 %v5520, %v5512
    %v5729 = vpack.c.b16 %v5521, %v5513
    %v5730 = vpack.c.b16 %v5522, %v5514
    %v5731 = vpack.c.b16 %v5523, %v5515
    %v5732 = vpack.c.b16 %v5524, %v5516
    %v5733 = vpack.c.b16 %v5525, %v5517
    %v5734 = vpack.c.b16 %v5534, %v5526
    %v5735 = vpack.c.b16 %v5535, %v5527
    %v5736 = vpack.c.b16 %v5536, %v5528
    %v5737 = vpack.c.b16 %v5537, %v5529
    %v5738 = vpack.c.b16 %v5538, %v5530
    %v5739 = vpack.c.b16 %v5539, %v5531
    %v5740 = vpack.c.b16 %v5540, %v5532
    %v5741 = vpack.c.b16 %v5541, %v5533
    %v5742 = vpack.c.b16 %v5542, %v5542
    %v5743 = vpack.c.b16 %v5543, %v5543
    %v5744 = vpack.c.b16 %v5544, %v5544
    %v5745 = vpack.c.b16 %v5545, %v5545
    %v5746 = vpack.c.b16 %v5546, %v5546
    %v5747 = vpack.c.b16 %v5547, %v5547
    %v5748 = vpack.c.b16 %v5548, %v5548
    %v5749 = vpack.c.b16 %v5549, %v5549
    %v5943 = vsel %vm2059, %v4765, 0
    %v5946 = vsel %vm3027, %v5742, 0
    %v5949 = vsel %vm3027, %v5743, 0
    %v5952 = vsel %vm3027, %v5744, 0
    %v5955 = vsel %vm3027, %v5745, 0
    %v5958 = vsel %vm3027, %v5746, 0
    %v5961 = vsel %vm3027, %v5747, 0
    %v5964 = vsel %vm3027, %v5748, 0
    %v5967 = vsel %vm3027, %v5749, 0
    %5969 = vmatprep.subr.bf16.mxu0 %v5551
    %5970 = vmatpush1.bf16.msra.mxu0 %v5550
    %5971 = vmatprep.subr.bf16.mxu0 %v5559
    %5972 = vmatpush1.bf16.msra.mxu0 %v5558
    %5973 = vmatprep.subr.bf16.mxu0 %v5567
    %5974 = vmatpush1.bf16.msra.mxu0 %v5566
    %5975 = vmatprep.subr.bf16.mxu0 %v5575
    %5976 = vmatpush1.bf16.msra.mxu0 %v5574
    %5977 = vmatprep.subr.bf16.mxu0 %v5583
    %5978 = vmatpush1.bf16.msra.mxu0 %v5582
    %5979 = vmatprep.subr.bf16.mxu0 %v5591
    %5980 = vmatpush1.bf16.msra.mxu0 %v5590
    %5981 = vmatprep.subr.bf16.mxu0 %v5599
    %5982 = vmatpush1.bf16.msra.mxu0 %v5598
    %5983 = vmatprep.subr.bf16.mxu0 %v5607
    %5984 = vmatpush1.bf16.msra.mxu0 %v5606
    %5985 = vmatprep.subr.bf16.mxu0 %v5615
    %5986 = vmatpush1.bf16.msra.mxu0 %v5614
    %5987 = vmatprep.subr.bf16.mxu0 %v5623
    %5988 = vmatpush1.bf16.msra.mxu0 %v5622
    %5989 = vmatprep.subr.bf16.mxu0 %v5631
    %5990 = vmatpush1.bf16.msra.mxu0 %v5630
    %5991 = vmatprep.subr.bf16.mxu0 %v5639
    %5992 = vmatpush1.bf16.msra.mxu0 %v5638
    %5993 = vmatprep.subr.bf16.mxu0 %v5647
    %5994 = vmatpush1.bf16.msra.mxu0 %v5646
    %5995 = vmatprep.subr.bf16.mxu0 %v5655
    %5996 = vmatpush1.bf16.msra.mxu0 %v5654
    %5997 = vmatprep.subr.bf16.mxu0 %v5663
    %5998 = vmatpush1.bf16.msra.mxu0 %v5662
    %5999 = vmatprep.subr.bf16.mxu0 %v5671
    %6000 = vmatpush1.bf16.msra.mxu0 %v5670
    %6001 = vmatprep.mubr.bf16.mxu0 %v4763
    %6002 = vmatmul.mubr.bf16.gmra.mrb[0].mxu0 %v4762
    %v6003 = vpop.f32.mrb[0].mxu0
    %v6004 = vadd.f32 0.0, %v6003
    %v6005 = vpop.f32.mrb[0].mxu0
    %v6006 = vadd.f32 0.0, %v6005
    %v6007 = vpop.f32.mrb[0].mxu0
    %v6008 = vpop.f32.mrb[0].mxu0
    %6009 = vdwg.mxu0
    %6010 = vmatprep.subr.bf16.mxu0 %v5679
    %6011 = vmatpush1.bf16.msra.mxu0 %v5678
    %6012 = vmatprep.subr.bf16.mxu0 %v5687
    %6013 = vmatpush1.bf16.msra.mxu0 %v5686
    %6014 = vmatprep.subr.bf16.mxu0 %v5695
    %6015 = vmatpush1.bf16.msra.mxu0 %v5694
    %6016 = vmatprep.subr.bf16.mxu0 %v5703
    %6017 = vmatpush1.bf16.msra.mxu0 %v5702
    %6018 = vmatprep.subr.bf16.mxu0 %v5711
    %6019 = vmatpush1.bf16.msra.mxu0 %v5710
    %6020 = vmatprep.subr.bf16.mxu0 %v5719
    %6021 = vmatpush1.bf16.msra.mxu0 %v5718
    %6022 = vmatprep.subr.bf16.mxu0 %v5727
    %6023 = vmatpush1.bf16.msra.mxu0 %v5726
    %6024 = vmatprep.subr.bf16.mxu0 %v5735
    %6025 = vmatpush1.bf16.msra.mxu0 %v5734
    %6026 = vmatprep.subr.bf16.mxu0 %v5949
    %6027 = vmatpush1.bf16.msra.mxu0 %v5946
    %6028 = vmatprep.subr.bf16.mxu0 0
    %6029 = vmatpush1.bf16.msra.mxu0 0
    %6030 = vmatprep.subr.bf16.mxu0 0
    %6031 = vmatpush1.bf16.msra.mxu0 0
    %6032 = vmatprep.subr.bf16.mxu0 0
    %6033 = vmatpush1.bf16.msra.mxu0 0
    %6034 = vmatprep.subr.bf16.mxu0 0
    %6035 = vmatpush1.bf16.msra.mxu0 0
    %6036 = vmatprep.subr.bf16.mxu0 0
    %6037 = vmatpush1.bf16.msra.mxu0 0
    %6038 = vmatprep.subr.bf16.mxu0 0
    %6039 = vmatpush1.bf16.msra.mxu0 0
    %6040 = vmatprep.subr.bf16.mxu0 0
    %6041 = vmatpush1.bf16.msra.mxu0 0
    %6042 = vmatprep.mubr.bf16.mxu0 %v5943
    %6043 = vmatmul.mubr.bf16.gmra.mrb[0].mxu0 %v4764
    %v6044 = vpop.f32.mrb[0].mxu0
    %v6045 = vadd.f32 %v6004, %v6044
    %v6046 = vpop.f32.mrb[0].mxu0
    %v6047 = vadd.f32 %v6006, %v6046
    %v6048 = vpop.f32.mrb[0].mxu0
    %v6049 = vpop.f32.mrb[0].mxu0
    %6050 = vdwg.mxu0
    %6051 = vmatprep.subr.bf16.mxu0 %v5553
    %6052 = vmatpush1.bf16.msra.mxu0 %v5552
    %6053 = vmatprep.subr.bf16.mxu0 %v5561
    %6054 = vmatpush1.bf16.msra.mxu0 %v5560
    %6055 = vmatprep.subr.bf16.mxu0 %v5569
    %6056 = vmatpush1.bf16.msra.mxu0 %v5568
    %6057 = vmatprep.subr.bf16.mxu0 %v5577
    %6058 = vmatpush1.bf16.msra.mxu0 %v5576
    %6059 = vmatprep.subr.bf16.mxu0 %v5585
    %6060 = vmatpush1.bf16.msra.mxu0 %v5584
    %6061 = vmatprep.subr.bf16.mxu0 %v5593
    %6062 = vmatpush1.bf16.msra.mxu0 %v5592
    %6063 = vmatprep.subr.bf16.mxu0 %v5601
    %6064 = vmatpush1.bf16.msra.mxu0 %v5600
    %6065 = vmatprep.subr.bf16.mxu0 %v5609
    %6066 = vmatpush1.bf16.msra.mxu0 %v5608
    %6067 = vmatprep.subr.bf16.mxu0 %v5617
    %6068 = vmatpush1.bf16.msra.mxu0 %v5616
    %6069 = vmatprep.subr.bf16.mxu0 %v5625
    %6070 = vmatpush1.bf16.msra.mxu0 %v5624
    %6071 = vmatprep.subr.bf16.mxu0 %v5633
    %6072 = vmatpush1.bf16.msra.mxu0 %v5632
    %6073 = vmatprep.subr.bf16.mxu0 %v5641
    %6074 = vmatpush1.bf16.msra.mxu0 %v5640
    %6075 = vmatprep.subr.bf16.mxu0 %v5649
    %6076 = vmatpush1.bf16.msra.mxu0 %v5648
    %6077 = vmatprep.subr.bf16.mxu0 %v5657
    %6078 = vmatpush1.bf16.msra.mxu0 %v5656
    %6079 = vmatprep.subr.bf16.mxu0 %v5665
    %6080 = vmatpush1.bf16.msra.mxu0 %v5664
    %6081 = vmatprep.subr.bf16.mxu0 %v5673
    %6082 = vmatpush1.bf16.msra.mxu0 %v5672
    %6083 = vmatprep.mubr.bf16.mxu0 %v4763
    %6084 = vmatmul.mubr.bf16.gmra.mrb[0].mxu0 %v4762
    %v6085 = vpop.f32.mrb[0].mxu0
    %v6086 = vadd.f32 0.0, %v6085
    %v6087 = vpop.f32.mrb[0].mxu0
    %v6088 = vadd.f32 0.0, %v6087
    %v6089 = vpop.f32.mrb[0].mxu0
    %v6090 = vpop.f32.mrb[0].mxu0
    %6091 = vdwg.mxu0
    %6092 = vmatprep.subr.bf16.mxu0 %v5681
    %6093 = vmatpush1.bf16.msra.mxu0 %v5680
    %6094 = vmatprep.subr.bf16.mxu0 %v5689
    %6095 = vmatpush1.bf16.msra.mxu0 %v5688
    %6096 = vmatprep.subr.bf16.mxu0 %v5697
    %6097 = vmatpush1.bf16.msra.mxu0 %v5696
    %6098 = vmatprep.subr.bf16.mxu0 %v5705
    %6099 = vmatpush1.bf16.msra.mxu0 %v5704
    %6100 = vmatprep.subr.bf16.mxu0 %v5713
    %6101 = vmatpush1.bf16.msra.mxu0 %v5712
    %6102 = vmatprep.subr.bf16.mxu0 %v5721
    %6103 = vmatpush1.bf16.msra.mxu0 %v5720
    %6104 = vmatprep.subr.bf16.mxu0 %v5729
    %6105 = vmatpush1.bf16.msra.mxu0 %v5728
    %6106 = vmatprep.subr.bf16.mxu0 %v5737
    %6107 = vmatpush1.bf16.msra.mxu0 %v5736
    %6108 = vmatprep.subr.bf16.mxu0 %v5955
    %6109 = vmatpush1.bf16.msra.mxu0 %v5952
    %6110 = vmatprep.subr.bf16.mxu0 0
    %6111 = vmatpush1.bf16.msra.mxu0 0
    %6112 = vmatprep.subr.bf16.mxu0 0
    %6113 = vmatpush1.bf16.msra.mxu0 0
    %6114 = vmatprep.subr.bf16.mxu0 0
    %6115 = vmatpush1.bf16.msra.mxu0 0
    %6116 = vmatprep.subr.bf16.mxu0 0
    %6117 = vmatpush1.bf16.msra.mxu0 0
    %6118 = vmatprep.subr.bf16.mxu0 0
    %6119 = vmatpush1.bf16.msra.mxu0 0
    %6120 = vmatprep.subr.bf16.mxu0 0
    %6121 = vmatpush1.bf16.msra.mxu0 0
    %6122 = vmatprep.subr.bf16.mxu0 0
    %6123 = vmatpush1.bf16.msra.mxu0 0
    %6124 = vmatprep.mubr.bf16.mxu0 %v5943
    %6125 = vmatmul.mubr.bf16.gmra.mrb[0].mxu0 %v4764
    %v6126 = vpop.f32.mrb[0].mxu0
    %v6127 = vadd.f32 %v6086, %v6126
    %v6128 = vpop.f32.mrb[0].mxu0
    %v6129 = vadd.f32 %v6088, %v6128
    %v6130 = vpop.f32.mrb[0].mxu0
    %v6131 = vpop.f32.mrb[0].mxu0
    %6132 = vdwg.mxu0
    %6133 = vmatprep.subr.bf16.mxu0 %v5555
    %6134 = vmatpush1.bf16.msra.mxu0 %v5554
    %6135 = vmatprep.subr.bf16.mxu0 %v5563
    %6136 = vmatpush1.bf16.msra.mxu0 %v5562
    %6137 = vmatprep.subr.bf16.mxu0 %v5571
    %6138 = vmatpush1.bf16.msra.mxu0 %v5570
    %6139 = vmatprep.subr.bf16.mxu0 %v5579
    %6140 = vmatpush1.bf16.msra.mxu0 %v5578
    %6141 = vmatprep.subr.bf16.mxu0 %v5587
    %6142 = vmatpush1.bf16.msra.mxu0 %v5586
    %6143 = vmatprep.subr.bf16.mxu0 %v5595
    %6144 = vmatpush1.bf16.msra.mxu0 %v5594
    %6145 = vmatprep.subr.bf16.mxu0 %v5603
    %6146 = vmatpush1.bf16.msra.mxu0 %v5602
    %6147 = vmatprep.subr.bf16.mxu0 %v5611
    %6148 = vmatpush1.bf16.msra.mxu0 %v5610
    %6149 = vmatprep.subr.bf16.mxu0 %v5619
    %6150 = vmatpush1.bf16.msra.mxu0 %v5618
    %6151 = vmatprep.subr.bf16.mxu0 %v5627
    %6152 = vmatpush1.bf16.msra.mxu0 %v5626
    %6153 = vmatprep.subr.bf16.mxu0 %v5635
    %6154 = vmatpush1.bf16.msra.mxu0 %v5634
    %6155 = vmatprep.subr.bf16.mxu0 %v5643
    %6156 = vmatpush1.bf16.msra.mxu0 %v5642
    %6157 = vmatprep.subr.bf16.mxu0 %v5651
    %6158 = vmatpush1.bf16.msra.mxu0 %v5650
    %6159 = vmatprep.subr.bf16.mxu0 %v5659
    %6160 = vmatpush1.bf16.msra.mxu0 %v5658
    %6161 = vmatprep.subr.bf16.mxu0 %v5667
    %6162 = vmatpush1.bf16.msra.mxu0 %v5666
    %6163 = vmatprep.subr.bf16.mxu0 %v5675
    %6164 = vmatpush1.bf16.msra.mxu0 %v5674
    %6165 = vmatprep.mubr.bf16.mxu0 %v4763
    %6166 = vmatmul.mubr.bf16.gmra.mrb[0].mxu0 %v4762
    %v6167 = vpop.f32.mrb[0].mxu0
    %v6168 = vadd.f32 0.0, %v6167
    %v6169 = vpop.f32.mrb[0].mxu0
    %v6170 = vadd.f32 0.0, %v6169
    %v6171 = vpop.f32.mrb[0].mxu0
    %v6172 = vpop.f32.mrb[0].mxu0
    %6173 = vdwg.mxu0
    %6174 = vmatprep.subr.bf16.mxu0 %v5683
    %6175 = vmatpush1.bf16.msra.mxu0 %v5682
    %6176 = vmatprep.subr.bf16.mxu0 %v5691
    %6177 = vmatpush1.bf16.msra.mxu0 %v5690
    %6178 = vmatprep.subr.bf16.mxu0 %v5699
    %6179 = vmatpush1.bf16.msra.mxu0 %v5698
    %6180 = vmatprep.subr.bf16.mxu0 %v5707
    %6181 = vmatpush1.bf16.msra.mxu0 %v5706
    %6182 = vmatprep.subr.bf16.mxu0 %v5715
    %6183 = vmatpush1.bf16.msra.mxu0 %v5714
    %6184 = vmatprep.subr.bf16.mxu0 %v5723
    %6185 = vmatpush1.bf16.msra.mxu0 %v5722
    %6186 = vmatprep.subr.bf16.mxu0 %v5731
    %6187 = vmatpush1.bf16.msra.mxu0 %v5730
    %6188 = vmatprep.subr.bf16.mxu0 %v5739
    %6189 = vmatpush1.bf16.msra.mxu0 %v5738
    %6190 = vmatprep.subr.bf16.mxu0 %v5961
    %6191 = vmatpush1.bf16.msra.mxu0 %v5958
    %6192 = vmatprep.subr.bf16.mxu0 0
    %6193 = vmatpush1.bf16.msra.mxu0 0
    %6194 = vmatprep.subr.bf16.mxu0 0
    %6195 = vmatpush1.bf16.msra.mxu0 0
    %6196 = vmatprep.subr.bf16.mxu0 0
    %6197 = vmatpush1.bf16.msra.mxu0 0
    %6198 = vmatprep.subr.bf16.mxu0 0
    %6199 = vmatpush1.bf16.msra.mxu0 0
    %6200 = vmatprep.subr.bf16.mxu0 0
    %6201 = vmatpush1.bf16.msra.mxu0 0
    %6202 = vmatprep.subr.bf16.mxu0 0
    %6203 = vmatpush1.bf16.msra.mxu0 0
    %6204 = vmatprep.subr.bf16.mxu0 0
    %6205 = vmatpush1.bf16.msra.mxu0 0
    %6206 = vmatprep.mubr.bf16.mxu0 %v5943
    %6207 = vmatmul.mubr.bf16.gmra.mrb[0].mxu0 %v4764
    %v6208 = vpop.f32.mrb[0].mxu0
    %v6209 = vadd.f32 %v6168, %v6208
    %v6210 = vpop.f32.mrb[0].mxu0
    %v6211 = vadd.f32 %v6170, %v6210
    %v6212 = vpop.f32.mrb[0].mxu0
    %v6213 = vpop.f32.mrb[0].mxu0
    %6214 = vdwg.mxu0
    %6215 = vmatprep.subr.bf16.mxu0 %v5557
    %6216 = vmatpush1.bf16.msra.mxu0 %v5556
    %6217 = vmatprep.subr.bf16.mxu0 %v5565
    %6218 = vmatpush1.bf16.msra.mxu0 %v5564
    %6219 = vmatprep.subr.bf16.mxu0 %v5573
    %6220 = vmatpush1.bf16.msra.mxu0 %v5572
    %6221 = vmatprep.subr.bf16.mxu0 %v5581
    %6222 = vmatpush1.bf16.msra.mxu0 %v5580
    %6223 = vmatprep.subr.bf16.mxu0 %v5589
    %6224 = vmatpush1.bf16.msra.mxu0 %v5588
    %6225 = vmatprep.subr.bf16.mxu0 %v5597
    %6226 = vmatpush1.bf16.msra.mxu0 %v5596
    %6227 = vmatprep.subr.bf16.mxu0 %v5605
    %6228 = vmatpush1.bf16.msra.mxu0 %v5604
    %6229 = vmatprep.subr.bf16.mxu0 %v5613
    %6230 = vmatpush1.bf16.msra.mxu0 %v5612
    %6231 = vmatprep.subr.bf16.mxu0 %v5621
    %6232 = vmatpush1.bf16.msra.mxu0 %v5620
    %6233 = vmatprep.subr.bf16.mxu0 %v5629
    %6234 = vmatpush1.bf16.msra.mxu0 %v5628
    %6235 = vmatprep.subr.bf16.mxu0 %v5637
    %6236 = vmatpush1.bf16.msra.mxu0 %v5636
    %6237 = vmatprep.subr.bf16.mxu0 %v5645
    %6238 = vmatpush1.bf16.msra.mxu0 %v5644
    %6239 = vmatprep.subr.bf16.mxu0 %v5653
    %6240 = vmatpush1.bf16.msra.mxu0 %v5652
    %6241 = vmatprep.subr.bf16.mxu0 %v5661
    %6242 = vmatpush1.bf16.msra.mxu0 %v5660
    %6243 = vmatprep.subr.bf16.mxu0 %v5669
    %6244 = vmatpush1.bf16.msra.mxu0 %v5668
    %6245 = vmatprep.subr.bf16.mxu0 %v5677
    %6246 = vmatpush1.bf16.msra.mxu0 %v5676
    %6247 = vmatprep.mubr.bf16.mxu0 %v4763
    %6248 = vmatmul.mubr.bf16.gmra.mrb[0].mxu0 %v4762
    %v6249 = vpop.f32.mrb[0].mxu0
    %v6250 = vadd.f32 0.0, %v6249
    %v6251 = vpop.f32.mrb[0].mxu0
    %v6252 = vadd.f32 0.0, %v6251
    %v6253 = vpop.f32.mrb[0].mxu0
    %v6254 = vpop.f32.mrb[0].mxu0
    %6255 = vdwg.mxu0
    %6256 = vmatprep.subr.bf16.mxu0 %v5685
    %6257 = vmatpush1.bf16.msra.mxu0 %v5684
    %6258 = vmatprep.subr.bf16.mxu0 %v5693
    %6259 = vmatpush1.bf16.msra.mxu0 %v5692
    %6260 = vmatprep.subr.bf16.mxu0 %v5701
    %6261 = vmatpush1.bf16.msra.mxu0 %v5700
    %6262 = vmatprep.subr.bf16.mxu0 %v5709
    %6263 = vmatpush1.bf16.msra.mxu0 %v5708
    %6264 = vmatprep.subr.bf16.mxu0 %v5717
    %6265 = vmatpush1.bf16.msra.mxu0 %v5716
    %6266 = vmatprep.subr.bf16.mxu0 %v5725
    %6267 = vmatpush1.bf16.msra.mxu0 %v5724
    %6268 = vmatprep.subr.bf16.mxu0 %v5733
    %6269 = vmatpush1.bf16.msra.mxu0 %v5732
    %6270 = vmatprep.subr.bf16.mxu0 %v5741
    %6271 = vmatpush1.bf16.msra.mxu0 %v5740
    %6272 = vmatprep.subr.bf16.mxu0 %v5967
    %6273 = vmatpush1.bf16.msra.mxu0 %v5964
    %6274 = vmatprep.subr.bf16.mxu0 0
    %6275 = vmatpush1.bf16.msra.mxu0 0
    %6276 = vmatprep.subr.bf16.mxu0 0
    %6277 = vmatpush1.bf16.msra.mxu0 0
    %6278 = vmatprep.subr.bf16.mxu0 0
    %6279 = vmatpush1.bf16.msra.mxu0 0
    %6280 = vmatprep.subr.bf16.mxu0 0
    %6281 = vmatpush1.bf16.msra.mxu0 0
    %6282 = vmatprep.subr.bf16.mxu0 0
    %6283 = vmatpush1.bf16.msra.mxu0 0
    %6284 = vmatprep.subr.bf16.mxu0 0
    %6285 = vmatpush1.bf16.msra.mxu0 0
    %6286 = vmatprep.subr.bf16.mxu0 0
    %6287 = vmatpush1.bf16.msra.mxu0 0
    %6288 = vmatprep.mubr.bf16.mxu0 %v5943
    %6289 = vmatmul.mubr.bf16.gmra.mrb[0].mxu0 %v4764
    %v6290 = vpop.f32.mrb[0].mxu0
    %v6291 = vadd.f32 %v6250, %v6290
    %v6292 = vpop.f32.mrb[0].mxu0
    %v6293 = vadd.f32 %v6252, %v6292
    %v6294 = vpop.f32.mrb[0].mxu0
    %v6295 = vpop.f32.mrb[0].mxu0
    %6296 = vdwg.mxu0
    %v6297 = vld [vmem:[%s19] sm:$0xff]
    %v6298 = vld [vmem:[%s19 + $0x8] sm:$0xff]
    %v6299 = vld [vmem:[%s19 + $0x10] sm:$0xff]
    %v6300 = vld [vmem:[%s19 + $0x18] sm:$0xff]
    %v6301 = vsel %vm1997, %v6045, 0.0
    %v6302 = vrot.slane %v6301, 4
    %v6303 = vadd.f32 %v6301, %v6302
    %v6304 = vrot.slane %v6303, 2
    %v6305 = vadd.f32 %v6303, %v6304
    %v6306 = vrot.slane %v6305, 1
    %v6307 = vadd.f32 %v6305, %v6306
    %v6308 = vsel %vm1997, %v6047, 0.0
    %v6309 = vrot.slane %v6308, 4
    %v6310 = vadd.f32 %v6308, %v6309
    %v6311 = vrot.slane %v6310, 2
    %v6312 = vadd.f32 %v6310, %v6311
    %v6313 = vrot.slane %v6312, 1
    %v6314 = vadd.f32 %v6312, %v6313
    %v6315 = vsel %vm1997, %v6127, 0.0
    %v6316 = vrot.slane %v6315, 4
    %v6317 = vadd.f32 %v6315, %v6316
    %v6318 = vrot.slane %v6317, 2
    %v6319 = vadd.f32 %v6317, %v6318
    %v6320 = vrot.slane %v6319, 1
    %v6321 = vadd.f32 %v6319, %v6320
    %v6322 = vsel %vm1997, %v6129, 0.0
    %v6323 = vrot.slane %v6322, 4
    %v6324 = vadd.f32 %v6322, %v6323
    %v6325 = vrot.slane %v6324, 2
    %v6326 = vadd.f32 %v6324, %v6325
    %v6327 = vrot.slane %v6326, 1
    %v6328 = vadd.f32 %v6326, %v6327
    %v6329 = vsel %vm1997, %v6209, 0.0
    %v6330 = vrot.slane %v6329, 4
    %v6331 = vadd.f32 %v6329, %v6330
    %v6332 = vrot.slane %v6331, 2
    %v6333 = vadd.f32 %v6331, %v6332
    %v6334 = vrot.slane %v6333, 1
    %v6335 = vadd.f32 %v6333, %v6334
    %v6336 = vsel %vm1997, %v6211, 0.0
    %v6337 = vrot.slane %v6336, 4
    %v6338 = vadd.f32 %v6336, %v6337
    %v6339 = vrot.slane %v6338, 2
    %v6340 = vadd.f32 %v6338, %v6339
    %v6341 = vrot.slane %v6340, 1
    %v6342 = vadd.f32 %v6340, %v6341
    %v6343 = vsel %vm1997, %v6291, 0.0
    %v6344 = vrot.slane %v6343, 4
    %v6345 = vadd.f32 %v6343, %v6344
    %v6346 = vrot.slane %v6345, 2
    %v6347 = vadd.f32 %v6345, %v6346
    %v6348 = vrot.slane %v6347, 1
    %v6349 = vadd.f32 %v6347, %v6348
    %v6350 = vsel %vm1997, %v6293, 0.0
    %v6351 = vrot.slane %v6350, 4
    %v6352 = vadd.f32 %v6350, %v6351
    %v6353 = vrot.slane %v6352, 2
    %v6354 = vadd.f32 %v6352, %v6353
    %v6355 = vrot.slane %v6354, 1
    %v6356 = vadd.f32 %v6354, %v6355
    %v6357 = vmul.f32 %v6045, %v6045
    %v6358 = vmul.f32 %v6047, %v6047
    %v6359 = vmul.f32 %v6127, %v6127
    %v6360 = vmul.f32 %v6129, %v6129
    %v6361 = vmul.f32 %v6209, %v6209
    %v6362 = vmul.f32 %v6211, %v6211
    %v6363 = vmul.f32 %v6291, %v6291
    %v6364 = vmul.f32 %v6293, %v6293
    %v6365 = vsel %vm1997, %v6357, 0.0
    %v6366 = vrot.slane %v6365, 4
    %v6367 = vadd.f32 %v6365, %v6366
    %v6368 = vrot.slane %v6367, 2
    %v6369 = vadd.f32 %v6367, %v6368
    %v6370 = vrot.slane %v6369, 1
    %v6371 = vadd.f32 %v6369, %v6370
    %v6372 = vsel %vm1997, %v6358, 0.0
    %v6373 = vrot.slane %v6372, 4
    %v6374 = vadd.f32 %v6372, %v6373
    %v6375 = vrot.slane %v6374, 2
    %v6376 = vadd.f32 %v6374, %v6375
    %v6377 = vrot.slane %v6376, 1
    %v6378 = vadd.f32 %v6376, %v6377
    %v6379 = vsel %vm1997, %v6359, 0.0
    %v6380 = vrot.slane %v6379, 4
    %v6381 = vadd.f32 %v6379, %v6380
    %v6382 = vrot.slane %v6381, 2
    %v6383 = vadd.f32 %v6381, %v6382
    %v6384 = vrot.slane %v6383, 1
    %v6385 = vadd.f32 %v6383, %v6384
    %v6386 = vsel %vm1997, %v6360, 0.0
    %v6387 = vrot.slane %v6386, 4
    %v6388 = vadd.f32 %v6386, %v6387
    %v6389 = vrot.slane %v6388, 2
    %v6390 = vadd.f32 %v6388, %v6389
    %v6391 = vrot.slane %v6390, 1
    %v6392 = vadd.f32 %v6390, %v6391
    %v6393 = vsel %vm1997, %v6361, 0.0
    %v6394 = vrot.slane %v6393, 4
    %v6395 = vadd.f32 %v6393, %v6394
    %v6396 = vrot.slane %v6395, 2
    %v6397 = vadd.f32 %v6395, %v6396
    %v6398 = vrot.slane %v6397, 1
    %v6399 = vadd.f32 %v6397, %v6398
    %v6400 = vsel %vm1997, %v6362, 0.0
    %v6401 = vrot.slane %v6400, 4
    %v6402 = vadd.f32 %v6400, %v6401
    %v6403 = vrot.slane %v6402, 2
    %v6404 = vadd.f32 %v6402, %v6403
    %v6405 = vrot.slane %v6404, 1
    %v6406 = vadd.f32 %v6404, %v6405
    %v6407 = vsel %vm1997, %v6363, 0.0
    %v6408 = vrot.slane %v6407, 4
    %v6409 = vadd.f32 %v6407, %v6408
    %v6410 = vrot.slane %v6409, 2
    %v6411 = vadd.f32 %v6409, %v6410
    %v6412 = vrot.slane %v6411, 1
    %v6413 = vadd.f32 %v6411, %v6412
    %v6414 = vsel %vm1997, %v6364, 0.0
    %v6415 = vrot.slane %v6414, 4
    %v6416 = vadd.f32 %v6414, %v6415
    %v6417 = vrot.slane %v6416, 2
    %v6418 = vadd.f32 %v6416, %v6417
    %v6419 = vrot.slane %v6418, 1
    %v6420 = vadd.f32 %v6418, %v6419
    %v6425 = vcombine.high %v6297, %v6297
    %v6426 = vcombine.high %v6298, %v6298
    %v6427 = vcombine.high %v6299, %v6299
    %v6428 = vcombine.high %v6300, %v6300
    %6433 = vmatprep.subr.mxu0 %v6425
    %6434 = vmatpush1.xpose.msra.mxu0 %v6297
    %6435 = vmatprep.subr.mxu0 0.0
    %6436 = vmatpush1.xpose.msra.mxu0 0.0
    %6437 = vmatprep.subr.mxu0 0.0
    %6438 = vmatpush1.xpose.msra.mxu0 0.0
    %6439 = vmatprep.subr.mxu0 0.0
    %6440 = vmatpush1.xpose.msra.mxu0 0.0
    %6441 = vmatprep.subr.mxu0 0.0
    %6442 = vmatpush1.xpose.msra.mxu0 0.0
    %6443 = vmatprep.subr.mxu0 0.0
    %6444 = vmatpush1.xpose.msra.mxu0 0.0
    %6445 = vmatprep.subr.mxu0 0.0
    %6446 = vmatpush1.xpose.msra.mxu0 0.0
    %6447 = vmatprep.subr.mxu0 0.0
    %6448 = vmatpush1.xpose.msra.mxu0 0.0
    %6449 = vmatprep.subr.mxu0 0.0
    %6450 = vmatpush1.xpose.msra.mxu0 0.0
    %6451 = vmatprep.subr.mxu0 0.0
    %6452 = vmatpush1.xpose.msra.mxu0 0.0
    %6453 = vmatprep.subr.mxu0 0.0
    %6454 = vmatpush1.xpose.msra.mxu0 0.0
    %6455 = vmatprep.subr.mxu0 0.0
    %6456 = vmatpush1.xpose.msra.mxu0 0.0
    %6457 = vmatprep.subr.mxu0 0.0
    %6458 = vmatpush1.xpose.msra.mxu0 0.0
    %6459 = vmatprep.subr.mxu0 0.0
    %6460 = vmatpush1.xpose.msra.mxu0 0.0
    %6461 = vmatprep.subr.mxu0 0.0
    %6462 = vmatpush1.xpose.msra.mxu0 0.0
    %6463 = vmatprep.subr.mxu0 0.0
    %6464 = vmatpush1.xpose.msra.mxu0 0.0
    %6465 = vmatprep.subr.mxu0 0.0
    %6466 = vmatpush1.xpose.msra.mxu0 0.0
    %6467 = vmatprep.subr.mxu0 0.0
    %6468 = vmatpush1.xpose.msra.mxu0 0.0
    %6469 = vmatprep.subr.mxu0 0.0
    %6470 = vmatpush1.xpose.msra.mxu0 0.0
    %6471 = vmatprep.subr.mxu0 0.0
    %6472 = vmatpush1.xpose.msra.mxu0 0.0
    %6473 = vmatprep.subr.mxu0 0.0
    %6474 = vmatpush1.xpose.msra.mxu0 0.0
    %6475 = vmatprep.subr.mxu0 0.0
    %6476 = vmatpush1.xpose.msra.mxu0 0.0
    %6477 = vmatprep.subr.mxu0 0.0
    %6478 = vmatpush1.xpose.msra.mxu0 0.0
    %6479 = vmatprep.subr.mxu0 0.0
    %6480 = vmatpush1.xpose.msra.mxu0 0.0
    %6481 = vmatprep.subr.mxu0 0.0
    %6482 = vmatpush1.xpose.msra.mxu0 0.0
    %6483 = vmatprep.subr.mxu0 0.0
    %6484 = vmatpush1.xpose.msra.mxu0 0.0
    %6485 = vmatprep.subr.mxu0 0.0
    %6486 = vmatpush1.xpose.msra.mxu0 0.0
    %6487 = vmatprep.subr.mxu0 0.0
    %6488 = vmatpush1.xpose.msra.mxu0 0.0
    %6489 = vmatprep.subr.mxu0 0.0
    %6490 = vmatpush1.xpose.msra.mxu0 0.0
    %6491 = vmatprep.subr.mxu0 0.0
    %6492 = vmatpush1.xpose.msra.mxu0 0.0
    %6493 = vmatprep.subr.mxu0 0.0
    %6494 = vmatpush1.xpose.msra.mxu0 0.0
    %6495 = vmatprep.subr.mxu0 0.0
    %6496 = vmatpush1.xpose.msra.mxu0 0.0
    %6497 = vmatprep.mubr.f32.mxu0 %v6314
    %6498 = vmatmul.mubr.f32.gmra.mrb[0].mxu0 %v6307
    %v6499 = vpop.f32.mrb[0].mxu0
    %v6500 = vadd.f32 0.0, %v6499
    %v6501 = vpop.f32.mrb[0].mxu0
    %6502 = vdwg.mxu0
    %6503 = vmatprep.subr.mxu0 %v6426
    %6504 = vmatpush1.xpose.msra.mxu0 %v6298
    %6505 = vmatprep.subr.mxu0 0.0
    %6506 = vmatpush1.xpose.msra.mxu0 0.0
    %6507 = vmatprep.subr.mxu0 0.0
    %6508 = vmatpush1.xpose.msra.mxu0 0.0
    %6509 = vmatprep.subr.mxu0 0.0
    %6510 = vmatpush1.xpose.msra.mxu0 0.0
    %6511 = vmatprep.subr.mxu0 0.0
    %6512 = vmatpush1.xpose.msra.mxu0 0.0
    %6513 = vmatprep.subr.mxu0 0.0
    %6514 = vmatpush1.xpose.msra.mxu0 0.0
    %6515 = vmatprep.subr.mxu0 0.0
    %6516 = vmatpush1.xpose.msra.mxu0 0.0
    %6517 = vmatprep.subr.mxu0 0.0
    %6518 = vmatpush1.xpose.msra.mxu0 0.0
    %6519 = vmatprep.subr.mxu0 0.0
    %6520 = vmatpush1.xpose.msra.mxu0 0.0
    %6521 = vmatprep.subr.mxu0 0.0
    %6522 = vmatpush1.xpose.msra.mxu0 0.0
    %6523 = vmatprep.subr.mxu0 0.0
    %6524 = vmatpush1.xpose.msra.mxu0 0.0
    %6525 = vmatprep.subr.mxu0 0.0
    %6526 = vmatpush1.xpose.msra.mxu0 0.0
    %6527 = vmatprep.subr.mxu0 0.0
    %6528 = vmatpush1.xpose.msra.mxu0 0.0
    %6529 = vmatprep.subr.mxu0 0.0
    %6530 = vmatpush1.xpose.msra.mxu0 0.0
    %6531 = vmatprep.subr.mxu0 0.0
    %6532 = vmatpush1.xpose.msra.mxu0 0.0
    %6533 = vmatprep.subr.mxu0 0.0
    %6534 = vmatpush1.xpose.msra.mxu0 0.0
    %6535 = vmatprep.subr.mxu0 0.0
    %6536 = vmatpush1.xpose.msra.mxu0 0.0
    %6537 = vmatprep.subr.mxu0 0.0
    %6538 = vmatpush1.xpose.msra.mxu0 0.0
    %6539 = vmatprep.subr.mxu0 0.0
    %6540 = vmatpush1.xpose.msra.mxu0 0.0
    %6541 = vmatprep.subr.mxu0 0.0
    %6542 = vmatpush1.xpose.msra.mxu0 0.0
    %6543 = vmatprep.subr.mxu0 0.0
    %6544 = vmatpush1.xpose.msra.mxu0 0.0
    %6545 = vmatprep.subr.mxu0 0.0
    %6546 = vmatpush1.xpose.msra.mxu0 0.0
    %6547 = vmatprep.subr.mxu0 0.0
    %6548 = vmatpush1.xpose.msra.mxu0 0.0
    %6549 = vmatprep.subr.mxu0 0.0
    %6550 = vmatpush1.xpose.msra.mxu0 0.0
    %6551 = vmatprep.subr.mxu0 0.0
    %6552 = vmatpush1.xpose.msra.mxu0 0.0
    %6553 = vmatprep.subr.mxu0 0.0
    %6554 = vmatpush1.xpose.msra.mxu0 0.0
    %6555 = vmatprep.subr.mxu0 0.0
    %6556 = vmatpush1.xpose.msra.mxu0 0.0
    %6557 = vmatprep.subr.mxu0 0.0
    %6558 = vmatpush1.xpose.msra.mxu0 0.0
    %6559 = vmatprep.subr.mxu0 0.0
    %6560 = vmatpush1.xpose.msra.mxu0 0.0
    %6561 = vmatprep.subr.mxu0 0.0
    %6562 = vmatpush1.xpose.msra.mxu0 0.0
    %6563 = vmatprep.subr.mxu0 0.0
    %6564 = vmatpush1.xpose.msra.mxu0 0.0
    %6565 = vmatprep.subr.mxu0 0.0
    %6566 = vmatpush1.xpose.msra.mxu0 0.0
    %6567 = vmatprep.mubr.f32.mxu0 %v6328
    %6568 = vmatmul.mubr.f32.gmra.mrb[0].mxu0 %v6321
    %v6569 = vpop.f32.mrb[0].mxu0
    %v6570 = vadd.f32 %v6500, %v6569
    %v6571 = vpop.f32.mrb[0].mxu0
    %6572 = vdwg.mxu0
    %6573 = vmatprep.subr.mxu0 %v6427
    %6574 = vmatpush1.xpose.msra.mxu0 %v6299
    %6575 = vmatprep.subr.mxu0 0.0
    %6576 = vmatpush1.xpose.msra.mxu0 0.0
    %6577 = vmatprep.subr.mxu0 0.0
    %6578 = vmatpush1.xpose.msra.mxu0 0.0
    %6579 = vmatprep.subr.mxu0 0.0
    %6580 = vmatpush1.xpose.msra.mxu0 0.0
    %6581 = vmatprep.subr.mxu0 0.0
    %6582 = vmatpush1.xpose.msra.mxu0 0.0
    %6583 = vmatprep.subr.mxu0 0.0
    %6584 = vmatpush1.xpose.msra.mxu0 0.0
    %6585 = vmatprep.subr.mxu0 0.0
    %6586 = vmatpush1.xpose.msra.mxu0 0.0
    %6587 = vmatprep.subr.mxu0 0.0
    %6588 = vmatpush1.xpose.msra.mxu0 0.0
    %6589 = vmatprep.subr.mxu0 0.0
    %6590 = vmatpush1.xpose.msra.mxu0 0.0
    %6591 = vmatprep.subr.mxu0 0.0
    %6592 = vmatpush1.xpose.msra.mxu0 0.0
    %6593 = vmatprep.subr.mxu0 0.0
    %6594 = vmatpush1.xpose.msra.mxu0 0.0
    %6595 = vmatprep.subr.mxu0 0.0
    %6596 = vmatpush1.xpose.msra.mxu0 0.0
    %6597 = vmatprep.subr.mxu0 0.0
    %6598 = vmatpush1.xpose.msra.mxu0 0.0
    %6599 = vmatprep.subr.mxu0 0.0
    %6600 = vmatpush1.xpose.msra.mxu0 0.0
    %6601 = vmatprep.subr.mxu0 0.0
    %6602 = vmatpush1.xpose.msra.mxu0 0.0
    %6603 = vmatprep.subr.mxu0 0.0
    %6604 = vmatpush1.xpose.msra.mxu0 0.0
    %6605 = vmatprep.subr.mxu0 0.0
    %6606 = vmatpush1.xpose.msra.mxu0 0.0
    %6607 = vmatprep.subr.mxu0 0.0
    %6608 = vmatpush1.xpose.msra.mxu0 0.0
    %6609 = vmatprep.subr.mxu0 0.0
    %6610 = vmatpush1.xpose.msra.mxu0 0.0
    %6611 = vmatprep.subr.mxu0 0.0
    %6612 = vmatpush1.xpose.msra.mxu0 0.0
    %6613 = vmatprep.subr.mxu0 0.0
    %6614 = vmatpush1.xpose.msra.mxu0 0.0
    %6615 = vmatprep.subr.mxu0 0.0
    %6616 = vmatpush1.xpose.msra.mxu0 0.0
    %6617 = vmatprep.subr.mxu0 0.0
    %6618 = vmatpush1.xpose.msra.mxu0 0.0
    %6619 = vmatprep.subr.mxu0 0.0
    %6620 = vmatpush1.xpose.msra.mxu0 0.0
    %6621 = vmatprep.subr.mxu0 0.0
    %6622 = vmatpush1.xpose.msra.mxu0 0.0
    %6623 = vmatprep.subr.mxu0 0.0
    %6624 = vmatpush1.xpose.msra.mxu0 0.0
    %6625 = vmatprep.subr.mxu0 0.0
    %6626 = vmatpush1.xpose.msra.mxu0 0.0
    %6627 = vmatprep.subr.mxu0 0.0
    %6628 = vmatpush1.xpose.msra.mxu0 0.0
    %6629 = vmatprep.subr.mxu0 0.0
    %6630 = vmatpush1.xpose.msra.mxu0 0.0
    %6631 = vmatprep.subr.mxu0 0.0
    %6632 = vmatpush1.xpose.msra.mxu0 0.0
    %6633 = vmatprep.subr.mxu0 0.0
    %6634 = vmatpush1.xpose.msra.mxu0 0.0
    %6635 = vmatprep.subr.mxu0 0.0
    %6636 = vmatpush1.xpose.msra.mxu0 0.0
    %6637 = vmatprep.mubr.f32.mxu0 %v6342
    %6638 = vmatmul.mubr.f32.gmra.mrb[0].mxu0 %v6335
    %v6639 = vpop.f32.mrb[0].mxu0
    %v6640 = vadd.f32 %v6570, %v6639
    %v6641 = vpop.f32.mrb[0].mxu0
    %6642 = vdwg.mxu0
    %6643 = vmatprep.subr.mxu0 %v6428
    %6644 = vmatpush1.xpose.msra.mxu0 %v6300
    %6645 = vmatprep.subr.mxu0 0.0
    %6646 = vmatpush1.xpose.msra.mxu0 0.0
    %6647 = vmatprep.subr.mxu0 0.0
    %6648 = vmatpush1.xpose.msra.mxu0 0.0
    %6649 = vmatprep.subr.mxu0 0.0
    %6650 = vmatpush1.xpose.msra.mxu0 0.0
    %6651 = vmatprep.subr.mxu0 0.0
    %6652 = vmatpush1.xpose.msra.mxu0 0.0
    %6653 = vmatprep.subr.mxu0 0.0
    %6654 = vmatpush1.xpose.msra.mxu0 0.0
    %6655 = vmatprep.subr.mxu0 0.0
    %6656 = vmatpush1.xpose.msra.mxu0 0.0
    %6657 = vmatprep.subr.mxu0 0.0
    %6658 = vmatpush1.xpose.msra.mxu0 0.0
    %6659 = vmatprep.subr.mxu0 0.0
    %6660 = vmatpush1.xpose.msra.mxu0 0.0
    %6661 = vmatprep.subr.mxu0 0.0
    %6662 = vmatpush1.xpose.msra.mxu0 0.0
    %6663 = vmatprep.subr.mxu0 0.0
    %6664 = vmatpush1.xpose.msra.mxu0 0.0
    %6665 = vmatprep.subr.mxu0 0.0
    %6666 = vmatpush1.xpose.msra.mxu0 0.0
    %6667 = vmatprep.subr.mxu0 0.0
    %6668 = vmatpush1.xpose.msra.mxu0 0.0
    %6669 = vmatprep.subr.mxu0 0.0
    %6670 = vmatpush1.xpose.msra.mxu0 0.0
    %6671 = vmatprep.subr.mxu0 0.0
    %6672 = vmatpush1.xpose.msra.mxu0 0.0
    %6673 = vmatprep.subr.mxu0 0.0
    %6674 = vmatpush1.xpose.msra.mxu0 0.0
    %6675 = vmatprep.subr.mxu0 0.0
    %6676 = vmatpush1.xpose.msra.mxu0 0.0
    %6677 = vmatprep.subr.mxu0 0.0
    %6678 = vmatpush1.xpose.msra.mxu0 0.0
    %6679 = vmatprep.subr.mxu0 0.0
    %6680 = vmatpush1.xpose.msra.mxu0 0.0
    %6681 = vmatprep.subr.mxu0 0.0
    %6682 = vmatpush1.xpose.msra.mxu0 0.0
    %6683 = vmatprep.subr.mxu0 0.0
    %6684 = vmatpush1.xpose.msra.mxu0 0.0
    %6685 = vmatprep.subr.mxu0 0.0
    %6686 = vmatpush1.xpose.msra.mxu0 0.0
    %6687 = vmatprep.subr.mxu0 0.0
    %6688 = vmatpush1.xpose.msra.mxu0 0.0
    %6689 = vmatprep.subr.mxu0 0.0
    %6690 = vmatpush1.xpose.msra.mxu0 0.0
    %6691 = vmatprep.subr.mxu0 0.0
    %6692 = vmatpush1.xpose.msra.mxu0 0.0
    %6693 = vmatprep.subr.mxu0 0.0
    %6694 = vmatpush1.xpose.msra.mxu0 0.0
    %6695 = vmatprep.subr.mxu0 0.0
    %6696 = vmatpush1.xpose.msra.mxu0 0.0
    %6697 = vmatprep.subr.mxu0 0.0
    %6698 = vmatpush1.xpose.msra.mxu0 0.0
    %6699 = vmatprep.subr.mxu0 0.0
    %6700 = vmatpush1.xpose.msra.mxu0 0.0
    %6701 = vmatprep.subr.mxu0 0.0
    %6702 = vmatpush1.xpose.msra.mxu0 0.0
    %6703 = vmatprep.subr.mxu0 0.0
    %6704 = vmatpush1.xpose.msra.mxu0 0.0
    %6705 = vmatprep.subr.mxu0 0.0
    %6706 = vmatpush1.xpose.msra.mxu0 0.0
    %6707 = vmatprep.mubr.f32.mxu0 %v6356
    %6708 = vmatmul.mubr.f32.gmra.mrb[0].mxu0 %v6349
    %v6709 = vpop.f32.mrb[0].mxu0
    %v6710 = vadd.f32 %v6640, %v6709
    %v6711 = vpop.f32.mrb[0].mxu0
    %6712 = vdwg.mxu0
    %v6713 = vmul.f32 %v6710, 0.001953125
    %6714 = vmatprep.subr.mxu0 %v6425
    %6715 = vmatpush1.xpose.msra.mxu0 %v6297
    %6716 = vmatprep.subr.mxu0 0.0
    %6717 = vmatpush1.xpose.msra.mxu0 0.0
    %6718 = vmatprep.subr.mxu0 0.0
    %6719 = vmatpush1.xpose.msra.mxu0 0.0
    %6720 = vmatprep.subr.mxu0 0.0
    %6721 = vmatpush1.xpose.msra.mxu0 0.0
    %6722 = vmatprep.subr.mxu0 0.0
    %6723 = vmatpush1.xpose.msra.mxu0 0.0
    %6724 = vmatprep.subr.mxu0 0.0
    %6725 = vmatpush1.xpose.msra.mxu0 0.0
    %6726 = vmatprep.subr.mxu0 0.0
    %6727 = vmatpush1.xpose.msra.mxu0 0.0
    %6728 = vmatprep.subr.mxu0 0.0
    %6729 = vmatpush1.xpose.msra.mxu0 0.0
    %6730 = vmatprep.subr.mxu0 0.0
    %6731 = vmatpush1.xpose.msra.mxu0 0.0
    %6732 = vmatprep.subr.mxu0 0.0
    %6733 = vmatpush1.xpose.msra.mxu0 0.0
    %6734 = vmatprep.subr.mxu0 0.0
    %6735 = vmatpush1.xpose.msra.mxu0 0.0
    %6736 = vmatprep.subr.mxu0 0.0
    %6737 = vmatpush1.xpose.msra.mxu0 0.0
    %6738 = vmatprep.subr.mxu0 0.0
    %6739 = vmatpush1.xpose.msra.mxu0 0.0
    %6740 = vmatprep.subr.mxu0 0.0
    %6741 = vmatpush1.xpose.msra.mxu0 0.0
    %6742 = vmatprep.subr.mxu0 0.0
    %6743 = vmatpush1.xpose.msra.mxu0 0.0
    %6744 = vmatprep.subr.mxu0 0.0
    %6745 = vmatpush1.xpose.msra.mxu0 0.0
    %6746 = vmatprep.subr.mxu0 0.0
    %6747 = vmatpush1.xpose.msra.mxu0 0.0
    %6748 = vmatprep.subr.mxu0 0.0
    %6749 = vmatpush1.xpose.msra.mxu0 0.0
    %6750 = vmatprep.subr.mxu0 0.0
    %6751 = vmatpush1.xpose.msra.mxu0 0.0
    %6752 = vmatprep.subr.mxu0 0.0
    %6753 = vmatpush1.xpose.msra.mxu0 0.0
    %6754 = vmatprep.subr.mxu0 0.0
    %6755 = vmatpush1.xpose.msra.mxu0 0.0
    %6756 = vmatprep.subr.mxu0 0.0
    %6757 = vmatpush1.xpose.msra.mxu0 0.0
    %6758 = vmatprep.subr.mxu0 0.0
    %6759 = vmatpush1.xpose.msra.mxu0 0.0
    %6760 = vmatprep.subr.mxu0 0.0
    %6761 = vmatpush1.xpose.msra.mxu0 0.0
    %6762 = vmatprep.subr.mxu0 0.0
    %6763 = vmatpush1.xpose.msra.mxu0 0.0
    %6764 = vmatprep.subr.mxu0 0.0
    %6765 = vmatpush1.xpose.msra.mxu0 0.0
    %6766 = vmatprep.subr.mxu0 0.0
    %6767 = vmatpush1.xpose.msra.mxu0 0.0
    %6768 = vmatprep.subr.mxu0 0.0
    %6769 = vmatpush1.xpose.msra.mxu0 0.0
    %6770 = vmatprep.subr.mxu0 0.0
    %6771 = vmatpush1.xpose.msra.mxu0 0.0
    %6772 = vmatprep.subr.mxu0 0.0
    %6773 = vmatpush1.xpose.msra.mxu0 0.0
    %6774 = vmatprep.subr.mxu0 0.0
    %6775 = vmatpush1.xpose.msra.mxu0 0.0
    %6776 = vmatprep.subr.mxu0 0.0
    %6777 = vmatpush1.xpose.msra.mxu0 0.0
    %6778 = vmatprep.mubr.f32.mxu0 %v6378
    %6779 = vmatmul.mubr.f32.gmra.mrb[0].mxu0 %v6371
    %v6780 = vpop.f32.mrb[0].mxu0
    %v6781 = vadd.f32 0.0, %v6780
    %v6782 = vpop.f32.mrb[0].mxu0
    %6783 = vdwg.mxu0
    %6784 = vmatprep.subr.mxu0 %v6426
    %6785 = vmatpush1.xpose.msra.mxu0 %v6298
    %6786 = vmatprep.subr.mxu0 0.0
    %6787 = vmatpush1.xpose.msra.mxu0 0.0
    %6788 = vmatprep.subr.mxu0 0.0
    %6789 = vmatpush1.xpose.msra.mxu0 0.0
    %6790 = vmatprep.subr.mxu0 0.0
    %6791 = vmatpush1.xpose.msra.mxu0 0.0
    %6792 = vmatprep.subr.mxu0 0.0
    %6793 = vmatpush1.xpose.msra.mxu0 0.0
    %6794 = vmatprep.subr.mxu0 0.0
    %6795 = vmatpush1.xpose.msra.mxu0 0.0
    %6796 = vmatprep.subr.mxu0 0.0
    %6797 = vmatpush1.xpose.msra.mxu0 0.0
    %6798 = vmatprep.subr.mxu0 0.0
    %6799 = vmatpush1.xpose.msra.mxu0 0.0
    %6800 = vmatprep.subr.mxu0 0.0
    %6801 = vmatpush1.xpose.msra.mxu0 0.0
    %6802 = vmatprep.subr.mxu0 0.0
    %6803 = vmatpush1.xpose.msra.mxu0 0.0
    %6804 = vmatprep.subr.mxu0 0.0
    %6805 = vmatpush1.xpose.msra.mxu0 0.0
    %6806 = vmatprep.subr.mxu0 0.0
    %6807 = vmatpush1.xpose.msra.mxu0 0.0
    %6808 = vmatprep.subr.mxu0 0.0
    %6809 = vmatpush1.xpose.msra.mxu0 0.0
    %6810 = vmatprep.subr.mxu0 0.0
    %6811 = vmatpush1.xpose.msra.mxu0 0.0
    %6812 = vmatprep.subr.mxu0 0.0
    %6813 = vmatpush1.xpose.msra.mxu0 0.0
    %6814 = vmatprep.subr.mxu0 0.0
    %6815 = vmatpush1.xpose.msra.mxu0 0.0
    %6816 = vmatprep.subr.mxu0 0.0
    %6817 = vmatpush1.xpose.msra.mxu0 0.0
    %6818 = vmatprep.subr.mxu0 0.0
    %6819 = vmatpush1.xpose.msra.mxu0 0.0
    %6820 = vmatprep.subr.mxu0 0.0
    %6821 = vmatpush1.xpose.msra.mxu0 0.0
    %6822 = vmatprep.subr.mxu0 0.0
    %6823 = vmatpush1.xpose.msra.mxu0 0.0
    %6824 = vmatprep.subr.mxu0 0.0
    %6825 = vmatpush1.xpose.msra.mxu0 0.0
    %6826 = vmatprep.subr.mxu0 0.0
    %6827 = vmatpush1.xpose.msra.mxu0 0.0
    %6828 = vmatprep.subr.mxu0 0.0
    %6829 = vmatpush1.xpose.msra.mxu0 0.0
    %6830 = vmatprep.subr.mxu0 0.0
    %6831 = vmatpush1.xpose.msra.mxu0 0.0
    %6832 = vmatprep.subr.mxu0 0.0
    %6833 = vmatpush1.xpose.msra.mxu0 0.0
    %6834 = vmatprep.subr.mxu0 0.0
    %6835 = vmatpush1.xpose.msra.mxu0 0.0
    %6836 = vmatprep.subr.mxu0 0.0
    %6837 = vmatpush1.xpose.msra.mxu0 0.0
    %6838 = vmatprep.subr.mxu0 0.0
    %6839 = vmatpush1.xpose.msra.mxu0 0.0
    %6840 = vmatprep.subr.mxu0 0.0
    %6841 = vmatpush1.xpose.msra.mxu0 0.0
    %6842 = vmatprep.subr.mxu0 0.0
    %6843 = vmatpush1.xpose.msra.mxu0 0.0
    %6844 = vmatprep.subr.mxu0 0.0
    %6845 = vmatpush1.xpose.msra.mxu0 0.0
    %6846 = vmatprep.subr.mxu0 0.0
    %6847 = vmatpush1.xpose.msra.mxu0 0.0
    %6848 = vmatprep.mubr.f32.mxu0 %v6392
    %6849 = vmatmul.mubr.f32.gmra.mrb[0].mxu0 %v6385
    %v6850 = vpop.f32.mrb[0].mxu0
    %v6851 = vadd.f32 %v6781, %v6850
    %v6852 = vpop.f32.mrb[0].mxu0
    %6853 = vdwg.mxu0
    %6854 = vmatprep.subr.mxu0 %v6427
    %6855 = vmatpush1.xpose.msra.mxu0 %v6299
    %6856 = vmatprep.subr.mxu0 0.0
    %6857 = vmatpush1.xpose.msra.mxu0 0.0
    %6858 = vmatprep.subr.mxu0 0.0
    %6859 = vmatpush1.xpose.msra.mxu0 0.0
    %6860 = vmatprep.subr.mxu0 0.0
    %6861 = vmatpush1.xpose.msra.mxu0 0.0
    %6862 = vmatprep.subr.mxu0 0.0
    %6863 = vmatpush1.xpose.msra.mxu0 0.0
    %6864 = vmatprep.subr.mxu0 0.0
    %6865 = vmatpush1.xpose.msra.mxu0 0.0
    %6866 = vmatprep.subr.mxu0 0.0
    %6867 = vmatpush1.xpose.msra.mxu0 0.0
    %6868 = vmatprep.subr.mxu0 0.0
    %6869 = vmatpush1.xpose.msra.mxu0 0.0
    %6870 = vmatprep.subr.mxu0 0.0
    %6871 = vmatpush1.xpose.msra.mxu0 0.0
    %6872 = vmatprep.subr.mxu0 0.0
    %6873 = vmatpush1.xpose.msra.mxu0 0.0
    %6874 = vmatprep.subr.mxu0 0.0
    %6875 = vmatpush1.xpose.msra.mxu0 0.0
    %6876 = vmatprep.subr.mxu0 0.0
    %6877 = vmatpush1.xpose.msra.mxu0 0.0
    %6878 = vmatprep.subr.mxu0 0.0
    %6879 = vmatpush1.xpose.msra.mxu0 0.0
    %6880 = vmatprep.subr.mxu0 0.0
    %6881 = vmatpush1.xpose.msra.mxu0 0.0
    %6882 = vmatprep.subr.mxu0 0.0
    %6883 = vmatpush1.xpose.msra.mxu0 0.0
    %6884 = vmatprep.subr.mxu0 0.0
    %6885 = vmatpush1.xpose.msra.mxu0 0.0
    %6886 = vmatprep.subr.mxu0 0.0
    %6887 = vmatpush1.xpose.msra.mxu0 0.0
    %6888 = vmatprep.subr.mxu0 0.0
    %6889 = vmatpush1.xpose.msra.mxu0 0.0
    %6890 = vmatprep.subr.mxu0 0.0
    %6891 = vmatpush1.xpose.msra.mxu0 0.0
    %6892 = vmatprep.subr.mxu0 0.0
    %6893 = vmatpush1.xpose.msra.mxu0 0.0
    %6894 = vmatprep.subr.mxu0 0.0
    %6895 = vmatpush1.xpose.msra.mxu0 0.0
    %6896 = vmatprep.subr.mxu0 0.0
    %6897 = vmatpush1.xpose.msra.mxu0 0.0
    %6898 = vmatprep.subr.mxu0 0.0
    %6899 = vmatpush1.xpose.msra.mxu0 0.0
    %6900 = vmatprep.subr.mxu0 0.0
    %6901 = vmatpush1.xpose.msra.mxu0 0.0
    %6902 = vmatprep.subr.mxu0 0.0
    %6903 = vmatpush1.xpose.msra.mxu0 0.0
    %6904 = vmatprep.subr.mxu0 0.0
    %6905 = vmatpush1.xpose.msra.mxu0 0.0
    %6906 = vmatprep.subr.mxu0 0.0
    %6907 = vmatpush1.xpose.msra.mxu0 0.0
    %6908 = vmatprep.subr.mxu0 0.0
    %6909 = vmatpush1.xpose.msra.mxu0 0.0
    %6910 = vmatprep.subr.mxu0 0.0
    %6911 = vmatpush1.xpose.msra.mxu0 0.0
    %6912 = vmatprep.subr.mxu0 0.0
    %6913 = vmatpush1.xpose.msra.mxu0 0.0
    %6914 = vmatprep.subr.mxu0 0.0
    %6915 = vmatpush1.xpose.msra.mxu0 0.0
    %6916 = vmatprep.subr.mxu0 0.0
    %6917 = vmatpush1.xpose.msra.mxu0 0.0
    %6918 = vmatprep.mubr.f32.mxu0 %v6406
    %6919 = vmatmul.mubr.f32.gmra.mrb[0].mxu0 %v6399
    %v6920 = vpop.f32.mrb[0].mxu0
    %v6921 = vadd.f32 %v6851, %v6920
    %v6922 = vpop.f32.mrb[0].mxu0
    %6923 = vdwg.mxu0
    %6924 = vmatprep.subr.mxu0 %v6428
    %6925 = vmatpush1.xpose.msra.mxu0 %v6300
    %6926 = vmatprep.subr.mxu0 0.0
    %6927 = vmatpush1.xpose.msra.mxu0 0.0
    %6928 = vmatprep.subr.mxu0 0.0
    %6929 = vmatpush1.xpose.msra.mxu0 0.0
    %6930 = vmatprep.subr.mxu0 0.0
    %6931 = vmatpush1.xpose.msra.mxu0 0.0
    %6932 = vmatprep.subr.mxu0 0.0
    %6933 = vmatpush1.xpose.msra.mxu0 0.0
    %6934 = vmatprep.subr.mxu0 0.0
    %6935 = vmatpush1.xpose.msra.mxu0 0.0
    %6936 = vmatprep.subr.mxu0 0.0
    %6937 = vmatpush1.xpose.msra.mxu0 0.0
    %6938 = vmatprep.subr.mxu0 0.0
    %6939 = vmatpush1.xpose.msra.mxu0 0.0
    %6940 = vmatprep.subr.mxu0 0.0
    %6941 = vmatpush1.xpose.msra.mxu0 0.0
    %6942 = vmatprep.subr.mxu0 0.0
    %6943 = vmatpush1.xpose.msra.mxu0 0.0
    %6944 = vmatprep.subr.mxu0 0.0
    %6945 = vmatpush1.xpose.msra.mxu0 0.0
    %6946 = vmatprep.subr.mxu0 0.0
    %6947 = vmatpush1.xpose.msra.mxu0 0.0
    %6948 = vmatprep.subr.mxu0 0.0
    %6949 = vmatpush1.xpose.msra.mxu0 0.0
    %6950 = vmatprep.subr.mxu0 0.0
    %6951 = vmatpush1.xpose.msra.mxu0 0.0
    %6952 = vmatprep.subr.mxu0 0.0
    %6953 = vmatpush1.xpose.msra.mxu0 0.0
    %6954 = vmatprep.subr.mxu0 0.0
    %6955 = vmatpush1.xpose.msra.mxu0 0.0
    %6956 = vmatprep.subr.mxu0 0.0
    %6957 = vmatpush1.xpose.msra.mxu0 0.0
    %6958 = vmatprep.subr.mxu0 0.0
    %6959 = vmatpush1.xpose.msra.mxu0 0.0
    %6960 = vmatprep.subr.mxu0 0.0
    %6961 = vmatpush1.xpose.msra.mxu0 0.0
    %6962 = vmatprep.subr.mxu0 0.0
    %6963 = vmatpush1.xpose.msra.mxu0 0.0
    %6964 = vmatprep.subr.mxu0 0.0
    %6965 = vmatpush1.xpose.msra.mxu0 0.0
    %6966 = vmatprep.subr.mxu0 0.0
    %6967 = vmatpush1.xpose.msra.mxu0 0.0
    %6968 = vmatprep.subr.mxu0 0.0
    %6969 = vmatpush1.xpose.msra.mxu0 0.0
    %6970 = vmatprep.subr.mxu0 0.0
    %6971 = vmatpush1.xpose.msra.mxu0 0.0
    %6972 = vmatprep.subr.mxu0 0.0
    %6973 = vmatpush1.xpose.msra.mxu0 0.0
    %6974 = vmatprep.subr.mxu0 0.0
    %6975 = vmatpush1.xpose.msra.mxu0 0.0
    %6976 = vmatprep.subr.mxu0 0.0
    %6977 = vmatpush1.xpose.msra.mxu0 0.0
    %6978 = vmatprep.subr.mxu0 0.0
    %6979 = vmatpush1.xpose.msra.mxu0 0.0
    %6980 = vmatprep.subr.mxu0 0.0
    %6981 = vmatpush1.xpose.msra.mxu0 0.0
    %6982 = vmatprep.subr.mxu0 0.0
    %6983 = vmatpush1.xpose.msra.mxu0 0.0
    %6984 = vmatprep.subr.mxu0 0.0
    %6985 = vmatpush1.xpose.msra.mxu0 0.0
    %6986 = vmatprep.subr.mxu0 0.0
    %6987 = vmatpush1.xpose.msra.mxu0 0.0
    %6988 = vmatprep.mubr.f32.mxu0 %v6420
    %6989 = vmatmul.mubr.f32.gmra.mrb[0].mxu0 %v6413
    %v6990 = vpop.f32.mrb[0].mxu0
    %v6991 = vadd.f32 %v6921, %v6990
    %v6992 = vpop.f32.mrb[0].mxu0
    %6993 = vdwg.mxu0
    %v6994 = vmul.f32 %v6991, 0.001953125
    %v6995 = vmul.f32 %v6713, %v6713
    %v6996 = vsub.f32 %v6994, %v6995
    %v6997 = vld [vmem:[%s20] sm:$0x1]
    %v6998 = vadd.f32 %v6996, 1e-05
    %v6999 = vrsqrt.pop %v6998
    %v7000 = vmul.f32 %v6997, %v6999
    %v7001 = vld [vmem:[%s21] sm:$0x1]
    %v7002 = vmul.f32 %v6713, %v7000
    %v7003 = vsub.f32 %v7001, %v7002
    %vm7004 = vcmask 31744
    %v7006 = vsel %vm7004, %v7000, 0
    %v7008 = vsel %vm3027, %v6297, 0
    %v7010 = vsel %vm3027, %v6425, 0
    %v7012 = vsel %vm3027, %v6298, 0
    %v7014 = vsel %vm3027, %v6426, 0
    %v7016 = vsel %vm3027, %v6299, 0
    %v7018 = vsel %vm3027, %v6427, 0
    %v7020 = vsel %vm3027, %v6300, 0
    %v7022 = vsel %vm3027, %v6428, 0
    %7024 = vmatprep.subr.mxu0 %v7010
    %7025 = vmatpush1.msra.mxu0 %v7008
    %7026 = vmatprep.subr.mxu0 0.0
    %7027 = vmatpush1.msra.mxu0 0.0
    %7028 = vmatprep.subr.mxu0 0.0
    %7029 = vmatpush1.msra.mxu0 0.0
    %7030 = vmatprep.subr.mxu0 0.0
    %7031 = vmatpush1.msra.mxu0 0.0
    %7032 = vmatprep.subr.mxu0 0.0
    %7033 = vmatpush1.msra.mxu0 0.0
    %7034 = vmatprep.subr.mxu0 0.0
    %7035 = vmatpush1.msra.mxu0 0.0
    %7036 = vmatprep.subr.mxu0 0.0
    %7037 = vmatpush1.msra.mxu0 0.0
    %7038 = vmatprep.subr.mxu0 0.0
    %7039 = vmatpush1.msra.mxu0 0.0
    %7040 = vmatprep.subr.mxu0 0.0
    %7041 = vmatpush1.msra.mxu0 0.0
    %7042 = vmatprep.subr.mxu0 0.0
    %7043 = vmatpush1.msra.mxu0 0.0
    %7044 = vmatprep.subr.mxu0 0.0
    %7045 = vmatpush1.msra.mxu0 0.0
    %7046 = vmatprep.subr.mxu0 0.0
    %7047 = vmatpush1.msra.mxu0 0.0
    %7048 = vmatprep.subr.mxu0 0.0
    %7049 = vmatpush1.msra.mxu0 0.0
    %7050 = vmatprep.subr.mxu0 0.0
    %7051 = vmatpush1.msra.mxu0 0.0
    %7052 = vmatprep.subr.mxu0 0.0
    %7053 = vmatpush1.msra.mxu0 0.0
    %7054 = vmatprep.subr.mxu0 0.0
    %7055 = vmatpush1.msra.mxu0 0.0
    %7056 = vmatprep.subr.mxu0 0.0
    %7057 = vmatpush1.msra.mxu0 0.0
    %7058 = vmatprep.subr.mxu0 0.0
    %7059 = vmatpush1.msra.mxu0 0.0
    %7060 = vmatprep.subr.mxu0 0.0
    %7061 = vmatpush1.msra.mxu0 0.0
    %7062 = vmatprep.subr.mxu0 0.0
    %7063 = vmatpush1.msra.mxu0 0.0
    %7064 = vmatprep.subr.mxu0 0.0
    %7065 = vmatpush1.msra.mxu0 0.0
    %7066 = vmatprep.subr.mxu0 0.0
    %7067 = vmatpush1.msra.mxu0 0.0
    %7068 = vmatprep.subr.mxu0 0.0
    %7069 = vmatpush1.msra.mxu0 0.0
    %7070 = vmatprep.subr.mxu0 0.0
    %7071 = vmatpush1.msra.mxu0 0.0
    %7072 = vmatprep.subr.mxu0 0.0
    %7073 = vmatpush1.msra.mxu0 0.0
    %7074 = vmatprep.subr.mxu0 0.0
    %7075 = vmatpush1.msra.mxu0 0.0
    %7076 = vmatprep.subr.mxu0 0.0
    %7077 = vmatpush1.msra.mxu0 0.0
    %7078 = vmatprep.subr.mxu0 0.0
    %7079 = vmatpush1.msra.mxu0 0.0
    %7080 = vmatprep.subr.mxu0 0.0
    %7081 = vmatpush1.msra.mxu0 0.0
    %7082 = vmatprep.subr.mxu0 0.0
    %7083 = vmatpush1.msra.mxu0 0.0
    %7084 = vmatprep.subr.mxu0 0.0
    %7085 = vmatpush1.msra.mxu0 0.0
    %7086 = vmatprep.subr.mxu0 0.0
    %7087 = vmatpush1.msra.mxu0 0.0
    %7088 = vmatprep.mubr.f32.mxu0 0.0
    %7089 = vmatmul.mubr.f32.gmra.mrb[0].mxu0 %v7006
    %v7090 = vpop.f32.mrb[0].mxu0
    %v7091 = vadd.f32 0.0, %v7090
    %v7092 = vpop.f32.mrb[0].mxu0
    %v7093 = vadd.f32 0.0, %v7092
    %7094 = vdwg.mxu0
    %7095 = vmatprep.subr.mxu0 %v7014
    %7096 = vmatpush1.msra.mxu0 %v7012
    %7097 = vmatprep.subr.mxu0 0.0
    %7098 = vmatpush1.msra.mxu0 0.0
    %7099 = vmatprep.subr.mxu0 0.0
    %7100 = vmatpush1.msra.mxu0 0.0
    %7101 = vmatprep.subr.mxu0 0.0
    %7102 = vmatpush1.msra.mxu0 0.0
    %7103 = vmatprep.subr.mxu0 0.0
    %7104 = vmatpush1.msra.mxu0 0.0
    %7105 = vmatprep.subr.mxu0 0.0
    %7106 = vmatpush1.msra.mxu0 0.0
    %7107 = vmatprep.subr.mxu0 0.0
    %7108 = vmatpush1.msra.mxu0 0.0
    %7109 = vmatprep.subr.mxu0 0.0
    %7110 = vmatpush1.msra.mxu0 0.0
    %7111 = vmatprep.subr.mxu0 0.0
    %7112 = vmatpush1.msra.mxu0 0.0
    %7113 = vmatprep.subr.mxu0 0.0
    %7114 = vmatpush1.msra.mxu0 0.0
    %7115 = vmatprep.subr.mxu0 0.0
    %7116 = vmatpush1.msra.mxu0 0.0
    %7117 = vmatprep.subr.mxu0 0.0
    %7118 = vmatpush1.msra.mxu0 0.0
    %7119 = vmatprep.subr.mxu0 0.0
    %7120 = vmatpush1.msra.mxu0 0.0
    %7121 = vmatprep.subr.mxu0 0.0
    %7122 = vmatpush1.msra.mxu0 0.0
    %7123 = vmatprep.subr.mxu0 0.0
    %7124 = vmatpush1.msra.mxu0 0.0
    %7125 = vmatprep.subr.mxu0 0.0
    %7126 = vmatpush1.msra.mxu0 0.0
    %7127 = vmatprep.subr.mxu0 0.0
    %7128 = vmatpush1.msra.mxu0 0.0
    %7129 = vmatprep.subr.mxu0 0.0
    %7130 = vmatpush1.msra.mxu0 0.0
    %7131 = vmatprep.subr.mxu0 0.0
    %7132 = vmatpush1.msra.mxu0 0.0
    %7133 = vmatprep.subr.mxu0 0.0
    %7134 = vmatpush1.msra.mxu0 0.0
    %7135 = vmatprep.subr.mxu0 0.0
    %7136 = vmatpush1.msra.mxu0 0.0
    %7137 = vmatprep.subr.mxu0 0.0
    %7138 = vmatpush1.msra.mxu0 0.0
    %7139 = vmatprep.subr.mxu0 0.0
    %7140 = vmatpush1.msra.mxu0 0.0
    %7141 = vmatprep.subr.mxu0 0.0
    %7142 = vmatpush1.msra.mxu0 0.0
    %7143 = vmatprep.subr.mxu0 0.0
    %7144 = vmatpush1.msra.mxu0 0.0
    %7145 = vmatprep.subr.mxu0 0.0
    %7146 = vmatpush1.msra.mxu0 0.0
    %7147 = vmatprep.subr.mxu0 0.0
    %7148 = vmatpush1.msra.mxu0 0.0
    %7149 = vmatprep.subr.mxu0 0.0
    %7150 = vmatpush1.msra.mxu0 0.0
    %7151 = vmatprep.subr.mxu0 0.0
    %7152 = vmatpush1.msra.mxu0 0.0
    %7153 = vmatprep.subr.mxu0 0.0
    %7154 = vmatpush1.msra.mxu0 0.0
    %7155 = vmatprep.subr.mxu0 0.0
    %7156 = vmatpush1.msra.mxu0 0.0
    %7157 = vmatprep.subr.mxu0 0.0
    %7158 = vmatpush1.msra.mxu0 0.0
    %7159 = vmatprep.mubr.f32.mxu0 0.0
    %7160 = vmatmul.mubr.f32.gmra.mrb[0].mxu0 %v7006
    %v7161 = vpop.f32.mrb[0].mxu0
    %v7162 = vadd.f32 0.0, %v7161
    %v7163 = vpop.f32.mrb[0].mxu0
    %v7164 = vadd.f32 0.0, %v7163
    %7165 = vdwg.mxu0
    %7166 = vmatprep.subr.mxu0 %v7018
    %7167 = vmatpush1.msra.mxu0 %v7016
    %7168 = vmatprep.subr.mxu0 0.0
    %7169 = vmatpush1.msra.mxu0 0.0
    %7170 = vmatprep.subr.mxu0 0.0
    %7171 = vmatpush1.msra.mxu0 0.0
    %7172 = vmatprep.subr.mxu0 0.0
    %7173 = vmatpush1.msra.mxu0 0.0
    %7174 = vmatprep.subr.mxu0 0.0
    %7175 = vmatpush1.msra.mxu0 0.0
    %7176 = vmatprep.subr.mxu0 0.0
    %7177 = vmatpush1.msra.mxu0 0.0
    %7178 = vmatprep.subr.mxu0 0.0
    %7179 = vmatpush1.msra.mxu0 0.0
    %7180 = vmatprep.subr.mxu0 0.0
    %7181 = vmatpush1.msra.mxu0 0.0
    %7182 = vmatprep.subr.mxu0 0.0
    %7183 = vmatpush1.msra.mxu0 0.0
    %7184 = vmatprep.subr.mxu0 0.0
    %7185 = vmatpush1.msra.mxu0 0.0
    %7186 = vmatprep.subr.mxu0 0.0
    %7187 = vmatpush1.msra.mxu0 0.0
    %7188 = vmatprep.subr.mxu0 0.0
    %7189 = vmatpush1.msra.mxu0 0.0
    %7190 = vmatprep.subr.mxu0 0.0
    %7191 = vmatpush1.msra.mxu0 0.0
    %7192 = vmatprep.subr.mxu0 0.0
    %7193 = vmatpush1.msra.mxu0 0.0
    %7194 = vmatprep.subr.mxu0 0.0
    %7195 = vmatpush1.msra.mxu0 0.0
    %7196 = vmatprep.subr.mxu0 0.0
    %7197 = vmatpush1.msra.mxu0 0.0
    %7198 = vmatprep.subr.mxu0 0.0
    %7199 = vmatpush1.msra.mxu0 0.0
    %7200 = vmatprep.subr.mxu0 0.0
    %7201 = vmatpush1.msra.mxu0 0.0
    %7202 = vmatprep.subr.mxu0 0.0
    %7203 = vmatpush1.msra.mxu0 0.0
    %7204 = vmatprep.subr.mxu0 0.0
    %7205 = vmatpush1.msra.mxu0 0.0
    %7206 = vmatprep.subr.mxu0 0.0
    %7207 = vmatpush1.msra.mxu0 0.0
    %7208 = vmatprep.subr.mxu0 0.0
    %7209 = vmatpush1.msra.mxu0 0.0
    %7210 = vmatprep.subr.mxu0 0.0
    %7211 = vmatpush1.msra.mxu0 0.0
    %7212 = vmatprep.subr.mxu0 0.0
    %7213 = vmatpush1.msra.mxu0 0.0
    %7214 = vmatprep.subr.mxu0 0.0
    %7215 = vmatpush1.msra.mxu0 0.0
    %7216 = vmatprep.subr.mxu0 0.0
    %7217 = vmatpush1.msra.mxu0 0.0
    %7218 = vmatprep.subr.mxu0 0.0
    %7219 = vmatpush1.msra.mxu0 0.0
    %7220 = vmatprep.subr.mxu0 0.0
    %7221 = vmatpush1.msra.mxu0 0.0
    %7222 = vmatprep.subr.mxu0 0.0
    %7223 = vmatpush1.msra.mxu0 0.0
    %7224 = vmatprep.subr.mxu0 0.0
    %7225 = vmatpush1.msra.mxu0 0.0
    %7226 = vmatprep.subr.mxu0 0.0
    %7227 = vmatpush1.msra.mxu0 0.0
    %7228 = vmatprep.subr.mxu0 0.0
    %7229 = vmatpush1.msra.mxu0 0.0
    %7230 = vmatprep.mubr.f32.mxu0 0.0
    %7231 = vmatmul.mubr.f32.gmra.mrb[0].mxu0 %v7006
    %v7232 = vpop.f32.mrb[0].mxu0
    %v7233 = vadd.f32 0.0, %v7232
    %v7234 = vpop.f32.mrb[0].mxu0
    %v7235 = vadd.f32 0.0, %v7234
    %7236 = vdwg.mxu0
    %7237 = vmatprep.subr.mxu0 %v7022
    %7238 = vmatpush1.msra.mxu0 %v7020
    %7239 = vmatprep.subr.mxu0 0.0
    %7240 = vmatpush1.msra.mxu0 0.0
    %7241 = vmatprep.subr.mxu0 0.0
    %7242 = vmatpush1.msra.mxu0 0.0
    %7243 = vmatprep.subr.mxu0 0.0
    %7244 = vmatpush1.msra.mxu0 0.0
    %7245 = vmatprep.subr.mxu0 0.0
    %7246 = vmatpush1.msra.mxu0 0.0
    %7247 = vmatprep.subr.mxu0 0.0
    %7248 = vmatpush1.msra.mxu0 0.0
    %7249 = vmatprep.subr.mxu0 0.0
    %7250 = vmatpush1.msra.mxu0 0.0
    %7251 = vmatprep.subr.mxu0 0.0
    %7252 = vmatpush1.msra.mxu0 0.0
    %7253 = vmatprep.subr.mxu0 0.0
    %7254 = vmatpush1.msra.mxu0 0.0
    %7255 = vmatprep.subr.mxu0 0.0
    %7256 = vmatpush1.msra.mxu0 0.0
    %7257 = vmatprep.subr.mxu0 0.0
    %7258 = vmatpush1.msra.mxu0 0.0
    %7259 = vmatprep.subr.mxu0 0.0
    %7260 = vmatpush1.msra.mxu0 0.0
    %7261 = vmatprep.subr.mxu0 0.0
    %7262 = vmatpush1.msra.mxu0 0.0
    %7263 = vmatprep.subr.mxu0 0.0
    %7264 = vmatpush1.msra.mxu0 0.0
    %7265 = vmatprep.subr.mxu0 0.0
    %7266 = vmatpush1.msra.mxu0 0.0
    %7267 = vmatprep.subr.mxu0 0.0
    %7268 = vmatpush1.msra.mxu0 0.0
    %7269 = vmatprep.subr.mxu0 0.0
    %7270 = vmatpush1.msra.mxu0 0.0
    %7271 = vmatprep.subr.mxu0 0.0
    %7272 = vmatpush1.msra.mxu0 0.0
    %7273 = vmatprep.subr.mxu0 0.0
    %7274 = vmatpush1.msra.mxu0 0.0
    %7275 = vmatprep.subr.mxu0 0.0
    %7276 = vmatpush1.msra.mxu0 0.0
    %7277 = vmatprep.subr.mxu0 0.0
    %7278 = vmatpush1.msra.mxu0 0.0
    %7279 = vmatprep.subr.mxu0 0.0
    %7280 = vmatpush1.msra.mxu0 0.0
    %7281 = vmatprep.subr.mxu0 0.0
    %7282 = vmatpush1.msra.mxu0 0.0
    %7283 = vmatprep.subr.mxu0 0.0
    %7284 = vmatpush1.msra.mxu0 0.0
    %7285 = vmatprep.subr.mxu0 0.0
    %7286 = vmatpush1.msra.mxu0 0.0
    %7287 = vmatprep.subr.mxu0 0.0
    %7288 = vmatpush1.msra.mxu0 0.0
    %7289 = vmatprep.subr.mxu0 0.0
    %7290 = vmatpush1.msra.mxu0 0.0
    %7291 = vmatprep.subr.mxu0 0.0
    %7292 = vmatpush1.msra.mxu0 0.0
    %7293 = vmatprep.subr.mxu0 0.0
    %7294 = vmatpush1.msra.mxu0 0.0
    %7295 = vmatprep.subr.mxu0 0.0
    %7296 = vmatpush1.msra.mxu0 0.0
    %7297 = vmatprep.subr.mxu0 0.0
    %7298 = vmatpush1.msra.mxu0 0.0
    %7299 = vmatprep.subr.mxu0 0.0
    %7300 = vmatpush1.msra.mxu0 0.0
    %7301 = vmatprep.mubr.f32.mxu0 0.0
    %7302 = vmatmul.mubr.f32.gmra.mrb[0].mxu0 %v7006
    %v7303 = vpop.f32.mrb[0].mxu0
    %v7304 = vadd.f32 0.0, %v7303
    %v7305 = vpop.f32.mrb[0].mxu0
    %v7306 = vadd.f32 0.0, %v7305
    %7307 = vdwg.mxu0
    %v7309 = vsel %vm7004, %v7003, 0
    %7311 = vmatprep.subr.mxu0 %v7010
    %7312 = vmatpush1.msra.mxu0 %v7008
    %7313 = vmatprep.subr.mxu0 0.0
    %7314 = vmatpush1.msra.mxu0 0.0
    %7315 = vmatprep.subr.mxu0 0.0
    %7316 = vmatpush1.msra.mxu0 0.0
    %7317 = vmatprep.subr.mxu0 0.0
    %7318 = vmatpush1.msra.mxu0 0.0
    %7319 = vmatprep.subr.mxu0 0.0
    %7320 = vmatpush1.msra.mxu0 0.0
    %7321 = vmatprep.subr.mxu0 0.0
    %7322 = vmatpush1.msra.mxu0 0.0
    %7323 = vmatprep.subr.mxu0 0.0
    %7324 = vmatpush1.msra.mxu0 0.0
    %7325 = vmatprep.subr.mxu0 0.0
    %7326 = vmatpush1.msra.mxu0 0.0
    %7327 = vmatprep.subr.mxu0 0.0
    %7328 = vmatpush1.msra.mxu0 0.0
    %7329 = vmatprep.subr.mxu0 0.0
    %7330 = vmatpush1.msra.mxu0 0.0
    %7331 = vmatprep.subr.mxu0 0.0
    %7332 = vmatpush1.msra.mxu0 0.0
    %7333 = vmatprep.subr.mxu0 0.0
    %7334 = vmatpush1.msra.mxu0 0.0
    %7335 = vmatprep.subr.mxu0 0.0
    %7336 = vmatpush1.msra.mxu0 0.0
    %7337 = vmatprep.subr.mxu0 0.0
    %7338 = vmatpush1.msra.mxu0 0.0
    %7339 = vmatprep.subr.mxu0 0.0
    %7340 = vmatpush1.msra.mxu0 0.0
    %7341 = vmatprep.subr.mxu0 0.0
    %7342 = vmatpush1.msra.mxu0 0.0
    %7343 = vmatprep.subr.mxu0 0.0
    %7344 = vmatpush1.msra.mxu0 0.0
    %7345 = vmatprep.subr.mxu0 0.0
    %7346 = vmatpush1.msra.mxu0 0.0
    %7347 = vmatprep.subr.mxu0 0.0
    %7348 = vmatpush1.msra.mxu0 0.0
    %7349 = vmatprep.subr.mxu0 0.0
    %7350 = vmatpush1.msra.mxu0 0.0
    %7351 = vmatprep.subr.mxu0 0.0
    %7352 = vmatpush1.msra.mxu0 0.0
    %7353 = vmatprep.subr.mxu0 0.0
    %7354 = vmatpush1.msra.mxu0 0.0
    %7355 = vmatprep.subr.mxu0 0.0
    %7356 = vmatpush1.msra.mxu0 0.0
    %7357 = vmatprep.subr.mxu0 0.0
    %7358 = vmatpush1.msra.mxu0 0.0
    %7359 = vmatprep.subr.mxu0 0.0
    %7360 = vmatpush1.msra.mxu0 0.0
    %7361 = vmatprep.subr.mxu0 0.0
    %7362 = vmatpush1.msra.mxu0 0.0
    %7363 = vmatprep.subr.mxu0 0.0
    %7364 = vmatpush1.msra.mxu0 0.0
    %7365 = vmatprep.subr.mxu0 0.0
    %7366 = vmatpush1.msra.mxu0 0.0
    %7367 = vmatprep.subr.mxu0 0.0
    %7368 = vmatpush1.msra.mxu0 0.0
    %7369 = vmatprep.subr.mxu0 0.0
    %7370 = vmatpush1.msra.mxu0 0.0
    %7371 = vmatprep.subr.mxu0 0.0
    %7372 = vmatpush1.msra.mxu0 0.0
    %7373 = vmatprep.subr.mxu0 0.0
    %7374 = vmatpush1.msra.mxu0 0.0
    %7375 = vmatprep.mubr.f32.mxu0 0.0
    %7376 = vmatmul.mubr.f32.gmra.mrb[0].mxu0 %v7309
    %v7377 = vpop.f32.mrb[0].mxu0
    %v7378 = vadd.f32 0.0, %v7377
    %v7379 = vpop.f32.mrb[0].mxu0
    %v7380 = vadd.f32 0.0, %v7379
    %7381 = vdwg.mxu0
    %7382 = vmatprep.subr.mxu0 %v7014
    %7383 = vmatpush1.msra.mxu0 %v7012
    %7384 = vmatprep.subr.mxu0 0.0
    %7385 = vmatpush1.msra.mxu0 0.0
    %7386 = vmatprep.subr.mxu0 0.0
    %7387 = vmatpush1.msra.mxu0 0.0
    %7388 = vmatprep.subr.mxu0 0.0
    %7389 = vmatpush1.msra.mxu0 0.0
    %7390 = vmatprep.subr.mxu0 0.0
    %7391 = vmatpush1.msra.mxu0 0.0
    %7392 = vmatprep.subr.mxu0 0.0
    %7393 = vmatpush1.msra.mxu0 0.0
    %7394 = vmatprep.subr.mxu0 0.0
    %7395 = vmatpush1.msra.mxu0 0.0
    %7396 = vmatprep.subr.mxu0 0.0
    %7397 = vmatpush1.msra.mxu0 0.0
    %7398 = vmatprep.subr.mxu0 0.0
    %7399 = vmatpush1.msra.mxu0 0.0
    %7400 = vmatprep.subr.mxu0 0.0
    %7401 = vmatpush1.msra.mxu0 0.0
    %7402 = vmatprep.subr.mxu0 0.0
    %7403 = vmatpush1.msra.mxu0 0.0
    %7404 = vmatprep.subr.mxu0 0.0
    %7405 = vmatpush1.msra.mxu0 0.0
    %7406 = vmatprep.subr.mxu0 0.0
    %7407 = vmatpush1.msra.mxu0 0.0
    %7408 = vmatprep.subr.mxu0 0.0
    %7409 = vmatpush1.msra.mxu0 0.0
    %7410 = vmatprep.subr.mxu0 0.0
    %7411 = vmatpush1.msra.mxu0 0.0
    %7412 = vmatprep.subr.mxu0 0.0
    %7413 = vmatpush1.msra.mxu0 0.0
    %7414 = vmatprep.subr.mxu0 0.0
    %7415 = vmatpush1.msra.mxu0 0.0
    %7416 = vmatprep.subr.mxu0 0.0
    %7417 = vmatpush1.msra.mxu0 0.0
    %7418 = vmatprep.subr.mxu0 0.0
    %7419 = vmatpush1.msra.mxu0 0.0
    %7420 = vmatprep.subr.mxu0 0.0
    %7421 = vmatpush1.msra.mxu0 0.0
    %7422 = vmatprep.subr.mxu0 0.0
    %7423 = vmatpush1.msra.mxu0 0.0
    %7424 = vmatprep.subr.mxu0 0.0
    %7425 = vmatpush1.msra.mxu0 0.0
    %7426 = vmatprep.subr.mxu0 0.0
    %7427 = vmatpush1.msra.mxu0 0.0
    %7428 = vmatprep.subr.mxu0 0.0
    %7429 = vmatpush1.msra.mxu0 0.0
    %7430 = vmatprep.subr.mxu0 0.0
    %7431 = vmatpush1.msra.mxu0 0.0
    %7432 = vmatprep.subr.mxu0 0.0
    %7433 = vmatpush1.msra.mxu0 0.0
    %7434 = vmatprep.subr.mxu0 0.0
    %7435 = vmatpush1.msra.mxu0 0.0
    %7436 = vmatprep.subr.mxu0 0.0
    %7437 = vmatpush1.msra.mxu0 0.0
    %7438 = vmatprep.subr.mxu0 0.0
    %7439 = vmatpush1.msra.mxu0 0.0
    %7440 = vmatprep.subr.mxu0 0.0
    %7441 = vmatpush1.msra.mxu0 0.0
    %7442 = vmatprep.subr.mxu0 0.0
    %7443 = vmatpush1.msra.mxu0 0.0
    %7444 = vmatprep.subr.mxu0 0.0
    %7445 = vmatpush1.msra.mxu0 0.0
    %7446 = vmatprep.mubr.f32.mxu0 0.0
    %7447 = vmatmul.mubr.f32.gmra.mrb[0].mxu0 %v7309
    %v7448 = vpop.f32.mrb[0].mxu0
    %v7449 = vadd.f32 0.0, %v7448
    %v7450 = vpop.f32.mrb[0].mxu0
    %v7451 = vadd.f32 0.0, %v7450
    %7452 = vdwg.mxu0
    %7453 = vmatprep.subr.mxu0 %v7018
    %7454 = vmatpush1.msra.mxu0 %v7016
    %7455 = vmatprep.subr.mxu0 0.0
    %7456 = vmatpush1.msra.mxu0 0.0
    %7457 = vmatprep.subr.mxu0 0.0
    %7458 = vmatpush1.msra.mxu0 0.0
    %7459 = vmatprep.subr.mxu0 0.0
    %7460 = vmatpush1.msra.mxu0 0.0
    %7461 = vmatprep.subr.mxu0 0.0
    %7462 = vmatpush1.msra.mxu0 0.0
    %7463 = vmatprep.subr.mxu0 0.0
    %7464 = vmatpush1.msra.mxu0 0.0
    %7465 = vmatprep.subr.mxu0 0.0
    %7466 = vmatpush1.msra.mxu0 0.0
    %7467 = vmatprep.subr.mxu0 0.0
    %7468 = vmatpush1.msra.mxu0 0.0
    %7469 = vmatprep.subr.mxu0 0.0
    %7470 = vmatpush1.msra.mxu0 0.0
    %7471 = vmatprep.subr.mxu0 0.0
    %7472 = vmatpush1.msra.mxu0 0.0
    %7473 = vmatprep.subr.mxu0 0.0
    %7474 = vmatpush1.msra.mxu0 0.0
    %7475 = vmatprep.subr.mxu0 0.0
    %7476 = vmatpush1.msra.mxu0 0.0
    %7477 = vmatprep.subr.mxu0 0.0
    %7478 = vmatpush1.msra.mxu0 0.0
    %7479 = vmatprep.subr.mxu0 0.0
    %7480 = vmatpush1.msra.mxu0 0.0
    %7481 = vmatprep.subr.mxu0 0.0
    %7482 = vmatpush1.msra.mxu0 0.0
    %7483 = vmatprep.subr.mxu0 0.0
    %7484 = vmatpush1.msra.mxu0 0.0
    %7485 = vmatprep.subr.mxu0 0.0
    %7486 = vmatpush1.msra.mxu0 0.0
    %7487 = vmatprep.subr.mxu0 0.0
    %7488 = vmatpush1.msra.mxu0 0.0
    %7489 = vmatprep.subr.mxu0 0.0
    %7490 = vmatpush1.msra.mxu0 0.0
    %7491 = vmatprep.subr.mxu0 0.0
    %7492 = vmatpush1.msra.mxu0 0.0
    %7493 = vmatprep.subr.mxu0 0.0
    %7494 = vmatpush1.msra.mxu0 0.0
    %7495 = vmatprep.subr.mxu0 0.0
    %7496 = vmatpush1.msra.mxu0 0.0
    %7497 = vmatprep.subr.mxu0 0.0
    %7498 = vmatpush1.msra.mxu0 0.0
    %7499 = vmatprep.subr.mxu0 0.0
    %7500 = vmatpush1.msra.mxu0 0.0
    %7501 = vmatprep.subr.mxu0 0.0
    %7502 = vmatpush1.msra.mxu0 0.0
    %7503 = vmatprep.subr.mxu0 0.0
    %7504 = vmatpush1.msra.mxu0 0.0
    %7505 = vmatprep.subr.mxu0 0.0
    %7506 = vmatpush1.msra.mxu0 0.0
    %7507 = vmatprep.subr.mxu0 0.0
    %7508 = vmatpush1.msra.mxu0 0.0
    %7509 = vmatprep.subr.mxu0 0.0
    %7510 = vmatpush1.msra.mxu0 0.0
    %7511 = vmatprep.subr.mxu0 0.0
    %7512 = vmatpush1.msra.mxu0 0.0
    %7513 = vmatprep.subr.mxu0 0.0
    %7514 = vmatpush1.msra.mxu0 0.0
    %7515 = vmatprep.subr.mxu0 0.0
    %7516 = vmatpush1.msra.mxu0 0.0
    %7517 = vmatprep.mubr.f32.mxu0 0.0
    %7518 = vmatmul.mubr.f32.gmra.mrb[0].mxu0 %v7309
    %v7519 = vpop.f32.mrb[0].mxu0
    %v7520 = vadd.f32 0.0, %v7519
    %v7521 = vpop.f32.mrb[0].mxu0
    %v7522 = vadd.f32 0.0, %v7521
    %7523 = vdwg.mxu0
    %7524 = vmatprep.subr.mxu0 %v7022
    %7525 = vmatpush1.msra.mxu0 %v7020
    %7526 = vmatprep.subr.mxu0 0.0
    %7527 = vmatpush1.msra.mxu0 0.0
    %7528 = vmatprep.subr.mxu0 0.0
    %7529 = vmatpush1.msra.mxu0 0.0
    %7530 = vmatprep.subr.mxu0 0.0
    %7531 = vmatpush1.msra.mxu0 0.0
    %7532 = vmatprep.subr.mxu0 0.0
    %7533 = vmatpush1.msra.mxu0 0.0
    %7534 = vmatprep.subr.mxu0 0.0
    %7535 = vmatpush1.msra.mxu0 0.0
    %7536 = vmatprep.subr.mxu0 0.0
    %7537 = vmatpush1.msra.mxu0 0.0
    %7538 = vmatprep.subr.mxu0 0.0
    %7539 = vmatpush1.msra.mxu0 0.0
    %7540 = vmatprep.subr.mxu0 0.0
    %7541 = vmatpush1.msra.mxu0 0.0
    %7542 = vmatprep.subr.mxu0 0.0
    %7543 = vmatpush1.msra.mxu0 0.0
    %7544 = vmatprep.subr.mxu0 0.0
    %7545 = vmatpush1.msra.mxu0 0.0
    %7546 = vmatprep.subr.mxu0 0.0
    %7547 = vmatpush1.msra.mxu0 0.0
    %7548 = vmatprep.subr.mxu0 0.0
    %7549 = vmatpush1.msra.mxu0 0.0
    %7550 = vmatprep.subr.mxu0 0.0
    %7551 = vmatpush1.msra.mxu0 0.0
    %7552 = vmatprep.subr.mxu0 0.0
    %7553 = vmatpush1.msra.mxu0 0.0
    %7554 = vmatprep.subr.mxu0 0.0
    %7555 = vmatpush1.msra.mxu0 0.0
    %7556 = vmatprep.subr.mxu0 0.0
    %7557 = vmatpush1.msra.mxu0 0.0
    %7558 = vmatprep.subr.mxu0 0.0
    %7559 = vmatpush1.msra.mxu0 0.0
    %7560 = vmatprep.subr.mxu0 0.0
    %7561 = vmatpush1.msra.mxu0 0.0
    %7562 = vmatprep.subr.mxu0 0.0
    %7563 = vmatpush1.msra.mxu0 0.0
    %7564 = vmatprep.subr.mxu0 0.0
    %7565 = vmatpush1.msra.mxu0 0.0
    %7566 = vmatprep.subr.mxu0 0.0
    %7567 = vmatpush1.msra.mxu0 0.0
    %7568 = vmatprep.subr.mxu0 0.0
    %7569 = vmatpush1.msra.mxu0 0.0
    %7570 = vmatprep.subr.mxu0 0.0
    %7571 = vmatpush1.msra.mxu0 0.0
    %7572 = vmatprep.subr.mxu0 0.0
    %7573 = vmatpush1.msra.mxu0 0.0
    %7574 = vmatprep.subr.mxu0 0.0
    %7575 = vmatpush1.msra.mxu0 0.0
    %7576 = vmatprep.subr.mxu0 0.0
    %7577 = vmatpush1.msra.mxu0 0.0
    %7578 = vmatprep.subr.mxu0 0.0
    %7579 = vmatpush1.msra.mxu0 0.0
    %7580 = vmatprep.subr.mxu0 0.0
    %7581 = vmatpush1.msra.mxu0 0.0
    %7582 = vmatprep.subr.mxu0 0.0
    %7583 = vmatpush1.msra.mxu0 0.0
    %7584 = vmatprep.subr.mxu0 0.0
    %7585 = vmatpush1.msra.mxu0 0.0
    %7586 = vmatprep.subr.mxu0 0.0
    %7587 = vmatpush1.msra.mxu0 0.0
    %7588 = vmatprep.mubr.f32.mxu0 0.0
    %7589 = vmatmul.mubr.f32.gmra.mrb[0].mxu0 %v7309
    %v7590 = vpop.f32.mrb[0].mxu0
    %v7591 = vadd.f32 0.0, %v7590
    %v7592 = vpop.f32.mrb[0].mxu0
    %v7593 = vadd.f32 0.0, %v7592
    %7594 = vdwg.mxu0
    %v7595 = vlaneseq
    %v7596 = vshrl.u32 %v7595, 7
    %v7597 = vsub.s32 0, %v7596
    %v7598 = vrot.slane %v7091, %v7597
    %v7599 = vlaneseq
    %v7600 = vshrl.u32 %v7599, 7
    %v7601 = vsub.s32 0, %v7600
    %v7602 = vrot.slane %v7093, %v7601
    %v7603 = vlaneseq
    %v7604 = vshrl.u32 %v7603, 7
    %v7605 = vsub.s32 0, %v7604
    %v7606 = vrot.slane %v7162, %v7605
    %v7607 = vlaneseq
    %v7608 = vshrl.u32 %v7607, 7
    %v7609 = vsub.s32 0, %v7608
    %v7610 = vrot.slane %v7164, %v7609
    %v7611 = vlaneseq
    %v7612 = vshrl.u32 %v7611, 7
    %v7613 = vsub.s32 0, %v7612
    %v7614 = vrot.slane %v7233, %v7613
    %v7615 = vlaneseq
    %v7616 = vshrl.u32 %v7615, 7
    %v7617 = vsub.s32 0, %v7616
    %v7618 = vrot.slane %v7235, %v7617
    %v7619 = vlaneseq
    %v7620 = vshrl.u32 %v7619, 7
    %v7621 = vsub.s32 0, %v7620
    %v7622 = vrot.slane %v7304, %v7621
    %v7623 = vlaneseq
    %v7624 = vshrl.u32 %v7623, 7
    %v7625 = vsub.s32 0, %v7624
    %v7626 = vrot.slane %v7306, %v7625
    %v7627 = vmul.f32 %v6045, %v7598
    %v7628 = vmul.f32 %v6047, %v7602
    %v7629 = vmul.f32 %v6127, %v7606
    %v7630 = vmul.f32 %v6129, %v7610
    %v7631 = vmul.f32 %v6209, %v7614
    %v7632 = vmul.f32 %v6211, %v7618
    %v7633 = vmul.f32 %v6291, %v7622
    %v7634 = vmul.f32 %v6293, %v7626
    %v7635 = vlaneseq
    %v7636 = vshrl.u32 %v7635, 7
    %v7637 = vsub.s32 0, %v7636
    %v7638 = vrot.slane %v7378, %v7637
    %v7639 = vlaneseq
    %v7640 = vshrl.u32 %v7639, 7
    %v7641 = vsub.s32 0, %v7640
    %v7642 = vrot.slane %v7380, %v7641
    %v7643 = vlaneseq
    %v7644 = vshrl.u32 %v7643, 7
    %v7645 = vsub.s32 0, %v7644
    %v7646 = vrot.slane %v7449, %v7645
    %v7647 = vlaneseq
    %v7648 = vshrl.u32 %v7647, 7
    %v7649 = vsub.s32 0, %v7648
    %v7650 = vrot.slane %v7451, %v7649
    %v7651 = vlaneseq
    %v7652 = vshrl.u32 %v7651, 7
    %v7653 = vsub.s32 0, %v7652
    %v7654 = vrot.slane %v7520, %v7653
    %v7655 = vlaneseq
    %v7656 = vshrl.u32 %v7655, 7
    %v7657 = vsub.s32 0, %v7656
    %v7658 = vrot.slane %v7522, %v7657
    %v7659 = vlaneseq
    %v7660 = vshrl.u32 %v7659, 7
    %v7661 = vsub.s32 0, %v7660
    %v7662 = vrot.slane %v7591, %v7661
    %v7663 = vlaneseq
    %v7664 = vshrl.u32 %v7663, 7
    %v7665 = vsub.s32 0, %v7664
    %v7666 = vrot.slane %v7593, %v7665
    %v7667 = vadd.f32 %v7627, %v7638
    %v7668 = vadd.f32 %v7628, %v7642
    %v7669 = vadd.f32 %v7629, %v7646
    %v7670 = vadd.f32 %v7630, %v7650
    %v7671 = vadd.f32 %v7631, %v7654
    %v7672 = vadd.f32 %v7632, %v7658
    %v7673 = vadd.f32 %v7633, %v7662
    %v7674 = vadd.f32 %v7634, %v7666
    %v7675 = vsub.f32 0.0, %v7667
    %v7676 = vsub.f32 0.0, %v7668
    %v7677 = vsub.f32 0.0, %v7669
    %v7678 = vsub.f32 0.0, %v7670
    %v7679 = vsub.f32 0.0, %v7671
    %v7680 = vsub.f32 0.0, %v7672
    %v7681 = vsub.f32 0.0, %v7673
    %v7682 = vsub.f32 0.0, %v7674
    %v7683 = vmul.f32 %v7675, 1.442695
    %v7684 = vpow.pop %v7683
    %v7685 = vmul.f32 %v7676, 1.442695
    %v7686 = vpow.pop %v7685
    %v7687 = vmul.f32 %v7677, 1.442695
    %v7688 = vpow.pop %v7687
    %v7689 = vmul.f32 %v7678, 1.442695
    %v7690 = vpow.pop %v7689
    %v7691 = vmul.f32 %v7679, 1.442695
    %v7692 = vpow.pop %v7691
    %v7693 = vmul.f32 %v7680, 1.442695
    %v7694 = vpow.pop %v7693
    %v7695 = vmul.f32 %v7681, 1.442695
    %v7696 = vpow.pop %v7695
    %v7697 = vmul.f32 %v7682, 1.442695
    %v7698 = vpow.pop %v7697
    %v7699 = vadd.f32 %v7684, 1.0
    %v7700 = vadd.f32 %v7686, 1.0
    %v7701 = vadd.f32 %v7688, 1.0
    %v7702 = vadd.f32 %v7690, 1.0
    %v7703 = vadd.f32 %v7692, 1.0
    %v7704 = vadd.f32 %v7694, 1.0
    %v7705 = vadd.f32 %v7696, 1.0
    %v7706 = vadd.f32 %v7698, 1.0
    %v7707 = vrcp.pop %v7699
    %v7708 = vrcp.pop %v7700
    %v7709 = vrcp.pop %v7701
    %v7710 = vrcp.pop %v7702
    %v7711 = vrcp.pop %v7703
    %v7712 = vrcp.pop %v7704
    %v7713 = vrcp.pop %v7705
    %v7714 = vrcp.pop %v7706
    %v7723 = vcombine.low %v7707, %v7708
    %v7724 = vcombine.low %v7709, %v7710
    %v7726 = vunpack.c.l.s4 1983009808
    %v7727 = vunpack.c.0.s8 %v7726
    %v7728 = vlaneseq
    %v7729 = vshrl.u32 %v7728, 7
    %v7730 = vsub.s32 %v7727, %v7729
    %v7731 = vrot.slane %v7723, %v7730
    %v7733 = vunpack.c.l.s4 1983009808
    %v7734 = vunpack.c.0.s8 %v7733
    %v7735 = vlaneseq
    %v7736 = vshrl.u32 %v7735, 7
    %v7737 = vsub.s32 %v7734, %v7736
    %v7738 = vrot.slane %v7724, %v7737
    %v7739 = vcombine.low %v7731, %v7738
    %v7740 = vcombine.low %v7711, %v7712
    %v7741 = vcombine.low %v7713, %v7714
    %v7743 = vunpack.c.l.s4 1983009808
    %v7744 = vunpack.c.0.s8 %v7743
    %v7745 = vlaneseq
    %v7746 = vshrl.u32 %v7745, 7
    %v7747 = vsub.s32 %v7744, %v7746
    %v7748 = vrot.slane %v7740, %v7747
    %v7750 = vunpack.c.l.s4 1983009808
    %v7751 = vunpack.c.0.s8 %v7750
    %v7752 = vlaneseq
    %v7753 = vshrl.u32 %v7752, 7
    %v7754 = vsub.s32 %v7751, %v7753
    %v7755 = vrot.slane %v7741, %v7754
    %v7756 = vcombine.low %v7748, %v7755
    %7759 = vst [vmem:[%s22] sm:$0xff] %v7739
    %7760 = vst [vmem:[%s22 + $0x8] sm:$0xff] %v7756
    // Predicated region
    $region90: #{vae_forward.1} parent=1 // pred_check
      _
    $region91: #{vae_forward.1} parent=1 // pred_check_branch
      %7762 = sbr.rel (0) target = $region93
    $region92: #{vae_forward.1} parent=1 // pred_region
      _
    $region93: #{vae_forward.1} parent=1 // pred_fallthru
      _
    // Predicated region
    $region94: #{vae_forward.1} parent=1 // pred_check
      _
    $region95: #{vae_forward.1} parent=1 // pred_check_branch
      %7764 = sbr.rel (0) target = $region97
    $region96: #{vae_forward.1} parent=1 // pred_region
      %s7766 = ssub.s32 16, 16
      %7767 = vsyncadd [#allocation3], %s7766
      %s7769 = sshll.u32 [#allocation2], 4
      %s7770 = int_to_ptr.vmem [resolvable:$true] %s7769
      %7772 = dma.vmem_to_hbm [thread:$0]  %s7770, 16, %s23, [#allocation3]
    $region97: #{vae_forward.1} parent=1 // pred_fallthru
      _
    // Predicated region
    $region98: #{vae_forward.1} parent=1 // pred_check
      _
    $region99: #{vae_forward.1} parent=1 // pred_check_branch
      %7774 = sbr.rel (0) target = $region101
    $region100: #{vae_forward.1} parent=1 // pred_region
      _
    $region101: #{vae_forward.1} parent=1 // pred_fallthru
      _
    // Predicated region
    $region102: #{vae_forward.1} parent=1 // pred_check
      _
    $region103: #{vae_forward.1} parent=1 // pred_check_branch
      %7776 = sbr.rel (0) target = $region105
    $region104: #{vae_forward.1} parent=1 // pred_region
      %7777 = dma.done [#allocation3], 16
    $region105: #{vae_forward.1} parent=1 // pred_fallthru
      _
    %7778 = vsyncpa [#allocation3], 1

</llo_original>
